<compile_context>
chip_gen: v5e
topology: v5e:2x2
jax: 0.10.0
libtpu: 0.0.40
codegen_flags: <defaults>
</compile_context>

<pallas_src>
import functools

import numpy as np
import jax
import jax.numpy as jnp
from jax import lax
from jax.experimental import pallas as pl
from jax.experimental.pallas import tpu as pltpu

NEG_SLOPE = 0.01  # PyTorch nn.LeakyReLU default negative_slope
HID = 1024        # hidden width of the MLPs in the reference module

PRIOR_PARAM_KEYS = (
    "w_sa1", "b_sa1", "w_sa2", "b_sa2",
    "w_gru_i", "w_gru_h", "b_gru_i", "b_gru_h",
    "w_p1", "b_p1", "w_p2", "b_p2", "w_p3", "b_p3",
)
POST_PARAM_KEYS = (
    "w_q1_h", "w_q1_obs", "b_q1", "w_q2", "b_q2", "w_q3", "b_q3",
)


# --------------------------------------------------------------------------
# Shared math helpers (used by the kernels AND the pure-JAX reference).
# Param-dict entries may be arrays or zero-arg callables (lazy loads used by
# the single-step kernel to overlap the big weight DMAs with compute).
# --------------------------------------------------------------------------
def _leaky_relu(x):
    return jnp.where(x > 0, x, NEG_SLOPE * x)


def _dot(a, w):
    # Cast activations to the weight dtype (bf16) so the MXU runs a native
    # bf16 matmul; accumulate in f32.
    return jnp.dot(a.astype(w.dtype), w, preferred_element_type=jnp.float32)


def _get(p, k):
    v = p[k]
    return v() if callable(v) else v


def _state_action(x_in, p):
    h1 = _leaky_relu(_dot(x_in, _get(p, "w_sa1")) + _get(p, "b_sa1"))
    return _dot(h1, _get(p, "w_sa2")) + _get(p, "b_sa2")


def _gru_gates_input(x, p):
    return _dot(x, _get(p, "w_gru_i")) + _get(p, "b_gru_i")     # (.., 3H)


def _gru_update(gi_r, gi_z, gi_n, gh_r, gh_z, gh_n, h):
    # PyTorch GRUCell semantics (gate order r, z, n).
    r = jax.nn.sigmoid(gi_r + gh_r)
    z = jax.nn.sigmoid(gi_z + gh_z)
    n = jnp.tanh(gi_n + r * gh_n)
    return (1.0 - z) * n + z * h


def _tanh_mean(heads, L):
    # heads = [mean | log_var] packed on lanes; tanh only the first L cols.
    col = lax.broadcasted_iota(jnp.int32, heads.shape, heads.ndim - 1)
    return jnp.where(col < L, jnp.tanh(heads), heads)


def _prior_head(rnn, p, L):
    pr = _leaky_relu(_dot(rnn, _get(p, "w_p1")) + _get(p, "b_p1"))
    pr = _leaky_relu(_dot(pr, _get(p, "w_p2")) + _get(p, "b_p2"))
    return _tanh_mean(_dot(pr, _get(p, "w_p3")) + _get(p, "b_p3"), L)


def _posterior_head(rnn, obs, p, L):
    q = _leaky_relu(_dot(rnn, _get(p, "w_q1_h")) + _dot(obs, _get(p, "w_q1_obs"))
                    + _get(p, "b_q1"))
    q = _leaky_relu(_dot(q, _get(p, "w_q2")) + _get(p, "b_q2"))
    return _tanh_mean(_dot(q, _get(p, "w_q3")) + _get(p, "b_q3"), L)


def _rssm_math(x_in, hidden, obs, p, with_posterior):
    """Single-step RSSM math. x_in = concat([latents, actions], -1).

    Returns (packed_heads, rnn_out); packed_heads is
      (B, 4L) = [prior_mean | prior_log_var | post_mean | post_log_var]
    when with_posterior, else (B, 2L) = [prior_mean | prior_log_var].
    """
    L = p["w_sa2"].shape[1]
    H = hidden.shape[-1]

    x = _state_action(x_in, p)
    gi = _gru_gates_input(x, p)                                   # (B, 3H)
    gh = _dot(hidden, _get(p, "w_gru_h")) + _get(p, "b_gru_h")    # (B, 3H)
    rnn_out = _gru_update(gi[:, 0 * H:1 * H], gi[:, 1 * H:2 * H],
                          gi[:, 2 * H:3 * H],
                          gh[:, 0 * H:1 * H], gh[:, 1 * H:2 * H],
                          gh[:, 2 * H:3 * H], hidden)

    prior = _prior_head(rnn_out, p, L)                            # (B, 2L)
    if not with_posterior:
        return prior, rnn_out
    post = _posterior_head(rnn_out, obs, p, L)                    # (B, 2L)
    return jnp.concatenate([prior, post], axis=-1), rnn_out


def _pad_lanes(heads, out_pad):
    oc = heads.shape[-1]
    if out_pad > oc:
        heads = jnp.concatenate(
            [heads, jnp.zeros(heads.shape[:-1] + (out_pad - oc,),
                              heads.dtype)], axis=-1)
    return heads


def _pad_batch(x, bp):
    b = x.shape[0]
    if b == bp:
        return x
    return jnp.pad(x, ((0, bp - b),) + ((0, 0),) * (x.ndim - 1))


def _round_up(n, m):
    return ((n + m - 1) // m) * m


# --------------------------------------------------------------------------
# Single-step kernel (matches the runnable PyTorch forward path).
# w_p2 / w_q2 (2 MiB each) arrive as HBM refs and are streamed with manual
# async copies overlapped with the earlier layers' compute.
# --------------------------------------------------------------------------
def _step_kernel(with_posterior, keys, *refs):
    if with_posterior:
        x_ref, h_ref, obs_ref = refs[:3]
        off = 3
        obs = obs_ref[...]
    else:
        x_ref, h_ref = refs[:2]
        off = 2
        obs = None
    n_p = len(keys)
    param_refs = refs[off:off + n_p]
    heads_ref = refs[off + n_p]
    scratch = refs[off + n_p + 1:]
    if with_posterior:
        w_p2_vmem, w_q2_vmem, copy_sem = scratch
    else:
        w_p2_vmem, copy_sem = scratch
        w_q2_vmem = None

    p = {}
    cp_p2 = cp_q2 = None
    for k, r in zip(keys, param_refs):
        if k == "w_p2":
            cp_p2 = pltpu.make_async_copy(r, w_p2_vmem, copy_sem.at[0])
            cp_p2.start()
        elif k == "w_q2":
            cp_q2 = pltpu.make_async_copy(r, w_q2_vmem, copy_sem.at[1])
            cp_q2.start()
        else:
            p[k] = r[...]

    def _load_p2():
        cp_p2.wait()
        return w_p2_vmem[...]
    p["w_p2"] = _load_p2

    if with_posterior:
        def _load_q2():
            cp_q2.wait()
            return w_q2_vmem[...]
        p["w_q2"] = _load_q2

    heads, _ = _rssm_math(x_ref[...], h_ref[...], obs, p, with_posterior)
    heads_ref[...] = _pad_lanes(heads, heads_ref.shape[-1]).astype(
        heads_ref.dtype)


def rssm_forward(latents, actions, rnn_hidden, params, observations=None):
    """Single-step Pallas-backed RSSM forward.

    Returns (prior_mean, prior_log_var, post_mean, post_log_var, rnn_hidden);
    rnn_hidden is the (unchanged) input, exactly as in the reference module.
    """
    B = latents.shape[0]
    L = params["w_sa2"].shape[1]
    with_posterior = observations is not None

    keys = PRIOR_PARAM_KEYS + (POST_PARAM_KEYS if with_posterior else ())
    flat_params = [params[k] for k in keys]

    Bp = max(16, _round_up(B, 16))
    x_in = jnp.concatenate([latents, actions], axis=-1).astype(jnp.float32)
    inputs = [_pad_batch(x_in, Bp),
              _pad_batch(rnn_hidden.astype(jnp.float32), Bp)]
    if with_posterior:
        inputs.append(_pad_batch(observations.astype(jnp.float32), Bp))

    out_cols = 4 * L if with_posterior else 2 * L
    out_pad = _round_up(out_cols, 128)

    param_specs = []
    for k in keys:
        if k in ("w_p2", "w_q2"):
            param_specs.append(pl.BlockSpec(memory_space=pl.ANY))
        else:
            param_specs.append(
                pl.BlockSpec(memory_space=pltpu.MemorySpace.VMEM))
    in_specs = ([pl.BlockSpec(memory_space=pltpu.MemorySpace.VMEM)]
                * len(inputs)) + param_specs

    scratch_shapes = [pltpu.VMEM(params["w_p2"].shape, params["w_p2"].dtype)]
    if with_posterior:
        scratch_shapes.append(
            pltpu.VMEM(params["w_q2"].shape, params["w_q2"].dtype))
    scratch_shapes.append(pltpu.SemaphoreType.DMA((2,)))

    heads = pl.pallas_call(
        functools.partial(_step_kernel, with_posterior, keys),
        out_shape=jax.ShapeDtypeStruct((Bp, out_pad), jnp.float32),
        in_specs=in_specs,
        out_specs=pl.BlockSpec(memory_space=pltpu.MemorySpace.VMEM),
        scratch_shapes=scratch_shapes,
        compiler_params=pltpu.CompilerParams(
            vmem_limit_bytes=32 * 1024 * 1024),
    )(*inputs, *flat_params)

    heads = heads[:B]
    prior_mean = heads[:, 0 * L:1 * L]
    prior_log_var = heads[:, 1 * L:2 * L]
    if with_posterior:
        post_mean = heads[:, 2 * L:3 * L]
        post_log_var = heads[:, 3 * L:4 * L]
    else:
        post_mean, post_log_var = prior_mean, prior_log_var
    return prior_mean, prior_log_var, post_mean, post_log_var, rnn_hidden


# --------------------------------------------------------------------------
# Multi-step rollout: single kernel invocation, no time grid.
#   Phase 1: batched (T*Bp, .) state_action_fc + GRU input projection.
#   Phase 2: sequential GRU recurrence (only h @ W_h*, elementwise update).
#   Phase 3: batched prior/posterior heads on the stacked rnn_out.
# All ~5 MiB of bf16 weights are DMA'd once and stay VMEM-resident.
# --------------------------------------------------------------------------
def _rollout_kernel(with_posterior, keys, T, *refs):
    if with_posterior:
        x_ref, h0_ref, obs_ref = refs[:3]
        off = 3
    else:
        x_ref, h0_ref = refs[:2]
        obs_ref = None
        off = 2
    n_p = len(keys)
    param_refs = refs[off:off + n_p]
    heads_ref, h_final_ref = refs[off + n_p:off + n_p + 2]
    gi_r_s, gi_z_s, gi_n_s, rnn_s = refs[off + n_p + 2:off + n_p + 6]

    p = {k: r[...] for k, r in zip(keys, param_refs)}
    Bp, H = h0_ref.shape
    L = p["w_sa2"].shape[1]

    # ---- Phase 1: all T-parallel pre-recurrence matmuls at M = T*Bp. ------
    x = _state_action(x_ref[...], p)                  # (T*Bp, L)
    gi = _gru_gates_input(x, p)                       # (T*Bp, 3H)
    # Split packed gates ONCE (outside the recurrent loop).
    gi_r_s[...] = gi[:, 0 * H:1 * H]
    gi_z_s[...] = gi[:, 1 * H:2 * H]
    gi_n_s[...] = gi[:, 2 * H:3 * H]

    # ---- Phase 2: sequential GRU recurrence. ------------------------------
    w_gh = p["w_gru_h"]
    b_gh = p["b_gru_h"]
    w_hr, w_hz, w_hn = (w_gh[:, 0 * H:1 * H], w_gh[:, 1 * H:2 * H],
                        w_gh[:, 2 * H:3 * H])
    b_hr, b_hz, b_hn = (b_gh[:, 0 * H:1 * H], b_gh[:, 1 * H:2 * H],
                        b_gh[:, 2 * H:3 * H])

    def step(t, h):
        row = pl.multiple_of(t * Bp, Bp)
        gh_r = _dot(h, w_hr) + b_hr
        gh_z = _dot(h, w_hz) + b_hz
        gh_n = _dot(h, w_hn) + b_hn
        h_new = _gru_update(gi_r_s[pl.ds(row, Bp), :],
                            gi_z_s[pl.ds(row, Bp), :],
                            gi_n_s[pl.ds(row, Bp), :],
                            gh_r, gh_z, gh_n, h)
        rnn_s[pl.ds(row, Bp), :] = h_new
        return h_new

    h_last = lax.fori_loop(0, T, step, h0_ref[...], unroll=True)
    h_final_ref[...] = h_last.astype(h_final_ref.dtype)   # written once

    # ---- Phase 3: batched heads on the stacked rnn_out. --------------------
    rnn_all = rnn_s[...]                              # (T*Bp, H)
    prior = _prior_head(rnn_all, p, L)                # (T*Bp, 2L)
    if with_posterior:
        post = _posterior_head(rnn_all, obs_ref[...], p, L)
        heads = jnp.concatenate([prior, post], axis=-1)
    else:
        heads = prior
    heads_ref[...] = _pad_lanes(heads, heads_ref.shape[-1]).astype(
        heads_ref.dtype)


def rssm_rollout(latents, actions, rnn_hidden, params, observations=None):
    """Closed-loop multi-step rollout over the sequence axis.

    latents: (B, T, L), actions: (B, T, A), observations: (B, T, E) or None,
    rnn_hidden: (B, H).  Applies the single-step RSSM forward T times, feeding
    the GRU output back as the next hidden state.

    Returns (prior_mean, prior_log_var, post_mean, post_log_var, rnn_hidden_T)
    with the first four of shape (B, T, L) and rnn_hidden_T of shape (B, H).
    """
    B, T, _ = latents.shape
    L = params["w_sa2"].shape[1]
    H = rnn_hidden.shape[-1]
    A = actions.shape[-1]
    with_posterior = observations is not None

    keys = PRIOR_PARAM_KEYS + (POST_PARAM_KEYS if with_posterior else ())
    flat_params = [params[k] for k in keys]

    Bp = max(16, _round_up(B, 16))
    x_in = jnp.concatenate([latents, actions], axis=-1).astype(jnp.float32)
    x_flat = jnp.transpose(_pad_batch(x_in, Bp), (1, 0, 2)).reshape(
        T * Bp, L + A)                                           # t-major rows
    hidden0 = _pad_batch(rnn_hidden.astype(jnp.float32), Bp)     # (Bp, H)

    inputs = [x_flat, hidden0]
    if with_posterior:
        E = observations.shape[-1]
        obs_flat = jnp.transpose(
            _pad_batch(observations.astype(jnp.float32), Bp),
            (1, 0, 2)).reshape(T * Bp, E)
        inputs.append(obs_flat)

    out_cols = 4 * L if with_posterior else 2 * L
    out_pad = _round_up(out_cols, 128)
    n_in = len(inputs) + len(flat_params)

    out_shape = (
        jax.ShapeDtypeStruct((T * Bp, out_pad), jnp.float32),
        jax.ShapeDtypeStruct((Bp, H), jnp.float32),
    )
    heads_flat, h_final = pl.pallas_call(
        functools.partial(_rollout_kernel, with_posterior, keys, T),
        out_shape=out_shape,
        in_specs=[pl.BlockSpec(memory_space=pltpu.MemorySpace.VMEM)] * n_in,
        out_specs=(pl.BlockSpec(memory_space=pltpu.MemorySpace.VMEM),
                   pl.BlockSpec(memory_space=pltpu.MemorySpace.VMEM)),
        scratch_shapes=[pltpu.VMEM((T * Bp, H), jnp.float32)
                        for _ in range(4)],
        compiler_params=pltpu.CompilerParams(
            vmem_limit_bytes=32 * 1024 * 1024),
    )(*inputs, *flat_params)

    heads_seq = heads_flat.reshape(T, Bp, out_pad)
    heads_seq = jnp.transpose(heads_seq, (1, 0, 2))[:B, :, :out_cols]
    prior_mean = heads_seq[..., 0 * L:1 * L]
    prior_log_var = heads_seq[..., 1 * L:2 * L]
    if with_posterior:
        post_mean = heads_seq[..., 2 * L:3 * L]
        post_log_var = heads_seq[..., 3 * L:4 * L]
    else:
        post_mean, post_log_var = prior_mean, prior_log_var
    return prior_mean, prior_log_var, post_mean, post_log_var, h_final[:B]


# --------------------------------------------------------------------------
# Parameter init (packed layout) and pure-JAX reference.
# --------------------------------------------------------------------------
def init_params(key, latent_dim, action_dim, rnn_hidden_dim, embedded_obs_dim,
                weight_dtype=jnp.bfloat16):
    """Deterministic synthetic params, PyTorch-style U(-1/sqrt(fan_in), +),
    pre-packed into the fused layout the kernel expects.  Weights in
    `weight_dtype` (bf16 by default); biases f32."""
    L, A, H, E = latent_dim, action_dim, rnn_hidden_dim, embedded_obs_dim
    keys = iter(jax.random.split(key, 32))

    def w(shape, fan_in):
        bound = 1.0 / np.sqrt(fan_in)
        return jax.random.uniform(next(keys), shape, jnp.float32,
                                  -bound, bound).astype(weight_dtype)

    def b(shape, fan_in):
        bound = 1.0 / np.sqrt(fan_in)
        return jax.random.uniform(next(keys), shape, jnp.float32,
                                  -bound, bound)

    p = {}
    # state_action_fc: Linear(L+A, 1024) -> LeakyReLU -> Linear(1024, L)
    p["w_sa1"] = w((L + A, HID), L + A)
    p["b_sa1"] = b((1, HID), L + A)
    p["w_sa2"] = w((HID, L), HID)
    p["b_sa2"] = b((1, L), HID)
    # GRUCell(L, H): gates packed on lanes in PyTorch order (r, z, n).
    p["w_gru_i"] = w((L, 3 * H), H)
    p["w_gru_h"] = w((H, 3 * H), H)
    p["b_gru_i"] = b((1, 3 * H), H)
    p["b_gru_h"] = b((1, 3 * H), H)
    # prior_fc: Linear(H,1024)->LReLU->Linear(1024,1024)->LReLU->Linear(1024,2L)
    p["w_p1"] = w((H, HID), H)
    p["b_p1"] = b((1, HID), H)
    p["w_p2"] = w((HID, HID), HID)
    p["b_p2"] = b((1, HID), HID)
    p["w_p3"] = w((HID, 2 * L), HID)      # [mean | log_var] packed
    p["b_p3"] = b((1, 2 * L), HID)
    # posterior_fc (layer-1 weight split over the cat([rnn_out, obs]) input)
    p["w_q1_h"] = w((H, HID), H + E)
    p["w_q1_obs"] = w((E, HID), H + E)
    p["b_q1"] = b((1, HID), H + E)
    p["w_q2"] = w((HID, HID), HID)
    p["b_q2"] = b((1, HID), HID)
    p["w_q3"] = w((HID, 2 * L), HID)
    p["b_q3"] = b((1, 2 * L), HID)
    return p


def rssm_reference(latents, actions, rnn_hidden, params, observations=None):
    """Pure-JAX (XLA) reference using the same packed bf16 params."""
    L = params["w_sa2"].shape[1]
    with_posterior = observations is not None
    x_in = jnp.concatenate([latents, actions], axis=-1).astype(jnp.float32)
    obs = None if observations is None else observations.astype(jnp.float32)
    heads, rnn_out = _rssm_math(x_in, rnn_hidden.astype(jnp.float32), obs,
                                params, with_posterior)
    prior_mean = heads[:, 0 * L:1 * L]
    prior_log_var = heads[:, 1 * L:2 * L]
    if with_posterior:
        post_mean = heads[:, 2 * L:3 * L]
        post_log_var = heads[:, 3 * L:4 * L]
    else:
        post_mean, post_log_var = prior_mean, prior_log_var
    return (prior_mean, prior_log_var, post_mean, post_log_var, rnn_hidden,
            rnn_out)


def _rollout_reference(lat_seq, act_seq, rnn_hidden, params, obs_seq):
    """Python-loop closed-loop reference, same bf16 params."""
    L = params["w_sa2"].shape[1]
    with_posterior = obs_seq is not None
    h = rnn_hidden.astype(jnp.float32)
    heads_list = []
    T = lat_seq.shape[1]
    for t in range(T):
        x_t = jnp.concatenate([lat_seq[:, t], act_seq[:, t]],
                              axis=-1).astype(jnp.float32)
        o_t = None if obs_seq is None else obs_seq[:, t].astype(jnp.float32)
        heads_t, h = _rssm_math(x_t, h, o_t, params, with_posterior)
        heads_list.append(heads_t)
    heads_all = jnp.stack(heads_list, axis=1)          # (B, T, 2L or 4L)
    prior_mean = heads_all[..., 0 * L:1 * L]
    prior_log_var = heads_all[..., 1 * L:2 * L]
    if with_posterior:
        post_mean = heads_all[..., 2 * L:3 * L]
        post_log_var = heads_all[..., 3 * L:4 * L]
    else:
        post_mean, post_log_var = prior_mean, prior_log_var
    return prior_mean, prior_log_var, post_mean, post_log_var, h


if __name__ == "__main__":
    latent_dim, action_dim, rnn_hidden_dim, embedded_obs_dim = 32, 8, 32, 64
    batch, seq_len = 2, 8

    key = jax.random.PRNGKey(0)
    k_p, k_l, k_a, k_h, k_o = jax.random.split(key, 5)

    params = init_params(k_p, latent_dim, action_dim, rnn_hidden_dim,
                         embedded_obs_dim)

    latents = jax.random.normal(k_l, (batch, latent_dim), jnp.float32)
    actions = jax.random.normal(k_a, (batch, action_dim), jnp.float32)
    rnn_hidden = jax.random.normal(k_h, (batch, rnn_hidden_dim), jnp.float32)
    observations = jax.random.normal(k_o, (batch, embedded_obs_dim),
                                     jnp.float32)

    names = ["prior_mean", "prior_log_var", "post_mean", "post_log_var",
             "rnn_hidden"]

    # --- single-step, with observations (posterior branch active) ----------
    outs = jax.block_until_ready(
        rssm_forward(latents, actions, rnn_hidden, params, observations))
    ref = rssm_reference(latents, actions, rnn_hidden, params, observations)
    for name, o, r in zip(names, outs, ref[:5]):
        o_np, r_np = np.asarray(o), np.asarray(r)
        assert np.all(np.isfinite(o_np)), f"{name} has non-finite values"
        np.testing.assert_allclose(o_np, r_np, rtol=2e-2, atol=2e-2,
                                   err_msg=f"mismatch in {name}")

    # --- single-step, observations=None (prior-only kernel variant) --------
    outs_np = jax.block_until_ready(
        rssm_forward(latents, actions, rnn_hidden, params, None))
    ref_np = rssm_reference(latents, actions, rnn_hidden, params, None)
    for name, o, r in zip(names, outs_np, ref_np[:5]):
        np.testing.assert_allclose(np.asarray(o), np.asarray(r),
                                   rtol=2e-2, atol=2e-2,
                                   err_msg=f"mismatch (no-obs) in {name}")

    # --- multi-step rollouts (with and without observations) ---------------
    k_ls, k_as, k_os = jax.random.split(jax.random.PRNGKey(1), 3)
    lat_seq = jax.random.normal(k_ls, (batch, seq_len, latent_dim),
                                jnp.float32)
    act_seq = jax.random.normal(k_as, (batch, seq_len, action_dim),
                                jnp.float32)
    obs_seq = jax.random.normal(k_os, (batch, seq_len, embedded_obs_dim),
                                jnp.float32)

    roll_names = ["prior_mean_seq", "prior_log_var_seq", "post_mean_seq",
                  "post_log_var_seq", "rnn_hidden_final"]
    for obs_arg, tag in ((obs_seq, "obs"), (None, "no-obs")):
        roll = jax.block_until_ready(
            rssm_rollout(lat_seq, act_seq, rnn_hidden, params, obs_arg))
        roll_ref = _rollout_reference(lat_seq, act_seq, rnn_hidden, params,
                                      obs_arg)
        for name, o, r in zip(roll_names, roll, roll_ref):
            o_np, r_np = np.asarray(o), np.asarray(r)
            assert np.all(np.isfinite(o_np)), \
                f"{name} ({tag}) has non-finite values"
            np.testing.assert_allclose(o_np, r_np, rtol=2e-2, atol=2e-2,
                                       err_msg=f"mismatch ({tag}) in {name}")

    print("KERNEL_OK")
</pallas_src>

<mosaic_0001>
module attributes {stable_mosaic.version = 11 : i64} {
  func.func @_step_kernel(%arg0: memref<16x40xf32, #tpu.memory_space<vmem>>, %arg1: memref<16x32xf32, #tpu.memory_space<vmem>>, %arg2: memref<16x64xf32, #tpu.memory_space<vmem>>, %arg3: memref<40x1024xbf16, #tpu.memory_space<vmem>>, %arg4: memref<1x1024xf32, #tpu.memory_space<vmem>>, %arg5: memref<1024x32xbf16, #tpu.memory_space<vmem>>, %arg6: memref<1x32xf32, #tpu.memory_space<vmem>>, %arg7: memref<32x96xbf16, #tpu.memory_space<vmem>>, %arg8: memref<32x96xbf16, #tpu.memory_space<vmem>>, %arg9: memref<1x96xf32, #tpu.memory_space<vmem>>, %arg10: memref<1x96xf32, #tpu.memory_space<vmem>>, %arg11: memref<32x1024xbf16, #tpu.memory_space<vmem>>, %arg12: memref<1x1024xf32, #tpu.memory_space<vmem>>, %arg13: memref<1024x1024xbf16, #tpu.memory_space<any>>, %arg14: memref<1x1024xf32, #tpu.memory_space<vmem>>, %arg15: memref<1024x64xbf16, #tpu.memory_space<vmem>>, %arg16: memref<1x64xf32, #tpu.memory_space<vmem>>, %arg17: memref<32x1024xbf16, #tpu.memory_space<vmem>>, %arg18: memref<64x1024xbf16, #tpu.memory_space<vmem>>, %arg19: memref<1x1024xf32, #tpu.memory_space<vmem>>, %arg20: memref<1024x1024xbf16, #tpu.memory_space<any>>, %arg21: memref<1x1024xf32, #tpu.memory_space<vmem>>, %arg22: memref<1024x64xbf16, #tpu.memory_space<vmem>>, %arg23: memref<1x64xf32, #tpu.memory_space<vmem>>, %arg24: memref<16x128xf32, #tpu.memory_space<vmem>>, %arg25: memref<1024x1024xbf16, #tpu.memory_space<vmem>>, %arg26: memref<1024x1024xbf16, #tpu.memory_space<vmem>>, %arg27: memref<2x!tpu.dma_semaphore, #tpu.memory_space<semaphore_mem>>) attributes {dimension_semantics = [], scalar_prefetch = 0 : i64, scratch_operands = 3 : i64, tpu.core_type = #tpu.core_type<tc>} {
    %c0 = arith.constant 0 : index
    %c0_0 = arith.constant 0 : index
    %0 = vector.load %arg2[%c0, %c0_0] : memref<16x64xf32, #tpu.memory_space<vmem>>, vector<16x64xf32>
    %c0_1 = arith.constant 0 : index
    %c0_2 = arith.constant 0 : index
    %1 = vector.load %arg3[%c0_1, %c0_2] : memref<40x1024xbf16, #tpu.memory_space<vmem>>, vector<40x1024xbf16>
    %c0_3 = arith.constant 0 : index
    %c0_4 = arith.constant 0 : index
    %2 = vector.load %arg4[%c0_3, %c0_4] : memref<1x1024xf32, #tpu.memory_space<vmem>>, vector<1x1024xf32>
    %c0_5 = arith.constant 0 : index
    %c0_6 = arith.constant 0 : index
    %3 = vector.load %arg5[%c0_5, %c0_6] : memref<1024x32xbf16, #tpu.memory_space<vmem>>, vector<1024x32xbf16>
    %c0_7 = arith.constant 0 : index
    %c0_8 = arith.constant 0 : index
    %4 = vector.load %arg6[%c0_7, %c0_8] : memref<1x32xf32, #tpu.memory_space<vmem>>, vector<1x32xf32>
    %c0_9 = arith.constant 0 : index
    %c0_10 = arith.constant 0 : index
    %5 = vector.load %arg7[%c0_9, %c0_10] : memref<32x96xbf16, #tpu.memory_space<vmem>>, vector<32x96xbf16>
    %c0_11 = arith.constant 0 : index
    %c0_12 = arith.constant 0 : index
    %6 = vector.load %arg8[%c0_11, %c0_12] : memref<32x96xbf16, #tpu.memory_space<vmem>>, vector<32x96xbf16>
    %c0_13 = arith.constant 0 : index
    %c0_14 = arith.constant 0 : index
    %7 = vector.load %arg9[%c0_13, %c0_14] : memref<1x96xf32, #tpu.memory_space<vmem>>, vector<1x96xf32>
    %c0_15 = arith.constant 0 : index
    %c0_16 = arith.constant 0 : index
    %8 = vector.load %arg10[%c0_15, %c0_16] : memref<1x96xf32, #tpu.memory_space<vmem>>, vector<1x96xf32>
    %c0_17 = arith.constant 0 : index
    %c0_18 = arith.constant 0 : index
    %9 = vector.load %arg11[%c0_17, %c0_18] : memref<32x1024xbf16, #tpu.memory_space<vmem>>, vector<32x1024xbf16>
    %c0_19 = arith.constant 0 : index
    %c0_20 = arith.constant 0 : index
    %10 = vector.load %arg12[%c0_19, %c0_20] : memref<1x1024xf32, #tpu.memory_space<vmem>>, vector<1x1024xf32>
    %c0_i32 = arith.constant 0 : i32
    %11 = tpu.memref_slice %arg27[%c0_i32] : memref<2x!tpu.dma_semaphore, #tpu.memory_space<semaphore_mem>> -> memref<1x!tpu.dma_semaphore, #tpu.memory_space<semaphore_mem>>
    %12 = tpu.memref_squeeze %11 : memref<1x!tpu.dma_semaphore, #tpu.memory_space<semaphore_mem>> -> memref<!tpu.dma_semaphore, #tpu.memory_space<semaphore_mem>>
    tpu.enqueue_dma source(%arg13 : memref<1024x1024xbf16, #tpu.memory_space<any>>) target(%arg25 : memref<1024x1024xbf16, #tpu.memory_space<vmem>>) target_semaphore(%12 : memref<!tpu.dma_semaphore, #tpu.memory_space<semaphore_mem>>)
    %c0_21 = arith.constant 0 : index
    %c0_22 = arith.constant 0 : index
    %13 = vector.load %arg14[%c0_21, %c0_22] : memref<1x1024xf32, #tpu.memory_space<vmem>>, vector<1x1024xf32>
    %c0_23 = arith.constant 0 : index
    %c0_24 = arith.constant 0 : index
    %14 = vector.load %arg15[%c0_23, %c0_24] : memref<1024x64xbf16, #tpu.memory_space<vmem>>, vector<1024x64xbf16>
    %c0_25 = arith.constant 0 : index
    %c0_26 = arith.constant 0 : index
    %15 = vector.load %arg16[%c0_25, %c0_26] : memref<1x64xf32, #tpu.memory_space<vmem>>, vector<1x64xf32>
    %c0_27 = arith.constant 0 : index
    %c0_28 = arith.constant 0 : index
    %16 = vector.load %arg17[%c0_27, %c0_28] : memref<32x1024xbf16, #tpu.memory_space<vmem>>, vector<32x1024xbf16>
    %c0_29 = arith.constant 0 : index
    %c0_30 = arith.constant 0 : index
    %17 = vector.load %arg18[%c0_29, %c0_30] : memref<64x1024xbf16, #tpu.memory_space<vmem>>, vector<64x1024xbf16>
    %c0_31 = arith.constant 0 : index
    %c0_32 = arith.constant 0 : index
    %18 = vector.load %arg19[%c0_31, %c0_32] : memref<1x1024xf32, #tpu.memory_space<vmem>>, vector<1x1024xf32>
    %c1_i32 = arith.constant 1 : i32
    %19 = tpu.memref_slice %arg27[%c1_i32] : memref<2x!tpu.dma_semaphore, #tpu.memory_space<semaphore_mem>> -> memref<1x!tpu.dma_semaphore, #tpu.memory_space<semaphore_mem>>
    %20 = tpu.memref_squeeze %19 : memref<1x!tpu.dma_semaphore, #tpu.memory_space<semaphore_mem>> -> memref<!tpu.dma_semaphore, #tpu.memory_space<semaphore_mem>>
    tpu.enqueue_dma source(%arg20 : memref<1024x1024xbf16, #tpu.memory_space<any>>) target(%arg26 : memref<1024x1024xbf16, #tpu.memory_space<vmem>>) target_semaphore(%20 : memref<!tpu.dma_semaphore, #tpu.memory_space<semaphore_mem>>)
    %c0_33 = arith.constant 0 : index
    %c0_34 = arith.constant 0 : index
    %21 = vector.load %arg21[%c0_33, %c0_34] : memref<1x1024xf32, #tpu.memory_space<vmem>>, vector<1x1024xf32>
    %c0_35 = arith.constant 0 : index
    %c0_36 = arith.constant 0 : index
    %22 = vector.load %arg22[%c0_35, %c0_36] : memref<1024x64xbf16, #tpu.memory_space<vmem>>, vector<1024x64xbf16>
    %c0_37 = arith.constant 0 : index
    %c0_38 = arith.constant 0 : index
    %23 = vector.load %arg23[%c0_37, %c0_38] : memref<1x64xf32, #tpu.memory_space<vmem>>, vector<1x64xf32>
    %c0_39 = arith.constant 0 : index
    %c0_40 = arith.constant 0 : index
    %24 = vector.load %arg0[%c0_39, %c0_40] : memref<16x40xf32, #tpu.memory_space<vmem>>, vector<16x40xf32>
    %c0_41 = arith.constant 0 : index
    %c0_42 = arith.constant 0 : index
    %25 = vector.load %arg1[%c0_41, %c0_42] : memref<16x32xf32, #tpu.memory_space<vmem>>, vector<16x32xf32>
    %26 = arith.truncf %24 : vector<16x40xf32> to vector<16x40xbf16>
    %cst = arith.constant dense<0.000000e+00> : vector<16x1024xf32>
    %27 = tpu.matmul %26, %1, %cst {dimension_numbers = #tpu.dot_dimension_numbers<[1], [0], [0], [1], [0, 0, 1, 1], [], []>} : vector<16x40xbf16>, vector<40x1024xbf16>, vector<16x1024xf32> -> vector<16x1024xf32>
    %28 = vector.broadcast %2 : vector<1x1024xf32> to vector<16x1024xf32>
    %29 = arith.addf %27, %28 : vector<16x1024xf32>
    %cst_43 = arith.constant 0.000000e+00 : f32
    %30 = vector.broadcast %cst_43 : f32 to vector<16x1024xf32>
    %31 = arith.cmpf ogt, %29, %30 : vector<16x1024xf32>
    %cst_44 = arith.constant 0.00999999977 : f32
    %32 = vector.broadcast %cst_44 : f32 to vector<16x1024xf32>
    %33 = arith.mulf %32, %29 : vector<16x1024xf32>
    %34 = arith.select %31, %29, %33 : vector<16x1024xi1>, vector<16x1024xf32>
    %35 = arith.truncf %34 : vector<16x1024xf32> to vector<16x1024xbf16>
    %cst_45 = arith.constant dense<0.000000e+00> : vector<16x32xf32>
    %36 = tpu.matmul %35, %3, %cst_45 {dimension_numbers = #tpu.dot_dimension_numbers<[1], [0], [0], [1], [0, 0, 1, 1], [], []>} : vector<16x1024xbf16>, vector<1024x32xbf16>, vector<16x32xf32> -> vector<16x32xf32>
    %37 = vector.broadcast %4 : vector<1x32xf32> to vector<16x32xf32>
    %38 = arith.addf %36, %37 : vector<16x32xf32>
    %39 = arith.truncf %38 : vector<16x32xf32> to vector<16x32xbf16>
    %cst_46 = arith.constant dense<0.000000e+00> : vector<16x96xf32>
    %40 = tpu.matmul %39, %5, %cst_46 {dimension_numbers = #tpu.dot_dimension_numbers<[1], [0], [0], [1], [0, 0, 1, 1], [], []>} : vector<16x32xbf16>, vector<32x96xbf16>, vector<16x96xf32> -> vector<16x96xf32>
    %41 = vector.broadcast %7 : vector<1x96xf32> to vector<16x96xf32>
    %42 = arith.addf %40, %41 : vector<16x96xf32>
    %43 = arith.truncf %25 : vector<16x32xf32> to vector<16x32xbf16>
    %cst_47 = arith.constant dense<0.000000e+00> : vector<16x96xf32>
    %44 = tpu.matmul %43, %6, %cst_47 {dimension_numbers = #tpu.dot_dimension_numbers<[1], [0], [0], [1], [0, 0, 1, 1], [], []>} : vector<16x32xbf16>, vector<32x96xbf16>, vector<16x96xf32> -> vector<16x96xf32>
    %45 = vector.broadcast %8 : vector<1x96xf32> to vector<16x96xf32>
    %46 = arith.addf %44, %45 : vector<16x96xf32>
    %47 = vector.extract_strided_slice %42 {offsets = [0, 0], sizes = [16, 32], strides = [1, 1]} : vector<16x96xf32> to vector<16x32xf32>
    %48 = vector.extract_strided_slice %42 {offsets = [0, 32], sizes = [16, 32], strides = [1, 1]} : vector<16x96xf32> to vector<16x32xf32>
    %49 = vector.extract_strided_slice %42 {offsets = [0, 64], sizes = [16, 32], strides = [1, 1]} : vector<16x96xf32> to vector<16x32xf32>
    %50 = vector.extract_strided_slice %46 {offsets = [0, 0], sizes = [16, 32], strides = [1, 1]} : vector<16x96xf32> to vector<16x32xf32>
    %51 = vector.extract_strided_slice %46 {offsets = [0, 32], sizes = [16, 32], strides = [1, 1]} : vector<16x96xf32> to vector<16x32xf32>
    %52 = vector.extract_strided_slice %46 {offsets = [0, 64], sizes = [16, 32], strides = [1, 1]} : vector<16x96xf32> to vector<16x32xf32>
    %53 = arith.addf %47, %50 : vector<16x32xf32>
    %54 = arith.negf %53 : vector<16x32xf32>
    %55 = math.exp %54 : vector<16x32xf32>
    %cst_48 = arith.constant 1.000000e+00 : f32
    %56 = vector.broadcast %cst_48 : f32 to vector<16x32xf32>
    %57 = arith.addf %56, %55 : vector<16x32xf32>
    %58 = arith.divf %56, %57 : vector<16x32xf32>
    %59 = arith.addf %48, %51 : vector<16x32xf32>
    %60 = arith.negf %59 : vector<16x32xf32>
    %61 = math.exp %60 : vector<16x32xf32>
    %cst_49 = arith.constant 1.000000e+00 : f32
    %62 = vector.broadcast %cst_49 : f32 to vector<16x32xf32>
    %63 = arith.addf %62, %61 : vector<16x32xf32>
    %64 = arith.divf %62, %63 : vector<16x32xf32>
    %65 = arith.mulf %58, %52 : vector<16x32xf32>
    %66 = arith.addf %49, %65 : vector<16x32xf32>
    %67 = math.tanh %66 : vector<16x32xf32>
    %cst_50 = arith.constant 1.000000e+00 : f32
    %68 = vector.broadcast %cst_50 : f32 to vector<16x32xf32>
    %69 = arith.subf %68, %64 : vector<16x32xf32>
    %70 = arith.mulf %69, %67 : vector<16x32xf32>
    %71 = arith.mulf %64, %25 : vector<16x32xf32>
    %72 = arith.addf %70, %71 : vector<16x32xf32>
    %73 = arith.truncf %72 : vector<16x32xf32> to vector<16x32xbf16>
    %cst_51 = arith.constant dense<0.000000e+00> : vector<16x1024xf32>
    %74 = tpu.matmul %73, %9, %cst_51 {dimension_numbers = #tpu.dot_dimension_numbers<[1], [0], [0], [1], [0, 0, 1, 1], [], []>} : vector<16x32xbf16>, vector<32x1024xbf16>, vector<16x1024xf32> -> vector<16x1024xf32>
    %75 = vector.broadcast %10 : vector<1x1024xf32> to vector<16x1024xf32>
    %76 = arith.addf %74, %75 : vector<16x1024xf32>
    %cst_52 = arith.constant 0.000000e+00 : f32
    %77 = vector.broadcast %cst_52 : f32 to vector<16x1024xf32>
    %78 = arith.cmpf ogt, %76, %77 : vector<16x1024xf32>
    %cst_53 = arith.constant 0.00999999977 : f32
    %79 = vector.broadcast %cst_53 : f32 to vector<16x1024xf32>
    %80 = arith.mulf %79, %76 : vector<16x1024xf32>
    %81 = arith.select %78, %76, %80 : vector<16x1024xi1>, vector<16x1024xf32>
    %c0_i32_54 = arith.constant 0 : i32
    %82 = tpu.memref_slice %arg27[%c0_i32_54] : memref<2x!tpu.dma_semaphore, #tpu.memory_space<semaphore_mem>> -> memref<1x!tpu.dma_semaphore, #tpu.memory_space<semaphore_mem>>
    %83 = tpu.memref_squeeze %82 : memref<1x!tpu.dma_semaphore, #tpu.memory_space<semaphore_mem>> -> memref<!tpu.dma_semaphore, #tpu.memory_space<semaphore_mem>>
    tpu.wait_dma2 semaphore(%83 : memref<!tpu.dma_semaphore, #tpu.memory_space<semaphore_mem>>) src(%arg13 : memref<1024x1024xbf16, #tpu.memory_space<any>>) dst(%arg25 : memref<1024x1024xbf16, #tpu.memory_space<vmem>>)
    %c0_55 = arith.constant 0 : index
    %c0_56 = arith.constant 0 : index
    %84 = vector.load %arg25[%c0_55, %c0_56] : memref<1024x1024xbf16, #tpu.memory_space<vmem>>, vector<1024x1024xbf16>
    %85 = arith.truncf %81 : vector<16x1024xf32> to vector<16x1024xbf16>
    %cst_57 = arith.constant dense<0.000000e+00> : vector<16x1024xf32>
    %86 = tpu.matmul %85, %84, %cst_57 {dimension_numbers = #tpu.dot_dimension_numbers<[1], [0], [0], [1], [0, 0, 1, 1], [], []>} : vector<16x1024xbf16>, vector<1024x1024xbf16>, vector<16x1024xf32> -> vector<16x1024xf32>
    %87 = vector.broadcast %13 : vector<1x1024xf32> to vector<16x1024xf32>
    %88 = arith.addf %86, %87 : vector<16x1024xf32>
    %cst_58 = arith.constant 0.000000e+00 : f32
    %89 = vector.broadcast %cst_58 : f32 to vector<16x1024xf32>
    %90 = arith.cmpf ogt, %88, %89 : vector<16x1024xf32>
    %cst_59 = arith.constant 0.00999999977 : f32
    %91 = vector.broadcast %cst_59 : f32 to vector<16x1024xf32>
    %92 = arith.mulf %91, %88 : vector<16x1024xf32>
    %93 = arith.select %90, %88, %92 : vector<16x1024xi1>, vector<16x1024xf32>
    %94 = arith.truncf %93 : vector<16x1024xf32> to vector<16x1024xbf16>
    %cst_60 = arith.constant dense<0.000000e+00> : vector<16x64xf32>
    %95 = tpu.matmul %94, %14, %cst_60 {dimension_numbers = #tpu.dot_dimension_numbers<[1], [0], [0], [1], [0, 0, 1, 1], [], []>} : vector<16x1024xbf16>, vector<1024x64xbf16>, vector<16x64xf32> -> vector<16x64xf32>
    %96 = vector.broadcast %15 : vector<1x64xf32> to vector<16x64xf32>
    %97 = arith.addf %95, %96 : vector<16x64xf32>
    %98 = tpu.iota {dimensions = array<i32: 1>} : vector<16x64xi32>
    %c32_i32 = arith.constant 32 : i32
    %99 = vector.broadcast %c32_i32 : i32 to vector<16x64xi32>
    %100 = arith.cmpi slt, %98, %99 : vector<16x64xi32>
    %101 = math.tanh %97 : vector<16x64xf32>
    %102 = arith.select %100, %101, %97 : vector<16x64xi1>, vector<16x64xf32>
    %103 = arith.truncf %72 : vector<16x32xf32> to vector<16x32xbf16>
    %cst_61 = arith.constant dense<0.000000e+00> : vector<16x1024xf32>
    %104 = tpu.matmul %103, %16, %cst_61 {dimension_numbers = #tpu.dot_dimension_numbers<[1], [0], [0], [1], [0, 0, 1, 1], [], []>} : vector<16x32xbf16>, vector<32x1024xbf16>, vector<16x1024xf32> -> vector<16x1024xf32>
    %105 = arith.truncf %0 : vector<16x64xf32> to vector<16x64xbf16>
    %cst_62 = arith.constant dense<0.000000e+00> : vector<16x1024xf32>
    %106 = tpu.matmul %105, %17, %cst_62 {dimension_numbers = #tpu.dot_dimension_numbers<[1], [0], [0], [1], [0, 0, 1, 1], [], []>} : vector<16x64xbf16>, vector<64x1024xbf16>, vector<16x1024xf32> -> vector<16x1024xf32>
    %107 = arith.addf %104, %106 : vector<16x1024xf32>
    %108 = vector.broadcast %18 : vector<1x1024xf32> to vector<16x1024xf32>
    %109 = arith.addf %107, %108 : vector<16x1024xf32>
    %cst_63 = arith.constant 0.000000e+00 : f32
    %110 = vector.broadcast %cst_63 : f32 to vector<16x1024xf32>
    %111 = arith.cmpf ogt, %109, %110 : vector<16x1024xf32>
    %cst_64 = arith.constant 0.00999999977 : f32
    %112 = vector.broadcast %cst_64 : f32 to vector<16x1024xf32>
    %113 = arith.mulf %112, %109 : vector<16x1024xf32>
    %114 = arith.select %111, %109, %113 : vector<16x1024xi1>, vector<16x1024xf32>
    %c1_i32_65 = arith.constant 1 : i32
    %115 = tpu.memref_slice %arg27[%c1_i32_65] : memref<2x!tpu.dma_semaphore, #tpu.memory_space<semaphore_mem>> -> memref<1x!tpu.dma_semaphore, #tpu.memory_space<semaphore_mem>>
    %116 = tpu.memref_squeeze %115 : memref<1x!tpu.dma_semaphore, #tpu.memory_space<semaphore_mem>> -> memref<!tpu.dma_semaphore, #tpu.memory_space<semaphore_mem>>
    tpu.wait_dma2 semaphore(%116 : memref<!tpu.dma_semaphore, #tpu.memory_space<semaphore_mem>>) src(%arg20 : memref<1024x1024xbf16, #tpu.memory_space<any>>) dst(%arg26 : memref<1024x1024xbf16, #tpu.memory_space<vmem>>)
    %c0_66 = arith.constant 0 : index
    %c0_67 = arith.constant 0 : index
    %117 = vector.load %arg26[%c0_66, %c0_67] : memref<1024x1024xbf16, #tpu.memory_space<vmem>>, vector<1024x1024xbf16>
    %118 = arith.truncf %114 : vector<16x1024xf32> to vector<16x1024xbf16>
    %cst_68 = arith.constant dense<0.000000e+00> : vector<16x1024xf32>
    %119 = tpu.matmul %118, %117, %cst_68 {dimension_numbers = #tpu.dot_dimension_numbers<[1], [0], [0], [1], [0, 0, 1, 1], [], []>} : vector<16x1024xbf16>, vector<1024x1024xbf16>, vector<16x1024xf32> -> vector<16x1024xf32>
    %120 = vector.broadcast %21 : vector<1x1024xf32> to vector<16x1024xf32>
    %121 = arith.addf %119, %120 : vector<16x1024xf32>
    %cst_69 = arith.constant 0.000000e+00 : f32
    %122 = vector.broadcast %cst_69 : f32 to vector<16x1024xf32>
    %123 = arith.cmpf ogt, %121, %122 : vector<16x1024xf32>
    %cst_70 = arith.constant 0.00999999977 : f32
    %124 = vector.broadcast %cst_70 : f32 to vector<16x1024xf32>
    %125 = arith.mulf %124, %121 : vector<16x1024xf32>
    %126 = arith.select %123, %121, %125 : vector<16x1024xi1>, vector<16x1024xf32>
    %127 = arith.truncf %126 : vector<16x1024xf32> to vector<16x1024xbf16>
    %cst_71 = arith.constant dense<0.000000e+00> : vector<16x64xf32>
    %128 = tpu.matmul %127, %22, %cst_71 {dimension_numbers = #tpu.dot_dimension_numbers<[1], [0], [0], [1], [0, 0, 1, 1], [], []>} : vector<16x1024xbf16>, vector<1024x64xbf16>, vector<16x64xf32> -> vector<16x64xf32>
    %129 = vector.broadcast %23 : vector<1x64xf32> to vector<16x64xf32>
    %130 = arith.addf %128, %129 : vector<16x64xf32>
    %131 = tpu.iota {dimensions = array<i32: 1>} : vector<16x64xi32>
    %c32_i32_72 = arith.constant 32 : i32
    %132 = vector.broadcast %c32_i32_72 : i32 to vector<16x64xi32>
    %133 = arith.cmpi slt, %131, %132 : vector<16x64xi32>
    %134 = math.tanh %130 : vector<16x64xf32>
    %135 = arith.select %133, %134, %130 : vector<16x64xi1>, vector<16x64xf32>
    %136 = tpu.concatenate %102, %135 in 1 : vector<16x64xf32>, vector<16x64xf32> -> vector<16x128xf32>
    %c0_73 = arith.constant 0 : index
    %c0_74 = arith.constant 0 : index
    %137 = vector.load %arg24[%c0_73, %c0_74] : memref<16x128xf32, #tpu.memory_space<vmem>>, vector<16x128xf32>
    tpu.vector_store %arg24[%c0_73, %c0_74], %136 {strides = array<i32>} : memref<16x128xf32, #tpu.memory_space<vmem>>, vector<16x128xf32>,
    return
  }
}

</mosaic_0001>

<llo_original>
// kernel: tpu_custom_call.1
$region0: #{tpu_custom_call.1}
  #allocation0 [shape = 'u32[]', space=smem, size = 0x4, offset = 0x4, fixed_abs, tag = 'smem constant byte address 0x4 - core index']
  #allocation1 [shape = 'u32[72,128]{1,0:T(1,128)}', space=vmem, size = 0x9000, scoped, tag = 'internal scratch']
  #allocation2 [shape = 'bf16[1024,1024]{1,0:T(8,128)(2,1)}', space=vmem, size = 0x200000, scoped, tag = 'scratch operand']
  #allocation3 [shape = 'bf16[1024,1024]{1,0:T(8,128)(2,1)}', space=vmem, size = 0x200000, scoped, tag = 'scratch operand']
  #allocation4 [shape = 's32[2]{0}', space=sflag, size = 0x8, scoped, tag = 'scratch operand']
  #allocation36 [shape = 's32[]', space=sflag, size = 0x4, offset = 0, fixed_abs, tag = 'sflag constant byte address 0x0 - dummy sync flag']
  #allocation37 [shape = 's32[]', space=sflag, size = 0x4, offset = 0, fixed_abs, tag = 'sflag constant byte address 0x0 - dummy sync flag']
  #allocation38 [shape = 'u32[]', space=smem, size = 0x4, offset = 0x44, fixed_abs, tag = 'smem constant byte address 0x44 - assertion arg 0']
  #allocation39 [shape = 'u32[]', space=smem, size = 0x4, offset = 0x48, fixed_abs, tag = 'smem constant byte address 0x48 - assertion arg 1']
  #allocation40 [shape = 's32[]', space=sflag, size = 0x4, offset = 0, fixed_abs, tag = 'sflag constant byte address 0x0 - dummy sync flag']
  #allocation41 [shape = 's32[]', space=sflag, size = 0x4, offset = 0, fixed_abs, tag = 'sflag constant byte address 0x0 - dummy sync flag']
  %s0 = inlined_call_operand.hbm [shape: f32[16,40], index: 0, kind: input, shape index: {}]
  %s1 = inlined_call_operand.hbm [shape: f32[16,32], index: 1, kind: input, shape index: {}]
  %s2 = inlined_call_operand.hbm [shape: f32[16,64], index: 2, kind: input, shape index: {}]
  %s3 = inlined_call_operand.hbm [shape: bf16[40,1024], index: 3, kind: input, shape index: {}]
  %s4 = inlined_call_operand.hbm [shape: f32[1,1024], index: 4, kind: input, shape index: {}]
  %s5 = inlined_call_operand.vmem [shape: bf16[1024,32], index: 5, kind: input, shape index: {}]
  %s6 = inlined_call_operand.hbm [shape: f32[1,32], index: 6, kind: input, shape index: {}]
  %s7 = inlined_call_operand.hbm [shape: bf16[32,96], index: 7, kind: input, shape index: {}]
  %s8 = inlined_call_operand.hbm [shape: bf16[32,96], index: 8, kind: input, shape index: {}]
  %s9 = inlined_call_operand.hbm [shape: f32[1,96], index: 9, kind: input, shape index: {}]
  %s10 = inlined_call_operand.hbm [shape: f32[1,96], index: 10, kind: input, shape index: {}]
  %s11 = inlined_call_operand.hbm [shape: bf16[32,1024], index: 11, kind: input, shape index: {}]
  %s12 = inlined_call_operand.hbm [shape: f32[1,1024], index: 12, kind: input, shape index: {}]
  %s13 = inlined_call_operand.hbm [shape: bf16[1024,1024], index: 13, kind: input, shape index: {}]
  %s14 = inlined_call_operand.hbm [shape: f32[1,1024], index: 14, kind: input, shape index: {}]
  %s15 = inlined_call_operand.vmem [shape: bf16[1024,64], index: 15, kind: input, shape index: {}]
  %s16 = inlined_call_operand.hbm [shape: f32[1,64], index: 16, kind: input, shape index: {}]
  %s17 = inlined_call_operand.hbm [shape: bf16[32,1024], index: 17, kind: input, shape index: {}]
  %s18 = inlined_call_operand.hbm [shape: bf16[64,1024], index: 18, kind: input, shape index: {}]
  %s19 = inlined_call_operand.hbm [shape: f32[1,1024], index: 19, kind: input, shape index: {}]
  %s20 = inlined_call_operand.hbm [shape: bf16[1024,1024], index: 20, kind: input, shape index: {}]
  %s21 = inlined_call_operand.hbm [shape: f32[1,1024], index: 21, kind: input, shape index: {}]
  %s22 = inlined_call_operand.vmem [shape: bf16[1024,64], index: 22, kind: input, shape index: {}]
  %s23 = inlined_call_operand.hbm [shape: f32[1,64], index: 23, kind: input, shape index: {}]
  %s24 = inlined_call_operand.hbm [shape: f32[16,128], index: 24, kind: output, shape index: {}]
  %s25 = sld [smem:[#allocation0]]
  $region182: #{tpu_custom_call.1} parent=0
    _
  %s27 = ssub.s32 1, %s25
  %s28 = scalar_select 0, %s27, %s25
  $region1: #{tpu_custom_call.1} parent=0
    #allocation5 [shape = 'u8[8192]{0}', space=vmem, size = 0x2000, scoped, tag = 'input window, operand 0, single buffered']
    #allocation6 [shape = 's32[1]{0}', space=sflag, size = 0x4, scoped, tag = 'scoped memory for tpu_custom_call.1']
    #allocation7 [shape = 's32[1]{0}', space=sflag, size = 0x4, scoped, tag = 'scoped memory for tpu_custom_call.1']
    #allocation8 [shape = 'u8[8192]{0}', space=vmem, size = 0x2000, scoped, tag = 'input window, operand 1, single buffered']
    #allocation9 [shape = 's32[1]{0}', space=sflag, size = 0x4, scoped, tag = 'scoped memory for tpu_custom_call.1']
    #allocation10 [shape = 'u8[8192]{0}', space=vmem, size = 0x2000, scoped, tag = 'input window, operand 2, single buffered']
    #allocation11 [shape = 'u8[81920]{0}', space=vmem, size = 0x14000, scoped, tag = 'input window, operand 3, single buffered']
    #allocation12 [shape = 's32[1]{0}', space=sflag, size = 0x4, scoped, tag = 'scoped memory for tpu_custom_call.1']
    #allocation13 [shape = 'u8[4096]{0}', space=vmem, size = 0x1000, scoped, tag = 'input window, operand 4, single buffered']
    #allocation14 [shape = 'u8[512]{0}', space=vmem, size = 0x400, scoped, tag = 'input window, operand 6, single buffered']
    #allocation15 [shape = 's32[1]{0}', space=sflag, size = 0x4, scoped, tag = 'scoped memory for tpu_custom_call.1']
    #allocation16 [shape = 'u8[8192]{0}', space=vmem, size = 0x2000, scoped, tag = 'input window, operand 7, single buffered']
    #allocation17 [shape = 'u8[8192]{0}', space=vmem, size = 0x2000, scoped, tag = 'input window, operand 8, single buffered']
    #allocation18 [shape = 's32[1]{0}', space=sflag, size = 0x4, scoped, tag = 'scoped memory for tpu_custom_call.1']
    #allocation19 [shape = 'u8[512]{0}', space=vmem, size = 0x400, scoped, tag = 'input window, operand 9, single buffered']
    #allocation20 [shape = 'u8[512]{0}', space=vmem, size = 0x400, scoped, tag = 'input window, operand 10, single buffered']
    #allocation21 [shape = 's32[1]{0}', space=sflag, size = 0x4, scoped, tag = 'scoped memory for tpu_custom_call.1']
    #allocation22 [shape = 'u8[65536]{0}', space=vmem, size = 0x10000, scoped, tag = 'input window, operand 11, single buffered']
    #allocation23 [shape = 'u8[4096]{0}', space=vmem, size = 0x1000, scoped, tag = 'input window, operand 12, single buffered']
    #allocation24 [shape = 's32[1]{0}', space=sflag, size = 0x4, scoped, tag = 'scoped memory for tpu_custom_call.1']
    #allocation25 [shape = 'u8[4096]{0}', space=vmem, size = 0x1000, scoped, tag = 'input window, operand 14, single buffered']
    #allocation26 [shape = 'u8[512]{0}', space=vmem, size = 0x400, scoped, tag = 'input window, operand 16, single buffered']
    #allocation27 [shape = 's32[1]{0}', space=sflag, size = 0x4, scoped, tag = 'scoped memory for tpu_custom_call.1']
    #allocation28 [shape = 'u8[65536]{0}', space=vmem, size = 0x10000, scoped, tag = 'input window, operand 17, single buffered']
    #allocation29 [shape = 'u8[131072]{0}', space=vmem, size = 0x20000, scoped, tag = 'input window, operand 18, single buffered']
    #allocation30 [shape = 's32[1]{0}', space=sflag, size = 0x4, scoped, tag = 'scoped memory for tpu_custom_call.1']
    #allocation31 [shape = 'u8[4096]{0}', space=vmem, size = 0x1000, scoped, tag = 'input window, operand 19, single buffered']
    #allocation32 [shape = 'u8[4096]{0}', space=vmem, size = 0x1000, scoped, tag = 'input window, operand 21, single buffered']
    #allocation33 [shape = 's32[1]{0}', space=sflag, size = 0x4, scoped, tag = 'scoped memory for tpu_custom_call.1']
    #allocation34 [shape = 'u8[512]{0}', space=vmem, size = 0x400, scoped, tag = 'input window, operand 23, single buffered']
    #allocation35 [shape = 'u8[8192]{0}', space=vmem, size = 0x2000, scoped, tag = 'output window, operand 0, single buffered']
    %29 = vsyncpa [#allocation6], 0
    %30 = vsyncpa [#allocation9], 0
    %31 = vsyncpa [#allocation12], 0
    %32 = vsyncpa [#allocation15], 0
    %33 = vsyncpa [#allocation18], 0
    %34 = vsyncpa [#allocation21], 0
    %35 = vsyncpa [#allocation24], 0
    %36 = vsyncpa [#allocation27], 0
    %37 = vsyncpa [#allocation30], 0
    %38 = vsyncpa [#allocation33], 0
    %39 = vsyncpa [#allocation7], 0
    // Predicated region
    $region2: #{tpu_custom_call.1} parent=1 // pred_check
      _
    $region3: #{tpu_custom_call.1} parent=1 // pred_check_branch
      %41 = sbr.rel (0) target = $region5
    $region4: #{tpu_custom_call.1} parent=1 // pred_region
      %43 = vsyncadd [#allocation6], 0
      %s44 = sshll.u32 %s0, 4
      %s45 = int_to_ptr.hbm [resolvable:$true] %s44
      %s46 = sshll.u32 [#allocation5], 4
      %s47 = int_to_ptr.vmem [resolvable:$true] %s46
      %52 = dma.hbm_to_vmem [thread:$0]  %s45, 256, %s47, [#allocation6], 128, 128, 8
    $region5: #{tpu_custom_call.1} parent=1 // pred_fallthru
      _
    // Predicated region
    $region6: #{tpu_custom_call.1} parent=1 // pred_check
      _
    $region7: #{tpu_custom_call.1} parent=1 // pred_check_branch
      %54 = sbr.rel (0) target = $region9
    $region8: #{tpu_custom_call.1} parent=1 // pred_region
      %56 = vsyncadd [#allocation9], 0
      %s57 = sshll.u32 %s1, 4
      %s58 = int_to_ptr.hbm [resolvable:$true] %s57
      %s59 = sshll.u32 [#allocation8], 4
      %s60 = int_to_ptr.vmem [resolvable:$true] %s59
      %65 = dma.hbm_to_vmem [thread:$0]  %s58, 256, %s60, [#allocation9], 128, 128, 8
    $region9: #{tpu_custom_call.1} parent=1 // pred_fallthru
      _
    // Predicated region
    $region10: #{tpu_custom_call.1} parent=1 // pred_check
      _
    $region11: #{tpu_custom_call.1} parent=1 // pred_check_branch
      %67 = sbr.rel (0) target = $region13
    $region12: #{tpu_custom_call.1} parent=1 // pred_region
      %69 = vsyncadd [#allocation9], 0
      %s70 = sshll.u32 %s2, 4
      %s71 = int_to_ptr.hbm [resolvable:$true] %s70
      %s72 = sshll.u32 [#allocation10], 4
      %s73 = int_to_ptr.vmem [resolvable:$true] %s72
      %78 = dma.hbm_to_vmem [thread:$0]  %s71, 256, %s73, [#allocation9], 128, 128, 8
    $region13: #{tpu_custom_call.1} parent=1 // pred_fallthru
      _
    // Predicated region
    $region14: #{tpu_custom_call.1} parent=1 // pred_check
      _
    $region15: #{tpu_custom_call.1} parent=1 // pred_check_branch
      %80 = sbr.rel (0) target = $region17
    $region16: #{tpu_custom_call.1} parent=1 // pred_region
      %82 = vsyncadd [#allocation12], 0
      %s83 = sshll.u32 %s3, 4
      %s84 = int_to_ptr.hbm [resolvable:$true] %s83
      %s85 = sshll.u32 [#allocation11], 4
      %s86 = int_to_ptr.vmem [resolvable:$true] %s85
      %91 = dma.hbm_to_vmem [thread:$0]  %s84, 2560, %s86, [#allocation12], 512, 512, 32
    $region17: #{tpu_custom_call.1} parent=1 // pred_fallthru
      _
    // Predicated region
    $region18: #{tpu_custom_call.1} parent=1 // pred_check
      _
    $region19: #{tpu_custom_call.1} parent=1 // pred_check_branch
      %93 = sbr.rel (0) target = $region21
    $region20: #{tpu_custom_call.1} parent=1 // pred_region
      %95 = vsyncadd [#allocation12], 0
      %s97 = sshll.u32 %s4, 4
      %s98 = int_to_ptr.hbm [resolvable:$true] %s97
      %s99 = sshll.u32 [#allocation13], 4
      %s100 = int_to_ptr.vmem [resolvable:$true] %s99
      %102 = dma.hbm_to_vmem [thread:$0]  %s98, 128, %s100, [#allocation12]
    $region21: #{tpu_custom_call.1} parent=1 // pred_fallthru
      _
    // Predicated region
    $region22: #{tpu_custom_call.1} parent=1 // pred_check
      _
    $region23: #{tpu_custom_call.1} parent=1 // pred_check_branch
      %104 = sbr.rel (0) target = $region25
    $region24: #{tpu_custom_call.1} parent=1 // pred_region
      _
    $region25: #{tpu_custom_call.1} parent=1 // pred_fallthru
      _
    // Predicated region
    $region26: #{tpu_custom_call.1} parent=1 // pred_check
      _
    $region27: #{tpu_custom_call.1} parent=1 // pred_check_branch
      %106 = sbr.rel (0) target = $region29
    $region28: #{tpu_custom_call.1} parent=1 // pred_region
      %108 = vsyncadd [#allocation15], 0
      %s110 = sshll.u32 %s6, 4
      %s111 = int_to_ptr.hbm [resolvable:$true] %s110
      %s112 = sshll.u32 [#allocation14], 4
      %s113 = int_to_ptr.vmem [resolvable:$true] %s112
      %115 = dma.hbm_to_vmem [thread:$0]  %s111, 16, %s113, [#allocation15]
    $region29: #{tpu_custom_call.1} parent=1 // pred_fallthru
      _
    // Predicated region
    $region30: #{tpu_custom_call.1} parent=1 // pred_check
      _
    $region31: #{tpu_custom_call.1} parent=1 // pred_check_branch
      %117 = sbr.rel (0) target = $region33
    $region32: #{tpu_custom_call.1} parent=1 // pred_region
      %119 = vsyncadd [#allocation15], 0
      %s120 = sshll.u32 %s7, 4
      %s121 = int_to_ptr.hbm [resolvable:$true] %s120
      %s122 = sshll.u32 [#allocation16], 4
      %s123 = int_to_ptr.vmem [resolvable:$true] %s122
      %128 = dma.hbm_to_vmem [thread:$0]  %s121, 256, %s123, [#allocation15], 64, 64, 4
    $region33: #{tpu_custom_call.1} parent=1 // pred_fallthru
      _
    // Predicated region
    $region34: #{tpu_custom_call.1} parent=1 // pred_check
      _
    $region35: #{tpu_custom_call.1} parent=1 // pred_check_branch
      %130 = sbr.rel (0) target = $region37
    $region36: #{tpu_custom_call.1} parent=1 // pred_region
      %132 = vsyncadd [#allocation18], 0
      %s133 = sshll.u32 %s8, 4
      %s134 = int_to_ptr.hbm [resolvable:$true] %s133
      %s135 = sshll.u32 [#allocation17], 4
      %s136 = int_to_ptr.vmem [resolvable:$true] %s135
      %141 = dma.hbm_to_vmem [thread:$0]  %s134, 256, %s136, [#allocation18], 64, 64, 4
    $region37: #{tpu_custom_call.1} parent=1 // pred_fallthru
      _
    // Predicated region
    $region38: #{tpu_custom_call.1} parent=1 // pred_check
      _
    $region39: #{tpu_custom_call.1} parent=1 // pred_check_branch
      %143 = sbr.rel (0) target = $region41
    $region40: #{tpu_custom_call.1} parent=1 // pred_region
      %145 = vsyncadd [#allocation18], 0
      %s147 = sshll.u32 %s9, 4
      %s148 = int_to_ptr.hbm [resolvable:$true] %s147
      %s149 = sshll.u32 [#allocation19], 4
      %s150 = int_to_ptr.vmem [resolvable:$true] %s149
      %152 = dma.hbm_to_vmem [thread:$0]  %s148, 16, %s150, [#allocation18]
    $region41: #{tpu_custom_call.1} parent=1 // pred_fallthru
      _
    // Predicated region
    $region42: #{tpu_custom_call.1} parent=1 // pred_check
      _
    $region43: #{tpu_custom_call.1} parent=1 // pred_check_branch
      %154 = sbr.rel (0) target = $region45
    $region44: #{tpu_custom_call.1} parent=1 // pred_region
      %156 = vsyncadd [#allocation21], 0
      %s158 = sshll.u32 %s10, 4
      %s159 = int_to_ptr.hbm [resolvable:$true] %s158
      %s160 = sshll.u32 [#allocation20], 4
      %s161 = int_to_ptr.vmem [resolvable:$true] %s160
      %163 = dma.hbm_to_vmem [thread:$0]  %s159, 16, %s161, [#allocation21]
    $region45: #{tpu_custom_call.1} parent=1 // pred_fallthru
      _
    // Predicated region
    $region46: #{tpu_custom_call.1} parent=1 // pred_check
      _
    $region47: #{tpu_custom_call.1} parent=1 // pred_check_branch
      %165 = sbr.rel (0) target = $region49
    $region48: #{tpu_custom_call.1} parent=1 // pred_region
      %167 = vsyncadd [#allocation21], 0
      %s168 = sshll.u32 %s11, 4
      %s169 = int_to_ptr.hbm [resolvable:$true] %s168
      %s170 = sshll.u32 [#allocation22], 4
      %s171 = int_to_ptr.vmem [resolvable:$true] %s170
      %176 = dma.hbm_to_vmem [thread:$0]  %s169, 2048, %s171, [#allocation21], 512, 512, 32
    $region49: #{tpu_custom_call.1} parent=1 // pred_fallthru
      _
    // Predicated region
    $region50: #{tpu_custom_call.1} parent=1 // pred_check
      _
    $region51: #{tpu_custom_call.1} parent=1 // pred_check_branch
      %178 = sbr.rel (0) target = $region53
    $region52: #{tpu_custom_call.1} parent=1 // pred_region
      %180 = vsyncadd [#allocation24], 0
      %s182 = sshll.u32 %s12, 4
      %s183 = int_to_ptr.hbm [resolvable:$true] %s182
      %s184 = sshll.u32 [#allocation23], 4
      %s185 = int_to_ptr.vmem [resolvable:$true] %s184
      %187 = dma.hbm_to_vmem [thread:$0]  %s183, 128, %s185, [#allocation24]
    $region53: #{tpu_custom_call.1} parent=1 // pred_fallthru
      _
    // Predicated region
    $region54: #{tpu_custom_call.1} parent=1 // pred_check
      _
    $region55: #{tpu_custom_call.1} parent=1 // pred_check_branch
      %189 = sbr.rel (0) target = $region57
    $region56: #{tpu_custom_call.1} parent=1 // pred_region
      %191 = vsyncadd [#allocation24], 0
      %s193 = sshll.u32 %s14, 4
      %s194 = int_to_ptr.hbm [resolvable:$true] %s193
      %s195 = sshll.u32 [#allocation25], 4
      %s196 = int_to_ptr.vmem [resolvable:$true] %s195
      %198 = dma.hbm_to_vmem [thread:$0]  %s194, 128, %s196, [#allocation24]
    $region57: #{tpu_custom_call.1} parent=1 // pred_fallthru
      _
    // Predicated region
    $region58: #{tpu_custom_call.1} parent=1 // pred_check
      _
    $region59: #{tpu_custom_call.1} parent=1 // pred_check_branch
      %200 = sbr.rel (0) target = $region61
    $region60: #{tpu_custom_call.1} parent=1 // pred_region
      _
    $region61: #{tpu_custom_call.1} parent=1 // pred_fallthru
      _
    // Predicated region
    $region62: #{tpu_custom_call.1} parent=1 // pred_check
      _
    $region63: #{tpu_custom_call.1} parent=1 // pred_check_branch
      %202 = sbr.rel (0) target = $region65
    $region64: #{tpu_custom_call.1} parent=1 // pred_region
      %204 = vsyncadd [#allocation27], 0
      %s206 = sshll.u32 %s16, 4
      %s207 = int_to_ptr.hbm [resolvable:$true] %s206
      %s208 = sshll.u32 [#allocation26], 4
      %s209 = int_to_ptr.vmem [resolvable:$true] %s208
      %211 = dma.hbm_to_vmem [thread:$0]  %s207, 16, %s209, [#allocation27]
    $region65: #{tpu_custom_call.1} parent=1 // pred_fallthru
      _
    // Predicated region
    $region66: #{tpu_custom_call.1} parent=1 // pred_check
      _
    $region67: #{tpu_custom_call.1} parent=1 // pred_check_branch
      %213 = sbr.rel (0) target = $region69
    $region68: #{tpu_custom_call.1} parent=1 // pred_region
      %215 = vsyncadd [#allocation27], 0
      %s216 = sshll.u32 %s17, 4
      %s217 = int_to_ptr.hbm [resolvable:$true] %s216
      %s218 = sshll.u32 [#allocation28], 4
      %s219 = int_to_ptr.vmem [resolvable:$true] %s218
      %224 = dma.hbm_to_vmem [thread:$0]  %s217, 2048, %s219, [#allocation27], 512, 512, 32
    $region69: #{tpu_custom_call.1} parent=1 // pred_fallthru
      _
    // Predicated region
    $region70: #{tpu_custom_call.1} parent=1 // pred_check
      _
    $region71: #{tpu_custom_call.1} parent=1 // pred_check_branch
      %226 = sbr.rel (0) target = $region73
    $region72: #{tpu_custom_call.1} parent=1 // pred_region
      %228 = vsyncadd [#allocation30], 0
      %s229 = sshll.u32 %s18, 4
      %s230 = int_to_ptr.hbm [resolvable:$true] %s229
      %s231 = sshll.u32 [#allocation29], 4
      %s232 = int_to_ptr.vmem [resolvable:$true] %s231
      %237 = dma.hbm_to_vmem [thread:$0]  %s230, 4096, %s232, [#allocation30], 512, 512, 32
    $region73: #{tpu_custom_call.1} parent=1 // pred_fallthru
      _
    // Predicated region
    $region74: #{tpu_custom_call.1} parent=1 // pred_check
      _
    $region75: #{tpu_custom_call.1} parent=1 // pred_check_branch
      %239 = sbr.rel (0) target = $region77
    $region76: #{tpu_custom_call.1} parent=1 // pred_region
      %241 = vsyncadd [#allocation30], 0
      %s243 = sshll.u32 %s19, 4
      %s244 = int_to_ptr.hbm [resolvable:$true] %s243
      %s245 = sshll.u32 [#allocation31], 4
      %s246 = int_to_ptr.vmem [resolvable:$true] %s245
      %248 = dma.hbm_to_vmem [thread:$0]  %s244, 128, %s246, [#allocation30]
    $region77: #{tpu_custom_call.1} parent=1 // pred_fallthru
      _
    // Predicated region
    $region78: #{tpu_custom_call.1} parent=1 // pred_check
      _
    $region79: #{tpu_custom_call.1} parent=1 // pred_check_branch
      %250 = sbr.rel (0) target = $region81
    $region80: #{tpu_custom_call.1} parent=1 // pred_region
      %252 = vsyncadd [#allocation33], 0
      %s254 = sshll.u32 %s21, 4
      %s255 = int_to_ptr.hbm [resolvable:$true] %s254
      %s256 = sshll.u32 [#allocation32], 4
      %s257 = int_to_ptr.vmem [resolvable:$true] %s256
      %259 = dma.hbm_to_vmem [thread:$0]  %s255, 128, %s257, [#allocation33]
    $region81: #{tpu_custom_call.1} parent=1 // pred_fallthru
      _
    // Predicated region
    $region82: #{tpu_custom_call.1} parent=1 // pred_check
      _
    $region83: #{tpu_custom_call.1} parent=1 // pred_check_branch
      %261 = sbr.rel (0) target = $region85
    $region84: #{tpu_custom_call.1} parent=1 // pred_region
      _
    $region85: #{tpu_custom_call.1} parent=1 // pred_fallthru
      _
    // Predicated region
    $region86: #{tpu_custom_call.1} parent=1 // pred_check
      _
    $region87: #{tpu_custom_call.1} parent=1 // pred_check_branch
      %263 = sbr.rel (0) target = $region89
    $region88: #{tpu_custom_call.1} parent=1 // pred_region
      %265 = vsyncadd [#allocation33], 0
      %s267 = sshll.u32 %s23, 4
      %s268 = int_to_ptr.hbm [resolvable:$true] %s267
      %s269 = sshll.u32 [#allocation34], 4
      %s270 = int_to_ptr.vmem [resolvable:$true] %s269
      %272 = dma.hbm_to_vmem [thread:$0]  %s268, 16, %s270, [#allocation33]
    $region89: #{tpu_custom_call.1} parent=1 // pred_fallthru
      _
    // Predicated region
    $region90: #{tpu_custom_call.1} parent=1 // pred_check
      _
    $region91: #{tpu_custom_call.1} parent=1 // pred_check_branch
      %274 = sbr.rel (0) target = $region93
    $region92: #{tpu_custom_call.1} parent=1 // pred_region
      %276 = dma.done [#allocation6], 256
    $region93: #{tpu_custom_call.1} parent=1 // pred_fallthru
      _
    // Predicated region
    $region94: #{tpu_custom_call.1} parent=1 // pred_check
      _
    $region95: #{tpu_custom_call.1} parent=1 // pred_check_branch
      %278 = sbr.rel (0) target = $region97
    $region96: #{tpu_custom_call.1} parent=1 // pred_region
      %280 = dma.done [#allocation9], 256
    $region97: #{tpu_custom_call.1} parent=1 // pred_fallthru
      _
    // Predicated region
    $region98: #{tpu_custom_call.1} parent=1 // pred_check
      _
    $region99: #{tpu_custom_call.1} parent=1 // pred_check_branch
      %282 = sbr.rel (0) target = $region101
    $region100: #{tpu_custom_call.1} parent=1 // pred_region
      %284 = dma.done [#allocation9], 256
    $region101: #{tpu_custom_call.1} parent=1 // pred_fallthru
      _
    // Predicated region
    $region102: #{tpu_custom_call.1} parent=1 // pred_check
      _
    $region103: #{tpu_custom_call.1} parent=1 // pred_check_branch
      %286 = sbr.rel (0) target = $region105
    $region104: #{tpu_custom_call.1} parent=1 // pred_region
      %288 = dma.done [#allocation12], 2560
    $region105: #{tpu_custom_call.1} parent=1 // pred_fallthru
      _
    // Predicated region
    $region106: #{tpu_custom_call.1} parent=1 // pred_check
      _
    $region107: #{tpu_custom_call.1} parent=1 // pred_check_branch
      %290 = sbr.rel (0) target = $region109
    $region108: #{tpu_custom_call.1} parent=1 // pred_region
      %292 = dma.done [#allocation12], 128
    $region109: #{tpu_custom_call.1} parent=1 // pred_fallthru
      _
    // Predicated region
    $region110: #{tpu_custom_call.1} parent=1 // pred_check
      _
    $region111: #{tpu_custom_call.1} parent=1 // pred_check_branch
      %294 = sbr.rel (0) target = $region113
    $region112: #{tpu_custom_call.1} parent=1 // pred_region
      %296 = dma.done [#allocation15], 16
    $region113: #{tpu_custom_call.1} parent=1 // pred_fallthru
      _
    // Predicated region
    $region114: #{tpu_custom_call.1} parent=1 // pred_check
      _
    $region115: #{tpu_custom_call.1} parent=1 // pred_check_branch
      %298 = sbr.rel (0) target = $region117
    $region116: #{tpu_custom_call.1} parent=1 // pred_region
      %300 = dma.done [#allocation15], 256
    $region117: #{tpu_custom_call.1} parent=1 // pred_fallthru
      _
    // Predicated region
    $region118: #{tpu_custom_call.1} parent=1 // pred_check
      _
    $region119: #{tpu_custom_call.1} parent=1 // pred_check_branch
      %302 = sbr.rel (0) target = $region121
    $region120: #{tpu_custom_call.1} parent=1 // pred_region
      %304 = dma.done [#allocation18], 256
    $region121: #{tpu_custom_call.1} parent=1 // pred_fallthru
      _
    // Predicated region
    $region122: #{tpu_custom_call.1} parent=1 // pred_check
      _
    $region123: #{tpu_custom_call.1} parent=1 // pred_check_branch
      %306 = sbr.rel (0) target = $region125
    $region124: #{tpu_custom_call.1} parent=1 // pred_region
      %308 = dma.done [#allocation18], 16
    $region125: #{tpu_custom_call.1} parent=1 // pred_fallthru
      _
    // Predicated region
    $region126: #{tpu_custom_call.1} parent=1 // pred_check
      _
    $region127: #{tpu_custom_call.1} parent=1 // pred_check_branch
      %310 = sbr.rel (0) target = $region129
    $region128: #{tpu_custom_call.1} parent=1 // pred_region
      %312 = dma.done [#allocation21], 16
    $region129: #{tpu_custom_call.1} parent=1 // pred_fallthru
      _
    // Predicated region
    $region130: #{tpu_custom_call.1} parent=1 // pred_check
      _
    $region131: #{tpu_custom_call.1} parent=1 // pred_check_branch
      %314 = sbr.rel (0) target = $region133
    $region132: #{tpu_custom_call.1} parent=1 // pred_region
      %316 = dma.done [#allocation21], 2048
    $region133: #{tpu_custom_call.1} parent=1 // pred_fallthru
      _
    // Predicated region
    $region134: #{tpu_custom_call.1} parent=1 // pred_check
      _
    $region135: #{tpu_custom_call.1} parent=1 // pred_check_branch
      %318 = sbr.rel (0) target = $region137
    $region136: #{tpu_custom_call.1} parent=1 // pred_region
      %320 = dma.done [#allocation24], 128
    $region137: #{tpu_custom_call.1} parent=1 // pred_fallthru
      _
    // Predicated region
    $region138: #{tpu_custom_call.1} parent=1 // pred_check
      _
    $region139: #{tpu_custom_call.1} parent=1 // pred_check_branch
      %322 = sbr.rel (0) target = $region141
    $region140: #{tpu_custom_call.1} parent=1 // pred_region
      %324 = dma.done [#allocation24], 128
    $region141: #{tpu_custom_call.1} parent=1 // pred_fallthru
      _
    // Predicated region
    $region142: #{tpu_custom_call.1} parent=1 // pred_check
      _
    $region143: #{tpu_custom_call.1} parent=1 // pred_check_branch
      %326 = sbr.rel (0) target = $region145
    $region144: #{tpu_custom_call.1} parent=1 // pred_region
      %328 = dma.done [#allocation27], 16
    $region145: #{tpu_custom_call.1} parent=1 // pred_fallthru
      _
    // Predicated region
    $region146: #{tpu_custom_call.1} parent=1 // pred_check
      _
    $region147: #{tpu_custom_call.1} parent=1 // pred_check_branch
      %330 = sbr.rel (0) target = $region149
    $region148: #{tpu_custom_call.1} parent=1 // pred_region
      %332 = dma.done [#allocation27], 2048
    $region149: #{tpu_custom_call.1} parent=1 // pred_fallthru
      _
    // Predicated region
    $region150: #{tpu_custom_call.1} parent=1 // pred_check
      _
    $region151: #{tpu_custom_call.1} parent=1 // pred_check_branch
      %334 = sbr.rel (0) target = $region153
    $region152: #{tpu_custom_call.1} parent=1 // pred_region
      %336 = dma.done [#allocation30], 4096
    $region153: #{tpu_custom_call.1} parent=1 // pred_fallthru
      _
    // Predicated region
    $region154: #{tpu_custom_call.1} parent=1 // pred_check
      _
    $region155: #{tpu_custom_call.1} parent=1 // pred_check_branch
      %338 = sbr.rel (0) target = $region157
    $region156: #{tpu_custom_call.1} parent=1 // pred_region
      %340 = dma.done [#allocation30], 128
    $region157: #{tpu_custom_call.1} parent=1 // pred_fallthru
      _
    // Predicated region
    $region158: #{tpu_custom_call.1} parent=1 // pred_check
      _
    $region159: #{tpu_custom_call.1} parent=1 // pred_check_branch
      %342 = sbr.rel (0) target = $region161
    $region160: #{tpu_custom_call.1} parent=1 // pred_region
      %344 = dma.done [#allocation33], 128
    $region161: #{tpu_custom_call.1} parent=1 // pred_fallthru
      _
    // Predicated region
    $region162: #{tpu_custom_call.1} parent=1 // pred_check
      _
    $region163: #{tpu_custom_call.1} parent=1 // pred_check_branch
      %346 = sbr.rel (0) target = $region165
    $region164: #{tpu_custom_call.1} parent=1 // pred_region
      %348 = dma.done [#allocation33], 16
    $region165: #{tpu_custom_call.1} parent=1 // pred_fallthru
      _
    %v350 = vld [vmem:[#allocation10] sm:$0xff]
    %v351 = vld [vmem:[#allocation10 + $0x8] sm:$0xff]
    %v352 = vld [vmem:[#allocation11] sm:$0xff]
    %v353 = vld [vmem:[#allocation11 + $0x8] sm:$0xff]
    %v354 = vld [vmem:[#allocation11 + $0x10] sm:$0xff]
    %v355 = vld [vmem:[#allocation11 + $0x18] sm:$0xff]
    %v356 = vld [vmem:[#allocation11 + $0x20] sm:$0xff]
    %v357 = vld [vmem:[#allocation11 + $0x28] sm:$0xff]
    %v358 = vld [vmem:[#allocation11 + $0x30] sm:$0xff]
    %v359 = vld [vmem:[#allocation11 + $0x38] sm:$0xff]
    %v360 = vld [vmem:[#allocation11 + $0x40] sm:$0xff]
    %v361 = vld [vmem:[#allocation11 + $0x48] sm:$0xff]
    %v362 = vld [vmem:[#allocation11 + $0x50] sm:$0xff]
    %v363 = vld [vmem:[#allocation11 + $0x58] sm:$0xff]
    %v364 = vld [vmem:[#allocation11 + $0x60] sm:$0xff]
    %v365 = vld [vmem:[#allocation11 + $0x68] sm:$0xff]
    %v366 = vld [vmem:[#allocation11 + $0x70] sm:$0xff]
    %v367 = vld [vmem:[#allocation11 + $0x78] sm:$0xff]
    %v368 = vld [vmem:[#allocation11 + $0x80] sm:$0xff]
    %v369 = vld [vmem:[#allocation11 + $0x88] sm:$0xff]
    %v370 = vld [vmem:[#allocation11 + $0x90] sm:$0xff]
    %v371 = vld [vmem:[#allocation11 + $0x98] sm:$0xff]
    %v372 = vld [vmem:[#allocation13] sm:$0xff]
    %v373 = vld [vmem:[%s5] sm:$0xf]
    %v374 = vld [vmem:[%s5 + $0x4] sm:$0xf]
    %v375 = vld [vmem:[%s5 + $0x8] sm:$0xf]
    %v376 = vld [vmem:[%s5 + $0xc] sm:$0xf]
    %v377 = vld [vmem:[%s5 + $0x10] sm:$0xf]
    %v378 = vld [vmem:[%s5 + $0x14] sm:$0xf]
    %v379 = vld [vmem:[%s5 + $0x18] sm:$0xf]
    %v380 = vld [vmem:[%s5 + $0x1c] sm:$0xf]
    %v381 = vld [vmem:[%s5 + $0x20] sm:$0xf]
    %v382 = vld [vmem:[%s5 + $0x24] sm:$0xf]
    %v383 = vld [vmem:[%s5 + $0x28] sm:$0xf]
    %v384 = vld [vmem:[%s5 + $0x2c] sm:$0xf]
    %v385 = vld [vmem:[%s5 + $0x30] sm:$0xf]
    %v386 = vld [vmem:[%s5 + $0x34] sm:$0xf]
    %v387 = vld [vmem:[%s5 + $0x38] sm:$0xf]
    %v388 = vld [vmem:[%s5 + $0x3c] sm:$0xf]
    %v389 = vld [vmem:[%s5 + $0x40] sm:$0xf]
    %v390 = vld [vmem:[%s5 + $0x44] sm:$0xf]
    %v391 = vld [vmem:[%s5 + $0x48] sm:$0xf]
    %v392 = vld [vmem:[%s5 + $0x4c] sm:$0xf]
    %v393 = vld [vmem:[%s5 + $0x50] sm:$0xf]
    %v394 = vld [vmem:[%s5 + $0x54] sm:$0xf]
    %v395 = vld [vmem:[%s5 + $0x58] sm:$0xf]
    %v396 = vld [vmem:[%s5 + $0x5c] sm:$0xf]
    %v397 = vld [vmem:[%s5 + $0x60] sm:$0xf]
    %v398 = vld [vmem:[%s5 + $0x64] sm:$0xf]
    %v399 = vld [vmem:[%s5 + $0x68] sm:$0xf]
    %v400 = vld [vmem:[%s5 + $0x6c] sm:$0xf]
    %v401 = vld [vmem:[%s5 + $0x70] sm:$0xf]
    %v402 = vld [vmem:[%s5 + $0x74] sm:$0xf]
    %v403 = vld [vmem:[%s5 + $0x78] sm:$0xf]
    %v404 = vld [vmem:[%s5 + $0x7c] sm:$0xf]
    %v405 = vld [vmem:[%s5 + $0x80] sm:$0xf]
    %v406 = vld [vmem:[%s5 + $0x84] sm:$0xf]
    %v407 = vld [vmem:[%s5 + $0x88] sm:$0xf]
    %v408 = vld [vmem:[%s5 + $0x8c] sm:$0xf]
    %v409 = vld [vmem:[%s5 + $0x90] sm:$0xf]
    %v410 = vld [vmem:[%s5 + $0x94] sm:$0xf]
    %v411 = vld [vmem:[%s5 + $0x98] sm:$0xf]
    %v412 = vld [vmem:[%s5 + $0x9c] sm:$0xf]
    %v413 = vld [vmem:[%s5 + $0xa0] sm:$0xf]
    %v414 = vld [vmem:[%s5 + $0xa4] sm:$0xf]
    %v415 = vld [vmem:[%s5 + $0xa8] sm:$0xf]
    %v416 = vld [vmem:[%s5 + $0xac] sm:$0xf]
    %v417 = vld [vmem:[%s5 + $0xb0] sm:$0xf]
    %v418 = vld [vmem:[%s5 + $0xb4] sm:$0xf]
    %v419 = vld [vmem:[%s5 + $0xb8] sm:$0xf]
    %v420 = vld [vmem:[%s5 + $0xbc] sm:$0xf]
    %v421 = vld [vmem:[%s5 + $0xc0] sm:$0xf]
    %v422 = vld [vmem:[%s5 + $0xc4] sm:$0xf]
    %v423 = vld [vmem:[%s5 + $0xc8] sm:$0xf]
    %v424 = vld [vmem:[%s5 + $0xcc] sm:$0xf]
    %v425 = vld [vmem:[%s5 + $0xd0] sm:$0xf]
    %v426 = vld [vmem:[%s5 + $0xd4] sm:$0xf]
    %v427 = vld [vmem:[%s5 + $0xd8] sm:$0xf]
    %v428 = vld [vmem:[%s5 + $0xdc] sm:$0xf]
    %v429 = vld [vmem:[%s5 + $0xe0] sm:$0xf]
    %v430 = vld [vmem:[%s5 + $0xe4] sm:$0xf]
    %v431 = vld [vmem:[%s5 + $0xe8] sm:$0xf]
    %v432 = vld [vmem:[%s5 + $0xec] sm:$0xf]
    %v433 = vld [vmem:[%s5 + $0xf0] sm:$0xf]
    %v434 = vld [vmem:[%s5 + $0xf4] sm:$0xf]
    %v435 = vld [vmem:[%s5 + $0xf8] sm:$0xf]
    %v436 = vld [vmem:[%s5 + $0xfc] sm:$0xf]
    %v437 = vld [vmem:[%s5 + $0x100] sm:$0xf]
    %v438 = vld [vmem:[%s5 + $0x104] sm:$0xf]
    %v439 = vld [vmem:[%s5 + $0x108] sm:$0xf]
    %v440 = vld [vmem:[%s5 + $0x10c] sm:$0xf]
    %v441 = vld [vmem:[%s5 + $0x110] sm:$0xf]
    %v442 = vld [vmem:[%s5 + $0x114] sm:$0xf]
    %v443 = vld [vmem:[%s5 + $0x118] sm:$0xf]
    %v444 = vld [vmem:[%s5 + $0x11c] sm:$0xf]
    %v445 = vld [vmem:[%s5 + $0x120] sm:$0xf]
    %v446 = vld [vmem:[%s5 + $0x124] sm:$0xf]
    %v447 = vld [vmem:[%s5 + $0x128] sm:$0xf]
    %v448 = vld [vmem:[%s5 + $0x12c] sm:$0xf]
    %v449 = vld [vmem:[%s5 + $0x130] sm:$0xf]
    %v450 = vld [vmem:[%s5 + $0x134] sm:$0xf]
    %v451 = vld [vmem:[%s5 + $0x138] sm:$0xf]
    %v452 = vld [vmem:[%s5 + $0x13c] sm:$0xf]
    %v453 = vld [vmem:[%s5 + $0x140] sm:$0xf]
    %v454 = vld [vmem:[%s5 + $0x144] sm:$0xf]
    %v455 = vld [vmem:[%s5 + $0x148] sm:$0xf]
    %v456 = vld [vmem:[%s5 + $0x14c] sm:$0xf]
    %v457 = vld [vmem:[%s5 + $0x150] sm:$0xf]
    %v458 = vld [vmem:[%s5 + $0x154] sm:$0xf]
    %v459 = vld [vmem:[%s5 + $0x158] sm:$0xf]
    %v460 = vld [vmem:[%s5 + $0x15c] sm:$0xf]
    %v461 = vld [vmem:[%s5 + $0x160] sm:$0xf]
    %v462 = vld [vmem:[%s5 + $0x164] sm:$0xf]
    %v463 = vld [vmem:[%s5 + $0x168] sm:$0xf]
    %v464 = vld [vmem:[%s5 + $0x16c] sm:$0xf]
    %v465 = vld [vmem:[%s5 + $0x170] sm:$0xf]
    %v466 = vld [vmem:[%s5 + $0x174] sm:$0xf]
    %v467 = vld [vmem:[%s5 + $0x178] sm:$0xf]
    %v468 = vld [vmem:[%s5 + $0x17c] sm:$0xf]
    %v469 = vld [vmem:[%s5 + $0x180] sm:$0xf]
    %v470 = vld [vmem:[%s5 + $0x184] sm:$0xf]
    %v471 = vld [vmem:[%s5 + $0x188] sm:$0xf]
    %v472 = vld [vmem:[%s5 + $0x18c] sm:$0xf]
    %v473 = vld [vmem:[%s5 + $0x190] sm:$0xf]
    %v474 = vld [vmem:[%s5 + $0x194] sm:$0xf]
    %v475 = vld [vmem:[%s5 + $0x198] sm:$0xf]
    %v476 = vld [vmem:[%s5 + $0x19c] sm:$0xf]
    %v477 = vld [vmem:[%s5 + $0x1a0] sm:$0xf]
    %v478 = vld [vmem:[%s5 + $0x1a4] sm:$0xf]
    %v479 = vld [vmem:[%s5 + $0x1a8] sm:$0xf]
    %v480 = vld [vmem:[%s5 + $0x1ac] sm:$0xf]
    %v481 = vld [vmem:[%s5 + $0x1b0] sm:$0xf]
    %v482 = vld [vmem:[%s5 + $0x1b4] sm:$0xf]
    %v483 = vld [vmem:[%s5 + $0x1b8] sm:$0xf]
    %v484 = vld [vmem:[%s5 + $0x1bc] sm:$0xf]
    %v485 = vld [vmem:[%s5 + $0x1c0] sm:$0xf]
    %v486 = vld [vmem:[%s5 + $0x1c4] sm:$0xf]
    %v487 = vld [vmem:[%s5 + $0x1c8] sm:$0xf]
    %v488 = vld [vmem:[%s5 + $0x1cc] sm:$0xf]
    %v489 = vld [vmem:[%s5 + $0x1d0] sm:$0xf]
    %v490 = vld [vmem:[%s5 + $0x1d4] sm:$0xf]
    %v491 = vld [vmem:[%s5 + $0x1d8] sm:$0xf]
    %v492 = vld [vmem:[%s5 + $0x1dc] sm:$0xf]
    %v493 = vld [vmem:[%s5 + $0x1e0] sm:$0xf]
    %v494 = vld [vmem:[%s5 + $0x1e4] sm:$0xf]
    %v495 = vld [vmem:[%s5 + $0x1e8] sm:$0xf]
    %v496 = vld [vmem:[%s5 + $0x1ec] sm:$0xf]
    %v497 = vld [vmem:[%s5 + $0x1f0] sm:$0xf]
    %v498 = vld [vmem:[%s5 + $0x1f4] sm:$0xf]
    %v499 = vld [vmem:[%s5 + $0x1f8] sm:$0xf]
    %v500 = vld [vmem:[%s5 + $0x1fc] sm:$0xf]
    %v501 = vld [vmem:[#allocation14] sm:$0x1]
    %v502 = vld [vmem:[#allocation16] sm:$0xf]
    %v503 = vld [vmem:[#allocation16 + $0x4] sm:$0xf]
    %v504 = vld [vmem:[#allocation16 + $0x8] sm:$0xf]
    %v505 = vld [vmem:[#allocation16 + $0xc] sm:$0xf]
    %v506 = vld [vmem:[#allocation17] sm:$0xf]
    %v507 = vld [vmem:[#allocation17 + $0x4] sm:$0xf]
    %v508 = vld [vmem:[#allocation17 + $0x8] sm:$0xf]
    %v509 = vld [vmem:[#allocation17 + $0xc] sm:$0xf]
    %v510 = vld [vmem:[#allocation19] sm:$0x1]
    %v511 = vld [vmem:[#allocation20] sm:$0x1]
    %v512 = vld [vmem:[#allocation22] sm:$0xff]
    %v513 = vld [vmem:[#allocation22 + $0x8] sm:$0xff]
    %v514 = vld [vmem:[#allocation22 + $0x10] sm:$0xff]
    %v515 = vld [vmem:[#allocation22 + $0x18] sm:$0xff]
    %v516 = vld [vmem:[#allocation22 + $0x20] sm:$0xff]
    %v517 = vld [vmem:[#allocation22 + $0x28] sm:$0xff]
    %v518 = vld [vmem:[#allocation22 + $0x30] sm:$0xff]
    %v519 = vld [vmem:[#allocation22 + $0x38] sm:$0xff]
    %v520 = vld [vmem:[#allocation22 + $0x40] sm:$0xff]
    %v521 = vld [vmem:[#allocation22 + $0x48] sm:$0xff]
    %v522 = vld [vmem:[#allocation22 + $0x50] sm:$0xff]
    %v523 = vld [vmem:[#allocation22 + $0x58] sm:$0xff]
    %v524 = vld [vmem:[#allocation22 + $0x60] sm:$0xff]
    %v525 = vld [vmem:[#allocation22 + $0x68] sm:$0xff]
    %v526 = vld [vmem:[#allocation22 + $0x70] sm:$0xff]
    %v527 = vld [vmem:[#allocation22 + $0x78] sm:$0xff]
    %v528 = vld [vmem:[#allocation23] sm:$0xff]
    // Predicated region
    $region166: #{tpu_custom_call.1} parent=1 // pred_check
      _
    $region167: #{tpu_custom_call.1} parent=1 // pred_check_branch
      %530 = sbr.rel target = $region169
    $region168: #{tpu_custom_call.1} parent=1 // pred_region
      %531 = sst [smem:[#allocation38]] [#allocation37]
      %532 = sst [smem:[#allocation39]] [#allocation36]
    $region169: #{tpu_custom_call.1} parent=1 // pred_fallthru
      _
    %534 = shalt.err (0)
    %s536 = sshll.u32 %s13, 4
    %s537 = int_to_ptr.hbm [resolvable:$true] %s536
    %s538 = sshll.u32 [#allocation2], 4
    %s539 = int_to_ptr.vmem [resolvable:$true] %s538
    %541 = dma.hbm_to_vmem [thread:$0]  %s537, 65536, %s539, [#allocation4]
    %v542 = vld [vmem:[#allocation25] sm:$0xff]
    %v543 = vld [vmem:[%s15] sm:$0xf]
    %v544 = vld [vmem:[%s15 + $0x4] sm:$0xf]
    %v545 = vld [vmem:[%s15 + $0x8] sm:$0xf]
    %v546 = vld [vmem:[%s15 + $0xc] sm:$0xf]
    %v547 = vld [vmem:[%s15 + $0x10] sm:$0xf]
    %v548 = vld [vmem:[%s15 + $0x14] sm:$0xf]
    %v549 = vld [vmem:[%s15 + $0x18] sm:$0xf]
    %v550 = vld [vmem:[%s15 + $0x1c] sm:$0xf]
    %v551 = vld [vmem:[%s15 + $0x20] sm:$0xf]
    %v552 = vld [vmem:[%s15 + $0x24] sm:$0xf]
    %v553 = vld [vmem:[%s15 + $0x28] sm:$0xf]
    %v554 = vld [vmem:[%s15 + $0x2c] sm:$0xf]
    %v555 = vld [vmem:[%s15 + $0x30] sm:$0xf]
    %v556 = vld [vmem:[%s15 + $0x34] sm:$0xf]
    %v557 = vld [vmem:[%s15 + $0x38] sm:$0xf]
    %v558 = vld [vmem:[%s15 + $0x3c] sm:$0xf]
    %v559 = vld [vmem:[%s15 + $0x40] sm:$0xf]
    %v560 = vld [vmem:[%s15 + $0x44] sm:$0xf]
    %v561 = vld [vmem:[%s15 + $0x48] sm:$0xf]
    %v562 = vld [vmem:[%s15 + $0x4c] sm:$0xf]
    %v563 = vld [vmem:[%s15 + $0x50] sm:$0xf]
    %v564 = vld [vmem:[%s15 + $0x54] sm:$0xf]
    %v565 = vld [vmem:[%s15 + $0x58] sm:$0xf]
    %v566 = vld [vmem:[%s15 + $0x5c] sm:$0xf]
    %v567 = vld [vmem:[%s15 + $0x60] sm:$0xf]
    %v568 = vld [vmem:[%s15 + $0x64] sm:$0xf]
    %v569 = vld [vmem:[%s15 + $0x68] sm:$0xf]
    %v570 = vld [vmem:[%s15 + $0x6c] sm:$0xf]
    %v571 = vld [vmem:[%s15 + $0x70] sm:$0xf]
    %v572 = vld [vmem:[%s15 + $0x74] sm:$0xf]
    %v573 = vld [vmem:[%s15 + $0x78] sm:$0xf]
    %v574 = vld [vmem:[%s15 + $0x7c] sm:$0xf]
    %v575 = vld [vmem:[%s15 + $0x80] sm:$0xf]
    %v576 = vld [vmem:[%s15 + $0x84] sm:$0xf]
    %v577 = vld [vmem:[%s15 + $0x88] sm:$0xf]
    %v578 = vld [vmem:[%s15 + $0x8c] sm:$0xf]
    %v579 = vld [vmem:[%s15 + $0x90] sm:$0xf]
    %v580 = vld [vmem:[%s15 + $0x94] sm:$0xf]
    %v581 = vld [vmem:[%s15 + $0x98] sm:$0xf]
    %v582 = vld [vmem:[%s15 + $0x9c] sm:$0xf]
    %v583 = vld [vmem:[%s15 + $0xa0] sm:$0xf]
    %v584 = vld [vmem:[%s15 + $0xa4] sm:$0xf]
    %v585 = vld [vmem:[%s15 + $0xa8] sm:$0xf]
    %v586 = vld [vmem:[%s15 + $0xac] sm:$0xf]
    %v587 = vld [vmem:[%s15 + $0xb0] sm:$0xf]
    %v588 = vld [vmem:[%s15 + $0xb4] sm:$0xf]
    %v589 = vld [vmem:[%s15 + $0xb8] sm:$0xf]
    %v590 = vld [vmem:[%s15 + $0xbc] sm:$0xf]
    %v591 = vld [vmem:[%s15 + $0xc0] sm:$0xf]
    %v592 = vld [vmem:[%s15 + $0xc4] sm:$0xf]
    %v593 = vld [vmem:[%s15 + $0xc8] sm:$0xf]
    %v594 = vld [vmem:[%s15 + $0xcc] sm:$0xf]
    %v595 = vld [vmem:[%s15 + $0xd0] sm:$0xf]
    %v596 = vld [vmem:[%s15 + $0xd4] sm:$0xf]
    %v597 = vld [vmem:[%s15 + $0xd8] sm:$0xf]
    %v598 = vld [vmem:[%s15 + $0xdc] sm:$0xf]
    %v599 = vld [vmem:[%s15 + $0xe0] sm:$0xf]
    %v600 = vld [vmem:[%s15 + $0xe4] sm:$0xf]
    %v601 = vld [vmem:[%s15 + $0xe8] sm:$0xf]
    %v602 = vld [vmem:[%s15 + $0xec] sm:$0xf]
    %v603 = vld [vmem:[%s15 + $0xf0] sm:$0xf]
    %v604 = vld [vmem:[%s15 + $0xf4] sm:$0xf]
    %v605 = vld [vmem:[%s15 + $0xf8] sm:$0xf]
    %v606 = vld [vmem:[%s15 + $0xfc] sm:$0xf]
    %v607 = vld [vmem:[%s15 + $0x100] sm:$0xf]
    %v608 = vld [vmem:[%s15 + $0x104] sm:$0xf]
    %v609 = vld [vmem:[%s15 + $0x108] sm:$0xf]
    %v610 = vld [vmem:[%s15 + $0x10c] sm:$0xf]
    %v611 = vld [vmem:[%s15 + $0x110] sm:$0xf]
    %v612 = vld [vmem:[%s15 + $0x114] sm:$0xf]
    %v613 = vld [vmem:[%s15 + $0x118] sm:$0xf]
    %v614 = vld [vmem:[%s15 + $0x11c] sm:$0xf]
    %v615 = vld [vmem:[%s15 + $0x120] sm:$0xf]
    %v616 = vld [vmem:[%s15 + $0x124] sm:$0xf]
    %v617 = vld [vmem:[%s15 + $0x128] sm:$0xf]
    %v618 = vld [vmem:[%s15 + $0x12c] sm:$0xf]
    %v619 = vld [vmem:[%s15 + $0x130] sm:$0xf]
    %v620 = vld [vmem:[%s15 + $0x134] sm:$0xf]
    %v621 = vld [vmem:[%s15 + $0x138] sm:$0xf]
    %v622 = vld [vmem:[%s15 + $0x13c] sm:$0xf]
    %v623 = vld [vmem:[%s15 + $0x140] sm:$0xf]
    %v624 = vld [vmem:[%s15 + $0x144] sm:$0xf]
    %v625 = vld [vmem:[%s15 + $0x148] sm:$0xf]
    %v626 = vld [vmem:[%s15 + $0x14c] sm:$0xf]
    %v627 = vld [vmem:[%s15 + $0x150] sm:$0xf]
    %v628 = vld [vmem:[%s15 + $0x154] sm:$0xf]
    %v629 = vld [vmem:[%s15 + $0x158] sm:$0xf]
    %v630 = vld [vmem:[%s15 + $0x15c] sm:$0xf]
    %v631 = vld [vmem:[%s15 + $0x160] sm:$0xf]
    %v632 = vld [vmem:[%s15 + $0x164] sm:$0xf]
    %v633 = vld [vmem:[%s15 + $0x168] sm:$0xf]
    %v634 = vld [vmem:[%s15 + $0x16c] sm:$0xf]
    %v635 = vld [vmem:[%s15 + $0x170] sm:$0xf]
    %v636 = vld [vmem:[%s15 + $0x174] sm:$0xf]
    %v637 = vld [vmem:[%s15 + $0x178] sm:$0xf]
    %v638 = vld [vmem:[%s15 + $0x17c] sm:$0xf]
    %v639 = vld [vmem:[%s15 + $0x180] sm:$0xf]
    %v640 = vld [vmem:[%s15 + $0x184] sm:$0xf]
    %v641 = vld [vmem:[%s15 + $0x188] sm:$0xf]
    %v642 = vld [vmem:[%s15 + $0x18c] sm:$0xf]
    %v643 = vld [vmem:[%s15 + $0x190] sm:$0xf]
    %v644 = vld [vmem:[%s15 + $0x194] sm:$0xf]
    %v645 = vld [vmem:[%s15 + $0x198] sm:$0xf]
    %v646 = vld [vmem:[%s15 + $0x19c] sm:$0xf]
    %v647 = vld [vmem:[%s15 + $0x1a0] sm:$0xf]
    %v648 = vld [vmem:[%s15 + $0x1a4] sm:$0xf]
    %v649 = vld [vmem:[%s15 + $0x1a8] sm:$0xf]
    %v650 = vld [vmem:[%s15 + $0x1ac] sm:$0xf]
    %v651 = vld [vmem:[%s15 + $0x1b0] sm:$0xf]
    %v652 = vld [vmem:[%s15 + $0x1b4] sm:$0xf]
    %v653 = vld [vmem:[%s15 + $0x1b8] sm:$0xf]
    %v654 = vld [vmem:[%s15 + $0x1bc] sm:$0xf]
    %v655 = vld [vmem:[%s15 + $0x1c0] sm:$0xf]
    %v656 = vld [vmem:[%s15 + $0x1c4] sm:$0xf]
    %v657 = vld [vmem:[%s15 + $0x1c8] sm:$0xf]
    %v658 = vld [vmem:[%s15 + $0x1cc] sm:$0xf]
    %v659 = vld [vmem:[%s15 + $0x1d0] sm:$0xf]
    %v660 = vld [vmem:[%s15 + $0x1d4] sm:$0xf]
    %v661 = vld [vmem:[%s15 + $0x1d8] sm:$0xf]
    %v662 = vld [vmem:[%s15 + $0x1dc] sm:$0xf]
    %v663 = vld [vmem:[%s15 + $0x1e0] sm:$0xf]
    %v664 = vld [vmem:[%s15 + $0x1e4] sm:$0xf]
    %v665 = vld [vmem:[%s15 + $0x1e8] sm:$0xf]
    %v666 = vld [vmem:[%s15 + $0x1ec] sm:$0xf]
    %v667 = vld [vmem:[%s15 + $0x1f0] sm:$0xf]
    %v668 = vld [vmem:[%s15 + $0x1f4] sm:$0xf]
    %v669 = vld [vmem:[%s15 + $0x1f8] sm:$0xf]
    %v670 = vld [vmem:[%s15 + $0x1fc] sm:$0xf]
    %v671 = vld [vmem:[#allocation26] sm:$0x1]
    %v672 = vld [vmem:[#allocation28] sm:$0xff]
    %v673 = vld [vmem:[#allocation28 + $0x8] sm:$0xff]
    %v674 = vld [vmem:[#allocation28 + $0x10] sm:$0xff]
    %v675 = vld [vmem:[#allocation28 + $0x18] sm:$0xff]
    %v676 = vld [vmem:[#allocation28 + $0x20] sm:$0xff]
    %v677 = vld [vmem:[#allocation28 + $0x28] sm:$0xff]
    %v678 = vld [vmem:[#allocation28 + $0x30] sm:$0xff]
    %v679 = vld [vmem:[#allocation28 + $0x38] sm:$0xff]
    %v680 = vld [vmem:[#allocation28 + $0x40] sm:$0xff]
    %v681 = vld [vmem:[#allocation28 + $0x48] sm:$0xff]
    %v682 = vld [vmem:[#allocation28 + $0x50] sm:$0xff]
    %v683 = vld [vmem:[#allocation28 + $0x58] sm:$0xff]
    %v684 = vld [vmem:[#allocation28 + $0x60] sm:$0xff]
    %v685 = vld [vmem:[#allocation28 + $0x68] sm:$0xff]
    %v686 = vld [vmem:[#allocation28 + $0x70] sm:$0xff]
    %v687 = vld [vmem:[#allocation28 + $0x78] sm:$0xff]
    %v688 = vld [vmem:[#allocation29] sm:$0xff]
    %v689 = vld [vmem:[#allocation29 + $0x8] sm:$0xff]
    %v690 = vld [vmem:[#allocation29 + $0x10] sm:$0xff]
    %v691 = vld [vmem:[#allocation29 + $0x18] sm:$0xff]
    %v692 = vld [vmem:[#allocation29 + $0x20] sm:$0xff]
    %v693 = vld [vmem:[#allocation29 + $0x28] sm:$0xff]
    %v694 = vld [vmem:[#allocation29 + $0x30] sm:$0xff]
    %v695 = vld [vmem:[#allocation29 + $0x38] sm:$0xff]
    %v696 = vld [vmem:[#allocation29 + $0x40] sm:$0xff]
    %v697 = vld [vmem:[#allocation29 + $0x48] sm:$0xff]
    %v698 = vld [vmem:[#allocation29 + $0x50] sm:$0xff]
    %v699 = vld [vmem:[#allocation29 + $0x58] sm:$0xff]
    %v700 = vld [vmem:[#allocation29 + $0x60] sm:$0xff]
    %v701 = vld [vmem:[#allocation29 + $0x68] sm:$0xff]
    %v702 = vld [vmem:[#allocation29 + $0x70] sm:$0xff]
    %v703 = vld [vmem:[#allocation29 + $0x78] sm:$0xff]
    %v704 = vld [vmem:[#allocation29 + $0x80] sm:$0xff]
    %v705 = vld [vmem:[#allocation29 + $0x88] sm:$0xff]
    %v706 = vld [vmem:[#allocation29 + $0x90] sm:$0xff]
    %v707 = vld [vmem:[#allocation29 + $0x98] sm:$0xff]
    %v708 = vld [vmem:[#allocation29 + $0xa0] sm:$0xff]
    %v709 = vld [vmem:[#allocation29 + $0xa8] sm:$0xff]
    %v710 = vld [vmem:[#allocation29 + $0xb0] sm:$0xff]
    %v711 = vld [vmem:[#allocation29 + $0xb8] sm:$0xff]
    %v712 = vld [vmem:[#allocation29 + $0xc0] sm:$0xff]
    %v713 = vld [vmem:[#allocation29 + $0xc8] sm:$0xff]
    %v714 = vld [vmem:[#allocation29 + $0xd0] sm:$0xff]
    %v715 = vld [vmem:[#allocation29 + $0xd8] sm:$0xff]
    %v716 = vld [vmem:[#allocation29 + $0xe0] sm:$0xff]
    %v717 = vld [vmem:[#allocation29 + $0xe8] sm:$0xff]
    %v718 = vld [vmem:[#allocation29 + $0xf0] sm:$0xff]
    %v719 = vld [vmem:[#allocation29 + $0xf8] sm:$0xff]
    %v720 = vld [vmem:[#allocation31] sm:$0xff]
    %s721 = scalar_lea.sflag [#allocation4], 1
    // Predicated region
    $region170: #{tpu_custom_call.1} parent=1 // pred_check
      _
    $region171: #{tpu_custom_call.1} parent=1 // pred_check_branch
      %723 = sbr.rel target = $region173
    $region172: #{tpu_custom_call.1} parent=1 // pred_region
      %724 = sst [smem:[#allocation38]] [#allocation41]
      %725 = sst [smem:[#allocation39]] [#allocation40]
    $region173: #{tpu_custom_call.1} parent=1 // pred_fallthru
      _
    %727 = shalt.err (0)
    %s729 = sshll.u32 %s20, 4
    %s730 = int_to_ptr.hbm [resolvable:$true] %s729
    %s731 = sshll.u32 [#allocation3], 4
    %s732 = int_to_ptr.vmem [resolvable:$true] %s731
    %734 = dma.hbm_to_vmem [thread:$0]  %s730, 65536, %s732, %s721
    %v735 = vld [vmem:[#allocation32] sm:$0xff]
    %v736 = vld [vmem:[%s22] sm:$0xf]
    %v737 = vld [vmem:[%s22 + $0x4] sm:$0xf]
    %v738 = vld [vmem:[%s22 + $0x8] sm:$0xf]
    %v739 = vld [vmem:[%s22 + $0xc] sm:$0xf]
    %v740 = vld [vmem:[%s22 + $0x10] sm:$0xf]
    %v741 = vld [vmem:[%s22 + $0x14] sm:$0xf]
    %v742 = vld [vmem:[%s22 + $0x18] sm:$0xf]
    %v743 = vld [vmem:[%s22 + $0x1c] sm:$0xf]
    %v744 = vld [vmem:[%s22 + $0x20] sm:$0xf]
    %v745 = vld [vmem:[%s22 + $0x24] sm:$0xf]
    %v746 = vld [vmem:[%s22 + $0x28] sm:$0xf]
    %v747 = vld [vmem:[%s22 + $0x2c] sm:$0xf]
    %v748 = vld [vmem:[%s22 + $0x30] sm:$0xf]
    %v749 = vld [vmem:[%s22 + $0x34] sm:$0xf]
    %v750 = vld [vmem:[%s22 + $0x38] sm:$0xf]
    %v751 = vld [vmem:[%s22 + $0x3c] sm:$0xf]
    %v752 = vld [vmem:[%s22 + $0x40] sm:$0xf]
    %v753 = vld [vmem:[%s22 + $0x44] sm:$0xf]
    %v754 = vld [vmem:[%s22 + $0x48] sm:$0xf]
    %v755 = vld [vmem:[%s22 + $0x4c] sm:$0xf]
    %v756 = vld [vmem:[%s22 + $0x50] sm:$0xf]
    %v757 = vld [vmem:[%s22 + $0x54] sm:$0xf]
    %v758 = vld [vmem:[%s22 + $0x58] sm:$0xf]
    %v759 = vld [vmem:[%s22 + $0x5c] sm:$0xf]
    %v760 = vld [vmem:[%s22 + $0x60] sm:$0xf]
    %v761 = vld [vmem:[%s22 + $0x64] sm:$0xf]
    %v762 = vld [vmem:[%s22 + $0x68] sm:$0xf]
    %v763 = vld [vmem:[%s22 + $0x6c] sm:$0xf]
    %v764 = vld [vmem:[%s22 + $0x70] sm:$0xf]
    %v765 = vld [vmem:[%s22 + $0x74] sm:$0xf]
    %v766 = vld [vmem:[%s22 + $0x78] sm:$0xf]
    %v767 = vld [vmem:[%s22 + $0x7c] sm:$0xf]
    %v768 = vld [vmem:[%s22 + $0x80] sm:$0xf]
    %v769 = vld [vmem:[%s22 + $0x84] sm:$0xf]
    %v770 = vld [vmem:[%s22 + $0x88] sm:$0xf]
    %v771 = vld [vmem:[%s22 + $0x8c] sm:$0xf]
    %v772 = vld [vmem:[%s22 + $0x90] sm:$0xf]
    %v773 = vld [vmem:[%s22 + $0x94] sm:$0xf]
    %v774 = vld [vmem:[%s22 + $0x98] sm:$0xf]
    %v775 = vld [vmem:[%s22 + $0x9c] sm:$0xf]
    %v776 = vld [vmem:[%s22 + $0xa0] sm:$0xf]
    %v777 = vld [vmem:[%s22 + $0xa4] sm:$0xf]
    %v778 = vld [vmem:[%s22 + $0xa8] sm:$0xf]
    %v779 = vld [vmem:[%s22 + $0xac] sm:$0xf]
    %v780 = vld [vmem:[%s22 + $0xb0] sm:$0xf]
    %v781 = vld [vmem:[%s22 + $0xb4] sm:$0xf]
    %v782 = vld [vmem:[%s22 + $0xb8] sm:$0xf]
    %v783 = vld [vmem:[%s22 + $0xbc] sm:$0xf]
    %v784 = vld [vmem:[%s22 + $0xc0] sm:$0xf]
    %v785 = vld [vmem:[%s22 + $0xc4] sm:$0xf]
    %v786 = vld [vmem:[%s22 + $0xc8] sm:$0xf]
    %v787 = vld [vmem:[%s22 + $0xcc] sm:$0xf]
    %v788 = vld [vmem:[%s22 + $0xd0] sm:$0xf]
    %v789 = vld [vmem:[%s22 + $0xd4] sm:$0xf]
    %v790 = vld [vmem:[%s22 + $0xd8] sm:$0xf]
    %v791 = vld [vmem:[%s22 + $0xdc] sm:$0xf]
    %v792 = vld [vmem:[%s22 + $0xe0] sm:$0xf]
    %v793 = vld [vmem:[%s22 + $0xe4] sm:$0xf]
    %v794 = vld [vmem:[%s22 + $0xe8] sm:$0xf]
    %v795 = vld [vmem:[%s22 + $0xec] sm:$0xf]
    %v796 = vld [vmem:[%s22 + $0xf0] sm:$0xf]
    %v797 = vld [vmem:[%s22 + $0xf4] sm:$0xf]
    %v798 = vld [vmem:[%s22 + $0xf8] sm:$0xf]
    %v799 = vld [vmem:[%s22 + $0xfc] sm:$0xf]
    %v800 = vld [vmem:[%s22 + $0x100] sm:$0xf]
    %v801 = vld [vmem:[%s22 + $0x104] sm:$0xf]
    %v802 = vld [vmem:[%s22 + $0x108] sm:$0xf]
    %v803 = vld [vmem:[%s22 + $0x10c] sm:$0xf]
    %v804 = vld [vmem:[%s22 + $0x110] sm:$0xf]
    %v805 = vld [vmem:[%s22 + $0x114] sm:$0xf]
    %v806 = vld [vmem:[%s22 + $0x118] sm:$0xf]
    %v807 = vld [vmem:[%s22 + $0x11c] sm:$0xf]
    %v808 = vld [vmem:[%s22 + $0x120] sm:$0xf]
    %v809 = vld [vmem:[%s22 + $0x124] sm:$0xf]
    %v810 = vld [vmem:[%s22 + $0x128] sm:$0xf]
    %v811 = vld [vmem:[%s22 + $0x12c] sm:$0xf]
    %v812 = vld [vmem:[%s22 + $0x130] sm:$0xf]
    %v813 = vld [vmem:[%s22 + $0x134] sm:$0xf]
    %v814 = vld [vmem:[%s22 + $0x138] sm:$0xf]
    %v815 = vld [vmem:[%s22 + $0x13c] sm:$0xf]
    %v816 = vld [vmem:[%s22 + $0x140] sm:$0xf]
    %v817 = vld [vmem:[%s22 + $0x144] sm:$0xf]
    %v818 = vld [vmem:[%s22 + $0x148] sm:$0xf]
    %v819 = vld [vmem:[%s22 + $0x14c] sm:$0xf]
    %v820 = vld [vmem:[%s22 + $0x150] sm:$0xf]
    %v821 = vld [vmem:[%s22 + $0x154] sm:$0xf]
    %v822 = vld [vmem:[%s22 + $0x158] sm:$0xf]
    %v823 = vld [vmem:[%s22 + $0x15c] sm:$0xf]
    %v824 = vld [vmem:[%s22 + $0x160] sm:$0xf]
    %v825 = vld [vmem:[%s22 + $0x164] sm:$0xf]
    %v826 = vld [vmem:[%s22 + $0x168] sm:$0xf]
    %v827 = vld [vmem:[%s22 + $0x16c] sm:$0xf]
    %v828 = vld [vmem:[%s22 + $0x170] sm:$0xf]
    %v829 = vld [vmem:[%s22 + $0x174] sm:$0xf]
    %v830 = vld [vmem:[%s22 + $0x178] sm:$0xf]
    %v831 = vld [vmem:[%s22 + $0x17c] sm:$0xf]
    %v832 = vld [vmem:[%s22 + $0x180] sm:$0xf]
    %v833 = vld [vmem:[%s22 + $0x184] sm:$0xf]
    %v834 = vld [vmem:[%s22 + $0x188] sm:$0xf]
    %v835 = vld [vmem:[%s22 + $0x18c] sm:$0xf]
    %v836 = vld [vmem:[%s22 + $0x190] sm:$0xf]
    %v837 = vld [vmem:[%s22 + $0x194] sm:$0xf]
    %v838 = vld [vmem:[%s22 + $0x198] sm:$0xf]
    %v839 = vld [vmem:[%s22 + $0x19c] sm:$0xf]
    %v840 = vld [vmem:[%s22 + $0x1a0] sm:$0xf]
    %v841 = vld [vmem:[%s22 + $0x1a4] sm:$0xf]
    %v842 = vld [vmem:[%s22 + $0x1a8] sm:$0xf]
    %v843 = vld [vmem:[%s22 + $0x1ac] sm:$0xf]
    %v844 = vld [vmem:[%s22 + $0x1b0] sm:$0xf]
    %v845 = vld [vmem:[%s22 + $0x1b4] sm:$0xf]
    %v846 = vld [vmem:[%s22 + $0x1b8] sm:$0xf]
    %v847 = vld [vmem:[%s22 + $0x1bc] sm:$0xf]
    %v848 = vld [vmem:[%s22 + $0x1c0] sm:$0xf]
    %v849 = vld [vmem:[%s22 + $0x1c4] sm:$0xf]
    %v850 = vld [vmem:[%s22 + $0x1c8] sm:$0xf]
    %v851 = vld [vmem:[%s22 + $0x1cc] sm:$0xf]
    %v852 = vld [vmem:[%s22 + $0x1d0] sm:$0xf]
    %v853 = vld [vmem:[%s22 + $0x1d4] sm:$0xf]
    %v854 = vld [vmem:[%s22 + $0x1d8] sm:$0xf]
    %v855 = vld [vmem:[%s22 + $0x1dc] sm:$0xf]
    %v856 = vld [vmem:[%s22 + $0x1e0] sm:$0xf]
    %v857 = vld [vmem:[%s22 + $0x1e4] sm:$0xf]
    %v858 = vld [vmem:[%s22 + $0x1e8] sm:$0xf]
    %v859 = vld [vmem:[%s22 + $0x1ec] sm:$0xf]
    %v860 = vld [vmem:[%s22 + $0x1f0] sm:$0xf]
    %v861 = vld [vmem:[%s22 + $0x1f4] sm:$0xf]
    %v862 = vld [vmem:[%s22 + $0x1f8] sm:$0xf]
    %v863 = vld [vmem:[%s22 + $0x1fc] sm:$0xf]
    %v864 = vld [vmem:[#allocation34] sm:$0x1]
    %v865 = vld [vmem:[#allocation5] sm:$0xff]
    %v866 = vld [vmem:[#allocation5 + $0x8] sm:$0xff]
    %v867 = vld [vmem:[#allocation8] sm:$0xff]
    %v868 = vld [vmem:[#allocation8 + $0x8] sm:$0xff]
    %v869 = vpack.c.bf16 %v866, %v865
    %v871 = vperm.slane %v372, 0
    %v872 = vperm.slane %v372, 1
    %v873 = vperm.slane %v372, 2
    %v874 = vperm.slane %v372, 3
    %v875 = vperm.slane %v372, 4
    %v876 = vperm.slane %v372, 5
    %v877 = vperm.slane %v372, 6
    %v878 = vperm.slane %v372, 7
    %v907 = vunpack.c.l.b16 %v352
    %v908 = vunpack.c.h.b16 %v352
    %v909 = vunpack.c.l.b16 %v353
    %v910 = vunpack.c.h.b16 %v353
    %v911 = vunpack.c.l.b16 %v354
    %v912 = vunpack.c.h.b16 %v354
    %v913 = vunpack.c.l.b16 %v355
    %v914 = vunpack.c.h.b16 %v355
    %v915 = vunpack.c.l.b16 %v356
    %v916 = vunpack.c.h.b16 %v356
    %v917 = vunpack.c.l.b16 %v357
    %v918 = vunpack.c.h.b16 %v357
    %v919 = vunpack.c.l.b16 %v358
    %v920 = vunpack.c.h.b16 %v358
    %v921 = vunpack.c.l.b16 %v359
    %v922 = vunpack.c.h.b16 %v359
    %v923 = vunpack.c.l.b16 %v360
    %v924 = vunpack.c.h.b16 %v360
    %v925 = vunpack.c.l.b16 %v361
    %v926 = vunpack.c.h.b16 %v361
    %v927 = vunpack.c.l.b16 %v362
    %v928 = vunpack.c.h.b16 %v362
    %v929 = vunpack.c.l.b16 %v363
    %v930 = vunpack.c.h.b16 %v363
    %v931 = vunpack.c.l.b16 %v364
    %v932 = vunpack.c.h.b16 %v364
    %v933 = vunpack.c.l.b16 %v365
    %v934 = vunpack.c.h.b16 %v365
    %v935 = vunpack.c.l.b16 %v366
    %v936 = vunpack.c.h.b16 %v366
    %v937 = vunpack.c.l.b16 %v367
    %v938 = vunpack.c.h.b16 %v367
    %v939 = vunpack.c.l.b16 %v368
    %v940 = vunpack.c.h.b16 %v368
    %v941 = vunpack.c.l.b16 %v369
    %v942 = vunpack.c.h.b16 %v369
    %v943 = vunpack.c.l.b16 %v370
    %v944 = vunpack.c.h.b16 %v370
    %v945 = vunpack.c.l.b16 %v371
    %v946 = vunpack.c.h.b16 %v371
    %v947 = vpack.c.b16 %v915, %v907
    %v948 = vpack.c.b16 %v916, %v908
    %v949 = vpack.c.b16 %v917, %v909
    %v950 = vpack.c.b16 %v918, %v910
    %v951 = vpack.c.b16 %v919, %v911
    %v952 = vpack.c.b16 %v920, %v912
    %v953 = vpack.c.b16 %v921, %v913
    %v954 = vpack.c.b16 %v922, %v914
    %v955 = vpack.c.b16 %v931, %v923
    %v956 = vpack.c.b16 %v932, %v924
    %v957 = vpack.c.b16 %v933, %v925
    %v958 = vpack.c.b16 %v934, %v926
    %v959 = vpack.c.b16 %v935, %v927
    %v960 = vpack.c.b16 %v936, %v928
    %v961 = vpack.c.b16 %v937, %v929
    %v962 = vpack.c.b16 %v938, %v930
    %v963 = vpack.c.b16 %v939, %v939
    %v964 = vpack.c.b16 %v940, %v940
    %v965 = vpack.c.b16 %v941, %v941
    %v966 = vpack.c.b16 %v942, %v942
    %v967 = vpack.c.b16 %v943, %v943
    %v968 = vpack.c.b16 %v944, %v944
    %v969 = vpack.c.b16 %v945, %v945
    %v970 = vpack.c.b16 %v946, %v946
    %vm987 = vcmask 326656
    %v989 = vsel %vm987, %v869, 0
    %vm991 = vcmask 1043456
    %v993 = vsel %vm991, %v963, 0
    %v996 = vsel %vm991, %v964, 0
    %v999 = vsel %vm991, %v965, 0
    %v1002 = vsel %vm991, %v966, 0
    %v1005 = vsel %vm991, %v967, 0
    %v1008 = vsel %vm991, %v968, 0
    %v1011 = vsel %vm991, %v969, 0
    %v1014 = vsel %vm991, %v970, 0
    %1016 = vmatpush.bf16.msra.mxu0 0
    %1017 = vmatpush.bf16.msra.mxu0 0
    %1018 = vmatpush.bf16.msra.mxu0 0
    %1019 = vmatpush.bf16.msra.mxu0 0
    %1020 = vmatpush.bf16.msra.mxu0 0
    %1021 = vmatpush.bf16.msra.mxu0 %v993
    %1022 = vmatpush.bf16.msra.mxu0 %v955
    %1023 = vmatpush.bf16.msra.mxu0 %v947
    %1024 = vmatmul.bf16.gmra.mxu0 %v989
    %v1025 = vpop.f32.mrf.mxu0
    %v1026 = vadd.f32 %v871, %v1025
    %v1027 = vpop.f32.mrf.mxu0
    %v1028 = vadd.f32 %v871, %v1027
    %1029 = vdwg.mxu0
    %1030 = vmatpush.bf16.msra.mxu0 0
    %1031 = vmatpush.bf16.msra.mxu0 0
    %1032 = vmatpush.bf16.msra.mxu0 0
    %1033 = vmatpush.bf16.msra.mxu0 0
    %1034 = vmatpush.bf16.msra.mxu0 0
    %1035 = vmatpush.bf16.msra.mxu0 %v996
    %1036 = vmatpush.bf16.msra.mxu0 %v956
    %1037 = vmatpush.bf16.msra.mxu0 %v948
    %1038 = vmatmul.bf16.gmra.mxu0 %v989
    %v1039 = vpop.f32.mrf.mxu0
    %v1040 = vadd.f32 %v872, %v1039
    %v1041 = vpop.f32.mrf.mxu0
    %v1042 = vadd.f32 %v872, %v1041
    %1043 = vdwg.mxu0
    %1044 = vmatpush.bf16.msra.mxu0 0
    %1045 = vmatpush.bf16.msra.mxu0 0
    %1046 = vmatpush.bf16.msra.mxu0 0
    %1047 = vmatpush.bf16.msra.mxu0 0
    %1048 = vmatpush.bf16.msra.mxu0 0
    %1049 = vmatpush.bf16.msra.mxu0 %v999
    %1050 = vmatpush.bf16.msra.mxu0 %v957
    %1051 = vmatpush.bf16.msra.mxu0 %v949
    %1052 = vmatmul.bf16.gmra.mxu0 %v989
    %v1053 = vpop.f32.mrf.mxu0
    %v1054 = vadd.f32 %v873, %v1053
    %v1055 = vpop.f32.mrf.mxu0
    %v1056 = vadd.f32 %v873, %v1055
    %1057 = vdwg.mxu0
    %1058 = vmatpush.bf16.msra.mxu0 0
    %1059 = vmatpush.bf16.msra.mxu0 0
    %1060 = vmatpush.bf16.msra.mxu0 0
    %1061 = vmatpush.bf16.msra.mxu0 0
    %1062 = vmatpush.bf16.msra.mxu0 0
    %1063 = vmatpush.bf16.msra.mxu0 %v1002
    %1064 = vmatpush.bf16.msra.mxu0 %v958
    %1065 = vmatpush.bf16.msra.mxu0 %v950
    %1066 = vmatmul.bf16.gmra.mxu0 %v989
    %v1067 = vpop.f32.mrf.mxu0
    %v1068 = vadd.f32 %v874, %v1067
    %v1069 = vpop.f32.mrf.mxu0
    %v1070 = vadd.f32 %v874, %v1069
    %1071 = vdwg.mxu0
    %1072 = vmatpush.bf16.msra.mxu0 0
    %1073 = vmatpush.bf16.msra.mxu0 0
    %1074 = vmatpush.bf16.msra.mxu0 0
    %1075 = vmatpush.bf16.msra.mxu0 0
    %1076 = vmatpush.bf16.msra.mxu0 0
    %1077 = vmatpush.bf16.msra.mxu0 %v1005
    %1078 = vmatpush.bf16.msra.mxu0 %v959
    %1079 = vmatpush.bf16.msra.mxu0 %v951
    %1080 = vmatmul.bf16.gmra.mxu0 %v989
    %v1081 = vpop.f32.mrf.mxu0
    %v1082 = vadd.f32 %v875, %v1081
    %v1083 = vpop.f32.mrf.mxu0
    %v1084 = vadd.f32 %v875, %v1083
    %1085 = vdwg.mxu0
    %1086 = vmatpush.bf16.msra.mxu0 0
    %1087 = vmatpush.bf16.msra.mxu0 0
    %1088 = vmatpush.bf16.msra.mxu0 0
    %1089 = vmatpush.bf16.msra.mxu0 0
    %1090 = vmatpush.bf16.msra.mxu0 0
    %1091 = vmatpush.bf16.msra.mxu0 %v1008
    %1092 = vmatpush.bf16.msra.mxu0 %v960
    %1093 = vmatpush.bf16.msra.mxu0 %v952
    %1094 = vmatmul.bf16.gmra.mxu0 %v989
    %v1095 = vpop.f32.mrf.mxu0
    %v1096 = vadd.f32 %v876, %v1095
    %v1097 = vpop.f32.mrf.mxu0
    %v1098 = vadd.f32 %v876, %v1097
    %1099 = vdwg.mxu0
    %1100 = vmatpush.bf16.msra.mxu0 0
    %1101 = vmatpush.bf16.msra.mxu0 0
    %1102 = vmatpush.bf16.msra.mxu0 0
    %1103 = vmatpush.bf16.msra.mxu0 0
    %1104 = vmatpush.bf16.msra.mxu0 0
    %1105 = vmatpush.bf16.msra.mxu0 %v1011
    %1106 = vmatpush.bf16.msra.mxu0 %v961
    %1107 = vmatpush.bf16.msra.mxu0 %v953
    %1108 = vmatmul.bf16.gmra.mxu0 %v989
    %v1109 = vpop.f32.mrf.mxu0
    %v1110 = vadd.f32 %v877, %v1109
    %v1111 = vpop.f32.mrf.mxu0
    %v1112 = vadd.f32 %v877, %v1111
    %1113 = vdwg.mxu0
    %1114 = vmatpush.bf16.msra.mxu0 0
    %1115 = vmatpush.bf16.msra.mxu0 0
    %1116 = vmatpush.bf16.msra.mxu0 0
    %1117 = vmatpush.bf16.msra.mxu0 0
    %1118 = vmatpush.bf16.msra.mxu0 0
    %1119 = vmatpush.bf16.msra.mxu0 %v1014
    %1120 = vmatpush.bf16.msra.mxu0 %v962
    %1121 = vmatpush.bf16.msra.mxu0 %v954
    %1122 = vmatmul.bf16.gmra.mxu0 %v989
    %v1123 = vpop.f32.mrf.mxu0
    %v1124 = vadd.f32 %v878, %v1123
    %v1125 = vpop.f32.mrf.mxu0
    %v1126 = vadd.f32 %v878, %v1125
    %1127 = vdwg.mxu0
    %vm1128 = vcmp.gt.f32.partialorder %v1026, 0.0
    %vm1129 = vcmp.gt.f32.partialorder %v1040, 0.0
    %vm1130 = vcmp.gt.f32.partialorder %v1054, 0.0
    %vm1131 = vcmp.gt.f32.partialorder %v1068, 0.0
    %vm1132 = vcmp.gt.f32.partialorder %v1082, 0.0
    %vm1133 = vcmp.gt.f32.partialorder %v1096, 0.0
    %vm1134 = vcmp.gt.f32.partialorder %v1110, 0.0
    %vm1135 = vcmp.gt.f32.partialorder %v1124, 0.0
    %vm1136 = vcmp.gt.f32.partialorder %v1028, 0.0
    %vm1137 = vcmp.gt.f32.partialorder %v1042, 0.0
    %vm1138 = vcmp.gt.f32.partialorder %v1056, 0.0
    %vm1139 = vcmp.gt.f32.partialorder %v1070, 0.0
    %vm1140 = vcmp.gt.f32.partialorder %v1084, 0.0
    %vm1141 = vcmp.gt.f32.partialorder %v1098, 0.0
    %vm1142 = vcmp.gt.f32.partialorder %v1112, 0.0
    %vm1143 = vcmp.gt.f32.partialorder %v1126, 0.0
    %v1144 = vmul.f32 %v1026, 0.01
    %v1145 = vmul.f32 %v1040, 0.01
    %v1146 = vmul.f32 %v1054, 0.01
    %v1147 = vmul.f32 %v1068, 0.01
    %v1148 = vmul.f32 %v1082, 0.01
    %v1149 = vmul.f32 %v1096, 0.01
    %v1150 = vmul.f32 %v1110, 0.01
    %v1151 = vmul.f32 %v1124, 0.01
    %v1152 = vmul.f32 %v1028, 0.01
    %v1153 = vmul.f32 %v1042, 0.01
    %v1154 = vmul.f32 %v1056, 0.01
    %v1155 = vmul.f32 %v1070, 0.01
    %v1156 = vmul.f32 %v1084, 0.01
    %v1157 = vmul.f32 %v1098, 0.01
    %v1158 = vmul.f32 %v1112, 0.01
    %v1159 = vmul.f32 %v1126, 0.01
    %v1160 = vsel %vm1128, %v1026, %v1144
    %v1161 = vsel %vm1129, %v1040, %v1145
    %v1162 = vsel %vm1130, %v1054, %v1146
    %v1163 = vsel %vm1131, %v1068, %v1147
    %v1164 = vsel %vm1132, %v1082, %v1148
    %v1165 = vsel %vm1133, %v1096, %v1149
    %v1166 = vsel %vm1134, %v1110, %v1150
    %v1167 = vsel %vm1135, %v1124, %v1151
    %v1168 = vsel %vm1136, %v1028, %v1152
    %v1169 = vsel %vm1137, %v1042, %v1153
    %v1170 = vsel %vm1138, %v1056, %v1154
    %v1171 = vsel %vm1139, %v1070, %v1155
    %v1172 = vsel %vm1140, %v1084, %v1156
    %v1173 = vsel %vm1141, %v1098, %v1157
    %v1174 = vsel %vm1142, %v1112, %v1158
    %v1175 = vsel %vm1143, %v1126, %v1159
    %v1176 = vpack.c.bf16 %v1168, %v1160
    %v1177 = vpack.c.bf16 %v1169, %v1161
    %v1178 = vpack.c.bf16 %v1170, %v1162
    %v1179 = vpack.c.bf16 %v1171, %v1163
    %v1180 = vpack.c.bf16 %v1172, %v1164
    %v1181 = vpack.c.bf16 %v1173, %v1165
    %v1182 = vpack.c.bf16 %v1174, %v1166
    %v1183 = vpack.c.bf16 %v1175, %v1167
    %v1185 = vperm.slane %v501, 0
    %v1315 = vunpack.c.l.b16 %v373
    %v1316 = vunpack.c.l.b16 %v374
    %v1317 = vunpack.c.l.b16 %v375
    %v1318 = vunpack.c.l.b16 %v376
    %v1319 = vunpack.c.l.b16 %v377
    %v1320 = vunpack.c.l.b16 %v378
    %v1321 = vunpack.c.l.b16 %v379
    %v1322 = vunpack.c.l.b16 %v380
    %v1323 = vunpack.c.l.b16 %v381
    %v1324 = vunpack.c.l.b16 %v382
    %v1325 = vunpack.c.l.b16 %v383
    %v1326 = vunpack.c.l.b16 %v384
    %v1327 = vunpack.c.l.b16 %v385
    %v1328 = vunpack.c.l.b16 %v386
    %v1329 = vunpack.c.l.b16 %v387
    %v1330 = vunpack.c.l.b16 %v388
    %v1331 = vunpack.c.l.b16 %v389
    %v1332 = vunpack.c.l.b16 %v390
    %v1333 = vunpack.c.l.b16 %v391
    %v1334 = vunpack.c.l.b16 %v392
    %v1335 = vunpack.c.l.b16 %v393
    %v1336 = vunpack.c.l.b16 %v394
    %v1337 = vunpack.c.l.b16 %v395
    %v1338 = vunpack.c.l.b16 %v396
    %v1339 = vunpack.c.l.b16 %v397
    %v1340 = vunpack.c.l.b16 %v398
    %v1341 = vunpack.c.l.b16 %v399
    %v1342 = vunpack.c.l.b16 %v400
    %v1343 = vunpack.c.l.b16 %v401
    %v1344 = vunpack.c.l.b16 %v402
    %v1345 = vunpack.c.l.b16 %v403
    %v1346 = vunpack.c.l.b16 %v404
    %v1347 = vunpack.c.l.b16 %v405
    %v1348 = vunpack.c.l.b16 %v406
    %v1349 = vunpack.c.l.b16 %v407
    %v1350 = vunpack.c.l.b16 %v408
    %v1351 = vunpack.c.l.b16 %v409
    %v1352 = vunpack.c.l.b16 %v410
    %v1353 = vunpack.c.l.b16 %v411
    %v1354 = vunpack.c.l.b16 %v412
    %v1355 = vunpack.c.l.b16 %v413
    %v1356 = vunpack.c.l.b16 %v414
    %v1357 = vunpack.c.l.b16 %v415
    %v1358 = vunpack.c.l.b16 %v416
    %v1359 = vunpack.c.l.b16 %v417
    %v1360 = vunpack.c.l.b16 %v418
    %v1361 = vunpack.c.l.b16 %v419
    %v1362 = vunpack.c.l.b16 %v420
    %v1363 = vunpack.c.l.b16 %v421
    %v1364 = vunpack.c.l.b16 %v422
    %v1365 = vunpack.c.l.b16 %v423
    %v1366 = vunpack.c.l.b16 %v424
    %v1367 = vunpack.c.l.b16 %v425
    %v1368 = vunpack.c.l.b16 %v426
    %v1369 = vunpack.c.l.b16 %v427
    %v1370 = vunpack.c.l.b16 %v428
    %v1371 = vunpack.c.l.b16 %v429
    %v1372 = vunpack.c.l.b16 %v430
    %v1373 = vunpack.c.l.b16 %v431
    %v1374 = vunpack.c.l.b16 %v432
    %v1375 = vunpack.c.l.b16 %v433
    %v1376 = vunpack.c.l.b16 %v434
    %v1377 = vunpack.c.l.b16 %v435
    %v1378 = vunpack.c.l.b16 %v436
    %v1379 = vunpack.c.l.b16 %v437
    %v1380 = vunpack.c.l.b16 %v438
    %v1381 = vunpack.c.l.b16 %v439
    %v1382 = vunpack.c.l.b16 %v440
    %v1383 = vunpack.c.l.b16 %v441
    %v1384 = vunpack.c.l.b16 %v442
    %v1385 = vunpack.c.l.b16 %v443
    %v1386 = vunpack.c.l.b16 %v444
    %v1387 = vunpack.c.l.b16 %v445
    %v1388 = vunpack.c.l.b16 %v446
    %v1389 = vunpack.c.l.b16 %v447
    %v1390 = vunpack.c.l.b16 %v448
    %v1391 = vunpack.c.l.b16 %v449
    %v1392 = vunpack.c.l.b16 %v450
    %v1393 = vunpack.c.l.b16 %v451
    %v1394 = vunpack.c.l.b16 %v452
    %v1395 = vunpack.c.l.b16 %v453
    %v1396 = vunpack.c.l.b16 %v454
    %v1397 = vunpack.c.l.b16 %v455
    %v1398 = vunpack.c.l.b16 %v456
    %v1399 = vunpack.c.l.b16 %v457
    %v1400 = vunpack.c.l.b16 %v458
    %v1401 = vunpack.c.l.b16 %v459
    %v1402 = vunpack.c.l.b16 %v460
    %v1403 = vunpack.c.l.b16 %v461
    %v1404 = vunpack.c.l.b16 %v462
    %v1405 = vunpack.c.l.b16 %v463
    %v1406 = vunpack.c.l.b16 %v464
    %v1407 = vunpack.c.l.b16 %v465
    %v1408 = vunpack.c.l.b16 %v466
    %v1409 = vunpack.c.l.b16 %v467
    %v1410 = vunpack.c.l.b16 %v468
    %v1411 = vunpack.c.l.b16 %v469
    %v1412 = vunpack.c.l.b16 %v470
    %v1413 = vunpack.c.l.b16 %v471
    %v1414 = vunpack.c.l.b16 %v472
    %v1415 = vunpack.c.l.b16 %v473
    %v1416 = vunpack.c.l.b16 %v474
    %v1417 = vunpack.c.l.b16 %v475
    %v1418 = vunpack.c.l.b16 %v476
    %v1419 = vunpack.c.l.b16 %v477
    %v1420 = vunpack.c.l.b16 %v478
    %v1421 = vunpack.c.l.b16 %v479
    %v1422 = vunpack.c.l.b16 %v480
    %v1423 = vunpack.c.l.b16 %v481
    %v1424 = vunpack.c.l.b16 %v482
    %v1425 = vunpack.c.l.b16 %v483
    %v1426 = vunpack.c.l.b16 %v484
    %v1427 = vunpack.c.l.b16 %v485
    %v1428 = vunpack.c.l.b16 %v486
    %v1429 = vunpack.c.l.b16 %v487
    %v1430 = vunpack.c.l.b16 %v488
    %v1431 = vunpack.c.l.b16 %v489
    %v1432 = vunpack.c.l.b16 %v490
    %v1433 = vunpack.c.l.b16 %v491
    %v1434 = vunpack.c.l.b16 %v492
    %v1435 = vunpack.c.l.b16 %v493
    %v1436 = vunpack.c.l.b16 %v494
    %v1437 = vunpack.c.l.b16 %v495
    %v1438 = vunpack.c.l.b16 %v496
    %v1439 = vunpack.c.l.b16 %v497
    %v1440 = vunpack.c.l.b16 %v498
    %v1441 = vunpack.c.l.b16 %v499
    %v1442 = vunpack.c.l.b16 %v500
    %v1443 = vpack.c.b16 %v1316, %v1315
    %v1444 = vpack.c.b16 %v1318, %v1317
    %v1445 = vpack.c.b16 %v1320, %v1319
    %v1446 = vpack.c.b16 %v1322, %v1321
    %v1447 = vpack.c.b16 %v1324, %v1323
    %v1448 = vpack.c.b16 %v1326, %v1325
    %v1449 = vpack.c.b16 %v1328, %v1327
    %v1450 = vpack.c.b16 %v1330, %v1329
    %v1451 = vpack.c.b16 %v1332, %v1331
    %v1452 = vpack.c.b16 %v1334, %v1333
    %v1453 = vpack.c.b16 %v1336, %v1335
    %v1454 = vpack.c.b16 %v1338, %v1337
    %v1455 = vpack.c.b16 %v1340, %v1339
    %v1456 = vpack.c.b16 %v1342, %v1341
    %v1457 = vpack.c.b16 %v1344, %v1343
    %v1458 = vpack.c.b16 %v1346, %v1345
    %v1459 = vpack.c.b16 %v1348, %v1347
    %v1460 = vpack.c.b16 %v1350, %v1349
    %v1461 = vpack.c.b16 %v1352, %v1351
    %v1462 = vpack.c.b16 %v1354, %v1353
    %v1463 = vpack.c.b16 %v1356, %v1355
    %v1464 = vpack.c.b16 %v1358, %v1357
    %v1465 = vpack.c.b16 %v1360, %v1359
    %v1466 = vpack.c.b16 %v1362, %v1361
    %v1467 = vpack.c.b16 %v1364, %v1363
    %v1468 = vpack.c.b16 %v1366, %v1365
    %v1469 = vpack.c.b16 %v1368, %v1367
    %v1470 = vpack.c.b16 %v1370, %v1369
    %v1471 = vpack.c.b16 %v1372, %v1371
    %v1472 = vpack.c.b16 %v1374, %v1373
    %v1473 = vpack.c.b16 %v1376, %v1375
    %v1474 = vpack.c.b16 %v1378, %v1377
    %v1475 = vpack.c.b16 %v1380, %v1379
    %v1476 = vpack.c.b16 %v1382, %v1381
    %v1477 = vpack.c.b16 %v1384, %v1383
    %v1478 = vpack.c.b16 %v1386, %v1385
    %v1479 = vpack.c.b16 %v1388, %v1387
    %v1480 = vpack.c.b16 %v1390, %v1389
    %v1481 = vpack.c.b16 %v1392, %v1391
    %v1482 = vpack.c.b16 %v1394, %v1393
    %v1483 = vpack.c.b16 %v1396, %v1395
    %v1484 = vpack.c.b16 %v1398, %v1397
    %v1485 = vpack.c.b16 %v1400, %v1399
    %v1486 = vpack.c.b16 %v1402, %v1401
    %v1487 = vpack.c.b16 %v1404, %v1403
    %v1488 = vpack.c.b16 %v1406, %v1405
    %v1489 = vpack.c.b16 %v1408, %v1407
    %v1490 = vpack.c.b16 %v1410, %v1409
    %v1491 = vpack.c.b16 %v1412, %v1411
    %v1492 = vpack.c.b16 %v1414, %v1413
    %v1493 = vpack.c.b16 %v1416, %v1415
    %v1494 = vpack.c.b16 %v1418, %v1417
    %v1495 = vpack.c.b16 %v1420, %v1419
    %v1496 = vpack.c.b16 %v1422, %v1421
    %v1497 = vpack.c.b16 %v1424, %v1423
    %v1498 = vpack.c.b16 %v1426, %v1425
    %v1499 = vpack.c.b16 %v1428, %v1427
    %v1500 = vpack.c.b16 %v1430, %v1429
    %v1501 = vpack.c.b16 %v1432, %v1431
    %v1502 = vpack.c.b16 %v1434, %v1433
    %v1503 = vpack.c.b16 %v1436, %v1435
    %v1504 = vpack.c.b16 %v1438, %v1437
    %v1505 = vpack.c.b16 %v1440, %v1439
    %v1506 = vpack.c.b16 %v1442, %v1441
    %1571 = vmatpush.bf16.msra.mxu0 %v1450
    %1572 = vmatpush.bf16.msra.mxu0 %v1449
    %1573 = vmatpush.bf16.msra.mxu0 %v1448
    %1574 = vmatpush.bf16.msra.mxu0 %v1447
    %1575 = vmatpush.bf16.msra.mxu0 %v1446
    %1576 = vmatpush.bf16.msra.mxu0 %v1445
    %1577 = vmatpush.bf16.msra.mxu0 %v1444
    %1578 = vmatpush.bf16.msra.mxu0 %v1443
    %1579 = vmatmul.bf16.gmra.mxu0 %v1176
    %v1580 = vpop.f32.mrf.mxu0
    %v1581 = vadd.f32 %v1185, %v1580
    %v1582 = vpop.f32.mrf.mxu0
    %v1583 = vadd.f32 %v1185, %v1582
    %1584 = vdwg.mxu0
    %1585 = vmatpush.bf16.msra.mxu0 %v1458
    %1586 = vmatpush.bf16.msra.mxu0 %v1457
    %1587 = vmatpush.bf16.msra.mxu0 %v1456
    %1588 = vmatpush.bf16.msra.mxu0 %v1455
    %1589 = vmatpush.bf16.msra.mxu0 %v1454
    %1590 = vmatpush.bf16.msra.mxu0 %v1453
    %1591 = vmatpush.bf16.msra.mxu0 %v1452
    %1592 = vmatpush.bf16.msra.mxu0 %v1451
    %1593 = vmatmul.bf16.gmra.mxu0 %v1177
    %v1594 = vpop.f32.mrf.mxu0
    %v1595 = vadd.f32 %v1581, %v1594
    %v1596 = vpop.f32.mrf.mxu0
    %v1597 = vadd.f32 %v1583, %v1596
    %1598 = vdwg.mxu0
    %1599 = vmatpush.bf16.msra.mxu0 %v1466
    %1600 = vmatpush.bf16.msra.mxu0 %v1465
    %1601 = vmatpush.bf16.msra.mxu0 %v1464
    %1602 = vmatpush.bf16.msra.mxu0 %v1463
    %1603 = vmatpush.bf16.msra.mxu0 %v1462
    %1604 = vmatpush.bf16.msra.mxu0 %v1461
    %1605 = vmatpush.bf16.msra.mxu0 %v1460
    %1606 = vmatpush.bf16.msra.mxu0 %v1459
    %1607 = vmatmul.bf16.gmra.mxu0 %v1178
    %v1608 = vpop.f32.mrf.mxu0
    %v1609 = vadd.f32 %v1595, %v1608
    %v1610 = vpop.f32.mrf.mxu0
    %v1611 = vadd.f32 %v1597, %v1610
    %1612 = vdwg.mxu0
    %1613 = vmatpush.bf16.msra.mxu0 %v1474
    %1614 = vmatpush.bf16.msra.mxu0 %v1473
    %1615 = vmatpush.bf16.msra.mxu0 %v1472
    %1616 = vmatpush.bf16.msra.mxu0 %v1471
    %1617 = vmatpush.bf16.msra.mxu0 %v1470
    %1618 = vmatpush.bf16.msra.mxu0 %v1469
    %1619 = vmatpush.bf16.msra.mxu0 %v1468
    %1620 = vmatpush.bf16.msra.mxu0 %v1467
    %1621 = vmatmul.bf16.gmra.mxu0 %v1179
    %v1622 = vpop.f32.mrf.mxu0
    %v1623 = vadd.f32 %v1609, %v1622
    %v1624 = vpop.f32.mrf.mxu0
    %v1625 = vadd.f32 %v1611, %v1624
    %1626 = vdwg.mxu0
    %1627 = vmatpush.bf16.msra.mxu0 %v1482
    %1628 = vmatpush.bf16.msra.mxu0 %v1481
    %1629 = vmatpush.bf16.msra.mxu0 %v1480
    %1630 = vmatpush.bf16.msra.mxu0 %v1479
    %1631 = vmatpush.bf16.msra.mxu0 %v1478
    %1632 = vmatpush.bf16.msra.mxu0 %v1477
    %1633 = vmatpush.bf16.msra.mxu0 %v1476
    %1634 = vmatpush.bf16.msra.mxu0 %v1475
    %1635 = vmatmul.bf16.gmra.mxu0 %v1180
    %v1636 = vpop.f32.mrf.mxu0
    %v1637 = vadd.f32 %v1623, %v1636
    %v1638 = vpop.f32.mrf.mxu0
    %v1639 = vadd.f32 %v1625, %v1638
    %1640 = vdwg.mxu0
    %1641 = vmatpush.bf16.msra.mxu0 %v1490
    %1642 = vmatpush.bf16.msra.mxu0 %v1489
    %1643 = vmatpush.bf16.msra.mxu0 %v1488
    %1644 = vmatpush.bf16.msra.mxu0 %v1487
    %1645 = vmatpush.bf16.msra.mxu0 %v1486
    %1646 = vmatpush.bf16.msra.mxu0 %v1485
    %1647 = vmatpush.bf16.msra.mxu0 %v1484
    %1648 = vmatpush.bf16.msra.mxu0 %v1483
    %1649 = vmatmul.bf16.gmra.mxu0 %v1181
    %v1650 = vpop.f32.mrf.mxu0
    %v1651 = vadd.f32 %v1637, %v1650
    %v1652 = vpop.f32.mrf.mxu0
    %v1653 = vadd.f32 %v1639, %v1652
    %1654 = vdwg.mxu0
    %1655 = vmatpush.bf16.msra.mxu0 %v1498
    %1656 = vmatpush.bf16.msra.mxu0 %v1497
    %1657 = vmatpush.bf16.msra.mxu0 %v1496
    %1658 = vmatpush.bf16.msra.mxu0 %v1495
    %1659 = vmatpush.bf16.msra.mxu0 %v1494
    %1660 = vmatpush.bf16.msra.mxu0 %v1493
    %1661 = vmatpush.bf16.msra.mxu0 %v1492
    %1662 = vmatpush.bf16.msra.mxu0 %v1491
    %1663 = vmatmul.bf16.gmra.mxu0 %v1182
    %v1664 = vpop.f32.mrf.mxu0
    %v1665 = vadd.f32 %v1651, %v1664
    %v1666 = vpop.f32.mrf.mxu0
    %v1667 = vadd.f32 %v1653, %v1666
    %1668 = vdwg.mxu0
    %1669 = vmatpush.bf16.msra.mxu0 %v1506
    %1670 = vmatpush.bf16.msra.mxu0 %v1505
    %1671 = vmatpush.bf16.msra.mxu0 %v1504
    %1672 = vmatpush.bf16.msra.mxu0 %v1503
    %1673 = vmatpush.bf16.msra.mxu0 %v1502
    %1674 = vmatpush.bf16.msra.mxu0 %v1501
    %1675 = vmatpush.bf16.msra.mxu0 %v1500
    %1676 = vmatpush.bf16.msra.mxu0 %v1499
    %1677 = vmatmul.bf16.gmra.mxu0 %v1183
    %v1678 = vpop.f32.mrf.mxu0
    %v1679 = vadd.f32 %v1665, %v1678
    %v1680 = vpop.f32.mrf.mxu0
    %v1681 = vadd.f32 %v1667, %v1680
    %1682 = vdwg.mxu0
    %v1683 = vpack.c.bf16 %v1681, %v1679
    %v1685 = vperm.slane %v510, 0
    %v1691 = vunpack.c.l.b16 %v502
    %v1692 = vunpack.c.l.b16 %v503
    %v1693 = vunpack.c.l.b16 %v504
    %v1694 = vunpack.c.l.b16 %v505
    %v1695 = vpack.c.b16 %v1692, %v1691
    %v1696 = vpack.c.b16 %v1694, %v1693
    %vm1699 = vcmask 261120
    %v1701 = vsel %vm1699, %v1683, 0
    %1703 = vmatpush.bf16.msra.mxu0 0
    %1704 = vmatpush.bf16.msra.mxu0 0
    %1705 = vmatpush.bf16.msra.mxu0 0
    %1706 = vmatpush.bf16.msra.mxu0 0
    %1707 = vmatpush.bf16.msra.mxu0 0
    %1708 = vmatpush.bf16.msra.mxu0 0
    %1709 = vmatpush.bf16.msra.mxu0 %v1696
    %1710 = vmatpush.bf16.msra.mxu0 %v1695
    %1711 = vmatmul.bf16.gmra.mxu0 %v1701
    %v1712 = vpop.f32.mrf.mxu0
    %v1713 = vadd.f32 %v1685, %v1712
    %v1714 = vpop.f32.mrf.mxu0
    %v1715 = vadd.f32 %v1685, %v1714
    %1716 = vdwg.mxu0
    %v1717 = vpack.c.bf16 %v868, %v867
    %v1719 = vperm.slane %v511, 0
    %v1725 = vunpack.c.l.b16 %v506
    %v1726 = vunpack.c.l.b16 %v507
    %v1727 = vunpack.c.l.b16 %v508
    %v1728 = vunpack.c.l.b16 %v509
    %v1729 = vpack.c.b16 %v1726, %v1725
    %v1730 = vpack.c.b16 %v1728, %v1727
    %v1734 = vsel %vm1699, %v1717, 0
    %1736 = vmatpush.bf16.msra.mxu0 0
    %1737 = vmatpush.bf16.msra.mxu0 0
    %1738 = vmatpush.bf16.msra.mxu0 0
    %1739 = vmatpush.bf16.msra.mxu0 0
    %1740 = vmatpush.bf16.msra.mxu0 0
    %1741 = vmatpush.bf16.msra.mxu0 0
    %1742 = vmatpush.bf16.msra.mxu0 %v1730
    %1743 = vmatpush.bf16.msra.mxu0 %v1729
    %1744 = vmatmul.bf16.gmra.mxu0 %v1734
    %v1745 = vpop.f32.mrf.mxu0
    %v1746 = vadd.f32 %v1719, %v1745
    %v1747 = vpop.f32.mrf.mxu0
    %v1748 = vadd.f32 %v1719, %v1747
    %1749 = vdwg.mxu0
    %v1750 = vadd.f32 %v1713, %v1746
    %v1751 = vadd.f32 %v1715, %v1748
    %v1752 = vxor.u32 %v1750, 2147483648
    %v1753 = vxor.u32 %v1751, 2147483648
    %v1754 = vmul.f32 %v1752, 1.442695
    %v1755 = vpow.pop %v1754
    %v1756 = vmul.f32 %v1753, 1.442695
    %v1757 = vpow.pop %v1756
    %v1758 = vadd.f32 %v1755, 1.0
    %v1759 = vadd.f32 %v1757, 1.0
    %v1760 = vrcp.pop %v1758
    %v1761 = vmul.f32 %v1758, %v1760
    %v1762 = vsub.f32 1.0, %v1761
    %v1763 = vmul.f32 %v1760, %v1762
    %v1764 = vadd.f32 %v1760, %v1763
    %vm1765 = vweird.f32 %v1758
    %vm1766 = vweird.f32 %v1760
    %vm1767 = vmor %vm1765, %vm1766
    %v1768 = vsel %vm1767, %v1760, %v1764
    %v1769 = vand.u32 2147483647, %v1758
    %vm1770 = vcmp.eq.f32.partialorder %v1769, 8.507059e+37
    %v1771 = vand.u32 %v1758, 2147483648
    %v1772 = vor.u32 1.1754944e-38, %v1771
    %v1773 = vsel %vm1770, %v1772, %v1768
    %v1774 = vmul.f32 1.0, %v1773
    %v1775 = vrcp.pop %v1759
    %v1776 = vmul.f32 %v1759, %v1775
    %v1777 = vsub.f32 1.0, %v1776
    %v1778 = vmul.f32 %v1775, %v1777
    %v1779 = vadd.f32 %v1775, %v1778
    %vm1780 = vweird.f32 %v1759
    %vm1781 = vweird.f32 %v1775
    %vm1782 = vmor %vm1780, %vm1781
    %v1783 = vsel %vm1782, %v1775, %v1779
    %v1784 = vand.u32 2147483647, %v1759
    %vm1785 = vcmp.eq.f32.partialorder %v1784, 8.507059e+37
    %v1786 = vand.u32 %v1759, 2147483648
    %v1787 = vor.u32 1.1754944e-38, %v1786
    %v1788 = vsel %vm1785, %v1787, %v1783
    %v1789 = vmul.f32 1.0, %v1788
    %1792 = vrot.lane.b32.xlu0 %v1746, 64
    %v1793 = vpop.permute.xlu0 %1792
    %1794 = vrot.lane.b32.xlu0 %v1748, 64
    %v1795 = vpop.permute.xlu0 %1794
    %v1798 = vmul.f32 %v1774, %v1793
    %v1799 = vmul.f32 %v1789, %v1795
    %1802 = vrot.lane.b32.xlu0 %v1798, 64
    %v1803 = vpop.permute.xlu0 %1802
    %1804 = vrot.lane.b32.xlu0 %v1799, 64
    %v1805 = vpop.permute.xlu0 %1804
    %v1808 = vadd.f32 %v1713, %v1803
    %v1809 = vadd.f32 %v1715, %v1805
    %v1810 = vtanh.pop %v1808
    %v1811 = vtanh.pop %v1809
    %v1812 = vsub.f32 1.0, %v1774
    %v1813 = vsub.f32 1.0, %v1789
    %1816 = vrot.lane.b32.xlu0 %v1810, 96
    %v1817 = vpop.permute.xlu0 %1816
    %1818 = vrot.lane.b32.xlu0 %v1811, 96
    %v1819 = vpop.permute.xlu0 %1818
    %v1822 = vmul.f32 %v1812, %v1817
    %v1823 = vmul.f32 %v1813, %v1819
    %1826 = vrot.lane.b32.xlu0 %v867, 32
    %v1827 = vpop.permute.xlu0 %1826
    %1828 = vrot.lane.b32.xlu0 %v868, 32
    %v1829 = vpop.permute.xlu0 %1828
    %v1832 = vmul.f32 %v1774, %v1827
    %v1833 = vmul.f32 %v1789, %v1829
    %v1834 = vadd.f32 %v1822, %v1832
    %v1835 = vadd.f32 %v1823, %v1833
    %v1836 = vpack.c.bf16 %v1835, %v1834
    %v1838 = vperm.slane %v528, 0
    %v1839 = vperm.slane %v528, 1
    %v1840 = vperm.slane %v528, 2
    %v1841 = vperm.slane %v528, 3
    %v1842 = vperm.slane %v528, 4
    %v1843 = vperm.slane %v528, 5
    %v1844 = vperm.slane %v528, 6
    %v1845 = vperm.slane %v528, 7
    %1855 = vrot.lane.b32.xlu0 %v1836, 96
    %v1856 = vpop.permute.xlu0 %1855
    %v1873 = vunpack.c.l.b16 %v512
    %v1874 = vunpack.c.h.b16 %v512
    %v1875 = vunpack.c.l.b16 %v513
    %v1876 = vunpack.c.h.b16 %v513
    %v1877 = vunpack.c.l.b16 %v514
    %v1878 = vunpack.c.h.b16 %v514
    %v1879 = vunpack.c.l.b16 %v515
    %v1880 = vunpack.c.h.b16 %v515
    %v1881 = vunpack.c.l.b16 %v516
    %v1882 = vunpack.c.h.b16 %v516
    %v1883 = vunpack.c.l.b16 %v517
    %v1884 = vunpack.c.h.b16 %v517
    %v1885 = vunpack.c.l.b16 %v518
    %v1886 = vunpack.c.h.b16 %v518
    %v1887 = vunpack.c.l.b16 %v519
    %v1888 = vunpack.c.h.b16 %v519
    %v1889 = vunpack.c.l.b16 %v520
    %v1890 = vunpack.c.h.b16 %v520
    %v1891 = vunpack.c.l.b16 %v521
    %v1892 = vunpack.c.h.b16 %v521
    %v1893 = vunpack.c.l.b16 %v522
    %v1894 = vunpack.c.h.b16 %v522
    %v1895 = vunpack.c.l.b16 %v523
    %v1896 = vunpack.c.h.b16 %v523
    %v1897 = vunpack.c.l.b16 %v524
    %v1898 = vunpack.c.h.b16 %v524
    %v1899 = vunpack.c.l.b16 %v525
    %v1900 = vunpack.c.h.b16 %v525
    %v1901 = vunpack.c.l.b16 %v526
    %v1902 = vunpack.c.h.b16 %v526
    %v1903 = vunpack.c.l.b16 %v527
    %v1904 = vunpack.c.h.b16 %v527
    %v1905 = vpack.c.b16 %v1881, %v1873
    %v1906 = vpack.c.b16 %v1882, %v1874
    %v1907 = vpack.c.b16 %v1883, %v1875
    %v1908 = vpack.c.b16 %v1884, %v1876
    %v1909 = vpack.c.b16 %v1885, %v1877
    %v1910 = vpack.c.b16 %v1886, %v1878
    %v1911 = vpack.c.b16 %v1887, %v1879
    %v1912 = vpack.c.b16 %v1888, %v1880
    %v1913 = vpack.c.b16 %v1897, %v1889
    %v1914 = vpack.c.b16 %v1898, %v1890
    %v1915 = vpack.c.b16 %v1899, %v1891
    %v1916 = vpack.c.b16 %v1900, %v1892
    %v1917 = vpack.c.b16 %v1901, %v1893
    %v1918 = vpack.c.b16 %v1902, %v1894
    %v1919 = vpack.c.b16 %v1903, %v1895
    %v1920 = vpack.c.b16 %v1904, %v1896
    %v1938 = vsel %vm1699, %v1856, 0
    %1940 = vmatpush.bf16.msra.mxu0 0
    %1941 = vmatpush.bf16.msra.mxu0 0
    %1942 = vmatpush.bf16.msra.mxu0 0
    %1943 = vmatpush.bf16.msra.mxu0 0
    %1944 = vmatpush.bf16.msra.mxu0 0
    %1945 = vmatpush.bf16.msra.mxu0 0
    %1946 = vmatpush.bf16.msra.mxu0 %v1913
    %1947 = vmatpush.bf16.msra.mxu0 %v1905
    %1948 = vmatmul.bf16.gmra.mxu0 %v1938
    %v1949 = vpop.f32.mrf.mxu0
    %v1950 = vadd.f32 %v1838, %v1949
    %v1951 = vpop.f32.mrf.mxu0
    %v1952 = vadd.f32 %v1838, %v1951
    %1953 = vdwg.mxu0
    %1954 = vmatpush.bf16.msra.mxu0 0
    %1955 = vmatpush.bf16.msra.mxu0 0
    %1956 = vmatpush.bf16.msra.mxu0 0
    %1957 = vmatpush.bf16.msra.mxu0 0
    %1958 = vmatpush.bf16.msra.mxu0 0
    %1959 = vmatpush.bf16.msra.mxu0 0
    %1960 = vmatpush.bf16.msra.mxu0 %v1914
    %1961 = vmatpush.bf16.msra.mxu0 %v1906
    %1962 = vmatmul.bf16.gmra.mxu0 %v1938
    %v1963 = vpop.f32.mrf.mxu0
    %v1964 = vadd.f32 %v1839, %v1963
    %v1965 = vpop.f32.mrf.mxu0
    %v1966 = vadd.f32 %v1839, %v1965
    %1967 = vdwg.mxu0
    %1968 = vmatpush.bf16.msra.mxu0 0
    %1969 = vmatpush.bf16.msra.mxu0 0
    %1970 = vmatpush.bf16.msra.mxu0 0
    %1971 = vmatpush.bf16.msra.mxu0 0
    %1972 = vmatpush.bf16.msra.mxu0 0
    %1973 = vmatpush.bf16.msra.mxu0 0
    %1974 = vmatpush.bf16.msra.mxu0 %v1915
    %1975 = vmatpush.bf16.msra.mxu0 %v1907
    %1976 = vmatmul.bf16.gmra.mxu0 %v1938
    %v1977 = vpop.f32.mrf.mxu0
    %v1978 = vadd.f32 %v1840, %v1977
    %v1979 = vpop.f32.mrf.mxu0
    %v1980 = vadd.f32 %v1840, %v1979
    %1981 = vdwg.mxu0
    %1982 = vmatpush.bf16.msra.mxu0 0
    %1983 = vmatpush.bf16.msra.mxu0 0
    %1984 = vmatpush.bf16.msra.mxu0 0
    %1985 = vmatpush.bf16.msra.mxu0 0
    %1986 = vmatpush.bf16.msra.mxu0 0
    %1987 = vmatpush.bf16.msra.mxu0 0
    %1988 = vmatpush.bf16.msra.mxu0 %v1916
    %1989 = vmatpush.bf16.msra.mxu0 %v1908
    %1990 = vmatmul.bf16.gmra.mxu0 %v1938
    %v1991 = vpop.f32.mrf.mxu0
    %v1992 = vadd.f32 %v1841, %v1991
    %v1993 = vpop.f32.mrf.mxu0
    %v1994 = vadd.f32 %v1841, %v1993
    %1995 = vdwg.mxu0
    %1996 = vmatpush.bf16.msra.mxu0 0
    %1997 = vmatpush.bf16.msra.mxu0 0
    %1998 = vmatpush.bf16.msra.mxu0 0
    %1999 = vmatpush.bf16.msra.mxu0 0
    %2000 = vmatpush.bf16.msra.mxu0 0
    %2001 = vmatpush.bf16.msra.mxu0 0
    %2002 = vmatpush.bf16.msra.mxu0 %v1917
    %2003 = vmatpush.bf16.msra.mxu0 %v1909
    %2004 = vmatmul.bf16.gmra.mxu0 %v1938
    %v2005 = vpop.f32.mrf.mxu0
    %v2006 = vadd.f32 %v1842, %v2005
    %v2007 = vpop.f32.mrf.mxu0
    %v2008 = vadd.f32 %v1842, %v2007
    %2009 = vdwg.mxu0
    %2010 = vmatpush.bf16.msra.mxu0 0
    %2011 = vmatpush.bf16.msra.mxu0 0
    %2012 = vmatpush.bf16.msra.mxu0 0
    %2013 = vmatpush.bf16.msra.mxu0 0
    %2014 = vmatpush.bf16.msra.mxu0 0
    %2015 = vmatpush.bf16.msra.mxu0 0
    %2016 = vmatpush.bf16.msra.mxu0 %v1918
    %2017 = vmatpush.bf16.msra.mxu0 %v1910
    %2018 = vmatmul.bf16.gmra.mxu0 %v1938
    %v2019 = vpop.f32.mrf.mxu0
    %v2020 = vadd.f32 %v1843, %v2019
    %v2021 = vpop.f32.mrf.mxu0
    %v2022 = vadd.f32 %v1843, %v2021
    %2023 = vdwg.mxu0
    %2024 = vmatpush.bf16.msra.mxu0 0
    %2025 = vmatpush.bf16.msra.mxu0 0
    %2026 = vmatpush.bf16.msra.mxu0 0
    %2027 = vmatpush.bf16.msra.mxu0 0
    %2028 = vmatpush.bf16.msra.mxu0 0
    %2029 = vmatpush.bf16.msra.mxu0 0
    %2030 = vmatpush.bf16.msra.mxu0 %v1919
    %2031 = vmatpush.bf16.msra.mxu0 %v1911
    %2032 = vmatmul.bf16.gmra.mxu0 %v1938
    %v2033 = vpop.f32.mrf.mxu0
    %v2034 = vadd.f32 %v1844, %v2033
    %v2035 = vpop.f32.mrf.mxu0
    %v2036 = vadd.f32 %v1844, %v2035
    %2037 = vdwg.mxu0
    %2038 = vmatpush.bf16.msra.mxu0 0
    %2039 = vmatpush.bf16.msra.mxu0 0
    %2040 = vmatpush.bf16.msra.mxu0 0
    %2041 = vmatpush.bf16.msra.mxu0 0
    %2042 = vmatpush.bf16.msra.mxu0 0
    %2043 = vmatpush.bf16.msra.mxu0 0
    %2044 = vmatpush.bf16.msra.mxu0 %v1920
    %2045 = vmatpush.bf16.msra.mxu0 %v1912
    %2046 = vmatmul.bf16.gmra.mxu0 %v1938
    %v2047 = vpop.f32.mrf.mxu0
    %v2048 = vadd.f32 %v1845, %v2047
    %v2049 = vpop.f32.mrf.mxu0
    %v2050 = vadd.f32 %v1845, %v2049
    %2051 = vdwg.mxu0
    %vm2052 = vcmp.gt.f32.partialorder %v1950, 0.0
    %vm2053 = vcmp.gt.f32.partialorder %v1964, 0.0
    %vm2054 = vcmp.gt.f32.partialorder %v1978, 0.0
    %vm2055 = vcmp.gt.f32.partialorder %v1992, 0.0
    %vm2056 = vcmp.gt.f32.partialorder %v2006, 0.0
    %vm2057 = vcmp.gt.f32.partialorder %v2020, 0.0
    %vm2058 = vcmp.gt.f32.partialorder %v2034, 0.0
    %vm2059 = vcmp.gt.f32.partialorder %v2048, 0.0
    %vm2060 = vcmp.gt.f32.partialorder %v1952, 0.0
    %vm2061 = vcmp.gt.f32.partialorder %v1966, 0.0
    %vm2062 = vcmp.gt.f32.partialorder %v1980, 0.0
    %vm2063 = vcmp.gt.f32.partialorder %v1994, 0.0
    %vm2064 = vcmp.gt.f32.partialorder %v2008, 0.0
    %vm2065 = vcmp.gt.f32.partialorder %v2022, 0.0
    %vm2066 = vcmp.gt.f32.partialorder %v2036, 0.0
    %vm2067 = vcmp.gt.f32.partialorder %v2050, 0.0
    %v2068 = vmul.f32 %v1950, 0.01
    %v2069 = vmul.f32 %v1964, 0.01
    %v2070 = vmul.f32 %v1978, 0.01
    %v2071 = vmul.f32 %v1992, 0.01
    %v2072 = vmul.f32 %v2006, 0.01
    %v2073 = vmul.f32 %v2020, 0.01
    %v2074 = vmul.f32 %v2034, 0.01
    %v2075 = vmul.f32 %v2048, 0.01
    %v2076 = vmul.f32 %v1952, 0.01
    %v2077 = vmul.f32 %v1966, 0.01
    %v2078 = vmul.f32 %v1980, 0.01
    %v2079 = vmul.f32 %v1994, 0.01
    %v2080 = vmul.f32 %v2008, 0.01
    %v2081 = vmul.f32 %v2022, 0.01
    %v2082 = vmul.f32 %v2036, 0.01
    %v2083 = vmul.f32 %v2050, 0.01
    %v2084 = vsel %vm2052, %v1950, %v2068
    %v2085 = vsel %vm2053, %v1964, %v2069
    %v2086 = vsel %vm2054, %v1978, %v2070
    %v2087 = vsel %vm2055, %v1992, %v2071
    %v2088 = vsel %vm2056, %v2006, %v2072
    %v2089 = vsel %vm2057, %v2020, %v2073
    %v2090 = vsel %vm2058, %v2034, %v2074
    %v2091 = vsel %vm2059, %v2048, %v2075
    %v2092 = vsel %vm2060, %v1952, %v2076
    %v2093 = vsel %vm2061, %v1966, %v2077
    %v2094 = vsel %vm2062, %v1980, %v2078
    %v2095 = vsel %vm2063, %v1994, %v2079
    %v2096 = vsel %vm2064, %v2008, %v2080
    %v2097 = vsel %vm2065, %v2022, %v2081
    %v2098 = vsel %vm2066, %v2036, %v2082
    %v2099 = vsel %vm2067, %v2050, %v2083
    %s2100 = smul.u32 4, 128
    %s2101 = smul.u32 %s2100, 8
    %s2102 = sshll.u32 %s2101, 4
    %2103 = dma.done [#allocation4], %s2102
    %v2104 = vld [vmem:[#allocation2] sm:$0xff]
    %v2105 = vld [vmem:[#allocation2 + $0x8] sm:$0xff]
    %v2106 = vld [vmem:[#allocation2 + $0x10] sm:$0xff]
    %v2107 = vld [vmem:[#allocation2 + $0x18] sm:$0xff]
    %v2108 = vld [vmem:[#allocation2 + $0x20] sm:$0xff]
    %v2109 = vld [vmem:[#allocation2 + $0x28] sm:$0xff]
    %v2110 = vld [vmem:[#allocation2 + $0x30] sm:$0xff]
    %v2111 = vld [vmem:[#allocation2 + $0x38] sm:$0xff]
    %v2112 = vld [vmem:[#allocation2 + $0x40] sm:$0xff]
    %v2113 = vld [vmem:[#allocation2 + $0x48] sm:$0xff]
    %v2114 = vld [vmem:[#allocation2 + $0x50] sm:$0xff]
    %v2115 = vld [vmem:[#allocation2 + $0x58] sm:$0xff]
    %v2116 = vld [vmem:[#allocation2 + $0x60] sm:$0xff]
    %v2117 = vld [vmem:[#allocation2 + $0x68] sm:$0xff]
    %v2118 = vld [vmem:[#allocation2 + $0x70] sm:$0xff]
    %v2119 = vld [vmem:[#allocation2 + $0x78] sm:$0xff]
    %v2120 = vld [vmem:[#allocation2 + $0x80] sm:$0xff]
    %v2121 = vld [vmem:[#allocation2 + $0x88] sm:$0xff]
    %v2122 = vld [vmem:[#allocation2 + $0x90] sm:$0xff]
    %v2123 = vld [vmem:[#allocation2 + $0x98] sm:$0xff]
    %v2124 = vld [vmem:[#allocation2 + $0xa0] sm:$0xff]
    %v2125 = vld [vmem:[#allocation2 + $0xa8] sm:$0xff]
    %v2126 = vld [vmem:[#allocation2 + $0xb0] sm:$0xff]
    %v2127 = vld [vmem:[#allocation2 + $0xb8] sm:$0xff]
    %v2128 = vld [vmem:[#allocation2 + $0xc0] sm:$0xff]
    %v2129 = vld [vmem:[#allocation2 + $0xc8] sm:$0xff]
    %v2130 = vld [vmem:[#allocation2 + $0xd0] sm:$0xff]
    %v2131 = vld [vmem:[#allocation2 + $0xd8] sm:$0xff]
    %v2132 = vld [vmem:[#allocation2 + $0xe0] sm:$0xff]
    %v2133 = vld [vmem:[#allocation2 + $0xe8] sm:$0xff]
    %v2134 = vld [vmem:[#allocation2 + $0xf0] sm:$0xff]
    %v2135 = vld [vmem:[#allocation2 + $0xf8] sm:$0xff]
    %v2136 = vld [vmem:[#allocation2 + $0x100] sm:$0xff]
    %v2137 = vld [vmem:[#allocation2 + $0x108] sm:$0xff]
    %v2138 = vld [vmem:[#allocation2 + $0x110] sm:$0xff]
    %v2139 = vld [vmem:[#allocation2 + $0x118] sm:$0xff]
    %v2140 = vld [vmem:[#allocation2 + $0x120] sm:$0xff]
    %v2141 = vld [vmem:[#allocation2 + $0x128] sm:$0xff]
    %v2142 = vld [vmem:[#allocation2 + $0x130] sm:$0xff]
    %v2143 = vld [vmem:[#allocation2 + $0x138] sm:$0xff]
    %v2144 = vld [vmem:[#allocation2 + $0x140] sm:$0xff]
    %v2145 = vld [vmem:[#allocation2 + $0x148] sm:$0xff]
    %v2146 = vld [vmem:[#allocation2 + $0x150] sm:$0xff]
    %v2147 = vld [vmem:[#allocation2 + $0x158] sm:$0xff]
    %v2148 = vld [vmem:[#allocation2 + $0x160] sm:$0xff]
    %v2149 = vld [vmem:[#allocation2 + $0x168] sm:$0xff]
    %v2150 = vld [vmem:[#allocation2 + $0x170] sm:$0xff]
    %v2151 = vld [vmem:[#allocation2 + $0x178] sm:$0xff]
    %v2152 = vld [vmem:[#allocation2 + $0x180] sm:$0xff]
    %v2153 = vld [vmem:[#allocation2 + $0x188] sm:$0xff]
    %v2154 = vld [vmem:[#allocation2 + $0x190] sm:$0xff]
    %v2155 = vld [vmem:[#allocation2 + $0x198] sm:$0xff]
    %v2156 = vld [vmem:[#allocation2 + $0x1a0] sm:$0xff]
    %v2157 = vld [vmem:[#allocation2 + $0x1a8] sm:$0xff]
    %v2158 = vld [vmem:[#allocation2 + $0x1b0] sm:$0xff]
    %v2159 = vld [vmem:[#allocation2 + $0x1b8] sm:$0xff]
    %v2160 = vld [vmem:[#allocation2 + $0x1c0] sm:$0xff]
    %v2161 = vld [vmem:[#allocation2 + $0x1c8] sm:$0xff]
    %v2162 = vld [vmem:[#allocation2 + $0x1d0] sm:$0xff]
    %v2163 = vld [vmem:[#allocation2 + $0x1d8] sm:$0xff]
    %v2164 = vld [vmem:[#allocation2 + $0x1e0] sm:$0xff]
    %v2165 = vld [vmem:[#allocation2 + $0x1e8] sm:$0xff]
    %v2166 = vld [vmem:[#allocation2 + $0x1f0] sm:$0xff]
    %v2167 = vld [vmem:[#allocation2 + $0x1f8] sm:$0xff]
    %v2168 = vld [vmem:[#allocation2 + $0x200] sm:$0xff]
    %v2169 = vld [vmem:[#allocation2 + $0x208] sm:$0xff]
    %v2170 = vld [vmem:[#allocation2 + $0x210] sm:$0xff]
    %v2171 = vld [vmem:[#allocation2 + $0x218] sm:$0xff]
    %v2172 = vld [vmem:[#allocation2 + $0x220] sm:$0xff]
    %v2173 = vld [vmem:[#allocation2 + $0x228] sm:$0xff]
    %v2174 = vld [vmem:[#allocation2 + $0x230] sm:$0xff]
    %v2175 = vld [vmem:[#allocation2 + $0x238] sm:$0xff]
    %v2176 = vld [vmem:[#allocation2 + $0x240] sm:$0xff]
    %v2177 = vld [vmem:[#allocation2 + $0x248] sm:$0xff]
    %v2178 = vld [vmem:[#allocation2 + $0x250] sm:$0xff]
    %v2179 = vld [vmem:[#allocation2 + $0x258] sm:$0xff]
    %v2180 = vld [vmem:[#allocation2 + $0x260] sm:$0xff]
    %v2181 = vld [vmem:[#allocation2 + $0x268] sm:$0xff]
    %v2182 = vld [vmem:[#allocation2 + $0x270] sm:$0xff]
    %v2183 = vld [vmem:[#allocation2 + $0x278] sm:$0xff]
    %v2184 = vld [vmem:[#allocation2 + $0x280] sm:$0xff]
    %v2185 = vld [vmem:[#allocation2 + $0x288] sm:$0xff]
    %v2186 = vld [vmem:[#allocation2 + $0x290] sm:$0xff]
    %v2187 = vld [vmem:[#allocation2 + $0x298] sm:$0xff]
    %v2188 = vld [vmem:[#allocation2 + $0x2a0] sm:$0xff]
    %v2189 = vld [vmem:[#allocation2 + $0x2a8] sm:$0xff]
    %v2190 = vld [vmem:[#allocation2 + $0x2b0] sm:$0xff]
    %v2191 = vld [vmem:[#allocation2 + $0x2b8] sm:$0xff]
    %v2192 = vld [vmem:[#allocation2 + $0x2c0] sm:$0xff]
    %v2193 = vld [vmem:[#allocation2 + $0x2c8] sm:$0xff]
    %v2194 = vld [vmem:[#allocation2 + $0x2d0] sm:$0xff]
    %v2195 = vld [vmem:[#allocation2 + $0x2d8] sm:$0xff]
    %v2196 = vld [vmem:[#allocation2 + $0x2e0] sm:$0xff]
    %v2197 = vld [vmem:[#allocation2 + $0x2e8] sm:$0xff]
    %v2198 = vld [vmem:[#allocation2 + $0x2f0] sm:$0xff]
    %v2199 = vld [vmem:[#allocation2 + $0x2f8] sm:$0xff]
    %v2200 = vld [vmem:[#allocation2 + $0x300] sm:$0xff]
    %v2201 = vld [vmem:[#allocation2 + $0x308] sm:$0xff]
    %v2202 = vld [vmem:[#allocation2 + $0x310] sm:$0xff]
    %v2203 = vld [vmem:[#allocation2 + $0x318] sm:$0xff]
    %v2204 = vld [vmem:[#allocation2 + $0x320] sm:$0xff]
    %v2205 = vld [vmem:[#allocation2 + $0x328] sm:$0xff]
    %v2206 = vld [vmem:[#allocation2 + $0x330] sm:$0xff]
    %v2207 = vld [vmem:[#allocation2 + $0x338] sm:$0xff]
    %v2208 = vld [vmem:[#allocation2 + $0x340] sm:$0xff]
    %v2209 = vld [vmem:[#allocation2 + $0x348] sm:$0xff]
    %v2210 = vld [vmem:[#allocation2 + $0x350] sm:$0xff]
    %v2211 = vld [vmem:[#allocation2 + $0x358] sm:$0xff]
    %v2212 = vld [vmem:[#allocation2 + $0x360] sm:$0xff]
    %v2213 = vld [vmem:[#allocation2 + $0x368] sm:$0xff]
    %v2214 = vld [vmem:[#allocation2 + $0x370] sm:$0xff]
    %v2215 = vld [vmem:[#allocation2 + $0x378] sm:$0xff]
    %v2216 = vld [vmem:[#allocation2 + $0x380] sm:$0xff]
    %v2217 = vld [vmem:[#allocation2 + $0x388] sm:$0xff]
    %v2218 = vld [vmem:[#allocation2 + $0x390] sm:$0xff]
    %v2219 = vld [vmem:[#allocation2 + $0x398] sm:$0xff]
    %v2220 = vld [vmem:[#allocation2 + $0x3a0] sm:$0xff]
    %v2221 = vld [vmem:[#allocation2 + $0x3a8] sm:$0xff]
    %v2222 = vld [vmem:[#allocation2 + $0x3b0] sm:$0xff]
    %v2223 = vld [vmem:[#allocation2 + $0x3b8] sm:$0xff]
    %v2224 = vld [vmem:[#allocation2 + $0x3c0] sm:$0xff]
    %v2225 = vld [vmem:[#allocation2 + $0x3c8] sm:$0xff]
    %v2226 = vld [vmem:[#allocation2 + $0x3d0] sm:$0xff]
    %v2227 = vld [vmem:[#allocation2 + $0x3d8] sm:$0xff]
    %v2228 = vld [vmem:[#allocation2 + $0x3e0] sm:$0xff]
    %v2229 = vld [vmem:[#allocation2 + $0x3e8] sm:$0xff]
    %v2230 = vld [vmem:[#allocation2 + $0x3f0] sm:$0xff]
    %v2231 = vld [vmem:[#allocation2 + $0x3f8] sm:$0xff]
    %v2232 = vld [vmem:[#allocation2 + $0x400] sm:$0xff]
    %v2233 = vld [vmem:[#allocation2 + $0x408] sm:$0xff]
    %v2234 = vld [vmem:[#allocation2 + $0x410] sm:$0xff]
    %v2235 = vld [vmem:[#allocation2 + $0x418] sm:$0xff]
    %v2236 = vld [vmem:[#allocation2 + $0x420] sm:$0xff]
    %v2237 = vld [vmem:[#allocation2 + $0x428] sm:$0xff]
    %v2238 = vld [vmem:[#allocation2 + $0x430] sm:$0xff]
    %v2239 = vld [vmem:[#allocation2 + $0x438] sm:$0xff]
    %v2240 = vld [vmem:[#allocation2 + $0x440] sm:$0xff]
    %v2241 = vld [vmem:[#allocation2 + $0x448] sm:$0xff]
    %v2242 = vld [vmem:[#allocation2 + $0x450] sm:$0xff]
    %v2243 = vld [vmem:[#allocation2 + $0x458] sm:$0xff]
    %v2244 = vld [vmem:[#allocation2 + $0x460] sm:$0xff]
    %v2245 = vld [vmem:[#allocation2 + $0x468] sm:$0xff]
    %v2246 = vld [vmem:[#allocation2 + $0x470] sm:$0xff]
    %v2247 = vld [vmem:[#allocation2 + $0x478] sm:$0xff]
    %v2248 = vld [vmem:[#allocation2 + $0x480] sm:$0xff]
    %v2249 = vld [vmem:[#allocation2 + $0x488] sm:$0xff]
    %v2250 = vld [vmem:[#allocation2 + $0x490] sm:$0xff]
    %v2251 = vld [vmem:[#allocation2 + $0x498] sm:$0xff]
    %v2252 = vld [vmem:[#allocation2 + $0x4a0] sm:$0xff]
    %v2253 = vld [vmem:[#allocation2 + $0x4a8] sm:$0xff]
    %v2254 = vld [vmem:[#allocation2 + $0x4b0] sm:$0xff]
    %v2255 = vld [vmem:[#allocation2 + $0x4b8] sm:$0xff]
    %v2256 = vld [vmem:[#allocation2 + $0x4c0] sm:$0xff]
    %v2257 = vld [vmem:[#allocation2 + $0x4c8] sm:$0xff]
    %v2258 = vld [vmem:[#allocation2 + $0x4d0] sm:$0xff]
    %v2259 = vld [vmem:[#allocation2 + $0x4d8] sm:$0xff]
    %v2260 = vld [vmem:[#allocation2 + $0x4e0] sm:$0xff]
    %v2261 = vld [vmem:[#allocation2 + $0x4e8] sm:$0xff]
    %v2262 = vld [vmem:[#allocation2 + $0x4f0] sm:$0xff]
    %v2263 = vld [vmem:[#allocation2 + $0x4f8] sm:$0xff]
    %v2264 = vld [vmem:[#allocation2 + $0x500] sm:$0xff]
    %v2265 = vld [vmem:[#allocation2 + $0x508] sm:$0xff]
    %v2266 = vld [vmem:[#allocation2 + $0x510] sm:$0xff]
    %v2267 = vld [vmem:[#allocation2 + $0x518] sm:$0xff]
    %v2268 = vld [vmem:[#allocation2 + $0x520] sm:$0xff]
    %v2269 = vld [vmem:[#allocation2 + $0x528] sm:$0xff]
    %v2270 = vld [vmem:[#allocation2 + $0x530] sm:$0xff]
    %v2271 = vld [vmem:[#allocation2 + $0x538] sm:$0xff]
    %v2272 = vld [vmem:[#allocation2 + $0x540] sm:$0xff]
    %v2273 = vld [vmem:[#allocation2 + $0x548] sm:$0xff]
    %v2274 = vld [vmem:[#allocation2 + $0x550] sm:$0xff]
    %v2275 = vld [vmem:[#allocation2 + $0x558] sm:$0xff]
    %v2276 = vld [vmem:[#allocation2 + $0x560] sm:$0xff]
    %v2277 = vld [vmem:[#allocation2 + $0x568] sm:$0xff]
    %v2278 = vld [vmem:[#allocation2 + $0x570] sm:$0xff]
    %v2279 = vld [vmem:[#allocation2 + $0x578] sm:$0xff]
    %v2280 = vld [vmem:[#allocation2 + $0x580] sm:$0xff]
    %v2281 = vld [vmem:[#allocation2 + $0x588] sm:$0xff]
    %v2282 = vld [vmem:[#allocation2 + $0x590] sm:$0xff]
    %v2283 = vld [vmem:[#allocation2 + $0x598] sm:$0xff]
    %v2284 = vld [vmem:[#allocation2 + $0x5a0] sm:$0xff]
    %v2285 = vld [vmem:[#allocation2 + $0x5a8] sm:$0xff]
    %v2286 = vld [vmem:[#allocation2 + $0x5b0] sm:$0xff]
    %v2287 = vld [vmem:[#allocation2 + $0x5b8] sm:$0xff]
    %v2288 = vld [vmem:[#allocation2 + $0x5c0] sm:$0xff]
    %v2289 = vld [vmem:[#allocation2 + $0x5c8] sm:$0xff]
    %v2290 = vld [vmem:[#allocation2 + $0x5d0] sm:$0xff]
    %v2291 = vld [vmem:[#allocation2 + $0x5d8] sm:$0xff]
    %v2292 = vld [vmem:[#allocation2 + $0x5e0] sm:$0xff]
    %v2293 = vld [vmem:[#allocation2 + $0x5e8] sm:$0xff]
    %v2294 = vld [vmem:[#allocation2 + $0x5f0] sm:$0xff]
    %v2295 = vld [vmem:[#allocation2 + $0x5f8] sm:$0xff]
    %v2296 = vld [vmem:[#allocation2 + $0x600] sm:$0xff]
    %v2297 = vld [vmem:[#allocation2 + $0x608] sm:$0xff]
    %v2298 = vld [vmem:[#allocation2 + $0x610] sm:$0xff]
    %v2299 = vld [vmem:[#allocation2 + $0x618] sm:$0xff]
    %v2300 = vld [vmem:[#allocation2 + $0x620] sm:$0xff]
    %v2301 = vld [vmem:[#allocation2 + $0x628] sm:$0xff]
    %v2302 = vld [vmem:[#allocation2 + $0x630] sm:$0xff]
    %v2303 = vld [vmem:[#allocation2 + $0x638] sm:$0xff]
    %v2304 = vld [vmem:[#allocation2 + $0x640] sm:$0xff]
    %v2305 = vld [vmem:[#allocation2 + $0x648] sm:$0xff]
    %v2306 = vld [vmem:[#allocation2 + $0x650] sm:$0xff]
    %v2307 = vld [vmem:[#allocation2 + $0x658] sm:$0xff]
    %v2308 = vld [vmem:[#allocation2 + $0x660] sm:$0xff]
    %v2309 = vld [vmem:[#allocation2 + $0x668] sm:$0xff]
    %v2310 = vld [vmem:[#allocation2 + $0x670] sm:$0xff]
    %v2311 = vld [vmem:[#allocation2 + $0x678] sm:$0xff]
    %v2312 = vld [vmem:[#allocation2 + $0x680] sm:$0xff]
    %v2313 = vld [vmem:[#allocation2 + $0x688] sm:$0xff]
    %v2314 = vld [vmem:[#allocation2 + $0x690] sm:$0xff]
    %v2315 = vld [vmem:[#allocation2 + $0x698] sm:$0xff]
    %v2316 = vld [vmem:[#allocation2 + $0x6a0] sm:$0xff]
    %v2317 = vld [vmem:[#allocation2 + $0x6a8] sm:$0xff]
    %v2318 = vld [vmem:[#allocation2 + $0x6b0] sm:$0xff]
    %v2319 = vld [vmem:[#allocation2 + $0x6b8] sm:$0xff]
    %v2320 = vld [vmem:[#allocation2 + $0x6c0] sm:$0xff]
    %v2321 = vld [vmem:[#allocation2 + $0x6c8] sm:$0xff]
    %v2322 = vld [vmem:[#allocation2 + $0x6d0] sm:$0xff]
    %v2323 = vld [vmem:[#allocation2 + $0x6d8] sm:$0xff]
    %v2324 = vld [vmem:[#allocation2 + $0x6e0] sm:$0xff]
    %v2325 = vld [vmem:[#allocation2 + $0x6e8] sm:$0xff]
    %v2326 = vld [vmem:[#allocation2 + $0x6f0] sm:$0xff]
    %v2327 = vld [vmem:[#allocation2 + $0x6f8] sm:$0xff]
    %v2328 = vld [vmem:[#allocation2 + $0x700] sm:$0xff]
    %v2329 = vld [vmem:[#allocation2 + $0x708] sm:$0xff]
    %v2330 = vld [vmem:[#allocation2 + $0x710] sm:$0xff]
    %v2331 = vld [vmem:[#allocation2 + $0x718] sm:$0xff]
    %v2332 = vld [vmem:[#allocation2 + $0x720] sm:$0xff]
    %v2333 = vld [vmem:[#allocation2 + $0x728] sm:$0xff]
    %v2334 = vld [vmem:[#allocation2 + $0x730] sm:$0xff]
    %v2335 = vld [vmem:[#allocation2 + $0x738] sm:$0xff]
    %v2336 = vld [vmem:[#allocation2 + $0x740] sm:$0xff]
    %v2337 = vld [vmem:[#allocation2 + $0x748] sm:$0xff]
    %v2338 = vld [vmem:[#allocation2 + $0x750] sm:$0xff]
    %v2339 = vld [vmem:[#allocation2 + $0x758] sm:$0xff]
    %v2340 = vld [vmem:[#allocation2 + $0x760] sm:$0xff]
    %v2341 = vld [vmem:[#allocation2 + $0x768] sm:$0xff]
    %v2342 = vld [vmem:[#allocation2 + $0x770] sm:$0xff]
    %v2343 = vld [vmem:[#allocation2 + $0x778] sm:$0xff]
    %v2344 = vld [vmem:[#allocation2 + $0x780] sm:$0xff]
    %v2345 = vld [vmem:[#allocation2 + $0x788] sm:$0xff]
    %v2346 = vld [vmem:[#allocation2 + $0x790] sm:$0xff]
    %v2347 = vld [vmem:[#allocation2 + $0x798] sm:$0xff]
    %v2348 = vld [vmem:[#allocation2 + $0x7a0] sm:$0xff]
    %v2349 = vld [vmem:[#allocation2 + $0x7a8] sm:$0xff]
    %v2350 = vld [vmem:[#allocation2 + $0x7b0] sm:$0xff]
    %v2351 = vld [vmem:[#allocation2 + $0x7b8] sm:$0xff]
    %v2352 = vld [vmem:[#allocation2 + $0x7c0] sm:$0xff]
    %v2353 = vld [vmem:[#allocation2 + $0x7c8] sm:$0xff]
    %v2354 = vld [vmem:[#allocation2 + $0x7d0] sm:$0xff]
    %v2355 = vld [vmem:[#allocation2 + $0x7d8] sm:$0xff]
    %v2356 = vld [vmem:[#allocation2 + $0x7e0] sm:$0xff]
    %v2357 = vld [vmem:[#allocation2 + $0x7e8] sm:$0xff]
    %v2358 = vld [vmem:[#allocation2 + $0x7f0] sm:$0xff]
    %v2359 = vld [vmem:[#allocation2 + $0x7f8] sm:$0xff]
    %v2360 = vld [vmem:[#allocation2 + $0x800] sm:$0xff]
    %v2361 = vld [vmem:[#allocation2 + $0x808] sm:$0xff]
    %v2362 = vld [vmem:[#allocation2 + $0x810] sm:$0xff]
    %v2363 = vld [vmem:[#allocation2 + $0x818] sm:$0xff]
    %v2364 = vld [vmem:[#allocation2 + $0x820] sm:$0xff]
    %v2365 = vld [vmem:[#allocation2 + $0x828] sm:$0xff]
    %v2366 = vld [vmem:[#allocation2 + $0x830] sm:$0xff]
    %v2367 = vld [vmem:[#allocation2 + $0x838] sm:$0xff]
    %v2368 = vld [vmem:[#allocation2 + $0x840] sm:$0xff]
    %v2369 = vld [vmem:[#allocation2 + $0x848] sm:$0xff]
    %v2370 = vld [vmem:[#allocation2 + $0x850] sm:$0xff]
    %v2371 = vld [vmem:[#allocation2 + $0x858] sm:$0xff]
    %v2372 = vld [vmem:[#allocation2 + $0x860] sm:$0xff]
    %v2373 = vld [vmem:[#allocation2 + $0x868] sm:$0xff]
    %v2374 = vld [vmem:[#allocation2 + $0x870] sm:$0xff]
    %v2375 = vld [vmem:[#allocation2 + $0x878] sm:$0xff]
    %v2376 = vld [vmem:[#allocation2 + $0x880] sm:$0xff]
    %v2377 = vld [vmem:[#allocation2 + $0x888] sm:$0xff]
    %v2378 = vld [vmem:[#allocation2 + $0x890] sm:$0xff]
    %v2379 = vld [vmem:[#allocation2 + $0x898] sm:$0xff]
    %v2380 = vld [vmem:[#allocation2 + $0x8a0] sm:$0xff]
    %v2381 = vld [vmem:[#allocation2 + $0x8a8] sm:$0xff]
    %v2382 = vld [vmem:[#allocation2 + $0x8b0] sm:$0xff]
    %v2383 = vld [vmem:[#allocation2 + $0x8b8] sm:$0xff]
    %v2384 = vld [vmem:[#allocation2 + $0x8c0] sm:$0xff]
    %v2385 = vld [vmem:[#allocation2 + $0x8c8] sm:$0xff]
    %v2386 = vld [vmem:[#allocation2 + $0x8d0] sm:$0xff]
    %v2387 = vld [vmem:[#allocation2 + $0x8d8] sm:$0xff]
    %v2388 = vld [vmem:[#allocation2 + $0x8e0] sm:$0xff]
    %v2389 = vld [vmem:[#allocation2 + $0x8e8] sm:$0xff]
    %v2390 = vld [vmem:[#allocation2 + $0x8f0] sm:$0xff]
    %v2391 = vld [vmem:[#allocation2 + $0x8f8] sm:$0xff]
    %v2392 = vld [vmem:[#allocation2 + $0x900] sm:$0xff]
    %v2393 = vld [vmem:[#allocation2 + $0x908] sm:$0xff]
    %v2394 = vld [vmem:[#allocation2 + $0x910] sm:$0xff]
    %v2395 = vld [vmem:[#allocation2 + $0x918] sm:$0xff]
    %v2396 = vld [vmem:[#allocation2 + $0x920] sm:$0xff]
    %v2397 = vld [vmem:[#allocation2 + $0x928] sm:$0xff]
    %v2398 = vld [vmem:[#allocation2 + $0x930] sm:$0xff]
    %v2399 = vld [vmem:[#allocation2 + $0x938] sm:$0xff]
    %v2400 = vld [vmem:[#allocation2 + $0x940] sm:$0xff]
    %v2401 = vld [vmem:[#allocation2 + $0x948] sm:$0xff]
    %v2402 = vld [vmem:[#allocation2 + $0x950] sm:$0xff]
    %v2403 = vld [vmem:[#allocation2 + $0x958] sm:$0xff]
    %v2404 = vld [vmem:[#allocation2 + $0x960] sm:$0xff]
    %v2405 = vld [vmem:[#allocation2 + $0x968] sm:$0xff]
    %v2406 = vld [vmem:[#allocation2 + $0x970] sm:$0xff]
    %v2407 = vld [vmem:[#allocation2 + $0x978] sm:$0xff]
    %v2408 = vld [vmem:[#allocation2 + $0x980] sm:$0xff]
    %v2409 = vld [vmem:[#allocation2 + $0x988] sm:$0xff]
    %v2410 = vld [vmem:[#allocation2 + $0x990] sm:$0xff]
    %v2411 = vld [vmem:[#allocation2 + $0x998] sm:$0xff]
    %v2412 = vld [vmem:[#allocation2 + $0x9a0] sm:$0xff]
    %v2413 = vld [vmem:[#allocation2 + $0x9a8] sm:$0xff]
    %v2414 = vld [vmem:[#allocation2 + $0x9b0] sm:$0xff]
    %v2415 = vld [vmem:[#allocation2 + $0x9b8] sm:$0xff]
    %v2416 = vld [vmem:[#allocation2 + $0x9c0] sm:$0xff]
    %v2417 = vld [vmem:[#allocation2 + $0x9c8] sm:$0xff]
    %v2418 = vld [vmem:[#allocation2 + $0x9d0] sm:$0xff]
    %v2419 = vld [vmem:[#allocation2 + $0x9d8] sm:$0xff]
    %v2420 = vld [vmem:[#allocation2 + $0x9e0] sm:$0xff]
    %v2421 = vld [vmem:[#allocation2 + $0x9e8] sm:$0xff]
    %v2422 = vld [vmem:[#allocation2 + $0x9f0] sm:$0xff]
    %v2423 = vld [vmem:[#allocation2 + $0x9f8] sm:$0xff]
    %v2424 = vld [vmem:[#allocation2 + $0xa00] sm:$0xff]
    %v2425 = vld [vmem:[#allocation2 + $0xa08] sm:$0xff]
    %v2426 = vld [vmem:[#allocation2 + $0xa10] sm:$0xff]
    %v2427 = vld [vmem:[#allocation2 + $0xa18] sm:$0xff]
    %v2428 = vld [vmem:[#allocation2 + $0xa20] sm:$0xff]
    %v2429 = vld [vmem:[#allocation2 + $0xa28] sm:$0xff]
    %v2430 = vld [vmem:[#allocation2 + $0xa30] sm:$0xff]
    %v2431 = vld [vmem:[#allocation2 + $0xa38] sm:$0xff]
    %v2432 = vld [vmem:[#allocation2 + $0xa40] sm:$0xff]
    %v2433 = vld [vmem:[#allocation2 + $0xa48] sm:$0xff]
    %v2434 = vld [vmem:[#allocation2 + $0xa50] sm:$0xff]
    %v2435 = vld [vmem:[#allocation2 + $0xa58] sm:$0xff]
    %v2436 = vld [vmem:[#allocation2 + $0xa60] sm:$0xff]
    %v2437 = vld [vmem:[#allocation2 + $0xa68] sm:$0xff]
    %v2438 = vld [vmem:[#allocation2 + $0xa70] sm:$0xff]
    %v2439 = vld [vmem:[#allocation2 + $0xa78] sm:$0xff]
    %v2440 = vld [vmem:[#allocation2 + $0xa80] sm:$0xff]
    %v2441 = vld [vmem:[#allocation2 + $0xa88] sm:$0xff]
    %v2442 = vld [vmem:[#allocation2 + $0xa90] sm:$0xff]
    %v2443 = vld [vmem:[#allocation2 + $0xa98] sm:$0xff]
    %v2444 = vld [vmem:[#allocation2 + $0xaa0] sm:$0xff]
    %v2445 = vld [vmem:[#allocation2 + $0xaa8] sm:$0xff]
    %v2446 = vld [vmem:[#allocation2 + $0xab0] sm:$0xff]
    %v2447 = vld [vmem:[#allocation2 + $0xab8] sm:$0xff]
    %v2448 = vld [vmem:[#allocation2 + $0xac0] sm:$0xff]
    %v2449 = vld [vmem:[#allocation2 + $0xac8] sm:$0xff]
    %v2450 = vld [vmem:[#allocation2 + $0xad0] sm:$0xff]
    %v2451 = vld [vmem:[#allocation2 + $0xad8] sm:$0xff]
    %v2452 = vld [vmem:[#allocation2 + $0xae0] sm:$0xff]
    %v2453 = vld [vmem:[#allocation2 + $0xae8] sm:$0xff]
    %v2454 = vld [vmem:[#allocation2 + $0xaf0] sm:$0xff]
    %v2455 = vld [vmem:[#allocation2 + $0xaf8] sm:$0xff]
    %v2456 = vld [vmem:[#allocation2 + $0xb00] sm:$0xff]
    %v2457 = vld [vmem:[#allocation2 + $0xb08] sm:$0xff]
    %v2458 = vld [vmem:[#allocation2 + $0xb10] sm:$0xff]
    %v2459 = vld [vmem:[#allocation2 + $0xb18] sm:$0xff]
    %v2460 = vld [vmem:[#allocation2 + $0xb20] sm:$0xff]
    %v2461 = vld [vmem:[#allocation2 + $0xb28] sm:$0xff]
    %v2462 = vld [vmem:[#allocation2 + $0xb30] sm:$0xff]
    %v2463 = vld [vmem:[#allocation2 + $0xb38] sm:$0xff]
    %v2464 = vld [vmem:[#allocation2 + $0xb40] sm:$0xff]
    %v2465 = vld [vmem:[#allocation2 + $0xb48] sm:$0xff]
    %v2466 = vld [vmem:[#allocation2 + $0xb50] sm:$0xff]
    %v2467 = vld [vmem:[#allocation2 + $0xb58] sm:$0xff]
    %v2468 = vld [vmem:[#allocation2 + $0xb60] sm:$0xff]
    %v2469 = vld [vmem:[#allocation2 + $0xb68] sm:$0xff]
    %v2470 = vld [vmem:[#allocation2 + $0xb70] sm:$0xff]
    %v2471 = vld [vmem:[#allocation2 + $0xb78] sm:$0xff]
    %v2472 = vld [vmem:[#allocation2 + $0xb80] sm:$0xff]
    %v2473 = vld [vmem:[#allocation2 + $0xb88] sm:$0xff]
    %v2474 = vld [vmem:[#allocation2 + $0xb90] sm:$0xff]
    %v2475 = vld [vmem:[#allocation2 + $0xb98] sm:$0xff]
    %v2476 = vld [vmem:[#allocation2 + $0xba0] sm:$0xff]
    %v2477 = vld [vmem:[#allocation2 + $0xba8] sm:$0xff]
    %v2478 = vld [vmem:[#allocation2 + $0xbb0] sm:$0xff]
    %v2479 = vld [vmem:[#allocation2 + $0xbb8] sm:$0xff]
    %v2480 = vld [vmem:[#allocation2 + $0xbc0] sm:$0xff]
    %v2481 = vld [vmem:[#allocation2 + $0xbc8] sm:$0xff]
    %v2482 = vld [vmem:[#allocation2 + $0xbd0] sm:$0xff]
    %v2483 = vld [vmem:[#allocation2 + $0xbd8] sm:$0xff]
    %v2484 = vld [vmem:[#allocation2 + $0xbe0] sm:$0xff]
    %v2485 = vld [vmem:[#allocation2 + $0xbe8] sm:$0xff]
    %v2486 = vld [vmem:[#allocation2 + $0xbf0] sm:$0xff]
    %v2487 = vld [vmem:[#allocation2 + $0xbf8] sm:$0xff]
    %v2488 = vld [vmem:[#allocation2 + $0xc00] sm:$0xff]
    %v2489 = vld [vmem:[#allocation2 + $0xc08] sm:$0xff]
    %v2490 = vld [vmem:[#allocation2 + $0xc10] sm:$0xff]
    %v2491 = vld [vmem:[#allocation2 + $0xc18] sm:$0xff]
    %v2492 = vld [vmem:[#allocation2 + $0xc20] sm:$0xff]
    %v2493 = vld [vmem:[#allocation2 + $0xc28] sm:$0xff]
    %v2494 = vld [vmem:[#allocation2 + $0xc30] sm:$0xff]
    %v2495 = vld [vmem:[#allocation2 + $0xc38] sm:$0xff]
    %v2496 = vld [vmem:[#allocation2 + $0xc40] sm:$0xff]
    %v2497 = vld [vmem:[#allocation2 + $0xc48] sm:$0xff]
    %v2498 = vld [vmem:[#allocation2 + $0xc50] sm:$0xff]
    %v2499 = vld [vmem:[#allocation2 + $0xc58] sm:$0xff]
    %v2500 = vld [vmem:[#allocation2 + $0xc60] sm:$0xff]
    %v2501 = vld [vmem:[#allocation2 + $0xc68] sm:$0xff]
    %v2502 = vld [vmem:[#allocation2 + $0xc70] sm:$0xff]
    %v2503 = vld [vmem:[#allocation2 + $0xc78] sm:$0xff]
    %v2504 = vld [vmem:[#allocation2 + $0xc80] sm:$0xff]
    %v2505 = vld [vmem:[#allocation2 + $0xc88] sm:$0xff]
    %v2506 = vld [vmem:[#allocation2 + $0xc90] sm:$0xff]
    %v2507 = vld [vmem:[#allocation2 + $0xc98] sm:$0xff]
    %v2508 = vld [vmem:[#allocation2 + $0xca0] sm:$0xff]
    %v2509 = vld [vmem:[#allocation2 + $0xca8] sm:$0xff]
    %v2510 = vld [vmem:[#allocation2 + $0xcb0] sm:$0xff]
    %v2511 = vld [vmem:[#allocation2 + $0xcb8] sm:$0xff]
    %v2512 = vld [vmem:[#allocation2 + $0xcc0] sm:$0xff]
    %v2513 = vld [vmem:[#allocation2 + $0xcc8] sm:$0xff]
    %v2514 = vld [vmem:[#allocation2 + $0xcd0] sm:$0xff]
    %v2515 = vld [vmem:[#allocation2 + $0xcd8] sm:$0xff]
    %v2516 = vld [vmem:[#allocation2 + $0xce0] sm:$0xff]
    %v2517 = vld [vmem:[#allocation2 + $0xce8] sm:$0xff]
    %v2518 = vld [vmem:[#allocation2 + $0xcf0] sm:$0xff]
    %v2519 = vld [vmem:[#allocation2 + $0xcf8] sm:$0xff]
    %v2520 = vld [vmem:[#allocation2 + $0xd00] sm:$0xff]
    %v2521 = vld [vmem:[#allocation2 + $0xd08] sm:$0xff]
    %v2522 = vld [vmem:[#allocation2 + $0xd10] sm:$0xff]
    %v2523 = vld [vmem:[#allocation2 + $0xd18] sm:$0xff]
    %v2524 = vld [vmem:[#allocation2 + $0xd20] sm:$0xff]
    %v2525 = vld [vmem:[#allocation2 + $0xd28] sm:$0xff]
    %v2526 = vld [vmem:[#allocation2 + $0xd30] sm:$0xff]
    %v2527 = vld [vmem:[#allocation2 + $0xd38] sm:$0xff]
    %v2528 = vld [vmem:[#allocation2 + $0xd40] sm:$0xff]
    %v2529 = vld [vmem:[#allocation2 + $0xd48] sm:$0xff]
    %v2530 = vld [vmem:[#allocation2 + $0xd50] sm:$0xff]
    %v2531 = vld [vmem:[#allocation2 + $0xd58] sm:$0xff]
    %v2532 = vld [vmem:[#allocation2 + $0xd60] sm:$0xff]
    %v2533 = vld [vmem:[#allocation2 + $0xd68] sm:$0xff]
    %v2534 = vld [vmem:[#allocation2 + $0xd70] sm:$0xff]
    %v2535 = vld [vmem:[#allocation2 + $0xd78] sm:$0xff]
    %v2536 = vld [vmem:[#allocation2 + $0xd80] sm:$0xff]
    %v2537 = vld [vmem:[#allocation2 + $0xd88] sm:$0xff]
    %v2538 = vld [vmem:[#allocation2 + $0xd90] sm:$0xff]
    %v2539 = vld [vmem:[#allocation2 + $0xd98] sm:$0xff]
    %v2540 = vld [vmem:[#allocation2 + $0xda0] sm:$0xff]
    %v2541 = vld [vmem:[#allocation2 + $0xda8] sm:$0xff]
    %v2542 = vld [vmem:[#allocation2 + $0xdb0] sm:$0xff]
    %v2543 = vld [vmem:[#allocation2 + $0xdb8] sm:$0xff]
    %v2544 = vld [vmem:[#allocation2 + $0xdc0] sm:$0xff]
    %v2545 = vld [vmem:[#allocation2 + $0xdc8] sm:$0xff]
    %v2546 = vld [vmem:[#allocation2 + $0xdd0] sm:$0xff]
    %v2547 = vld [vmem:[#allocation2 + $0xdd8] sm:$0xff]
    %v2548 = vld [vmem:[#allocation2 + $0xde0] sm:$0xff]
    %v2549 = vld [vmem:[#allocation2 + $0xde8] sm:$0xff]
    %v2550 = vld [vmem:[#allocation2 + $0xdf0] sm:$0xff]
    %v2551 = vld [vmem:[#allocation2 + $0xdf8] sm:$0xff]
    %v2552 = vld [vmem:[#allocation2 + $0xe00] sm:$0xff]
    %v2553 = vld [vmem:[#allocation2 + $0xe08] sm:$0xff]
    %v2554 = vld [vmem:[#allocation2 + $0xe10] sm:$0xff]
    %v2555 = vld [vmem:[#allocation2 + $0xe18] sm:$0xff]
    %v2556 = vld [vmem:[#allocation2 + $0xe20] sm:$0xff]
    %v2557 = vld [vmem:[#allocation2 + $0xe28] sm:$0xff]
    %v2558 = vld [vmem:[#allocation2 + $0xe30] sm:$0xff]
    %v2559 = vld [vmem:[#allocation2 + $0xe38] sm:$0xff]
    %v2560 = vld [vmem:[#allocation2 + $0xe40] sm:$0xff]
    %v2561 = vld [vmem:[#allocation2 + $0xe48] sm:$0xff]
    %v2562 = vld [vmem:[#allocation2 + $0xe50] sm:$0xff]
    %v2563 = vld [vmem:[#allocation2 + $0xe58] sm:$0xff]
    %v2564 = vld [vmem:[#allocation2 + $0xe60] sm:$0xff]
    %v2565 = vld [vmem:[#allocation2 + $0xe68] sm:$0xff]
    %v2566 = vld [vmem:[#allocation2 + $0xe70] sm:$0xff]
    %v2567 = vld [vmem:[#allocation2 + $0xe78] sm:$0xff]
    %v2568 = vld [vmem:[#allocation2 + $0xe80] sm:$0xff]
    %v2569 = vld [vmem:[#allocation2 + $0xe88] sm:$0xff]
    %v2570 = vld [vmem:[#allocation2 + $0xe90] sm:$0xff]
    %v2571 = vld [vmem:[#allocation2 + $0xe98] sm:$0xff]
    %v2572 = vld [vmem:[#allocation2 + $0xea0] sm:$0xff]
    %v2573 = vld [vmem:[#allocation2 + $0xea8] sm:$0xff]
    %v2574 = vld [vmem:[#allocation2 + $0xeb0] sm:$0xff]
    %v2575 = vld [vmem:[#allocation2 + $0xeb8] sm:$0xff]
    %v2576 = vld [vmem:[#allocation2 + $0xec0] sm:$0xff]
    %v2577 = vld [vmem:[#allocation2 + $0xec8] sm:$0xff]
    %v2578 = vld [vmem:[#allocation2 + $0xed0] sm:$0xff]
    %v2579 = vld [vmem:[#allocation2 + $0xed8] sm:$0xff]
    %v2580 = vld [vmem:[#allocation2 + $0xee0] sm:$0xff]
    %v2581 = vld [vmem:[#allocation2 + $0xee8] sm:$0xff]
    %v2582 = vld [vmem:[#allocation2 + $0xef0] sm:$0xff]
    %v2583 = vld [vmem:[#allocation2 + $0xef8] sm:$0xff]
    %v2584 = vld [vmem:[#allocation2 + $0xf00] sm:$0xff]
    %v2585 = vld [vmem:[#allocation2 + $0xf08] sm:$0xff]
    %v2586 = vld [vmem:[#allocation2 + $0xf10] sm:$0xff]
    %v2587 = vld [vmem:[#allocation2 + $0xf18] sm:$0xff]
    %v2588 = vld [vmem:[#allocation2 + $0xf20] sm:$0xff]
    %v2589 = vld [vmem:[#allocation2 + $0xf28] sm:$0xff]
    %v2590 = vld [vmem:[#allocation2 + $0xf30] sm:$0xff]
    %v2591 = vld [vmem:[#allocation2 + $0xf38] sm:$0xff]
    %v2592 = vld [vmem:[#allocation2 + $0xf40] sm:$0xff]
    %v2593 = vld [vmem:[#allocation2 + $0xf48] sm:$0xff]
    %v2594 = vld [vmem:[#allocation2 + $0xf50] sm:$0xff]
    %v2595 = vld [vmem:[#allocation2 + $0xf58] sm:$0xff]
    %v2596 = vld [vmem:[#allocation2 + $0xf60] sm:$0xff]
    %v2597 = vld [vmem:[#allocation2 + $0xf68] sm:$0xff]
    %v2598 = vld [vmem:[#allocation2 + $0xf70] sm:$0xff]
    %v2599 = vld [vmem:[#allocation2 + $0xf78] sm:$0xff]
    %v2600 = vld [vmem:[#allocation2 + $0xf80] sm:$0xff]
    %v2601 = vld [vmem:[#allocation2 + $0xf88] sm:$0xff]
    %v2602 = vld [vmem:[#allocation2 + $0xf90] sm:$0xff]
    %v2603 = vld [vmem:[#allocation2 + $0xf98] sm:$0xff]
    %v2604 = vld [vmem:[#allocation2 + $0xfa0] sm:$0xff]
    %v2605 = vld [vmem:[#allocation2 + $0xfa8] sm:$0xff]
    %v2606 = vld [vmem:[#allocation2 + $0xfb0] sm:$0xff]
    %v2607 = vld [vmem:[#allocation2 + $0xfb8] sm:$0xff]
    %v2608 = vld [vmem:[#allocation2 + $0xfc0] sm:$0xff]
    %v2609 = vld [vmem:[#allocation2 + $0xfc8] sm:$0xff]
    %v2610 = vld [vmem:[#allocation2 + $0xfd0] sm:$0xff]
    %v2611 = vld [vmem:[#allocation2 + $0xfd8] sm:$0xff]
    %v2612 = vld [vmem:[#allocation2 + $0xfe0] sm:$0xff]
    %v2613 = vld [vmem:[#allocation2 + $0xfe8] sm:$0xff]
    %v2614 = vld [vmem:[#allocation2 + $0xff0] sm:$0xff]
    %v2615 = vld [vmem:[#allocation2 + $0xff8] sm:$0xff]
    %v2616 = vpack.c.bf16 %v2092, %v2084
    %v2617 = vpack.c.bf16 %v2093, %v2085
    %v2618 = vpack.c.bf16 %v2094, %v2086
    %v2619 = vpack.c.bf16 %v2095, %v2087
    %v2620 = vpack.c.bf16 %v2096, %v2088
    %v2621 = vpack.c.bf16 %v2097, %v2089
    %v2622 = vpack.c.bf16 %v2098, %v2090
    %v2623 = vpack.c.bf16 %v2099, %v2091
    %v2625 = vperm.slane %v542, 0
    %v2626 = vperm.slane %v542, 1
    %v2627 = vperm.slane %v542, 2
    %v2628 = vperm.slane %v542, 3
    %v2629 = vperm.slane %v542, 4
    %v2630 = vperm.slane %v542, 5
    %v2631 = vperm.slane %v542, 6
    %v2632 = vperm.slane %v542, 7
    %v3153 = vunpack.c.l.b16 %v2104
    %v3154 = vunpack.c.h.b16 %v2104
    %v3155 = vunpack.c.l.b16 %v2105
    %v3156 = vunpack.c.h.b16 %v2105
    %v3157 = vunpack.c.l.b16 %v2106
    %v3158 = vunpack.c.h.b16 %v2106
    %v3159 = vunpack.c.l.b16 %v2107
    %v3160 = vunpack.c.h.b16 %v2107
    %v3161 = vunpack.c.l.b16 %v2108
    %v3162 = vunpack.c.h.b16 %v2108
    %v3163 = vunpack.c.l.b16 %v2109
    %v3164 = vunpack.c.h.b16 %v2109
    %v3165 = vunpack.c.l.b16 %v2110
    %v3166 = vunpack.c.h.b16 %v2110
    %v3167 = vunpack.c.l.b16 %v2111
    %v3168 = vunpack.c.h.b16 %v2111
    %v3169 = vunpack.c.l.b16 %v2112
    %v3170 = vunpack.c.h.b16 %v2112
    %v3171 = vunpack.c.l.b16 %v2113
    %v3172 = vunpack.c.h.b16 %v2113
    %v3173 = vunpack.c.l.b16 %v2114
    %v3174 = vunpack.c.h.b16 %v2114
    %v3175 = vunpack.c.l.b16 %v2115
    %v3176 = vunpack.c.h.b16 %v2115
    %v3177 = vunpack.c.l.b16 %v2116
    %v3178 = vunpack.c.h.b16 %v2116
    %v3179 = vunpack.c.l.b16 %v2117
    %v3180 = vunpack.c.h.b16 %v2117
    %v3181 = vunpack.c.l.b16 %v2118
    %v3182 = vunpack.c.h.b16 %v2118
    %v3183 = vunpack.c.l.b16 %v2119
    %v3184 = vunpack.c.h.b16 %v2119
    %v3185 = vunpack.c.l.b16 %v2120
    %v3186 = vunpack.c.h.b16 %v2120
    %v3187 = vunpack.c.l.b16 %v2121
    %v3188 = vunpack.c.h.b16 %v2121
    %v3189 = vunpack.c.l.b16 %v2122
    %v3190 = vunpack.c.h.b16 %v2122
    %v3191 = vunpack.c.l.b16 %v2123
    %v3192 = vunpack.c.h.b16 %v2123
    %v3193 = vunpack.c.l.b16 %v2124
    %v3194 = vunpack.c.h.b16 %v2124
    %v3195 = vunpack.c.l.b16 %v2125
    %v3196 = vunpack.c.h.b16 %v2125
    %v3197 = vunpack.c.l.b16 %v2126
    %v3198 = vunpack.c.h.b16 %v2126
    %v3199 = vunpack.c.l.b16 %v2127
    %v3200 = vunpack.c.h.b16 %v2127
    %v3201 = vunpack.c.l.b16 %v2128
    %v3202 = vunpack.c.h.b16 %v2128
    %v3203 = vunpack.c.l.b16 %v2129
    %v3204 = vunpack.c.h.b16 %v2129
    %v3205 = vunpack.c.l.b16 %v2130
    %v3206 = vunpack.c.h.b16 %v2130
    %v3207 = vunpack.c.l.b16 %v2131
    %v3208 = vunpack.c.h.b16 %v2131
    %v3209 = vunpack.c.l.b16 %v2132
    %v3210 = vunpack.c.h.b16 %v2132
    %v3211 = vunpack.c.l.b16 %v2133
    %v3212 = vunpack.c.h.b16 %v2133
    %v3213 = vunpack.c.l.b16 %v2134
    %v3214 = vunpack.c.h.b16 %v2134
    %v3215 = vunpack.c.l.b16 %v2135
    %v3216 = vunpack.c.h.b16 %v2135
    %v3217 = vunpack.c.l.b16 %v2136
    %v3218 = vunpack.c.h.b16 %v2136
    %v3219 = vunpack.c.l.b16 %v2137
    %v3220 = vunpack.c.h.b16 %v2137
    %v3221 = vunpack.c.l.b16 %v2138
    %v3222 = vunpack.c.h.b16 %v2138
    %v3223 = vunpack.c.l.b16 %v2139
    %v3224 = vunpack.c.h.b16 %v2139
    %v3225 = vunpack.c.l.b16 %v2140
    %v3226 = vunpack.c.h.b16 %v2140
    %v3227 = vunpack.c.l.b16 %v2141
    %v3228 = vunpack.c.h.b16 %v2141
    %v3229 = vunpack.c.l.b16 %v2142
    %v3230 = vunpack.c.h.b16 %v2142
    %v3231 = vunpack.c.l.b16 %v2143
    %v3232 = vunpack.c.h.b16 %v2143
    %v3233 = vunpack.c.l.b16 %v2144
    %v3234 = vunpack.c.h.b16 %v2144
    %v3235 = vunpack.c.l.b16 %v2145
    %v3236 = vunpack.c.h.b16 %v2145
    %v3237 = vunpack.c.l.b16 %v2146
    %v3238 = vunpack.c.h.b16 %v2146
    %v3239 = vunpack.c.l.b16 %v2147
    %v3240 = vunpack.c.h.b16 %v2147
    %v3241 = vunpack.c.l.b16 %v2148
    %v3242 = vunpack.c.h.b16 %v2148
    %v3243 = vunpack.c.l.b16 %v2149
    %v3244 = vunpack.c.h.b16 %v2149
    %v3245 = vunpack.c.l.b16 %v2150
    %v3246 = vunpack.c.h.b16 %v2150
    %v3247 = vunpack.c.l.b16 %v2151
    %v3248 = vunpack.c.h.b16 %v2151
    %v3249 = vunpack.c.l.b16 %v2152
    %v3250 = vunpack.c.h.b16 %v2152
    %v3251 = vunpack.c.l.b16 %v2153
    %v3252 = vunpack.c.h.b16 %v2153
    %v3253 = vunpack.c.l.b16 %v2154
    %v3254 = vunpack.c.h.b16 %v2154
    %v3255 = vunpack.c.l.b16 %v2155
    %v3256 = vunpack.c.h.b16 %v2155
    %v3257 = vunpack.c.l.b16 %v2156
    %v3258 = vunpack.c.h.b16 %v2156
    %v3259 = vunpack.c.l.b16 %v2157
    %v3260 = vunpack.c.h.b16 %v2157
    %v3261 = vunpack.c.l.b16 %v2158
    %v3262 = vunpack.c.h.b16 %v2158
    %v3263 = vunpack.c.l.b16 %v2159
    %v3264 = vunpack.c.h.b16 %v2159
    %v3265 = vunpack.c.l.b16 %v2160
    %v3266 = vunpack.c.h.b16 %v2160
    %v3267 = vunpack.c.l.b16 %v2161
    %v3268 = vunpack.c.h.b16 %v2161
    %v3269 = vunpack.c.l.b16 %v2162
    %v3270 = vunpack.c.h.b16 %v2162
    %v3271 = vunpack.c.l.b16 %v2163
    %v3272 = vunpack.c.h.b16 %v2163
    %v3273 = vunpack.c.l.b16 %v2164
    %v3274 = vunpack.c.h.b16 %v2164
    %v3275 = vunpack.c.l.b16 %v2165
    %v3276 = vunpack.c.h.b16 %v2165
    %v3277 = vunpack.c.l.b16 %v2166
    %v3278 = vunpack.c.h.b16 %v2166
    %v3279 = vunpack.c.l.b16 %v2167
    %v3280 = vunpack.c.h.b16 %v2167
    %v3281 = vunpack.c.l.b16 %v2168
    %v3282 = vunpack.c.h.b16 %v2168
    %v3283 = vunpack.c.l.b16 %v2169
    %v3284 = vunpack.c.h.b16 %v2169
    %v3285 = vunpack.c.l.b16 %v2170
    %v3286 = vunpack.c.h.b16 %v2170
    %v3287 = vunpack.c.l.b16 %v2171
    %v3288 = vunpack.c.h.b16 %v2171
    %v3289 = vunpack.c.l.b16 %v2172
    %v3290 = vunpack.c.h.b16 %v2172
    %v3291 = vunpack.c.l.b16 %v2173
    %v3292 = vunpack.c.h.b16 %v2173
    %v3293 = vunpack.c.l.b16 %v2174
    %v3294 = vunpack.c.h.b16 %v2174
    %v3295 = vunpack.c.l.b16 %v2175
    %v3296 = vunpack.c.h.b16 %v2175
    %v3297 = vunpack.c.l.b16 %v2176
    %v3298 = vunpack.c.h.b16 %v2176
    %v3299 = vunpack.c.l.b16 %v2177
    %v3300 = vunpack.c.h.b16 %v2177
    %v3301 = vunpack.c.l.b16 %v2178
    %v3302 = vunpack.c.h.b16 %v2178
    %v3303 = vunpack.c.l.b16 %v2179
    %v3304 = vunpack.c.h.b16 %v2179
    %v3305 = vunpack.c.l.b16 %v2180
    %v3306 = vunpack.c.h.b16 %v2180
    %v3307 = vunpack.c.l.b16 %v2181
    %v3308 = vunpack.c.h.b16 %v2181
    %v3309 = vunpack.c.l.b16 %v2182
    %v3310 = vunpack.c.h.b16 %v2182
    %v3311 = vunpack.c.l.b16 %v2183
    %v3312 = vunpack.c.h.b16 %v2183
    %v3313 = vunpack.c.l.b16 %v2184
    %v3314 = vunpack.c.h.b16 %v2184
    %v3315 = vunpack.c.l.b16 %v2185
    %v3316 = vunpack.c.h.b16 %v2185
    %v3317 = vunpack.c.l.b16 %v2186
    %v3318 = vunpack.c.h.b16 %v2186
    %v3319 = vunpack.c.l.b16 %v2187
    %v3320 = vunpack.c.h.b16 %v2187
    %v3321 = vunpack.c.l.b16 %v2188
    %v3322 = vunpack.c.h.b16 %v2188
    %v3323 = vunpack.c.l.b16 %v2189
    %v3324 = vunpack.c.h.b16 %v2189
    %v3325 = vunpack.c.l.b16 %v2190
    %v3326 = vunpack.c.h.b16 %v2190
    %v3327 = vunpack.c.l.b16 %v2191
    %v3328 = vunpack.c.h.b16 %v2191
    %v3329 = vunpack.c.l.b16 %v2192
    %v3330 = vunpack.c.h.b16 %v2192
    %v3331 = vunpack.c.l.b16 %v2193
    %v3332 = vunpack.c.h.b16 %v2193
    %v3333 = vunpack.c.l.b16 %v2194
    %v3334 = vunpack.c.h.b16 %v2194
    %v3335 = vunpack.c.l.b16 %v2195
    %v3336 = vunpack.c.h.b16 %v2195
    %v3337 = vunpack.c.l.b16 %v2196
    %v3338 = vunpack.c.h.b16 %v2196
    %v3339 = vunpack.c.l.b16 %v2197
    %v3340 = vunpack.c.h.b16 %v2197
    %v3341 = vunpack.c.l.b16 %v2198
    %v3342 = vunpack.c.h.b16 %v2198
    %v3343 = vunpack.c.l.b16 %v2199
    %v3344 = vunpack.c.h.b16 %v2199
    %v3345 = vunpack.c.l.b16 %v2200
    %v3346 = vunpack.c.h.b16 %v2200
    %v3347 = vunpack.c.l.b16 %v2201
    %v3348 = vunpack.c.h.b16 %v2201
    %v3349 = vunpack.c.l.b16 %v2202
    %v3350 = vunpack.c.h.b16 %v2202
    %v3351 = vunpack.c.l.b16 %v2203
    %v3352 = vunpack.c.h.b16 %v2203
    %v3353 = vunpack.c.l.b16 %v2204
    %v3354 = vunpack.c.h.b16 %v2204
    %v3355 = vunpack.c.l.b16 %v2205
    %v3356 = vunpack.c.h.b16 %v2205
    %v3357 = vunpack.c.l.b16 %v2206
    %v3358 = vunpack.c.h.b16 %v2206
    %v3359 = vunpack.c.l.b16 %v2207
    %v3360 = vunpack.c.h.b16 %v2207
    %v3361 = vunpack.c.l.b16 %v2208
    %v3362 = vunpack.c.h.b16 %v2208
    %v3363 = vunpack.c.l.b16 %v2209
    %v3364 = vunpack.c.h.b16 %v2209
    %v3365 = vunpack.c.l.b16 %v2210
    %v3366 = vunpack.c.h.b16 %v2210
    %v3367 = vunpack.c.l.b16 %v2211
    %v3368 = vunpack.c.h.b16 %v2211
    %v3369 = vunpack.c.l.b16 %v2212
    %v3370 = vunpack.c.h.b16 %v2212
    %v3371 = vunpack.c.l.b16 %v2213
    %v3372 = vunpack.c.h.b16 %v2213
    %v3373 = vunpack.c.l.b16 %v2214
    %v3374 = vunpack.c.h.b16 %v2214
    %v3375 = vunpack.c.l.b16 %v2215
    %v3376 = vunpack.c.h.b16 %v2215
    %v3377 = vunpack.c.l.b16 %v2216
    %v3378 = vunpack.c.h.b16 %v2216
    %v3379 = vunpack.c.l.b16 %v2217
    %v3380 = vunpack.c.h.b16 %v2217
    %v3381 = vunpack.c.l.b16 %v2218
    %v3382 = vunpack.c.h.b16 %v2218
    %v3383 = vunpack.c.l.b16 %v2219
    %v3384 = vunpack.c.h.b16 %v2219
    %v3385 = vunpack.c.l.b16 %v2220
    %v3386 = vunpack.c.h.b16 %v2220
    %v3387 = vunpack.c.l.b16 %v2221
    %v3388 = vunpack.c.h.b16 %v2221
    %v3389 = vunpack.c.l.b16 %v2222
    %v3390 = vunpack.c.h.b16 %v2222
    %v3391 = vunpack.c.l.b16 %v2223
    %v3392 = vunpack.c.h.b16 %v2223
    %v3393 = vunpack.c.l.b16 %v2224
    %v3394 = vunpack.c.h.b16 %v2224
    %v3395 = vunpack.c.l.b16 %v2225
    %v3396 = vunpack.c.h.b16 %v2225
    %v3397 = vunpack.c.l.b16 %v2226
    %v3398 = vunpack.c.h.b16 %v2226
    %v3399 = vunpack.c.l.b16 %v2227
    %v3400 = vunpack.c.h.b16 %v2227
    %v3401 = vunpack.c.l.b16 %v2228
    %v3402 = vunpack.c.h.b16 %v2228
    %v3403 = vunpack.c.l.b16 %v2229
    %v3404 = vunpack.c.h.b16 %v2229
    %v3405 = vunpack.c.l.b16 %v2230
    %v3406 = vunpack.c.h.b16 %v2230
    %v3407 = vunpack.c.l.b16 %v2231
    %v3408 = vunpack.c.h.b16 %v2231
    %v3409 = vunpack.c.l.b16 %v2232
    %v3410 = vunpack.c.h.b16 %v2232
    %v3411 = vunpack.c.l.b16 %v2233
    %v3412 = vunpack.c.h.b16 %v2233
    %v3413 = vunpack.c.l.b16 %v2234
    %v3414 = vunpack.c.h.b16 %v2234
    %v3415 = vunpack.c.l.b16 %v2235
    %v3416 = vunpack.c.h.b16 %v2235
    %v3417 = vunpack.c.l.b16 %v2236
    %v3418 = vunpack.c.h.b16 %v2236
    %v3419 = vunpack.c.l.b16 %v2237
    %v3420 = vunpack.c.h.b16 %v2237
    %v3421 = vunpack.c.l.b16 %v2238
    %v3422 = vunpack.c.h.b16 %v2238
    %v3423 = vunpack.c.l.b16 %v2239
    %v3424 = vunpack.c.h.b16 %v2239
    %v3425 = vunpack.c.l.b16 %v2240
    %v3426 = vunpack.c.h.b16 %v2240
    %v3427 = vunpack.c.l.b16 %v2241
    %v3428 = vunpack.c.h.b16 %v2241
    %v3429 = vunpack.c.l.b16 %v2242
    %v3430 = vunpack.c.h.b16 %v2242
    %v3431 = vunpack.c.l.b16 %v2243
    %v3432 = vunpack.c.h.b16 %v2243
    %v3433 = vunpack.c.l.b16 %v2244
    %v3434 = vunpack.c.h.b16 %v2244
    %v3435 = vunpack.c.l.b16 %v2245
    %v3436 = vunpack.c.h.b16 %v2245
    %v3437 = vunpack.c.l.b16 %v2246
    %v3438 = vunpack.c.h.b16 %v2246
    %v3439 = vunpack.c.l.b16 %v2247
    %v3440 = vunpack.c.h.b16 %v2247
    %v3441 = vunpack.c.l.b16 %v2248
    %v3442 = vunpack.c.h.b16 %v2248
    %v3443 = vunpack.c.l.b16 %v2249
    %v3444 = vunpack.c.h.b16 %v2249
    %v3445 = vunpack.c.l.b16 %v2250
    %v3446 = vunpack.c.h.b16 %v2250
    %v3447 = vunpack.c.l.b16 %v2251
    %v3448 = vunpack.c.h.b16 %v2251
    %v3449 = vunpack.c.l.b16 %v2252
    %v3450 = vunpack.c.h.b16 %v2252
    %v3451 = vunpack.c.l.b16 %v2253
    %v3452 = vunpack.c.h.b16 %v2253
    %v3453 = vunpack.c.l.b16 %v2254
    %v3454 = vunpack.c.h.b16 %v2254
    %v3455 = vunpack.c.l.b16 %v2255
    %v3456 = vunpack.c.h.b16 %v2255
    %v3457 = vunpack.c.l.b16 %v2256
    %v3458 = vunpack.c.h.b16 %v2256
    %v3459 = vunpack.c.l.b16 %v2257
    %v3460 = vunpack.c.h.b16 %v2257
    %v3461 = vunpack.c.l.b16 %v2258
    %v3462 = vunpack.c.h.b16 %v2258
    %v3463 = vunpack.c.l.b16 %v2259
    %v3464 = vunpack.c.h.b16 %v2259
    %v3465 = vunpack.c.l.b16 %v2260
    %v3466 = vunpack.c.h.b16 %v2260
    %v3467 = vunpack.c.l.b16 %v2261
    %v3468 = vunpack.c.h.b16 %v2261
    %v3469 = vunpack.c.l.b16 %v2262
    %v3470 = vunpack.c.h.b16 %v2262
    %v3471 = vunpack.c.l.b16 %v2263
    %v3472 = vunpack.c.h.b16 %v2263
    %v3473 = vunpack.c.l.b16 %v2264
    %v3474 = vunpack.c.h.b16 %v2264
    %v3475 = vunpack.c.l.b16 %v2265
    %v3476 = vunpack.c.h.b16 %v2265
    %v3477 = vunpack.c.l.b16 %v2266
    %v3478 = vunpack.c.h.b16 %v2266
    %v3479 = vunpack.c.l.b16 %v2267
    %v3480 = vunpack.c.h.b16 %v2267
    %v3481 = vunpack.c.l.b16 %v2268
    %v3482 = vunpack.c.h.b16 %v2268
    %v3483 = vunpack.c.l.b16 %v2269
    %v3484 = vunpack.c.h.b16 %v2269
    %v3485 = vunpack.c.l.b16 %v2270
    %v3486 = vunpack.c.h.b16 %v2270
    %v3487 = vunpack.c.l.b16 %v2271
    %v3488 = vunpack.c.h.b16 %v2271
    %v3489 = vunpack.c.l.b16 %v2272
    %v3490 = vunpack.c.h.b16 %v2272
    %v3491 = vunpack.c.l.b16 %v2273
    %v3492 = vunpack.c.h.b16 %v2273
    %v3493 = vunpack.c.l.b16 %v2274
    %v3494 = vunpack.c.h.b16 %v2274
    %v3495 = vunpack.c.l.b16 %v2275
    %v3496 = vunpack.c.h.b16 %v2275
    %v3497 = vunpack.c.l.b16 %v2276
    %v3498 = vunpack.c.h.b16 %v2276
    %v3499 = vunpack.c.l.b16 %v2277
    %v3500 = vunpack.c.h.b16 %v2277
    %v3501 = vunpack.c.l.b16 %v2278
    %v3502 = vunpack.c.h.b16 %v2278
    %v3503 = vunpack.c.l.b16 %v2279
    %v3504 = vunpack.c.h.b16 %v2279
    %v3505 = vunpack.c.l.b16 %v2280
    %v3506 = vunpack.c.h.b16 %v2280
    %v3507 = vunpack.c.l.b16 %v2281
    %v3508 = vunpack.c.h.b16 %v2281
    %v3509 = vunpack.c.l.b16 %v2282
    %v3510 = vunpack.c.h.b16 %v2282
    %v3511 = vunpack.c.l.b16 %v2283
    %v3512 = vunpack.c.h.b16 %v2283
    %v3513 = vunpack.c.l.b16 %v2284
    %v3514 = vunpack.c.h.b16 %v2284
    %v3515 = vunpack.c.l.b16 %v2285
    %v3516 = vunpack.c.h.b16 %v2285
    %v3517 = vunpack.c.l.b16 %v2286
    %v3518 = vunpack.c.h.b16 %v2286
    %v3519 = vunpack.c.l.b16 %v2287
    %v3520 = vunpack.c.h.b16 %v2287
    %v3521 = vunpack.c.l.b16 %v2288
    %v3522 = vunpack.c.h.b16 %v2288
    %v3523 = vunpack.c.l.b16 %v2289
    %v3524 = vunpack.c.h.b16 %v2289
    %v3525 = vunpack.c.l.b16 %v2290
    %v3526 = vunpack.c.h.b16 %v2290
    %v3527 = vunpack.c.l.b16 %v2291
    %v3528 = vunpack.c.h.b16 %v2291
    %v3529 = vunpack.c.l.b16 %v2292
    %v3530 = vunpack.c.h.b16 %v2292
    %v3531 = vunpack.c.l.b16 %v2293
    %v3532 = vunpack.c.h.b16 %v2293
    %v3533 = vunpack.c.l.b16 %v2294
    %v3534 = vunpack.c.h.b16 %v2294
    %v3535 = vunpack.c.l.b16 %v2295
    %v3536 = vunpack.c.h.b16 %v2295
    %v3537 = vunpack.c.l.b16 %v2296
    %v3538 = vunpack.c.h.b16 %v2296
    %v3539 = vunpack.c.l.b16 %v2297
    %v3540 = vunpack.c.h.b16 %v2297
    %v3541 = vunpack.c.l.b16 %v2298
    %v3542 = vunpack.c.h.b16 %v2298
    %v3543 = vunpack.c.l.b16 %v2299
    %v3544 = vunpack.c.h.b16 %v2299
    %v3545 = vunpack.c.l.b16 %v2300
    %v3546 = vunpack.c.h.b16 %v2300
    %v3547 = vunpack.c.l.b16 %v2301
    %v3548 = vunpack.c.h.b16 %v2301
    %v3549 = vunpack.c.l.b16 %v2302
    %v3550 = vunpack.c.h.b16 %v2302
    %v3551 = vunpack.c.l.b16 %v2303
    %v3552 = vunpack.c.h.b16 %v2303
    %v3553 = vunpack.c.l.b16 %v2304
    %v3554 = vunpack.c.h.b16 %v2304
    %v3555 = vunpack.c.l.b16 %v2305
    %v3556 = vunpack.c.h.b16 %v2305
    %v3557 = vunpack.c.l.b16 %v2306
    %v3558 = vunpack.c.h.b16 %v2306
    %v3559 = vunpack.c.l.b16 %v2307
    %v3560 = vunpack.c.h.b16 %v2307
    %v3561 = vunpack.c.l.b16 %v2308
    %v3562 = vunpack.c.h.b16 %v2308
    %v3563 = vunpack.c.l.b16 %v2309
    %v3564 = vunpack.c.h.b16 %v2309
    %v3565 = vunpack.c.l.b16 %v2310
    %v3566 = vunpack.c.h.b16 %v2310
    %v3567 = vunpack.c.l.b16 %v2311
    %v3568 = vunpack.c.h.b16 %v2311
    %v3569 = vunpack.c.l.b16 %v2312
    %v3570 = vunpack.c.h.b16 %v2312
    %v3571 = vunpack.c.l.b16 %v2313
    %v3572 = vunpack.c.h.b16 %v2313
    %v3573 = vunpack.c.l.b16 %v2314
    %v3574 = vunpack.c.h.b16 %v2314
    %v3575 = vunpack.c.l.b16 %v2315
    %v3576 = vunpack.c.h.b16 %v2315
    %v3577 = vunpack.c.l.b16 %v2316
    %v3578 = vunpack.c.h.b16 %v2316
    %v3579 = vunpack.c.l.b16 %v2317
    %v3580 = vunpack.c.h.b16 %v2317
    %v3581 = vunpack.c.l.b16 %v2318
    %v3582 = vunpack.c.h.b16 %v2318
    %v3583 = vunpack.c.l.b16 %v2319
    %v3584 = vunpack.c.h.b16 %v2319
    %v3585 = vunpack.c.l.b16 %v2320
    %v3586 = vunpack.c.h.b16 %v2320
    %v3587 = vunpack.c.l.b16 %v2321
    %v3588 = vunpack.c.h.b16 %v2321
    %v3589 = vunpack.c.l.b16 %v2322
    %v3590 = vunpack.c.h.b16 %v2322
    %v3591 = vunpack.c.l.b16 %v2323
    %v3592 = vunpack.c.h.b16 %v2323
    %v3593 = vunpack.c.l.b16 %v2324
    %v3594 = vunpack.c.h.b16 %v2324
    %v3595 = vunpack.c.l.b16 %v2325
    %v3596 = vunpack.c.h.b16 %v2325
    %v3597 = vunpack.c.l.b16 %v2326
    %v3598 = vunpack.c.h.b16 %v2326
    %v3599 = vunpack.c.l.b16 %v2327
    %v3600 = vunpack.c.h.b16 %v2327
    %v3601 = vunpack.c.l.b16 %v2328
    %v3602 = vunpack.c.h.b16 %v2328
    %v3603 = vunpack.c.l.b16 %v2329
    %v3604 = vunpack.c.h.b16 %v2329
    %v3605 = vunpack.c.l.b16 %v2330
    %v3606 = vunpack.c.h.b16 %v2330
    %v3607 = vunpack.c.l.b16 %v2331
    %v3608 = vunpack.c.h.b16 %v2331
    %v3609 = vunpack.c.l.b16 %v2332
    %v3610 = vunpack.c.h.b16 %v2332
    %v3611 = vunpack.c.l.b16 %v2333
    %v3612 = vunpack.c.h.b16 %v2333
    %v3613 = vunpack.c.l.b16 %v2334
    %v3614 = vunpack.c.h.b16 %v2334
    %v3615 = vunpack.c.l.b16 %v2335
    %v3616 = vunpack.c.h.b16 %v2335
    %v3617 = vunpack.c.l.b16 %v2336
    %v3618 = vunpack.c.h.b16 %v2336
    %v3619 = vunpack.c.l.b16 %v2337
    %v3620 = vunpack.c.h.b16 %v2337
    %v3621 = vunpack.c.l.b16 %v2338
    %v3622 = vunpack.c.h.b16 %v2338
    %v3623 = vunpack.c.l.b16 %v2339
    %v3624 = vunpack.c.h.b16 %v2339
    %v3625 = vunpack.c.l.b16 %v2340
    %v3626 = vunpack.c.h.b16 %v2340
    %v3627 = vunpack.c.l.b16 %v2341
    %v3628 = vunpack.c.h.b16 %v2341
    %v3629 = vunpack.c.l.b16 %v2342
    %v3630 = vunpack.c.h.b16 %v2342
    %v3631 = vunpack.c.l.b16 %v2343
    %v3632 = vunpack.c.h.b16 %v2343
    %v3633 = vunpack.c.l.b16 %v2344
    %v3634 = vunpack.c.h.b16 %v2344
    %v3635 = vunpack.c.l.b16 %v2345
    %v3636 = vunpack.c.h.b16 %v2345
    %v3637 = vunpack.c.l.b16 %v2346
    %v3638 = vunpack.c.h.b16 %v2346
    %v3639 = vunpack.c.l.b16 %v2347
    %v3640 = vunpack.c.h.b16 %v2347
    %v3641 = vunpack.c.l.b16 %v2348
    %v3642 = vunpack.c.h.b16 %v2348
    %v3643 = vunpack.c.l.b16 %v2349
    %v3644 = vunpack.c.h.b16 %v2349
    %v3645 = vunpack.c.l.b16 %v2350
    %v3646 = vunpack.c.h.b16 %v2350
    %v3647 = vunpack.c.l.b16 %v2351
    %v3648 = vunpack.c.h.b16 %v2351
    %v3649 = vunpack.c.l.b16 %v2352
    %v3650 = vunpack.c.h.b16 %v2352
    %v3651 = vunpack.c.l.b16 %v2353
    %v3652 = vunpack.c.h.b16 %v2353
    %v3653 = vunpack.c.l.b16 %v2354
    %v3654 = vunpack.c.h.b16 %v2354
    %v3655 = vunpack.c.l.b16 %v2355
    %v3656 = vunpack.c.h.b16 %v2355
    %v3657 = vunpack.c.l.b16 %v2356
    %v3658 = vunpack.c.h.b16 %v2356
    %v3659 = vunpack.c.l.b16 %v2357
    %v3660 = vunpack.c.h.b16 %v2357
    %v3661 = vunpack.c.l.b16 %v2358
    %v3662 = vunpack.c.h.b16 %v2358
    %v3663 = vunpack.c.l.b16 %v2359
    %v3664 = vunpack.c.h.b16 %v2359
    %v3665 = vunpack.c.l.b16 %v2360
    %v3666 = vunpack.c.h.b16 %v2360
    %v3667 = vunpack.c.l.b16 %v2361
    %v3668 = vunpack.c.h.b16 %v2361
    %v3669 = vunpack.c.l.b16 %v2362
    %v3670 = vunpack.c.h.b16 %v2362
    %v3671 = vunpack.c.l.b16 %v2363
    %v3672 = vunpack.c.h.b16 %v2363
    %v3673 = vunpack.c.l.b16 %v2364
    %v3674 = vunpack.c.h.b16 %v2364
    %v3675 = vunpack.c.l.b16 %v2365
    %v3676 = vunpack.c.h.b16 %v2365
    %v3677 = vunpack.c.l.b16 %v2366
    %v3678 = vunpack.c.h.b16 %v2366
    %v3679 = vunpack.c.l.b16 %v2367
    %v3680 = vunpack.c.h.b16 %v2367
    %v3681 = vunpack.c.l.b16 %v2368
    %v3682 = vunpack.c.h.b16 %v2368
    %v3683 = vunpack.c.l.b16 %v2369
    %v3684 = vunpack.c.h.b16 %v2369
    %v3685 = vunpack.c.l.b16 %v2370
    %v3686 = vunpack.c.h.b16 %v2370
    %v3687 = vunpack.c.l.b16 %v2371
    %v3688 = vunpack.c.h.b16 %v2371
    %v3689 = vunpack.c.l.b16 %v2372
    %v3690 = vunpack.c.h.b16 %v2372
    %v3691 = vunpack.c.l.b16 %v2373
    %v3692 = vunpack.c.h.b16 %v2373
    %v3693 = vunpack.c.l.b16 %v2374
    %v3694 = vunpack.c.h.b16 %v2374
    %v3695 = vunpack.c.l.b16 %v2375
    %v3696 = vunpack.c.h.b16 %v2375
    %v3697 = vunpack.c.l.b16 %v2376
    %v3698 = vunpack.c.h.b16 %v2376
    %v3699 = vunpack.c.l.b16 %v2377
    %v3700 = vunpack.c.h.b16 %v2377
    %v3701 = vunpack.c.l.b16 %v2378
    %v3702 = vunpack.c.h.b16 %v2378
    %v3703 = vunpack.c.l.b16 %v2379
    %v3704 = vunpack.c.h.b16 %v2379
    %v3705 = vunpack.c.l.b16 %v2380
    %v3706 = vunpack.c.h.b16 %v2380
    %v3707 = vunpack.c.l.b16 %v2381
    %v3708 = vunpack.c.h.b16 %v2381
    %v3709 = vunpack.c.l.b16 %v2382
    %v3710 = vunpack.c.h.b16 %v2382
    %v3711 = vunpack.c.l.b16 %v2383
    %v3712 = vunpack.c.h.b16 %v2383
    %v3713 = vunpack.c.l.b16 %v2384
    %v3714 = vunpack.c.h.b16 %v2384
    %v3715 = vunpack.c.l.b16 %v2385
    %v3716 = vunpack.c.h.b16 %v2385
    %v3717 = vunpack.c.l.b16 %v2386
    %v3718 = vunpack.c.h.b16 %v2386
    %v3719 = vunpack.c.l.b16 %v2387
    %v3720 = vunpack.c.h.b16 %v2387
    %v3721 = vunpack.c.l.b16 %v2388
    %v3722 = vunpack.c.h.b16 %v2388
    %v3723 = vunpack.c.l.b16 %v2389
    %v3724 = vunpack.c.h.b16 %v2389
    %v3725 = vunpack.c.l.b16 %v2390
    %v3726 = vunpack.c.h.b16 %v2390
    %v3727 = vunpack.c.l.b16 %v2391
    %v3728 = vunpack.c.h.b16 %v2391
    %v3729 = vunpack.c.l.b16 %v2392
    %v3730 = vunpack.c.h.b16 %v2392
    %v3731 = vunpack.c.l.b16 %v2393
    %v3732 = vunpack.c.h.b16 %v2393
    %v3733 = vunpack.c.l.b16 %v2394
    %v3734 = vunpack.c.h.b16 %v2394
    %v3735 = vunpack.c.l.b16 %v2395
    %v3736 = vunpack.c.h.b16 %v2395
    %v3737 = vunpack.c.l.b16 %v2396
    %v3738 = vunpack.c.h.b16 %v2396
    %v3739 = vunpack.c.l.b16 %v2397
    %v3740 = vunpack.c.h.b16 %v2397
    %v3741 = vunpack.c.l.b16 %v2398
    %v3742 = vunpack.c.h.b16 %v2398
    %v3743 = vunpack.c.l.b16 %v2399
    %v3744 = vunpack.c.h.b16 %v2399
    %v3745 = vunpack.c.l.b16 %v2400
    %v3746 = vunpack.c.h.b16 %v2400
    %v3747 = vunpack.c.l.b16 %v2401
    %v3748 = vunpack.c.h.b16 %v2401
    %v3749 = vunpack.c.l.b16 %v2402
    %v3750 = vunpack.c.h.b16 %v2402
    %v3751 = vunpack.c.l.b16 %v2403
    %v3752 = vunpack.c.h.b16 %v2403
    %v3753 = vunpack.c.l.b16 %v2404
    %v3754 = vunpack.c.h.b16 %v2404
    %v3755 = vunpack.c.l.b16 %v2405
    %v3756 = vunpack.c.h.b16 %v2405
    %v3757 = vunpack.c.l.b16 %v2406
    %v3758 = vunpack.c.h.b16 %v2406
    %v3759 = vunpack.c.l.b16 %v2407
    %v3760 = vunpack.c.h.b16 %v2407
    %v3761 = vunpack.c.l.b16 %v2408
    %v3762 = vunpack.c.h.b16 %v2408
    %v3763 = vunpack.c.l.b16 %v2409
    %v3764 = vunpack.c.h.b16 %v2409
    %v3765 = vunpack.c.l.b16 %v2410
    %v3766 = vunpack.c.h.b16 %v2410
    %v3767 = vunpack.c.l.b16 %v2411
    %v3768 = vunpack.c.h.b16 %v2411
    %v3769 = vunpack.c.l.b16 %v2412
    %v3770 = vunpack.c.h.b16 %v2412
    %v3771 = vunpack.c.l.b16 %v2413
    %v3772 = vunpack.c.h.b16 %v2413
    %v3773 = vunpack.c.l.b16 %v2414
    %v3774 = vunpack.c.h.b16 %v2414
    %v3775 = vunpack.c.l.b16 %v2415
    %v3776 = vunpack.c.h.b16 %v2415
    %v3777 = vunpack.c.l.b16 %v2416
    %v3778 = vunpack.c.h.b16 %v2416
    %v3779 = vunpack.c.l.b16 %v2417
    %v3780 = vunpack.c.h.b16 %v2417
    %v3781 = vunpack.c.l.b16 %v2418
    %v3782 = vunpack.c.h.b16 %v2418
    %v3783 = vunpack.c.l.b16 %v2419
    %v3784 = vunpack.c.h.b16 %v2419
    %v3785 = vunpack.c.l.b16 %v2420
    %v3786 = vunpack.c.h.b16 %v2420
    %v3787 = vunpack.c.l.b16 %v2421
    %v3788 = vunpack.c.h.b16 %v2421
    %v3789 = vunpack.c.l.b16 %v2422
    %v3790 = vunpack.c.h.b16 %v2422
    %v3791 = vunpack.c.l.b16 %v2423
    %v3792 = vunpack.c.h.b16 %v2423
    %v3793 = vunpack.c.l.b16 %v2424
    %v3794 = vunpack.c.h.b16 %v2424
    %v3795 = vunpack.c.l.b16 %v2425
    %v3796 = vunpack.c.h.b16 %v2425
    %v3797 = vunpack.c.l.b16 %v2426
    %v3798 = vunpack.c.h.b16 %v2426
    %v3799 = vunpack.c.l.b16 %v2427
    %v3800 = vunpack.c.h.b16 %v2427
    %v3801 = vunpack.c.l.b16 %v2428
    %v3802 = vunpack.c.h.b16 %v2428
    %v3803 = vunpack.c.l.b16 %v2429
    %v3804 = vunpack.c.h.b16 %v2429
    %v3805 = vunpack.c.l.b16 %v2430
    %v3806 = vunpack.c.h.b16 %v2430
    %v3807 = vunpack.c.l.b16 %v2431
    %v3808 = vunpack.c.h.b16 %v2431
    %v3809 = vunpack.c.l.b16 %v2432
    %v3810 = vunpack.c.h.b16 %v2432
    %v3811 = vunpack.c.l.b16 %v2433
    %v3812 = vunpack.c.h.b16 %v2433
    %v3813 = vunpack.c.l.b16 %v2434
    %v3814 = vunpack.c.h.b16 %v2434
    %v3815 = vunpack.c.l.b16 %v2435
    %v3816 = vunpack.c.h.b16 %v2435
    %v3817 = vunpack.c.l.b16 %v2436
    %v3818 = vunpack.c.h.b16 %v2436
    %v3819 = vunpack.c.l.b16 %v2437
    %v3820 = vunpack.c.h.b16 %v2437
    %v3821 = vunpack.c.l.b16 %v2438
    %v3822 = vunpack.c.h.b16 %v2438
    %v3823 = vunpack.c.l.b16 %v2439
    %v3824 = vunpack.c.h.b16 %v2439
    %v3825 = vunpack.c.l.b16 %v2440
    %v3826 = vunpack.c.h.b16 %v2440
    %v3827 = vunpack.c.l.b16 %v2441
    %v3828 = vunpack.c.h.b16 %v2441
    %v3829 = vunpack.c.l.b16 %v2442
    %v3830 = vunpack.c.h.b16 %v2442
    %v3831 = vunpack.c.l.b16 %v2443
    %v3832 = vunpack.c.h.b16 %v2443
    %v3833 = vunpack.c.l.b16 %v2444
    %v3834 = vunpack.c.h.b16 %v2444
    %v3835 = vunpack.c.l.b16 %v2445
    %v3836 = vunpack.c.h.b16 %v2445
    %v3837 = vunpack.c.l.b16 %v2446
    %v3838 = vunpack.c.h.b16 %v2446
    %v3839 = vunpack.c.l.b16 %v2447
    %v3840 = vunpack.c.h.b16 %v2447
    %v3841 = vunpack.c.l.b16 %v2448
    %v3842 = vunpack.c.h.b16 %v2448
    %v3843 = vunpack.c.l.b16 %v2449
    %v3844 = vunpack.c.h.b16 %v2449
    %v3845 = vunpack.c.l.b16 %v2450
    %v3846 = vunpack.c.h.b16 %v2450
    %v3847 = vunpack.c.l.b16 %v2451
    %v3848 = vunpack.c.h.b16 %v2451
    %v3849 = vunpack.c.l.b16 %v2452
    %v3850 = vunpack.c.h.b16 %v2452
    %v3851 = vunpack.c.l.b16 %v2453
    %v3852 = vunpack.c.h.b16 %v2453
    %v3853 = vunpack.c.l.b16 %v2454
    %v3854 = vunpack.c.h.b16 %v2454
    %v3855 = vunpack.c.l.b16 %v2455
    %v3856 = vunpack.c.h.b16 %v2455
    %v3857 = vunpack.c.l.b16 %v2456
    %v3858 = vunpack.c.h.b16 %v2456
    %v3859 = vunpack.c.l.b16 %v2457
    %v3860 = vunpack.c.h.b16 %v2457
    %v3861 = vunpack.c.l.b16 %v2458
    %v3862 = vunpack.c.h.b16 %v2458
    %v3863 = vunpack.c.l.b16 %v2459
    %v3864 = vunpack.c.h.b16 %v2459
    %v3865 = vunpack.c.l.b16 %v2460
    %v3866 = vunpack.c.h.b16 %v2460
    %v3867 = vunpack.c.l.b16 %v2461
    %v3868 = vunpack.c.h.b16 %v2461
    %v3869 = vunpack.c.l.b16 %v2462
    %v3870 = vunpack.c.h.b16 %v2462
    %v3871 = vunpack.c.l.b16 %v2463
    %v3872 = vunpack.c.h.b16 %v2463
    %v3873 = vunpack.c.l.b16 %v2464
    %v3874 = vunpack.c.h.b16 %v2464
    %v3875 = vunpack.c.l.b16 %v2465
    %v3876 = vunpack.c.h.b16 %v2465
    %v3877 = vunpack.c.l.b16 %v2466
    %v3878 = vunpack.c.h.b16 %v2466
    %v3879 = vunpack.c.l.b16 %v2467
    %v3880 = vunpack.c.h.b16 %v2467
    %v3881 = vunpack.c.l.b16 %v2468
    %v3882 = vunpack.c.h.b16 %v2468
    %v3883 = vunpack.c.l.b16 %v2469
    %v3884 = vunpack.c.h.b16 %v2469
    %v3885 = vunpack.c.l.b16 %v2470
    %v3886 = vunpack.c.h.b16 %v2470
    %v3887 = vunpack.c.l.b16 %v2471
    %v3888 = vunpack.c.h.b16 %v2471
    %v3889 = vunpack.c.l.b16 %v2472
    %v3890 = vunpack.c.h.b16 %v2472
    %v3891 = vunpack.c.l.b16 %v2473
    %v3892 = vunpack.c.h.b16 %v2473
    %v3893 = vunpack.c.l.b16 %v2474
    %v3894 = vunpack.c.h.b16 %v2474
    %v3895 = vunpack.c.l.b16 %v2475
    %v3896 = vunpack.c.h.b16 %v2475
    %v3897 = vunpack.c.l.b16 %v2476
    %v3898 = vunpack.c.h.b16 %v2476
    %v3899 = vunpack.c.l.b16 %v2477
    %v3900 = vunpack.c.h.b16 %v2477
    %v3901 = vunpack.c.l.b16 %v2478
    %v3902 = vunpack.c.h.b16 %v2478
    %v3903 = vunpack.c.l.b16 %v2479
    %v3904 = vunpack.c.h.b16 %v2479
    %v3905 = vunpack.c.l.b16 %v2480
    %v3906 = vunpack.c.h.b16 %v2480
    %v3907 = vunpack.c.l.b16 %v2481
    %v3908 = vunpack.c.h.b16 %v2481
    %v3909 = vunpack.c.l.b16 %v2482
    %v3910 = vunpack.c.h.b16 %v2482
    %v3911 = vunpack.c.l.b16 %v2483
    %v3912 = vunpack.c.h.b16 %v2483
    %v3913 = vunpack.c.l.b16 %v2484
    %v3914 = vunpack.c.h.b16 %v2484
    %v3915 = vunpack.c.l.b16 %v2485
    %v3916 = vunpack.c.h.b16 %v2485
    %v3917 = vunpack.c.l.b16 %v2486
    %v3918 = vunpack.c.h.b16 %v2486
    %v3919 = vunpack.c.l.b16 %v2487
    %v3920 = vunpack.c.h.b16 %v2487
    %v3921 = vunpack.c.l.b16 %v2488
    %v3922 = vunpack.c.h.b16 %v2488
    %v3923 = vunpack.c.l.b16 %v2489
    %v3924 = vunpack.c.h.b16 %v2489
    %v3925 = vunpack.c.l.b16 %v2490
    %v3926 = vunpack.c.h.b16 %v2490
    %v3927 = vunpack.c.l.b16 %v2491
    %v3928 = vunpack.c.h.b16 %v2491
    %v3929 = vunpack.c.l.b16 %v2492
    %v3930 = vunpack.c.h.b16 %v2492
    %v3931 = vunpack.c.l.b16 %v2493
    %v3932 = vunpack.c.h.b16 %v2493
    %v3933 = vunpack.c.l.b16 %v2494
    %v3934 = vunpack.c.h.b16 %v2494
    %v3935 = vunpack.c.l.b16 %v2495
    %v3936 = vunpack.c.h.b16 %v2495
    %v3937 = vunpack.c.l.b16 %v2496
    %v3938 = vunpack.c.h.b16 %v2496
    %v3939 = vunpack.c.l.b16 %v2497
    %v3940 = vunpack.c.h.b16 %v2497
    %v3941 = vunpack.c.l.b16 %v2498
    %v3942 = vunpack.c.h.b16 %v2498
    %v3943 = vunpack.c.l.b16 %v2499
    %v3944 = vunpack.c.h.b16 %v2499
    %v3945 = vunpack.c.l.b16 %v2500
    %v3946 = vunpack.c.h.b16 %v2500
    %v3947 = vunpack.c.l.b16 %v2501
    %v3948 = vunpack.c.h.b16 %v2501
    %v3949 = vunpack.c.l.b16 %v2502
    %v3950 = vunpack.c.h.b16 %v2502
    %v3951 = vunpack.c.l.b16 %v2503
    %v3952 = vunpack.c.h.b16 %v2503
    %v3953 = vunpack.c.l.b16 %v2504
    %v3954 = vunpack.c.h.b16 %v2504
    %v3955 = vunpack.c.l.b16 %v2505
    %v3956 = vunpack.c.h.b16 %v2505
    %v3957 = vunpack.c.l.b16 %v2506
    %v3958 = vunpack.c.h.b16 %v2506
    %v3959 = vunpack.c.l.b16 %v2507
    %v3960 = vunpack.c.h.b16 %v2507
    %v3961 = vunpack.c.l.b16 %v2508
    %v3962 = vunpack.c.h.b16 %v2508
    %v3963 = vunpack.c.l.b16 %v2509
    %v3964 = vunpack.c.h.b16 %v2509
    %v3965 = vunpack.c.l.b16 %v2510
    %v3966 = vunpack.c.h.b16 %v2510
    %v3967 = vunpack.c.l.b16 %v2511
    %v3968 = vunpack.c.h.b16 %v2511
    %v3969 = vunpack.c.l.b16 %v2512
    %v3970 = vunpack.c.h.b16 %v2512
    %v3971 = vunpack.c.l.b16 %v2513
    %v3972 = vunpack.c.h.b16 %v2513
    %v3973 = vunpack.c.l.b16 %v2514
    %v3974 = vunpack.c.h.b16 %v2514
    %v3975 = vunpack.c.l.b16 %v2515
    %v3976 = vunpack.c.h.b16 %v2515
    %v3977 = vunpack.c.l.b16 %v2516
    %v3978 = vunpack.c.h.b16 %v2516
    %v3979 = vunpack.c.l.b16 %v2517
    %v3980 = vunpack.c.h.b16 %v2517
    %v3981 = vunpack.c.l.b16 %v2518
    %v3982 = vunpack.c.h.b16 %v2518
    %v3983 = vunpack.c.l.b16 %v2519
    %v3984 = vunpack.c.h.b16 %v2519
    %v3985 = vunpack.c.l.b16 %v2520
    %v3986 = vunpack.c.h.b16 %v2520
    %v3987 = vunpack.c.l.b16 %v2521
    %v3988 = vunpack.c.h.b16 %v2521
    %v3989 = vunpack.c.l.b16 %v2522
    %v3990 = vunpack.c.h.b16 %v2522
    %v3991 = vunpack.c.l.b16 %v2523
    %v3992 = vunpack.c.h.b16 %v2523
    %v3993 = vunpack.c.l.b16 %v2524
    %v3994 = vunpack.c.h.b16 %v2524
    %v3995 = vunpack.c.l.b16 %v2525
    %v3996 = vunpack.c.h.b16 %v2525
    %v3997 = vunpack.c.l.b16 %v2526
    %v3998 = vunpack.c.h.b16 %v2526
    %v3999 = vunpack.c.l.b16 %v2527
    %v4000 = vunpack.c.h.b16 %v2527
    %v4001 = vunpack.c.l.b16 %v2528
    %v4002 = vunpack.c.h.b16 %v2528
    %v4003 = vunpack.c.l.b16 %v2529
    %v4004 = vunpack.c.h.b16 %v2529
    %v4005 = vunpack.c.l.b16 %v2530
    %v4006 = vunpack.c.h.b16 %v2530
    %v4007 = vunpack.c.l.b16 %v2531
    %v4008 = vunpack.c.h.b16 %v2531
    %v4009 = vunpack.c.l.b16 %v2532
    %v4010 = vunpack.c.h.b16 %v2532
    %v4011 = vunpack.c.l.b16 %v2533
    %v4012 = vunpack.c.h.b16 %v2533
    %v4013 = vunpack.c.l.b16 %v2534
    %v4014 = vunpack.c.h.b16 %v2534
    %v4015 = vunpack.c.l.b16 %v2535
    %v4016 = vunpack.c.h.b16 %v2535
    %v4017 = vunpack.c.l.b16 %v2536
    %v4018 = vunpack.c.h.b16 %v2536
    %v4019 = vunpack.c.l.b16 %v2537
    %v4020 = vunpack.c.h.b16 %v2537
    %v4021 = vunpack.c.l.b16 %v2538
    %v4022 = vunpack.c.h.b16 %v2538
    %v4023 = vunpack.c.l.b16 %v2539
    %v4024 = vunpack.c.h.b16 %v2539
    %v4025 = vunpack.c.l.b16 %v2540
    %v4026 = vunpack.c.h.b16 %v2540
    %v4027 = vunpack.c.l.b16 %v2541
    %v4028 = vunpack.c.h.b16 %v2541
    %v4029 = vunpack.c.l.b16 %v2542
    %v4030 = vunpack.c.h.b16 %v2542
    %v4031 = vunpack.c.l.b16 %v2543
    %v4032 = vunpack.c.h.b16 %v2543
    %v4033 = vunpack.c.l.b16 %v2544
    %v4034 = vunpack.c.h.b16 %v2544
    %v4035 = vunpack.c.l.b16 %v2545
    %v4036 = vunpack.c.h.b16 %v2545
    %v4037 = vunpack.c.l.b16 %v2546
    %v4038 = vunpack.c.h.b16 %v2546
    %v4039 = vunpack.c.l.b16 %v2547
    %v4040 = vunpack.c.h.b16 %v2547
    %v4041 = vunpack.c.l.b16 %v2548
    %v4042 = vunpack.c.h.b16 %v2548
    %v4043 = vunpack.c.l.b16 %v2549
    %v4044 = vunpack.c.h.b16 %v2549
    %v4045 = vunpack.c.l.b16 %v2550
    %v4046 = vunpack.c.h.b16 %v2550
    %v4047 = vunpack.c.l.b16 %v2551
    %v4048 = vunpack.c.h.b16 %v2551
    %v4049 = vunpack.c.l.b16 %v2552
    %v4050 = vunpack.c.h.b16 %v2552
    %v4051 = vunpack.c.l.b16 %v2553
    %v4052 = vunpack.c.h.b16 %v2553
    %v4053 = vunpack.c.l.b16 %v2554
    %v4054 = vunpack.c.h.b16 %v2554
    %v4055 = vunpack.c.l.b16 %v2555
    %v4056 = vunpack.c.h.b16 %v2555
    %v4057 = vunpack.c.l.b16 %v2556
    %v4058 = vunpack.c.h.b16 %v2556
    %v4059 = vunpack.c.l.b16 %v2557
    %v4060 = vunpack.c.h.b16 %v2557
    %v4061 = vunpack.c.l.b16 %v2558
    %v4062 = vunpack.c.h.b16 %v2558
    %v4063 = vunpack.c.l.b16 %v2559
    %v4064 = vunpack.c.h.b16 %v2559
    %v4065 = vunpack.c.l.b16 %v2560
    %v4066 = vunpack.c.h.b16 %v2560
    %v4067 = vunpack.c.l.b16 %v2561
    %v4068 = vunpack.c.h.b16 %v2561
    %v4069 = vunpack.c.l.b16 %v2562
    %v4070 = vunpack.c.h.b16 %v2562
    %v4071 = vunpack.c.l.b16 %v2563
    %v4072 = vunpack.c.h.b16 %v2563
    %v4073 = vunpack.c.l.b16 %v2564
    %v4074 = vunpack.c.h.b16 %v2564
    %v4075 = vunpack.c.l.b16 %v2565
    %v4076 = vunpack.c.h.b16 %v2565
    %v4077 = vunpack.c.l.b16 %v2566
    %v4078 = vunpack.c.h.b16 %v2566
    %v4079 = vunpack.c.l.b16 %v2567
    %v4080 = vunpack.c.h.b16 %v2567
    %v4081 = vunpack.c.l.b16 %v2568
    %v4082 = vunpack.c.h.b16 %v2568
    %v4083 = vunpack.c.l.b16 %v2569
    %v4084 = vunpack.c.h.b16 %v2569
    %v4085 = vunpack.c.l.b16 %v2570
    %v4086 = vunpack.c.h.b16 %v2570
    %v4087 = vunpack.c.l.b16 %v2571
    %v4088 = vunpack.c.h.b16 %v2571
    %v4089 = vunpack.c.l.b16 %v2572
    %v4090 = vunpack.c.h.b16 %v2572
    %v4091 = vunpack.c.l.b16 %v2573
    %v4092 = vunpack.c.h.b16 %v2573
    %v4093 = vunpack.c.l.b16 %v2574
    %v4094 = vunpack.c.h.b16 %v2574
    %v4095 = vunpack.c.l.b16 %v2575
    %v4096 = vunpack.c.h.b16 %v2575
    %v4097 = vunpack.c.l.b16 %v2576
    %v4098 = vunpack.c.h.b16 %v2576
    %v4099 = vunpack.c.l.b16 %v2577
    %v4100 = vunpack.c.h.b16 %v2577
    %v4101 = vunpack.c.l.b16 %v2578
    %v4102 = vunpack.c.h.b16 %v2578
    %v4103 = vunpack.c.l.b16 %v2579
    %v4104 = vunpack.c.h.b16 %v2579
    %v4105 = vunpack.c.l.b16 %v2580
    %v4106 = vunpack.c.h.b16 %v2580
    %v4107 = vunpack.c.l.b16 %v2581
    %v4108 = vunpack.c.h.b16 %v2581
    %v4109 = vunpack.c.l.b16 %v2582
    %v4110 = vunpack.c.h.b16 %v2582
    %v4111 = vunpack.c.l.b16 %v2583
    %v4112 = vunpack.c.h.b16 %v2583
    %v4113 = vunpack.c.l.b16 %v2584
    %v4114 = vunpack.c.h.b16 %v2584
    %v4115 = vunpack.c.l.b16 %v2585
    %v4116 = vunpack.c.h.b16 %v2585
    %v4117 = vunpack.c.l.b16 %v2586
    %v4118 = vunpack.c.h.b16 %v2586
    %v4119 = vunpack.c.l.b16 %v2587
    %v4120 = vunpack.c.h.b16 %v2587
    %v4121 = vunpack.c.l.b16 %v2588
    %v4122 = vunpack.c.h.b16 %v2588
    %v4123 = vunpack.c.l.b16 %v2589
    %v4124 = vunpack.c.h.b16 %v2589
    %v4125 = vunpack.c.l.b16 %v2590
    %v4126 = vunpack.c.h.b16 %v2590
    %v4127 = vunpack.c.l.b16 %v2591
    %v4128 = vunpack.c.h.b16 %v2591
    %v4129 = vunpack.c.l.b16 %v2592
    %v4130 = vunpack.c.h.b16 %v2592
    %v4131 = vunpack.c.l.b16 %v2593
    %v4132 = vunpack.c.h.b16 %v2593
    %v4133 = vunpack.c.l.b16 %v2594
    %v4134 = vunpack.c.h.b16 %v2594
    %v4135 = vunpack.c.l.b16 %v2595
    %v4136 = vunpack.c.h.b16 %v2595
    %v4137 = vunpack.c.l.b16 %v2596
    %v4138 = vunpack.c.h.b16 %v2596
    %v4139 = vunpack.c.l.b16 %v2597
    %v4140 = vunpack.c.h.b16 %v2597
    %v4141 = vunpack.c.l.b16 %v2598
    %v4142 = vunpack.c.h.b16 %v2598
    %v4143 = vunpack.c.l.b16 %v2599
    %v4144 = vunpack.c.h.b16 %v2599
    %v4145 = vunpack.c.l.b16 %v2600
    %v4146 = vunpack.c.h.b16 %v2600
    %v4147 = vunpack.c.l.b16 %v2601
    %v4148 = vunpack.c.h.b16 %v2601
    %v4149 = vunpack.c.l.b16 %v2602
    %v4150 = vunpack.c.h.b16 %v2602
    %v4151 = vunpack.c.l.b16 %v2603
    %v4152 = vunpack.c.h.b16 %v2603
    %v4153 = vunpack.c.l.b16 %v2604
    %v4154 = vunpack.c.h.b16 %v2604
    %v4155 = vunpack.c.l.b16 %v2605
    %v4156 = vunpack.c.h.b16 %v2605
    %v4157 = vunpack.c.l.b16 %v2606
    %v4158 = vunpack.c.h.b16 %v2606
    %v4159 = vunpack.c.l.b16 %v2607
    %v4160 = vunpack.c.h.b16 %v2607
    %v4161 = vunpack.c.l.b16 %v2608
    %v4162 = vunpack.c.h.b16 %v2608
    %v4163 = vunpack.c.l.b16 %v2609
    %v4164 = vunpack.c.h.b16 %v2609
    %v4165 = vunpack.c.l.b16 %v2610
    %v4166 = vunpack.c.h.b16 %v2610
    %v4167 = vunpack.c.l.b16 %v2611
    %v4168 = vunpack.c.h.b16 %v2611
    %v4169 = vunpack.c.l.b16 %v2612
    %v4170 = vunpack.c.h.b16 %v2612
    %v4171 = vunpack.c.l.b16 %v2613
    %v4172 = vunpack.c.h.b16 %v2613
    %v4173 = vunpack.c.l.b16 %v2614
    %v4174 = vunpack.c.h.b16 %v2614
    %v4175 = vunpack.c.l.b16 %v2615
    %v4176 = vunpack.c.h.b16 %v2615
    %v4177 = vpack.c.b16 %v3161, %v3153
    %v4178 = vpack.c.b16 %v3162, %v3154
    %v4179 = vpack.c.b16 %v3163, %v3155
    %v4180 = vpack.c.b16 %v3164, %v3156
    %v4181 = vpack.c.b16 %v3165, %v3157
    %v4182 = vpack.c.b16 %v3166, %v3158
    %v4183 = vpack.c.b16 %v3167, %v3159
    %v4184 = vpack.c.b16 %v3168, %v3160
    %v4185 = vpack.c.b16 %v3177, %v3169
    %v4186 = vpack.c.b16 %v3178, %v3170
    %v4187 = vpack.c.b16 %v3179, %v3171
    %v4188 = vpack.c.b16 %v3180, %v3172
    %v4189 = vpack.c.b16 %v3181, %v3173
    %v4190 = vpack.c.b16 %v3182, %v3174
    %v4191 = vpack.c.b16 %v3183, %v3175
    %v4192 = vpack.c.b16 %v3184, %v3176
    %v4193 = vpack.c.b16 %v3193, %v3185
    %v4194 = vpack.c.b16 %v3194, %v3186
    %v4195 = vpack.c.b16 %v3195, %v3187
    %v4196 = vpack.c.b16 %v3196, %v3188
    %v4197 = vpack.c.b16 %v3197, %v3189
    %v4198 = vpack.c.b16 %v3198, %v3190
    %v4199 = vpack.c.b16 %v3199, %v3191
    %v4200 = vpack.c.b16 %v3200, %v3192
    %v4201 = vpack.c.b16 %v3209, %v3201
    %v4202 = vpack.c.b16 %v3210, %v3202
    %v4203 = vpack.c.b16 %v3211, %v3203
    %v4204 = vpack.c.b16 %v3212, %v3204
    %v4205 = vpack.c.b16 %v3213, %v3205
    %v4206 = vpack.c.b16 %v3214, %v3206
    %v4207 = vpack.c.b16 %v3215, %v3207
    %v4208 = vpack.c.b16 %v3216, %v3208
    %v4209 = vpack.c.b16 %v3225, %v3217
    %v4210 = vpack.c.b16 %v3226, %v3218
    %v4211 = vpack.c.b16 %v3227, %v3219
    %v4212 = vpack.c.b16 %v3228, %v3220
    %v4213 = vpack.c.b16 %v3229, %v3221
    %v4214 = vpack.c.b16 %v3230, %v3222
    %v4215 = vpack.c.b16 %v3231, %v3223
    %v4216 = vpack.c.b16 %v3232, %v3224
    %v4217 = vpack.c.b16 %v3241, %v3233
    %v4218 = vpack.c.b16 %v3242, %v3234
    %v4219 = vpack.c.b16 %v3243, %v3235
    %v4220 = vpack.c.b16 %v3244, %v3236
    %v4221 = vpack.c.b16 %v3245, %v3237
    %v4222 = vpack.c.b16 %v3246, %v3238
    %v4223 = vpack.c.b16 %v3247, %v3239
    %v4224 = vpack.c.b16 %v3248, %v3240
    %v4225 = vpack.c.b16 %v3257, %v3249
    %v4226 = vpack.c.b16 %v3258, %v3250
    %v4227 = vpack.c.b16 %v3259, %v3251
    %v4228 = vpack.c.b16 %v3260, %v3252
    %v4229 = vpack.c.b16 %v3261, %v3253
    %v4230 = vpack.c.b16 %v3262, %v3254
    %v4231 = vpack.c.b16 %v3263, %v3255
    %v4232 = vpack.c.b16 %v3264, %v3256
    %v4233 = vpack.c.b16 %v3273, %v3265
    %v4234 = vpack.c.b16 %v3274, %v3266
    %v4235 = vpack.c.b16 %v3275, %v3267
    %v4236 = vpack.c.b16 %v3276, %v3268
    %v4237 = vpack.c.b16 %v3277, %v3269
    %v4238 = vpack.c.b16 %v3278, %v3270
    %v4239 = vpack.c.b16 %v3279, %v3271
    %v4240 = vpack.c.b16 %v3280, %v3272
    %v4241 = vpack.c.b16 %v3289, %v3281
    %v4242 = vpack.c.b16 %v3290, %v3282
    %v4243 = vpack.c.b16 %v3291, %v3283
    %v4244 = vpack.c.b16 %v3292, %v3284
    %v4245 = vpack.c.b16 %v3293, %v3285
    %v4246 = vpack.c.b16 %v3294, %v3286
    %v4247 = vpack.c.b16 %v3295, %v3287
    %v4248 = vpack.c.b16 %v3296, %v3288
    %v4249 = vpack.c.b16 %v3305, %v3297
    %v4250 = vpack.c.b16 %v3306, %v3298
    %v4251 = vpack.c.b16 %v3307, %v3299
    %v4252 = vpack.c.b16 %v3308, %v3300
    %v4253 = vpack.c.b16 %v3309, %v3301
    %v4254 = vpack.c.b16 %v3310, %v3302
    %v4255 = vpack.c.b16 %v3311, %v3303
    %v4256 = vpack.c.b16 %v3312, %v3304
    %v4257 = vpack.c.b16 %v3321, %v3313
    %v4258 = vpack.c.b16 %v3322, %v3314
    %v4259 = vpack.c.b16 %v3323, %v3315
    %v4260 = vpack.c.b16 %v3324, %v3316
    %v4261 = vpack.c.b16 %v3325, %v3317
    %v4262 = vpack.c.b16 %v3326, %v3318
    %v4263 = vpack.c.b16 %v3327, %v3319
    %v4264 = vpack.c.b16 %v3328, %v3320
    %v4265 = vpack.c.b16 %v3337, %v3329
    %v4266 = vpack.c.b16 %v3338, %v3330
    %v4267 = vpack.c.b16 %v3339, %v3331
    %v4268 = vpack.c.b16 %v3340, %v3332
    %v4269 = vpack.c.b16 %v3341, %v3333
    %v4270 = vpack.c.b16 %v3342, %v3334
    %v4271 = vpack.c.b16 %v3343, %v3335
    %v4272 = vpack.c.b16 %v3344, %v3336
    %v4273 = vpack.c.b16 %v3353, %v3345
    %v4274 = vpack.c.b16 %v3354, %v3346
    %v4275 = vpack.c.b16 %v3355, %v3347
    %v4276 = vpack.c.b16 %v3356, %v3348
    %v4277 = vpack.c.b16 %v3357, %v3349
    %v4278 = vpack.c.b16 %v3358, %v3350
    %v4279 = vpack.c.b16 %v3359, %v3351
    %v4280 = vpack.c.b16 %v3360, %v3352
    %v4281 = vpack.c.b16 %v3369, %v3361
    %v4282 = vpack.c.b16 %v3370, %v3362
    %v4283 = vpack.c.b16 %v3371, %v3363
    %v4284 = vpack.c.b16 %v3372, %v3364
    %v4285 = vpack.c.b16 %v3373, %v3365
    %v4286 = vpack.c.b16 %v3374, %v3366
    %v4287 = vpack.c.b16 %v3375, %v3367
    %v4288 = vpack.c.b16 %v3376, %v3368
    %v4289 = vpack.c.b16 %v3385, %v3377
    %v4290 = vpack.c.b16 %v3386, %v3378
    %v4291 = vpack.c.b16 %v3387, %v3379
    %v4292 = vpack.c.b16 %v3388, %v3380
    %v4293 = vpack.c.b16 %v3389, %v3381
    %v4294 = vpack.c.b16 %v3390, %v3382
    %v4295 = vpack.c.b16 %v3391, %v3383
    %v4296 = vpack.c.b16 %v3392, %v3384
    %v4297 = vpack.c.b16 %v3401, %v3393
    %v4298 = vpack.c.b16 %v3402, %v3394
    %v4299 = vpack.c.b16 %v3403, %v3395
    %v4300 = vpack.c.b16 %v3404, %v3396
    %v4301 = vpack.c.b16 %v3405, %v3397
    %v4302 = vpack.c.b16 %v3406, %v3398
    %v4303 = vpack.c.b16 %v3407, %v3399
    %v4304 = vpack.c.b16 %v3408, %v3400
    %v4305 = vpack.c.b16 %v3417, %v3409
    %v4306 = vpack.c.b16 %v3418, %v3410
    %v4307 = vpack.c.b16 %v3419, %v3411
    %v4308 = vpack.c.b16 %v3420, %v3412
    %v4309 = vpack.c.b16 %v3421, %v3413
    %v4310 = vpack.c.b16 %v3422, %v3414
    %v4311 = vpack.c.b16 %v3423, %v3415
    %v4312 = vpack.c.b16 %v3424, %v3416
    %v4313 = vpack.c.b16 %v3433, %v3425
    %v4314 = vpack.c.b16 %v3434, %v3426
    %v4315 = vpack.c.b16 %v3435, %v3427
    %v4316 = vpack.c.b16 %v3436, %v3428
    %v4317 = vpack.c.b16 %v3437, %v3429
    %v4318 = vpack.c.b16 %v3438, %v3430
    %v4319 = vpack.c.b16 %v3439, %v3431
    %v4320 = vpack.c.b16 %v3440, %v3432
    %v4321 = vpack.c.b16 %v3449, %v3441
    %v4322 = vpack.c.b16 %v3450, %v3442
    %v4323 = vpack.c.b16 %v3451, %v3443
    %v4324 = vpack.c.b16 %v3452, %v3444
    %v4325 = vpack.c.b16 %v3453, %v3445
    %v4326 = vpack.c.b16 %v3454, %v3446
    %v4327 = vpack.c.b16 %v3455, %v3447
    %v4328 = vpack.c.b16 %v3456, %v3448
    %v4329 = vpack.c.b16 %v3465, %v3457
    %v4330 = vpack.c.b16 %v3466, %v3458
    %v4331 = vpack.c.b16 %v3467, %v3459
    %v4332 = vpack.c.b16 %v3468, %v3460
    %v4333 = vpack.c.b16 %v3469, %v3461
    %v4334 = vpack.c.b16 %v3470, %v3462
    %v4335 = vpack.c.b16 %v3471, %v3463
    %v4336 = vpack.c.b16 %v3472, %v3464
    %v4337 = vpack.c.b16 %v3481, %v3473
    %v4338 = vpack.c.b16 %v3482, %v3474
    %v4339 = vpack.c.b16 %v3483, %v3475
    %v4340 = vpack.c.b16 %v3484, %v3476
    %v4341 = vpack.c.b16 %v3485, %v3477
    %v4342 = vpack.c.b16 %v3486, %v3478
    %v4343 = vpack.c.b16 %v3487, %v3479
    %v4344 = vpack.c.b16 %v3488, %v3480
    %v4345 = vpack.c.b16 %v3497, %v3489
    %v4346 = vpack.c.b16 %v3498, %v3490
    %v4347 = vpack.c.b16 %v3499, %v3491
    %v4348 = vpack.c.b16 %v3500, %v3492
    %v4349 = vpack.c.b16 %v3501, %v3493
    %v4350 = vpack.c.b16 %v3502, %v3494
    %v4351 = vpack.c.b16 %v3503, %v3495
    %v4352 = vpack.c.b16 %v3504, %v3496
    %v4353 = vpack.c.b16 %v3513, %v3505
    %v4354 = vpack.c.b16 %v3514, %v3506
    %v4355 = vpack.c.b16 %v3515, %v3507
    %v4356 = vpack.c.b16 %v3516, %v3508
    %v4357 = vpack.c.b16 %v3517, %v3509
    %v4358 = vpack.c.b16 %v3518, %v3510
    %v4359 = vpack.c.b16 %v3519, %v3511
    %v4360 = vpack.c.b16 %v3520, %v3512
    %v4361 = vpack.c.b16 %v3529, %v3521
    %v4362 = vpack.c.b16 %v3530, %v3522
    %v4363 = vpack.c.b16 %v3531, %v3523
    %v4364 = vpack.c.b16 %v3532, %v3524
    %v4365 = vpack.c.b16 %v3533, %v3525
    %v4366 = vpack.c.b16 %v3534, %v3526
    %v4367 = vpack.c.b16 %v3535, %v3527
    %v4368 = vpack.c.b16 %v3536, %v3528
    %v4369 = vpack.c.b16 %v3545, %v3537
    %v4370 = vpack.c.b16 %v3546, %v3538
    %v4371 = vpack.c.b16 %v3547, %v3539
    %v4372 = vpack.c.b16 %v3548, %v3540
    %v4373 = vpack.c.b16 %v3549, %v3541
    %v4374 = vpack.c.b16 %v3550, %v3542
    %v4375 = vpack.c.b16 %v3551, %v3543
    %v4376 = vpack.c.b16 %v3552, %v3544
    %v4377 = vpack.c.b16 %v3561, %v3553
    %v4378 = vpack.c.b16 %v3562, %v3554
    %v4379 = vpack.c.b16 %v3563, %v3555
    %v4380 = vpack.c.b16 %v3564, %v3556
    %v4381 = vpack.c.b16 %v3565, %v3557
    %v4382 = vpack.c.b16 %v3566, %v3558
    %v4383 = vpack.c.b16 %v3567, %v3559
    %v4384 = vpack.c.b16 %v3568, %v3560
    %v4385 = vpack.c.b16 %v3577, %v3569
    %v4386 = vpack.c.b16 %v3578, %v3570
    %v4387 = vpack.c.b16 %v3579, %v3571
    %v4388 = vpack.c.b16 %v3580, %v3572
    %v4389 = vpack.c.b16 %v3581, %v3573
    %v4390 = vpack.c.b16 %v3582, %v3574
    %v4391 = vpack.c.b16 %v3583, %v3575
    %v4392 = vpack.c.b16 %v3584, %v3576
    %v4393 = vpack.c.b16 %v3593, %v3585
    %v4394 = vpack.c.b16 %v3594, %v3586
    %v4395 = vpack.c.b16 %v3595, %v3587
    %v4396 = vpack.c.b16 %v3596, %v3588
    %v4397 = vpack.c.b16 %v3597, %v3589
    %v4398 = vpack.c.b16 %v3598, %v3590
    %v4399 = vpack.c.b16 %v3599, %v3591
    %v4400 = vpack.c.b16 %v3600, %v3592
    %v4401 = vpack.c.b16 %v3609, %v3601
    %v4402 = vpack.c.b16 %v3610, %v3602
    %v4403 = vpack.c.b16 %v3611, %v3603
    %v4404 = vpack.c.b16 %v3612, %v3604
    %v4405 = vpack.c.b16 %v3613, %v3605
    %v4406 = vpack.c.b16 %v3614, %v3606
    %v4407 = vpack.c.b16 %v3615, %v3607
    %v4408 = vpack.c.b16 %v3616, %v3608
    %v4409 = vpack.c.b16 %v3625, %v3617
    %v4410 = vpack.c.b16 %v3626, %v3618
    %v4411 = vpack.c.b16 %v3627, %v3619
    %v4412 = vpack.c.b16 %v3628, %v3620
    %v4413 = vpack.c.b16 %v3629, %v3621
    %v4414 = vpack.c.b16 %v3630, %v3622
    %v4415 = vpack.c.b16 %v3631, %v3623
    %v4416 = vpack.c.b16 %v3632, %v3624
    %v4417 = vpack.c.b16 %v3641, %v3633
    %v4418 = vpack.c.b16 %v3642, %v3634
    %v4419 = vpack.c.b16 %v3643, %v3635
    %v4420 = vpack.c.b16 %v3644, %v3636
    %v4421 = vpack.c.b16 %v3645, %v3637
    %v4422 = vpack.c.b16 %v3646, %v3638
    %v4423 = vpack.c.b16 %v3647, %v3639
    %v4424 = vpack.c.b16 %v3648, %v3640
    %v4425 = vpack.c.b16 %v3657, %v3649
    %v4426 = vpack.c.b16 %v3658, %v3650
    %v4427 = vpack.c.b16 %v3659, %v3651
    %v4428 = vpack.c.b16 %v3660, %v3652
    %v4429 = vpack.c.b16 %v3661, %v3653
    %v4430 = vpack.c.b16 %v3662, %v3654
    %v4431 = vpack.c.b16 %v3663, %v3655
    %v4432 = vpack.c.b16 %v3664, %v3656
    %v4433 = vpack.c.b16 %v3673, %v3665
    %v4434 = vpack.c.b16 %v3674, %v3666
    %v4435 = vpack.c.b16 %v3675, %v3667
    %v4436 = vpack.c.b16 %v3676, %v3668
    %v4437 = vpack.c.b16 %v3677, %v3669
    %v4438 = vpack.c.b16 %v3678, %v3670
    %v4439 = vpack.c.b16 %v3679, %v3671
    %v4440 = vpack.c.b16 %v3680, %v3672
    %v4441 = vpack.c.b16 %v3689, %v3681
    %v4442 = vpack.c.b16 %v3690, %v3682
    %v4443 = vpack.c.b16 %v3691, %v3683
    %v4444 = vpack.c.b16 %v3692, %v3684
    %v4445 = vpack.c.b16 %v3693, %v3685
    %v4446 = vpack.c.b16 %v3694, %v3686
    %v4447 = vpack.c.b16 %v3695, %v3687
    %v4448 = vpack.c.b16 %v3696, %v3688
    %v4449 = vpack.c.b16 %v3705, %v3697
    %v4450 = vpack.c.b16 %v3706, %v3698
    %v4451 = vpack.c.b16 %v3707, %v3699
    %v4452 = vpack.c.b16 %v3708, %v3700
    %v4453 = vpack.c.b16 %v3709, %v3701
    %v4454 = vpack.c.b16 %v3710, %v3702
    %v4455 = vpack.c.b16 %v3711, %v3703
    %v4456 = vpack.c.b16 %v3712, %v3704
    %v4457 = vpack.c.b16 %v3721, %v3713
    %v4458 = vpack.c.b16 %v3722, %v3714
    %v4459 = vpack.c.b16 %v3723, %v3715
    %v4460 = vpack.c.b16 %v3724, %v3716
    %v4461 = vpack.c.b16 %v3725, %v3717
    %v4462 = vpack.c.b16 %v3726, %v3718
    %v4463 = vpack.c.b16 %v3727, %v3719
    %v4464 = vpack.c.b16 %v3728, %v3720
    %v4465 = vpack.c.b16 %v3737, %v3729
    %v4466 = vpack.c.b16 %v3738, %v3730
    %v4467 = vpack.c.b16 %v3739, %v3731
    %v4468 = vpack.c.b16 %v3740, %v3732
    %v4469 = vpack.c.b16 %v3741, %v3733
    %v4470 = vpack.c.b16 %v3742, %v3734
    %v4471 = vpack.c.b16 %v3743, %v3735
    %v4472 = vpack.c.b16 %v3744, %v3736
    %v4473 = vpack.c.b16 %v3753, %v3745
    %v4474 = vpack.c.b16 %v3754, %v3746
    %v4475 = vpack.c.b16 %v3755, %v3747
    %v4476 = vpack.c.b16 %v3756, %v3748
    %v4477 = vpack.c.b16 %v3757, %v3749
    %v4478 = vpack.c.b16 %v3758, %v3750
    %v4479 = vpack.c.b16 %v3759, %v3751
    %v4480 = vpack.c.b16 %v3760, %v3752
    %v4481 = vpack.c.b16 %v3769, %v3761
    %v4482 = vpack.c.b16 %v3770, %v3762
    %v4483 = vpack.c.b16 %v3771, %v3763
    %v4484 = vpack.c.b16 %v3772, %v3764
    %v4485 = vpack.c.b16 %v3773, %v3765
    %v4486 = vpack.c.b16 %v3774, %v3766
    %v4487 = vpack.c.b16 %v3775, %v3767
    %v4488 = vpack.c.b16 %v3776, %v3768
    %v4489 = vpack.c.b16 %v3785, %v3777
    %v4490 = vpack.c.b16 %v3786, %v3778
    %v4491 = vpack.c.b16 %v3787, %v3779
    %v4492 = vpack.c.b16 %v3788, %v3780
    %v4493 = vpack.c.b16 %v3789, %v3781
    %v4494 = vpack.c.b16 %v3790, %v3782
    %v4495 = vpack.c.b16 %v3791, %v3783
    %v4496 = vpack.c.b16 %v3792, %v3784
    %v4497 = vpack.c.b16 %v3801, %v3793
    %v4498 = vpack.c.b16 %v3802, %v3794
    %v4499 = vpack.c.b16 %v3803, %v3795
    %v4500 = vpack.c.b16 %v3804, %v3796
    %v4501 = vpack.c.b16 %v3805, %v3797
    %v4502 = vpack.c.b16 %v3806, %v3798
    %v4503 = vpack.c.b16 %v3807, %v3799
    %v4504 = vpack.c.b16 %v3808, %v3800
    %v4505 = vpack.c.b16 %v3817, %v3809
    %v4506 = vpack.c.b16 %v3818, %v3810
    %v4507 = vpack.c.b16 %v3819, %v3811
    %v4508 = vpack.c.b16 %v3820, %v3812
    %v4509 = vpack.c.b16 %v3821, %v3813
    %v4510 = vpack.c.b16 %v3822, %v3814
    %v4511 = vpack.c.b16 %v3823, %v3815
    %v4512 = vpack.c.b16 %v3824, %v3816
    %v4513 = vpack.c.b16 %v3833, %v3825
    %v4514 = vpack.c.b16 %v3834, %v3826
    %v4515 = vpack.c.b16 %v3835, %v3827
    %v4516 = vpack.c.b16 %v3836, %v3828
    %v4517 = vpack.c.b16 %v3837, %v3829
    %v4518 = vpack.c.b16 %v3838, %v3830
    %v4519 = vpack.c.b16 %v3839, %v3831
    %v4520 = vpack.c.b16 %v3840, %v3832
    %v4521 = vpack.c.b16 %v3849, %v3841
    %v4522 = vpack.c.b16 %v3850, %v3842
    %v4523 = vpack.c.b16 %v3851, %v3843
    %v4524 = vpack.c.b16 %v3852, %v3844
    %v4525 = vpack.c.b16 %v3853, %v3845
    %v4526 = vpack.c.b16 %v3854, %v3846
    %v4527 = vpack.c.b16 %v3855, %v3847
    %v4528 = vpack.c.b16 %v3856, %v3848
    %v4529 = vpack.c.b16 %v3865, %v3857
    %v4530 = vpack.c.b16 %v3866, %v3858
    %v4531 = vpack.c.b16 %v3867, %v3859
    %v4532 = vpack.c.b16 %v3868, %v3860
    %v4533 = vpack.c.b16 %v3869, %v3861
    %v4534 = vpack.c.b16 %v3870, %v3862
    %v4535 = vpack.c.b16 %v3871, %v3863
    %v4536 = vpack.c.b16 %v3872, %v3864
    %v4537 = vpack.c.b16 %v3881, %v3873
    %v4538 = vpack.c.b16 %v3882, %v3874
    %v4539 = vpack.c.b16 %v3883, %v3875
    %v4540 = vpack.c.b16 %v3884, %v3876
    %v4541 = vpack.c.b16 %v3885, %v3877
    %v4542 = vpack.c.b16 %v3886, %v3878
    %v4543 = vpack.c.b16 %v3887, %v3879
    %v4544 = vpack.c.b16 %v3888, %v3880
    %v4545 = vpack.c.b16 %v3897, %v3889
    %v4546 = vpack.c.b16 %v3898, %v3890
    %v4547 = vpack.c.b16 %v3899, %v3891
    %v4548 = vpack.c.b16 %v3900, %v3892
    %v4549 = vpack.c.b16 %v3901, %v3893
    %v4550 = vpack.c.b16 %v3902, %v3894
    %v4551 = vpack.c.b16 %v3903, %v3895
    %v4552 = vpack.c.b16 %v3904, %v3896
    %v4553 = vpack.c.b16 %v3913, %v3905
    %v4554 = vpack.c.b16 %v3914, %v3906
    %v4555 = vpack.c.b16 %v3915, %v3907
    %v4556 = vpack.c.b16 %v3916, %v3908
    %v4557 = vpack.c.b16 %v3917, %v3909
    %v4558 = vpack.c.b16 %v3918, %v3910
    %v4559 = vpack.c.b16 %v3919, %v3911
    %v4560 = vpack.c.b16 %v3920, %v3912
    %v4561 = vpack.c.b16 %v3929, %v3921
    %v4562 = vpack.c.b16 %v3930, %v3922
    %v4563 = vpack.c.b16 %v3931, %v3923
    %v4564 = vpack.c.b16 %v3932, %v3924
    %v4565 = vpack.c.b16 %v3933, %v3925
    %v4566 = vpack.c.b16 %v3934, %v3926
    %v4567 = vpack.c.b16 %v3935, %v3927
    %v4568 = vpack.c.b16 %v3936, %v3928
    %v4569 = vpack.c.b16 %v3945, %v3937
    %v4570 = vpack.c.b16 %v3946, %v3938
    %v4571 = vpack.c.b16 %v3947, %v3939
    %v4572 = vpack.c.b16 %v3948, %v3940
    %v4573 = vpack.c.b16 %v3949, %v3941
    %v4574 = vpack.c.b16 %v3950, %v3942
    %v4575 = vpack.c.b16 %v3951, %v3943
    %v4576 = vpack.c.b16 %v3952, %v3944
    %v4577 = vpack.c.b16 %v3961, %v3953
    %v4578 = vpack.c.b16 %v3962, %v3954
    %v4579 = vpack.c.b16 %v3963, %v3955
    %v4580 = vpack.c.b16 %v3964, %v3956
    %v4581 = vpack.c.b16 %v3965, %v3957
    %v4582 = vpack.c.b16 %v3966, %v3958
    %v4583 = vpack.c.b16 %v3967, %v3959
    %v4584 = vpack.c.b16 %v3968, %v3960
    %v4585 = vpack.c.b16 %v3977, %v3969
    %v4586 = vpack.c.b16 %v3978, %v3970
    %v4587 = vpack.c.b16 %v3979, %v3971
    %v4588 = vpack.c.b16 %v3980, %v3972
    %v4589 = vpack.c.b16 %v3981, %v3973
    %v4590 = vpack.c.b16 %v3982, %v3974
    %v4591 = vpack.c.b16 %v3983, %v3975
    %v4592 = vpack.c.b16 %v3984, %v3976
    %v4593 = vpack.c.b16 %v3993, %v3985
    %v4594 = vpack.c.b16 %v3994, %v3986
    %v4595 = vpack.c.b16 %v3995, %v3987
    %v4596 = vpack.c.b16 %v3996, %v3988
    %v4597 = vpack.c.b16 %v3997, %v3989
    %v4598 = vpack.c.b16 %v3998, %v3990
    %v4599 = vpack.c.b16 %v3999, %v3991
    %v4600 = vpack.c.b16 %v4000, %v3992
    %v4601 = vpack.c.b16 %v4009, %v4001
    %v4602 = vpack.c.b16 %v4010, %v4002
    %v4603 = vpack.c.b16 %v4011, %v4003
    %v4604 = vpack.c.b16 %v4012, %v4004
    %v4605 = vpack.c.b16 %v4013, %v4005
    %v4606 = vpack.c.b16 %v4014, %v4006
    %v4607 = vpack.c.b16 %v4015, %v4007
    %v4608 = vpack.c.b16 %v4016, %v4008
    %v4609 = vpack.c.b16 %v4025, %v4017
    %v4610 = vpack.c.b16 %v4026, %v4018
    %v4611 = vpack.c.b16 %v4027, %v4019
    %v4612 = vpack.c.b16 %v4028, %v4020
    %v4613 = vpack.c.b16 %v4029, %v4021
    %v4614 = vpack.c.b16 %v4030, %v4022
    %v4615 = vpack.c.b16 %v4031, %v4023
    %v4616 = vpack.c.b16 %v4032, %v4024
    %v4617 = vpack.c.b16 %v4041, %v4033
    %v4618 = vpack.c.b16 %v4042, %v4034
    %v4619 = vpack.c.b16 %v4043, %v4035
    %v4620 = vpack.c.b16 %v4044, %v4036
    %v4621 = vpack.c.b16 %v4045, %v4037
    %v4622 = vpack.c.b16 %v4046, %v4038
    %v4623 = vpack.c.b16 %v4047, %v4039
    %v4624 = vpack.c.b16 %v4048, %v4040
    %v4625 = vpack.c.b16 %v4057, %v4049
    %v4626 = vpack.c.b16 %v4058, %v4050
    %v4627 = vpack.c.b16 %v4059, %v4051
    %v4628 = vpack.c.b16 %v4060, %v4052
    %v4629 = vpack.c.b16 %v4061, %v4053
    %v4630 = vpack.c.b16 %v4062, %v4054
    %v4631 = vpack.c.b16 %v4063, %v4055
    %v4632 = vpack.c.b16 %v4064, %v4056
    %v4633 = vpack.c.b16 %v4073, %v4065
    %v4634 = vpack.c.b16 %v4074, %v4066
    %v4635 = vpack.c.b16 %v4075, %v4067
    %v4636 = vpack.c.b16 %v4076, %v4068
    %v4637 = vpack.c.b16 %v4077, %v4069
    %v4638 = vpack.c.b16 %v4078, %v4070
    %v4639 = vpack.c.b16 %v4079, %v4071
    %v4640 = vpack.c.b16 %v4080, %v4072
    %v4641 = vpack.c.b16 %v4089, %v4081
    %v4642 = vpack.c.b16 %v4090, %v4082
    %v4643 = vpack.c.b16 %v4091, %v4083
    %v4644 = vpack.c.b16 %v4092, %v4084
    %v4645 = vpack.c.b16 %v4093, %v4085
    %v4646 = vpack.c.b16 %v4094, %v4086
    %v4647 = vpack.c.b16 %v4095, %v4087
    %v4648 = vpack.c.b16 %v4096, %v4088
    %v4649 = vpack.c.b16 %v4105, %v4097
    %v4650 = vpack.c.b16 %v4106, %v4098
    %v4651 = vpack.c.b16 %v4107, %v4099
    %v4652 = vpack.c.b16 %v4108, %v4100
    %v4653 = vpack.c.b16 %v4109, %v4101
    %v4654 = vpack.c.b16 %v4110, %v4102
    %v4655 = vpack.c.b16 %v4111, %v4103
    %v4656 = vpack.c.b16 %v4112, %v4104
    %v4657 = vpack.c.b16 %v4121, %v4113
    %v4658 = vpack.c.b16 %v4122, %v4114
    %v4659 = vpack.c.b16 %v4123, %v4115
    %v4660 = vpack.c.b16 %v4124, %v4116
    %v4661 = vpack.c.b16 %v4125, %v4117
    %v4662 = vpack.c.b16 %v4126, %v4118
    %v4663 = vpack.c.b16 %v4127, %v4119
    %v4664 = vpack.c.b16 %v4128, %v4120
    %v4665 = vpack.c.b16 %v4137, %v4129
    %v4666 = vpack.c.b16 %v4138, %v4130
    %v4667 = vpack.c.b16 %v4139, %v4131
    %v4668 = vpack.c.b16 %v4140, %v4132
    %v4669 = vpack.c.b16 %v4141, %v4133
    %v4670 = vpack.c.b16 %v4142, %v4134
    %v4671 = vpack.c.b16 %v4143, %v4135
    %v4672 = vpack.c.b16 %v4144, %v4136
    %v4673 = vpack.c.b16 %v4153, %v4145
    %v4674 = vpack.c.b16 %v4154, %v4146
    %v4675 = vpack.c.b16 %v4155, %v4147
    %v4676 = vpack.c.b16 %v4156, %v4148
    %v4677 = vpack.c.b16 %v4157, %v4149
    %v4678 = vpack.c.b16 %v4158, %v4150
    %v4679 = vpack.c.b16 %v4159, %v4151
    %v4680 = vpack.c.b16 %v4160, %v4152
    %v4681 = vpack.c.b16 %v4169, %v4161
    %v4682 = vpack.c.b16 %v4170, %v4162
    %v4683 = vpack.c.b16 %v4171, %v4163
    %v4684 = vpack.c.b16 %v4172, %v4164
    %v4685 = vpack.c.b16 %v4173, %v4165
    %v4686 = vpack.c.b16 %v4174, %v4166
    %v4687 = vpack.c.b16 %v4175, %v4167
    %v4688 = vpack.c.b16 %v4176, %v4168
    %5201 = vmatpush.bf16.msra.mxu0 %v4233
    %5202 = vmatpush.bf16.msra.mxu0 %v4225
    %5203 = vmatpush.bf16.msra.mxu0 %v4217
    %5204 = vmatpush.bf16.msra.mxu0 %v4209
    %5205 = vmatpush.bf16.msra.mxu0 %v4201
    %5206 = vmatpush.bf16.msra.mxu0 %v4193
    %5207 = vmatpush.bf16.msra.mxu0 %v4185
    %5208 = vmatpush.bf16.msra.mxu0 %v4177
    %5209 = vmatmul.bf16.gmra.mxu0 %v2616
    %v5210 = vpop.f32.mrf.mxu0
    %v5211 = vadd.f32 %v2625, %v5210
    %v5212 = vpop.f32.mrf.mxu0
    %v5213 = vadd.f32 %v2625, %v5212
    %5214 = vdwg.mxu0
    %5215 = vmatpush.bf16.msra.mxu0 %v4297
    %5216 = vmatpush.bf16.msra.mxu0 %v4289
    %5217 = vmatpush.bf16.msra.mxu0 %v4281
    %5218 = vmatpush.bf16.msra.mxu0 %v4273
    %5219 = vmatpush.bf16.msra.mxu0 %v4265
    %5220 = vmatpush.bf16.msra.mxu0 %v4257
    %5221 = vmatpush.bf16.msra.mxu0 %v4249
    %5222 = vmatpush.bf16.msra.mxu0 %v4241
    %5223 = vmatmul.bf16.gmra.mxu0 %v2617
    %v5224 = vpop.f32.mrf.mxu0
    %v5225 = vadd.f32 %v5211, %v5224
    %v5226 = vpop.f32.mrf.mxu0
    %v5227 = vadd.f32 %v5213, %v5226
    %5228 = vdwg.mxu0
    %5229 = vmatpush.bf16.msra.mxu0 %v4361
    %5230 = vmatpush.bf16.msra.mxu0 %v4353
    %5231 = vmatpush.bf16.msra.mxu0 %v4345
    %5232 = vmatpush.bf16.msra.mxu0 %v4337
    %5233 = vmatpush.bf16.msra.mxu0 %v4329
    %5234 = vmatpush.bf16.msra.mxu0 %v4321
    %5235 = vmatpush.bf16.msra.mxu0 %v4313
    %5236 = vmatpush.bf16.msra.mxu0 %v4305
    %5237 = vmatmul.bf16.gmra.mxu0 %v2618
    %v5238 = vpop.f32.mrf.mxu0
    %v5239 = vadd.f32 %v5225, %v5238
    %v5240 = vpop.f32.mrf.mxu0
    %v5241 = vadd.f32 %v5227, %v5240
    %5242 = vdwg.mxu0
    %5243 = vmatpush.bf16.msra.mxu0 %v4425
    %5244 = vmatpush.bf16.msra.mxu0 %v4417
    %5245 = vmatpush.bf16.msra.mxu0 %v4409
    %5246 = vmatpush.bf16.msra.mxu0 %v4401
    %5247 = vmatpush.bf16.msra.mxu0 %v4393
    %5248 = vmatpush.bf16.msra.mxu0 %v4385
    %5249 = vmatpush.bf16.msra.mxu0 %v4377
    %5250 = vmatpush.bf16.msra.mxu0 %v4369
    %5251 = vmatmul.bf16.gmra.mxu0 %v2619
    %v5252 = vpop.f32.mrf.mxu0
    %v5253 = vadd.f32 %v5239, %v5252
    %v5254 = vpop.f32.mrf.mxu0
    %v5255 = vadd.f32 %v5241, %v5254
    %5256 = vdwg.mxu0
    %5257 = vmatpush.bf16.msra.mxu0 %v4489
    %5258 = vmatpush.bf16.msra.mxu0 %v4481
    %5259 = vmatpush.bf16.msra.mxu0 %v4473
    %5260 = vmatpush.bf16.msra.mxu0 %v4465
    %5261 = vmatpush.bf16.msra.mxu0 %v4457
    %5262 = vmatpush.bf16.msra.mxu0 %v4449
    %5263 = vmatpush.bf16.msra.mxu0 %v4441
    %5264 = vmatpush.bf16.msra.mxu0 %v4433
    %5265 = vmatmul.bf16.gmra.mxu0 %v2620
    %v5266 = vpop.f32.mrf.mxu0
    %v5267 = vadd.f32 %v5253, %v5266
    %v5268 = vpop.f32.mrf.mxu0
    %v5269 = vadd.f32 %v5255, %v5268
    %5270 = vdwg.mxu0
    %5271 = vmatpush.bf16.msra.mxu0 %v4553
    %5272 = vmatpush.bf16.msra.mxu0 %v4545
    %5273 = vmatpush.bf16.msra.mxu0 %v4537
    %5274 = vmatpush.bf16.msra.mxu0 %v4529
    %5275 = vmatpush.bf16.msra.mxu0 %v4521
    %5276 = vmatpush.bf16.msra.mxu0 %v4513
    %5277 = vmatpush.bf16.msra.mxu0 %v4505
    %5278 = vmatpush.bf16.msra.mxu0 %v4497
    %5279 = vmatmul.bf16.gmra.mxu0 %v2621
    %v5280 = vpop.f32.mrf.mxu0
    %v5281 = vadd.f32 %v5267, %v5280
    %v5282 = vpop.f32.mrf.mxu0
    %v5283 = vadd.f32 %v5269, %v5282
    %5284 = vdwg.mxu0
    %5285 = vmatpush.bf16.msra.mxu0 %v4617
    %5286 = vmatpush.bf16.msra.mxu0 %v4609
    %5287 = vmatpush.bf16.msra.mxu0 %v4601
    %5288 = vmatpush.bf16.msra.mxu0 %v4593
    %5289 = vmatpush.bf16.msra.mxu0 %v4585
    %5290 = vmatpush.bf16.msra.mxu0 %v4577
    %5291 = vmatpush.bf16.msra.mxu0 %v4569
    %5292 = vmatpush.bf16.msra.mxu0 %v4561
    %5293 = vmatmul.bf16.gmra.mxu0 %v2622
    %v5294 = vpop.f32.mrf.mxu0
    %v5295 = vadd.f32 %v5281, %v5294
    %v5296 = vpop.f32.mrf.mxu0
    %v5297 = vadd.f32 %v5283, %v5296
    %5298 = vdwg.mxu0
    %5299 = vmatpush.bf16.msra.mxu0 %v4681
    %5300 = vmatpush.bf16.msra.mxu0 %v4673
    %5301 = vmatpush.bf16.msra.mxu0 %v4665
    %5302 = vmatpush.bf16.msra.mxu0 %v4657
    %5303 = vmatpush.bf16.msra.mxu0 %v4649
    %5304 = vmatpush.bf16.msra.mxu0 %v4641
    %5305 = vmatpush.bf16.msra.mxu0 %v4633
    %5306 = vmatpush.bf16.msra.mxu0 %v4625
    %5307 = vmatmul.bf16.gmra.mxu0 %v2623
    %v5308 = vpop.f32.mrf.mxu0
    %v5309 = vadd.f32 %v5295, %v5308
    %v5310 = vpop.f32.mrf.mxu0
    %v5311 = vadd.f32 %v5297, %v5310
    %5312 = vdwg.mxu0
    %5313 = vmatpush.bf16.msra.mxu0 %v4234
    %5314 = vmatpush.bf16.msra.mxu0 %v4226
    %5315 = vmatpush.bf16.msra.mxu0 %v4218
    %5316 = vmatpush.bf16.msra.mxu0 %v4210
    %5317 = vmatpush.bf16.msra.mxu0 %v4202
    %5318 = vmatpush.bf16.msra.mxu0 %v4194
    %5319 = vmatpush.bf16.msra.mxu0 %v4186
    %5320 = vmatpush.bf16.msra.mxu0 %v4178
    %5321 = vmatmul.bf16.gmra.mxu0 %v2616
    %v5322 = vpop.f32.mrf.mxu0
    %v5323 = vadd.f32 %v2626, %v5322
    %v5324 = vpop.f32.mrf.mxu0
    %v5325 = vadd.f32 %v2626, %v5324
    %5326 = vdwg.mxu0
    %5327 = vmatpush.bf16.msra.mxu0 %v4298
    %5328 = vmatpush.bf16.msra.mxu0 %v4290
    %5329 = vmatpush.bf16.msra.mxu0 %v4282
    %5330 = vmatpush.bf16.msra.mxu0 %v4274
    %5331 = vmatpush.bf16.msra.mxu0 %v4266
    %5332 = vmatpush.bf16.msra.mxu0 %v4258
    %5333 = vmatpush.bf16.msra.mxu0 %v4250
    %5334 = vmatpush.bf16.msra.mxu0 %v4242
    %5335 = vmatmul.bf16.gmra.mxu0 %v2617
    %v5336 = vpop.f32.mrf.mxu0
    %v5337 = vadd.f32 %v5323, %v5336
    %v5338 = vpop.f32.mrf.mxu0
    %v5339 = vadd.f32 %v5325, %v5338
    %5340 = vdwg.mxu0
    %5341 = vmatpush.bf16.msra.mxu0 %v4362
    %5342 = vmatpush.bf16.msra.mxu0 %v4354
    %5343 = vmatpush.bf16.msra.mxu0 %v4346
    %5344 = vmatpush.bf16.msra.mxu0 %v4338
    %5345 = vmatpush.bf16.msra.mxu0 %v4330
    %5346 = vmatpush.bf16.msra.mxu0 %v4322
    %5347 = vmatpush.bf16.msra.mxu0 %v4314
    %5348 = vmatpush.bf16.msra.mxu0 %v4306
    %5349 = vmatmul.bf16.gmra.mxu0 %v2618
    %v5350 = vpop.f32.mrf.mxu0
    %v5351 = vadd.f32 %v5337, %v5350
    %v5352 = vpop.f32.mrf.mxu0
    %v5353 = vadd.f32 %v5339, %v5352
    %5354 = vdwg.mxu0
    %5355 = vmatpush.bf16.msra.mxu0 %v4426
    %5356 = vmatpush.bf16.msra.mxu0 %v4418
    %5357 = vmatpush.bf16.msra.mxu0 %v4410
    %5358 = vmatpush.bf16.msra.mxu0 %v4402
    %5359 = vmatpush.bf16.msra.mxu0 %v4394
    %5360 = vmatpush.bf16.msra.mxu0 %v4386
    %5361 = vmatpush.bf16.msra.mxu0 %v4378
    %5362 = vmatpush.bf16.msra.mxu0 %v4370
    %5363 = vmatmul.bf16.gmra.mxu0 %v2619
    %v5364 = vpop.f32.mrf.mxu0
    %v5365 = vadd.f32 %v5351, %v5364
    %v5366 = vpop.f32.mrf.mxu0
    %v5367 = vadd.f32 %v5353, %v5366
    %5368 = vdwg.mxu0
    %5369 = vmatpush.bf16.msra.mxu0 %v4490
    %5370 = vmatpush.bf16.msra.mxu0 %v4482
    %5371 = vmatpush.bf16.msra.mxu0 %v4474
    %5372 = vmatpush.bf16.msra.mxu0 %v4466
    %5373 = vmatpush.bf16.msra.mxu0 %v4458
    %5374 = vmatpush.bf16.msra.mxu0 %v4450
    %5375 = vmatpush.bf16.msra.mxu0 %v4442
    %5376 = vmatpush.bf16.msra.mxu0 %v4434
    %5377 = vmatmul.bf16.gmra.mxu0 %v2620
    %v5378 = vpop.f32.mrf.mxu0
    %v5379 = vadd.f32 %v5365, %v5378
    %v5380 = vpop.f32.mrf.mxu0
    %v5381 = vadd.f32 %v5367, %v5380
    %5382 = vdwg.mxu0
    %5383 = vmatpush.bf16.msra.mxu0 %v4554
    %5384 = vmatpush.bf16.msra.mxu0 %v4546
    %5385 = vmatpush.bf16.msra.mxu0 %v4538
    %5386 = vmatpush.bf16.msra.mxu0 %v4530
    %5387 = vmatpush.bf16.msra.mxu0 %v4522
    %5388 = vmatpush.bf16.msra.mxu0 %v4514
    %5389 = vmatpush.bf16.msra.mxu0 %v4506
    %5390 = vmatpush.bf16.msra.mxu0 %v4498
    %5391 = vmatmul.bf16.gmra.mxu0 %v2621
    %v5392 = vpop.f32.mrf.mxu0
    %v5393 = vadd.f32 %v5379, %v5392
    %v5394 = vpop.f32.mrf.mxu0
    %v5395 = vadd.f32 %v5381, %v5394
    %5396 = vdwg.mxu0
    %5397 = vmatpush.bf16.msra.mxu0 %v4618
    %5398 = vmatpush.bf16.msra.mxu0 %v4610
    %5399 = vmatpush.bf16.msra.mxu0 %v4602
    %5400 = vmatpush.bf16.msra.mxu0 %v4594
    %5401 = vmatpush.bf16.msra.mxu0 %v4586
    %5402 = vmatpush.bf16.msra.mxu0 %v4578
    %5403 = vmatpush.bf16.msra.mxu0 %v4570
    %5404 = vmatpush.bf16.msra.mxu0 %v4562
    %5405 = vmatmul.bf16.gmra.mxu0 %v2622
    %v5406 = vpop.f32.mrf.mxu0
    %v5407 = vadd.f32 %v5393, %v5406
    %v5408 = vpop.f32.mrf.mxu0
    %v5409 = vadd.f32 %v5395, %v5408
    %5410 = vdwg.mxu0
    %5411 = vmatpush.bf16.msra.mxu0 %v4682
    %5412 = vmatpush.bf16.msra.mxu0 %v4674
    %5413 = vmatpush.bf16.msra.mxu0 %v4666
    %5414 = vmatpush.bf16.msra.mxu0 %v4658
    %5415 = vmatpush.bf16.msra.mxu0 %v4650
    %5416 = vmatpush.bf16.msra.mxu0 %v4642
    %5417 = vmatpush.bf16.msra.mxu0 %v4634
    %5418 = vmatpush.bf16.msra.mxu0 %v4626
    %5419 = vmatmul.bf16.gmra.mxu0 %v2623
    %v5420 = vpop.f32.mrf.mxu0
    %v5421 = vadd.f32 %v5407, %v5420
    %v5422 = vpop.f32.mrf.mxu0
    %v5423 = vadd.f32 %v5409, %v5422
    %5424 = vdwg.mxu0
    %5425 = vmatpush.bf16.msra.mxu0 %v4235
    %5426 = vmatpush.bf16.msra.mxu0 %v4227
    %5427 = vmatpush.bf16.msra.mxu0 %v4219
    %5428 = vmatpush.bf16.msra.mxu0 %v4211
    %5429 = vmatpush.bf16.msra.mxu0 %v4203
    %5430 = vmatpush.bf16.msra.mxu0 %v4195
    %5431 = vmatpush.bf16.msra.mxu0 %v4187
    %5432 = vmatpush.bf16.msra.mxu0 %v4179
    %5433 = vmatmul.bf16.gmra.mxu0 %v2616
    %v5434 = vpop.f32.mrf.mxu0
    %v5435 = vadd.f32 %v2627, %v5434
    %v5436 = vpop.f32.mrf.mxu0
    %v5437 = vadd.f32 %v2627, %v5436
    %5438 = vdwg.mxu0
    %5439 = vmatpush.bf16.msra.mxu0 %v4299
    %5440 = vmatpush.bf16.msra.mxu0 %v4291
    %5441 = vmatpush.bf16.msra.mxu0 %v4283
    %5442 = vmatpush.bf16.msra.mxu0 %v4275
    %5443 = vmatpush.bf16.msra.mxu0 %v4267
    %5444 = vmatpush.bf16.msra.mxu0 %v4259
    %5445 = vmatpush.bf16.msra.mxu0 %v4251
    %5446 = vmatpush.bf16.msra.mxu0 %v4243
    %5447 = vmatmul.bf16.gmra.mxu0 %v2617
    %v5448 = vpop.f32.mrf.mxu0
    %v5449 = vadd.f32 %v5435, %v5448
    %v5450 = vpop.f32.mrf.mxu0
    %v5451 = vadd.f32 %v5437, %v5450
    %5452 = vdwg.mxu0
    %5453 = vmatpush.bf16.msra.mxu0 %v4363
    %5454 = vmatpush.bf16.msra.mxu0 %v4355
    %5455 = vmatpush.bf16.msra.mxu0 %v4347
    %5456 = vmatpush.bf16.msra.mxu0 %v4339
    %5457 = vmatpush.bf16.msra.mxu0 %v4331
    %5458 = vmatpush.bf16.msra.mxu0 %v4323
    %5459 = vmatpush.bf16.msra.mxu0 %v4315
    %5460 = vmatpush.bf16.msra.mxu0 %v4307
    %5461 = vmatmul.bf16.gmra.mxu0 %v2618
    %v5462 = vpop.f32.mrf.mxu0
    %v5463 = vadd.f32 %v5449, %v5462
    %v5464 = vpop.f32.mrf.mxu0
    %v5465 = vadd.f32 %v5451, %v5464
    %5466 = vdwg.mxu0
    %5467 = vmatpush.bf16.msra.mxu0 %v4427
    %5468 = vmatpush.bf16.msra.mxu0 %v4419
    %5469 = vmatpush.bf16.msra.mxu0 %v4411
    %5470 = vmatpush.bf16.msra.mxu0 %v4403
    %5471 = vmatpush.bf16.msra.mxu0 %v4395
    %5472 = vmatpush.bf16.msra.mxu0 %v4387
    %5473 = vmatpush.bf16.msra.mxu0 %v4379
    %5474 = vmatpush.bf16.msra.mxu0 %v4371
    %5475 = vmatmul.bf16.gmra.mxu0 %v2619
    %v5476 = vpop.f32.mrf.mxu0
    %v5477 = vadd.f32 %v5463, %v5476
    %v5478 = vpop.f32.mrf.mxu0
    %v5479 = vadd.f32 %v5465, %v5478
    %5480 = vdwg.mxu0
    %5481 = vmatpush.bf16.msra.mxu0 %v4491
    %5482 = vmatpush.bf16.msra.mxu0 %v4483
    %5483 = vmatpush.bf16.msra.mxu0 %v4475
    %5484 = vmatpush.bf16.msra.mxu0 %v4467
    %5485 = vmatpush.bf16.msra.mxu0 %v4459
    %5486 = vmatpush.bf16.msra.mxu0 %v4451
    %5487 = vmatpush.bf16.msra.mxu0 %v4443
    %5488 = vmatpush.bf16.msra.mxu0 %v4435
    %5489 = vmatmul.bf16.gmra.mxu0 %v2620
    %v5490 = vpop.f32.mrf.mxu0
    %v5491 = vadd.f32 %v5477, %v5490
    %v5492 = vpop.f32.mrf.mxu0
    %v5493 = vadd.f32 %v5479, %v5492
    %5494 = vdwg.mxu0
    %5495 = vmatpush.bf16.msra.mxu0 %v4555
    %5496 = vmatpush.bf16.msra.mxu0 %v4547
    %5497 = vmatpush.bf16.msra.mxu0 %v4539
    %5498 = vmatpush.bf16.msra.mxu0 %v4531
    %5499 = vmatpush.bf16.msra.mxu0 %v4523
    %5500 = vmatpush.bf16.msra.mxu0 %v4515
    %5501 = vmatpush.bf16.msra.mxu0 %v4507
    %5502 = vmatpush.bf16.msra.mxu0 %v4499
    %5503 = vmatmul.bf16.gmra.mxu0 %v2621
    %v5504 = vpop.f32.mrf.mxu0
    %v5505 = vadd.f32 %v5491, %v5504
    %v5506 = vpop.f32.mrf.mxu0
    %v5507 = vadd.f32 %v5493, %v5506
    %5508 = vdwg.mxu0
    %5509 = vmatpush.bf16.msra.mxu0 %v4619
    %5510 = vmatpush.bf16.msra.mxu0 %v4611
    %5511 = vmatpush.bf16.msra.mxu0 %v4603
    %5512 = vmatpush.bf16.msra.mxu0 %v4595
    %5513 = vmatpush.bf16.msra.mxu0 %v4587
    %5514 = vmatpush.bf16.msra.mxu0 %v4579
    %5515 = vmatpush.bf16.msra.mxu0 %v4571
    %5516 = vmatpush.bf16.msra.mxu0 %v4563
    %5517 = vmatmul.bf16.gmra.mxu0 %v2622
    %v5518 = vpop.f32.mrf.mxu0
    %v5519 = vadd.f32 %v5505, %v5518
    %v5520 = vpop.f32.mrf.mxu0
    %v5521 = vadd.f32 %v5507, %v5520
    %5522 = vdwg.mxu0
    %5523 = vmatpush.bf16.msra.mxu0 %v4683
    %5524 = vmatpush.bf16.msra.mxu0 %v4675
    %5525 = vmatpush.bf16.msra.mxu0 %v4667
    %5526 = vmatpush.bf16.msra.mxu0 %v4659
    %5527 = vmatpush.bf16.msra.mxu0 %v4651
    %5528 = vmatpush.bf16.msra.mxu0 %v4643
    %5529 = vmatpush.bf16.msra.mxu0 %v4635
    %5530 = vmatpush.bf16.msra.mxu0 %v4627
    %5531 = vmatmul.bf16.gmra.mxu0 %v2623
    %v5532 = vpop.f32.mrf.mxu0
    %v5533 = vadd.f32 %v5519, %v5532
    %v5534 = vpop.f32.mrf.mxu0
    %v5535 = vadd.f32 %v5521, %v5534
    %5536 = vdwg.mxu0
    %5537 = vmatpush.bf16.msra.mxu0 %v4236
    %5538 = vmatpush.bf16.msra.mxu0 %v4228
    %5539 = vmatpush.bf16.msra.mxu0 %v4220
    %5540 = vmatpush.bf16.msra.mxu0 %v4212
    %5541 = vmatpush.bf16.msra.mxu0 %v4204
    %5542 = vmatpush.bf16.msra.mxu0 %v4196
    %5543 = vmatpush.bf16.msra.mxu0 %v4188
    %5544 = vmatpush.bf16.msra.mxu0 %v4180
    %5545 = vmatmul.bf16.gmra.mxu0 %v2616
    %v5546 = vpop.f32.mrf.mxu0
    %v5547 = vadd.f32 %v2628, %v5546
    %v5548 = vpop.f32.mrf.mxu0
    %v5549 = vadd.f32 %v2628, %v5548
    %5550 = vdwg.mxu0
    %5551 = vmatpush.bf16.msra.mxu0 %v4300
    %5552 = vmatpush.bf16.msra.mxu0 %v4292
    %5553 = vmatpush.bf16.msra.mxu0 %v4284
    %5554 = vmatpush.bf16.msra.mxu0 %v4276
    %5555 = vmatpush.bf16.msra.mxu0 %v4268
    %5556 = vmatpush.bf16.msra.mxu0 %v4260
    %5557 = vmatpush.bf16.msra.mxu0 %v4252
    %5558 = vmatpush.bf16.msra.mxu0 %v4244
    %5559 = vmatmul.bf16.gmra.mxu0 %v2617
    %v5560 = vpop.f32.mrf.mxu0
    %v5561 = vadd.f32 %v5547, %v5560
    %v5562 = vpop.f32.mrf.mxu0
    %v5563 = vadd.f32 %v5549, %v5562
    %5564 = vdwg.mxu0
    %5565 = vmatpush.bf16.msra.mxu0 %v4364
    %5566 = vmatpush.bf16.msra.mxu0 %v4356
    %5567 = vmatpush.bf16.msra.mxu0 %v4348
    %5568 = vmatpush.bf16.msra.mxu0 %v4340
    %5569 = vmatpush.bf16.msra.mxu0 %v4332
    %5570 = vmatpush.bf16.msra.mxu0 %v4324
    %5571 = vmatpush.bf16.msra.mxu0 %v4316
    %5572 = vmatpush.bf16.msra.mxu0 %v4308
    %5573 = vmatmul.bf16.gmra.mxu0 %v2618
    %v5574 = vpop.f32.mrf.mxu0
    %v5575 = vadd.f32 %v5561, %v5574
    %v5576 = vpop.f32.mrf.mxu0
    %v5577 = vadd.f32 %v5563, %v5576
    %5578 = vdwg.mxu0
    %5579 = vmatpush.bf16.msra.mxu0 %v4428
    %5580 = vmatpush.bf16.msra.mxu0 %v4420
    %5581 = vmatpush.bf16.msra.mxu0 %v4412
    %5582 = vmatpush.bf16.msra.mxu0 %v4404
    %5583 = vmatpush.bf16.msra.mxu0 %v4396
    %5584 = vmatpush.bf16.msra.mxu0 %v4388
    %5585 = vmatpush.bf16.msra.mxu0 %v4380
    %5586 = vmatpush.bf16.msra.mxu0 %v4372
    %5587 = vmatmul.bf16.gmra.mxu0 %v2619
    %v5588 = vpop.f32.mrf.mxu0
    %v5589 = vadd.f32 %v5575, %v5588
    %v5590 = vpop.f32.mrf.mxu0
    %v5591 = vadd.f32 %v5577, %v5590
    %5592 = vdwg.mxu0
    %5593 = vmatpush.bf16.msra.mxu0 %v4492
    %5594 = vmatpush.bf16.msra.mxu0 %v4484
    %5595 = vmatpush.bf16.msra.mxu0 %v4476
    %5596 = vmatpush.bf16.msra.mxu0 %v4468
    %5597 = vmatpush.bf16.msra.mxu0 %v4460
    %5598 = vmatpush.bf16.msra.mxu0 %v4452
    %5599 = vmatpush.bf16.msra.mxu0 %v4444
    %5600 = vmatpush.bf16.msra.mxu0 %v4436
    %5601 = vmatmul.bf16.gmra.mxu0 %v2620
    %v5602 = vpop.f32.mrf.mxu0
    %v5603 = vadd.f32 %v5589, %v5602
    %v5604 = vpop.f32.mrf.mxu0
    %v5605 = vadd.f32 %v5591, %v5604
    %5606 = vdwg.mxu0
    %5607 = vmatpush.bf16.msra.mxu0 %v4556
    %5608 = vmatpush.bf16.msra.mxu0 %v4548
    %5609 = vmatpush.bf16.msra.mxu0 %v4540
    %5610 = vmatpush.bf16.msra.mxu0 %v4532
    %5611 = vmatpush.bf16.msra.mxu0 %v4524
    %5612 = vmatpush.bf16.msra.mxu0 %v4516
    %5613 = vmatpush.bf16.msra.mxu0 %v4508
    %5614 = vmatpush.bf16.msra.mxu0 %v4500
    %5615 = vmatmul.bf16.gmra.mxu0 %v2621
    %v5616 = vpop.f32.mrf.mxu0
    %v5617 = vadd.f32 %v5603, %v5616
    %v5618 = vpop.f32.mrf.mxu0
    %v5619 = vadd.f32 %v5605, %v5618
    %5620 = vdwg.mxu0
    %5621 = vmatpush.bf16.msra.mxu0 %v4620
    %5622 = vmatpush.bf16.msra.mxu0 %v4612
    %5623 = vmatpush.bf16.msra.mxu0 %v4604
    %5624 = vmatpush.bf16.msra.mxu0 %v4596
    %5625 = vmatpush.bf16.msra.mxu0 %v4588
    %5626 = vmatpush.bf16.msra.mxu0 %v4580
    %5627 = vmatpush.bf16.msra.mxu0 %v4572
    %5628 = vmatpush.bf16.msra.mxu0 %v4564
    %5629 = vmatmul.bf16.gmra.mxu0 %v2622
    %v5630 = vpop.f32.mrf.mxu0
    %v5631 = vadd.f32 %v5617, %v5630
    %v5632 = vpop.f32.mrf.mxu0
    %v5633 = vadd.f32 %v5619, %v5632
    %5634 = vdwg.mxu0
    %5635 = vmatpush.bf16.msra.mxu0 %v4684
    %5636 = vmatpush.bf16.msra.mxu0 %v4676
    %5637 = vmatpush.bf16.msra.mxu0 %v4668
    %5638 = vmatpush.bf16.msra.mxu0 %v4660
    %5639 = vmatpush.bf16.msra.mxu0 %v4652
    %5640 = vmatpush.bf16.msra.mxu0 %v4644
    %5641 = vmatpush.bf16.msra.mxu0 %v4636
    %5642 = vmatpush.bf16.msra.mxu0 %v4628
    %5643 = vmatmul.bf16.gmra.mxu0 %v2623
    %v5644 = vpop.f32.mrf.mxu0
    %v5645 = vadd.f32 %v5631, %v5644
    %v5646 = vpop.f32.mrf.mxu0
    %v5647 = vadd.f32 %v5633, %v5646
    %5648 = vdwg.mxu0
    %5649 = vmatpush.bf16.msra.mxu0 %v4237
    %5650 = vmatpush.bf16.msra.mxu0 %v4229
    %5651 = vmatpush.bf16.msra.mxu0 %v4221
    %5652 = vmatpush.bf16.msra.mxu0 %v4213
    %5653 = vmatpush.bf16.msra.mxu0 %v4205
    %5654 = vmatpush.bf16.msra.mxu0 %v4197
    %5655 = vmatpush.bf16.msra.mxu0 %v4189
    %5656 = vmatpush.bf16.msra.mxu0 %v4181
    %5657 = vmatmul.bf16.gmra.mxu0 %v2616
    %v5658 = vpop.f32.mrf.mxu0
    %v5659 = vadd.f32 %v2629, %v5658
    %v5660 = vpop.f32.mrf.mxu0
    %v5661 = vadd.f32 %v2629, %v5660
    %5662 = vdwg.mxu0
    %5663 = vmatpush.bf16.msra.mxu0 %v4301
    %5664 = vmatpush.bf16.msra.mxu0 %v4293
    %5665 = vmatpush.bf16.msra.mxu0 %v4285
    %5666 = vmatpush.bf16.msra.mxu0 %v4277
    %5667 = vmatpush.bf16.msra.mxu0 %v4269
    %5668 = vmatpush.bf16.msra.mxu0 %v4261
    %5669 = vmatpush.bf16.msra.mxu0 %v4253
    %5670 = vmatpush.bf16.msra.mxu0 %v4245
    %5671 = vmatmul.bf16.gmra.mxu0 %v2617
    %v5672 = vpop.f32.mrf.mxu0
    %v5673 = vadd.f32 %v5659, %v5672
    %v5674 = vpop.f32.mrf.mxu0
    %v5675 = vadd.f32 %v5661, %v5674
    %5676 = vdwg.mxu0
    %5677 = vmatpush.bf16.msra.mxu0 %v4365
    %5678 = vmatpush.bf16.msra.mxu0 %v4357
    %5679 = vmatpush.bf16.msra.mxu0 %v4349
    %5680 = vmatpush.bf16.msra.mxu0 %v4341
    %5681 = vmatpush.bf16.msra.mxu0 %v4333
    %5682 = vmatpush.bf16.msra.mxu0 %v4325
    %5683 = vmatpush.bf16.msra.mxu0 %v4317
    %5684 = vmatpush.bf16.msra.mxu0 %v4309
    %5685 = vmatmul.bf16.gmra.mxu0 %v2618
    %v5686 = vpop.f32.mrf.mxu0
    %v5687 = vadd.f32 %v5673, %v5686
    %v5688 = vpop.f32.mrf.mxu0
    %v5689 = vadd.f32 %v5675, %v5688
    %5690 = vdwg.mxu0
    %5691 = vmatpush.bf16.msra.mxu0 %v4429
    %5692 = vmatpush.bf16.msra.mxu0 %v4421
    %5693 = vmatpush.bf16.msra.mxu0 %v4413
    %5694 = vmatpush.bf16.msra.mxu0 %v4405
    %5695 = vmatpush.bf16.msra.mxu0 %v4397
    %5696 = vmatpush.bf16.msra.mxu0 %v4389
    %5697 = vmatpush.bf16.msra.mxu0 %v4381
    %5698 = vmatpush.bf16.msra.mxu0 %v4373
    %5699 = vmatmul.bf16.gmra.mxu0 %v2619
    %v5700 = vpop.f32.mrf.mxu0
    %v5701 = vadd.f32 %v5687, %v5700
    %v5702 = vpop.f32.mrf.mxu0
    %v5703 = vadd.f32 %v5689, %v5702
    %5704 = vdwg.mxu0
    %5705 = vmatpush.bf16.msra.mxu0 %v4493
    %5706 = vmatpush.bf16.msra.mxu0 %v4485
    %5707 = vmatpush.bf16.msra.mxu0 %v4477
    %5708 = vmatpush.bf16.msra.mxu0 %v4469
    %5709 = vmatpush.bf16.msra.mxu0 %v4461
    %5710 = vmatpush.bf16.msra.mxu0 %v4453
    %5711 = vmatpush.bf16.msra.mxu0 %v4445
    %5712 = vmatpush.bf16.msra.mxu0 %v4437
    %5713 = vmatmul.bf16.gmra.mxu0 %v2620
    %v5714 = vpop.f32.mrf.mxu0
    %v5715 = vadd.f32 %v5701, %v5714
    %v5716 = vpop.f32.mrf.mxu0
    %v5717 = vadd.f32 %v5703, %v5716
    %5718 = vdwg.mxu0
    %5719 = vmatpush.bf16.msra.mxu0 %v4557
    %5720 = vmatpush.bf16.msra.mxu0 %v4549
    %5721 = vmatpush.bf16.msra.mxu0 %v4541
    %5722 = vmatpush.bf16.msra.mxu0 %v4533
    %5723 = vmatpush.bf16.msra.mxu0 %v4525
    %5724 = vmatpush.bf16.msra.mxu0 %v4517
    %5725 = vmatpush.bf16.msra.mxu0 %v4509
    %5726 = vmatpush.bf16.msra.mxu0 %v4501
    %5727 = vmatmul.bf16.gmra.mxu0 %v2621
    %v5728 = vpop.f32.mrf.mxu0
    %v5729 = vadd.f32 %v5715, %v5728
    %v5730 = vpop.f32.mrf.mxu0
    %v5731 = vadd.f32 %v5717, %v5730
    %5732 = vdwg.mxu0
    %5733 = vmatpush.bf16.msra.mxu0 %v4621
    %5734 = vmatpush.bf16.msra.mxu0 %v4613
    %5735 = vmatpush.bf16.msra.mxu0 %v4605
    %5736 = vmatpush.bf16.msra.mxu0 %v4597
    %5737 = vmatpush.bf16.msra.mxu0 %v4589
    %5738 = vmatpush.bf16.msra.mxu0 %v4581
    %5739 = vmatpush.bf16.msra.mxu0 %v4573
    %5740 = vmatpush.bf16.msra.mxu0 %v4565
    %5741 = vmatmul.bf16.gmra.mxu0 %v2622
    %v5742 = vpop.f32.mrf.mxu0
    %v5743 = vadd.f32 %v5729, %v5742
    %v5744 = vpop.f32.mrf.mxu0
    %v5745 = vadd.f32 %v5731, %v5744
    %5746 = vdwg.mxu0
    %5747 = vmatpush.bf16.msra.mxu0 %v4685
    %5748 = vmatpush.bf16.msra.mxu0 %v4677
    %5749 = vmatpush.bf16.msra.mxu0 %v4669
    %5750 = vmatpush.bf16.msra.mxu0 %v4661
    %5751 = vmatpush.bf16.msra.mxu0 %v4653
    %5752 = vmatpush.bf16.msra.mxu0 %v4645
    %5753 = vmatpush.bf16.msra.mxu0 %v4637
    %5754 = vmatpush.bf16.msra.mxu0 %v4629
    %5755 = vmatmul.bf16.gmra.mxu0 %v2623
    %v5756 = vpop.f32.mrf.mxu0
    %v5757 = vadd.f32 %v5743, %v5756
    %v5758 = vpop.f32.mrf.mxu0
    %v5759 = vadd.f32 %v5745, %v5758
    %5760 = vdwg.mxu0
    %5761 = vmatpush.bf16.msra.mxu0 %v4238
    %5762 = vmatpush.bf16.msra.mxu0 %v4230
    %5763 = vmatpush.bf16.msra.mxu0 %v4222
    %5764 = vmatpush.bf16.msra.mxu0 %v4214
    %5765 = vmatpush.bf16.msra.mxu0 %v4206
    %5766 = vmatpush.bf16.msra.mxu0 %v4198
    %5767 = vmatpush.bf16.msra.mxu0 %v4190
    %5768 = vmatpush.bf16.msra.mxu0 %v4182
    %5769 = vmatmul.bf16.gmra.mxu0 %v2616
    %v5770 = vpop.f32.mrf.mxu0
    %v5771 = vadd.f32 %v2630, %v5770
    %v5772 = vpop.f32.mrf.mxu0
    %v5773 = vadd.f32 %v2630, %v5772
    %5774 = vdwg.mxu0
    %5775 = vmatpush.bf16.msra.mxu0 %v4302
    %5776 = vmatpush.bf16.msra.mxu0 %v4294
    %5777 = vmatpush.bf16.msra.mxu0 %v4286
    %5778 = vmatpush.bf16.msra.mxu0 %v4278
    %5779 = vmatpush.bf16.msra.mxu0 %v4270
    %5780 = vmatpush.bf16.msra.mxu0 %v4262
    %5781 = vmatpush.bf16.msra.mxu0 %v4254
    %5782 = vmatpush.bf16.msra.mxu0 %v4246
    %5783 = vmatmul.bf16.gmra.mxu0 %v2617
    %v5784 = vpop.f32.mrf.mxu0
    %v5785 = vadd.f32 %v5771, %v5784
    %v5786 = vpop.f32.mrf.mxu0
    %v5787 = vadd.f32 %v5773, %v5786
    %5788 = vdwg.mxu0
    %5789 = vmatpush.bf16.msra.mxu0 %v4366
    %5790 = vmatpush.bf16.msra.mxu0 %v4358
    %5791 = vmatpush.bf16.msra.mxu0 %v4350
    %5792 = vmatpush.bf16.msra.mxu0 %v4342
    %5793 = vmatpush.bf16.msra.mxu0 %v4334
    %5794 = vmatpush.bf16.msra.mxu0 %v4326
    %5795 = vmatpush.bf16.msra.mxu0 %v4318
    %5796 = vmatpush.bf16.msra.mxu0 %v4310
    %5797 = vmatmul.bf16.gmra.mxu0 %v2618
    %v5798 = vpop.f32.mrf.mxu0
    %v5799 = vadd.f32 %v5785, %v5798
    %v5800 = vpop.f32.mrf.mxu0
    %v5801 = vadd.f32 %v5787, %v5800
    %5802 = vdwg.mxu0
    %5803 = vmatpush.bf16.msra.mxu0 %v4430
    %5804 = vmatpush.bf16.msra.mxu0 %v4422
    %5805 = vmatpush.bf16.msra.mxu0 %v4414
    %5806 = vmatpush.bf16.msra.mxu0 %v4406
    %5807 = vmatpush.bf16.msra.mxu0 %v4398
    %5808 = vmatpush.bf16.msra.mxu0 %v4390
    %5809 = vmatpush.bf16.msra.mxu0 %v4382
    %5810 = vmatpush.bf16.msra.mxu0 %v4374
    %5811 = vmatmul.bf16.gmra.mxu0 %v2619
    %v5812 = vpop.f32.mrf.mxu0
    %v5813 = vadd.f32 %v5799, %v5812
    %v5814 = vpop.f32.mrf.mxu0
    %v5815 = vadd.f32 %v5801, %v5814
    %5816 = vdwg.mxu0
    %5817 = vmatpush.bf16.msra.mxu0 %v4494
    %5818 = vmatpush.bf16.msra.mxu0 %v4486
    %5819 = vmatpush.bf16.msra.mxu0 %v4478
    %5820 = vmatpush.bf16.msra.mxu0 %v4470
    %5821 = vmatpush.bf16.msra.mxu0 %v4462
    %5822 = vmatpush.bf16.msra.mxu0 %v4454
    %5823 = vmatpush.bf16.msra.mxu0 %v4446
    %5824 = vmatpush.bf16.msra.mxu0 %v4438
    %5825 = vmatmul.bf16.gmra.mxu0 %v2620
    %v5826 = vpop.f32.mrf.mxu0
    %v5827 = vadd.f32 %v5813, %v5826
    %v5828 = vpop.f32.mrf.mxu0
    %v5829 = vadd.f32 %v5815, %v5828
    %5830 = vdwg.mxu0
    %5831 = vmatpush.bf16.msra.mxu0 %v4558
    %5832 = vmatpush.bf16.msra.mxu0 %v4550
    %5833 = vmatpush.bf16.msra.mxu0 %v4542
    %5834 = vmatpush.bf16.msra.mxu0 %v4534
    %5835 = vmatpush.bf16.msra.mxu0 %v4526
    %5836 = vmatpush.bf16.msra.mxu0 %v4518
    %5837 = vmatpush.bf16.msra.mxu0 %v4510
    %5838 = vmatpush.bf16.msra.mxu0 %v4502
    %5839 = vmatmul.bf16.gmra.mxu0 %v2621
    %v5840 = vpop.f32.mrf.mxu0
    %v5841 = vadd.f32 %v5827, %v5840
    %v5842 = vpop.f32.mrf.mxu0
    %v5843 = vadd.f32 %v5829, %v5842
    %5844 = vdwg.mxu0
    %5845 = vmatpush.bf16.msra.mxu0 %v4622
    %5846 = vmatpush.bf16.msra.mxu0 %v4614
    %5847 = vmatpush.bf16.msra.mxu0 %v4606
    %5848 = vmatpush.bf16.msra.mxu0 %v4598
    %5849 = vmatpush.bf16.msra.mxu0 %v4590
    %5850 = vmatpush.bf16.msra.mxu0 %v4582
    %5851 = vmatpush.bf16.msra.mxu0 %v4574
    %5852 = vmatpush.bf16.msra.mxu0 %v4566
    %5853 = vmatmul.bf16.gmra.mxu0 %v2622
    %v5854 = vpop.f32.mrf.mxu0
    %v5855 = vadd.f32 %v5841, %v5854
    %v5856 = vpop.f32.mrf.mxu0
    %v5857 = vadd.f32 %v5843, %v5856
    %5858 = vdwg.mxu0
    %5859 = vmatpush.bf16.msra.mxu0 %v4686
    %5860 = vmatpush.bf16.msra.mxu0 %v4678
    %5861 = vmatpush.bf16.msra.mxu0 %v4670
    %5862 = vmatpush.bf16.msra.mxu0 %v4662
    %5863 = vmatpush.bf16.msra.mxu0 %v4654
    %5864 = vmatpush.bf16.msra.mxu0 %v4646
    %5865 = vmatpush.bf16.msra.mxu0 %v4638
    %5866 = vmatpush.bf16.msra.mxu0 %v4630
    %5867 = vmatmul.bf16.gmra.mxu0 %v2623
    %v5868 = vpop.f32.mrf.mxu0
    %v5869 = vadd.f32 %v5855, %v5868
    %v5870 = vpop.f32.mrf.mxu0
    %v5871 = vadd.f32 %v5857, %v5870
    %5872 = vdwg.mxu0
    %5873 = vmatpush.bf16.msra.mxu0 %v4239
    %5874 = vmatpush.bf16.msra.mxu0 %v4231
    %5875 = vmatpush.bf16.msra.mxu0 %v4223
    %5876 = vmatpush.bf16.msra.mxu0 %v4215
    %5877 = vmatpush.bf16.msra.mxu0 %v4207
    %5878 = vmatpush.bf16.msra.mxu0 %v4199
    %5879 = vmatpush.bf16.msra.mxu0 %v4191
    %5880 = vmatpush.bf16.msra.mxu0 %v4183
    %5881 = vmatmul.bf16.gmra.mxu0 %v2616
    %v5882 = vpop.f32.mrf.mxu0
    %v5883 = vadd.f32 %v2631, %v5882
    %v5884 = vpop.f32.mrf.mxu0
    %v5885 = vadd.f32 %v2631, %v5884
    %5886 = vdwg.mxu0
    %5887 = vmatpush.bf16.msra.mxu0 %v4303
    %5888 = vmatpush.bf16.msra.mxu0 %v4295
    %5889 = vmatpush.bf16.msra.mxu0 %v4287
    %5890 = vmatpush.bf16.msra.mxu0 %v4279
    %5891 = vmatpush.bf16.msra.mxu0 %v4271
    %5892 = vmatpush.bf16.msra.mxu0 %v4263
    %5893 = vmatpush.bf16.msra.mxu0 %v4255
    %5894 = vmatpush.bf16.msra.mxu0 %v4247
    %5895 = vmatmul.bf16.gmra.mxu0 %v2617
    %v5896 = vpop.f32.mrf.mxu0
    %v5897 = vadd.f32 %v5883, %v5896
    %v5898 = vpop.f32.mrf.mxu0
    %v5899 = vadd.f32 %v5885, %v5898
    %5900 = vdwg.mxu0
    %5901 = vmatpush.bf16.msra.mxu0 %v4367
    %5902 = vmatpush.bf16.msra.mxu0 %v4359
    %5903 = vmatpush.bf16.msra.mxu0 %v4351
    %5904 = vmatpush.bf16.msra.mxu0 %v4343
    %5905 = vmatpush.bf16.msra.mxu0 %v4335
    %5906 = vmatpush.bf16.msra.mxu0 %v4327
    %5907 = vmatpush.bf16.msra.mxu0 %v4319
    %5908 = vmatpush.bf16.msra.mxu0 %v4311
    %5909 = vmatmul.bf16.gmra.mxu0 %v2618
    %v5910 = vpop.f32.mrf.mxu0
    %v5911 = vadd.f32 %v5897, %v5910
    %v5912 = vpop.f32.mrf.mxu0
    %v5913 = vadd.f32 %v5899, %v5912
    %5914 = vdwg.mxu0
    %5915 = vmatpush.bf16.msra.mxu0 %v4431
    %5916 = vmatpush.bf16.msra.mxu0 %v4423
    %5917 = vmatpush.bf16.msra.mxu0 %v4415
    %5918 = vmatpush.bf16.msra.mxu0 %v4407
    %5919 = vmatpush.bf16.msra.mxu0 %v4399
    %5920 = vmatpush.bf16.msra.mxu0 %v4391
    %5921 = vmatpush.bf16.msra.mxu0 %v4383
    %5922 = vmatpush.bf16.msra.mxu0 %v4375
    %5923 = vmatmul.bf16.gmra.mxu0 %v2619
    %v5924 = vpop.f32.mrf.mxu0
    %v5925 = vadd.f32 %v5911, %v5924
    %v5926 = vpop.f32.mrf.mxu0
    %v5927 = vadd.f32 %v5913, %v5926
    %5928 = vdwg.mxu0
    %5929 = vmatpush.bf16.msra.mxu0 %v4495
    %5930 = vmatpush.bf16.msra.mxu0 %v4487
    %5931 = vmatpush.bf16.msra.mxu0 %v4479
    %5932 = vmatpush.bf16.msra.mxu0 %v4471
    %5933 = vmatpush.bf16.msra.mxu0 %v4463
    %5934 = vmatpush.bf16.msra.mxu0 %v4455
    %5935 = vmatpush.bf16.msra.mxu0 %v4447
    %5936 = vmatpush.bf16.msra.mxu0 %v4439
    %5937 = vmatmul.bf16.gmra.mxu0 %v2620
    %v5938 = vpop.f32.mrf.mxu0
    %v5939 = vadd.f32 %v5925, %v5938
    %v5940 = vpop.f32.mrf.mxu0
    %v5941 = vadd.f32 %v5927, %v5940
    %5942 = vdwg.mxu0
    %5943 = vmatpush.bf16.msra.mxu0 %v4559
    %5944 = vmatpush.bf16.msra.mxu0 %v4551
    %5945 = vmatpush.bf16.msra.mxu0 %v4543
    %5946 = vmatpush.bf16.msra.mxu0 %v4535
    %5947 = vmatpush.bf16.msra.mxu0 %v4527
    %5948 = vmatpush.bf16.msra.mxu0 %v4519
    %5949 = vmatpush.bf16.msra.mxu0 %v4511
    %5950 = vmatpush.bf16.msra.mxu0 %v4503
    %5951 = vmatmul.bf16.gmra.mxu0 %v2621
    %v5952 = vpop.f32.mrf.mxu0
    %v5953 = vadd.f32 %v5939, %v5952
    %v5954 = vpop.f32.mrf.mxu0
    %v5955 = vadd.f32 %v5941, %v5954
    %5956 = vdwg.mxu0
    %5957 = vmatpush.bf16.msra.mxu0 %v4623
    %5958 = vmatpush.bf16.msra.mxu0 %v4615
    %5959 = vmatpush.bf16.msra.mxu0 %v4607
    %5960 = vmatpush.bf16.msra.mxu0 %v4599
    %5961 = vmatpush.bf16.msra.mxu0 %v4591
    %5962 = vmatpush.bf16.msra.mxu0 %v4583
    %5963 = vmatpush.bf16.msra.mxu0 %v4575
    %5964 = vmatpush.bf16.msra.mxu0 %v4567
    %5965 = vmatmul.bf16.gmra.mxu0 %v2622
    %v5966 = vpop.f32.mrf.mxu0
    %v5967 = vadd.f32 %v5953, %v5966
    %v5968 = vpop.f32.mrf.mxu0
    %v5969 = vadd.f32 %v5955, %v5968
    %5970 = vdwg.mxu0
    %5971 = vmatpush.bf16.msra.mxu0 %v4687
    %5972 = vmatpush.bf16.msra.mxu0 %v4679
    %5973 = vmatpush.bf16.msra.mxu0 %v4671
    %5974 = vmatpush.bf16.msra.mxu0 %v4663
    %5975 = vmatpush.bf16.msra.mxu0 %v4655
    %5976 = vmatpush.bf16.msra.mxu0 %v4647
    %5977 = vmatpush.bf16.msra.mxu0 %v4639
    %5978 = vmatpush.bf16.msra.mxu0 %v4631
    %5979 = vmatmul.bf16.gmra.mxu0 %v2623
    %v5980 = vpop.f32.mrf.mxu0
    %v5981 = vadd.f32 %v5967, %v5980
    %v5982 = vpop.f32.mrf.mxu0
    %v5983 = vadd.f32 %v5969, %v5982
    %5984 = vdwg.mxu0
    %5985 = vmatpush.bf16.msra.mxu0 %v4240
    %5986 = vmatpush.bf16.msra.mxu0 %v4232
    %5987 = vmatpush.bf16.msra.mxu0 %v4224
    %5988 = vmatpush.bf16.msra.mxu0 %v4216
    %5989 = vmatpush.bf16.msra.mxu0 %v4208
    %5990 = vmatpush.bf16.msra.mxu0 %v4200
    %5991 = vmatpush.bf16.msra.mxu0 %v4192
    %5992 = vmatpush.bf16.msra.mxu0 %v4184
    %5993 = vmatmul.bf16.gmra.mxu0 %v2616
    %v5994 = vpop.f32.mrf.mxu0
    %v5995 = vadd.f32 %v2632, %v5994
    %v5996 = vpop.f32.mrf.mxu0
    %v5997 = vadd.f32 %v2632, %v5996
    %5998 = vdwg.mxu0
    %5999 = vmatpush.bf16.msra.mxu0 %v4304
    %6000 = vmatpush.bf16.msra.mxu0 %v4296
    %6001 = vmatpush.bf16.msra.mxu0 %v4288
    %6002 = vmatpush.bf16.msra.mxu0 %v4280
    %6003 = vmatpush.bf16.msra.mxu0 %v4272
    %6004 = vmatpush.bf16.msra.mxu0 %v4264
    %6005 = vmatpush.bf16.msra.mxu0 %v4256
    %6006 = vmatpush.bf16.msra.mxu0 %v4248
    %6007 = vmatmul.bf16.gmra.mxu0 %v2617
    %v6008 = vpop.f32.mrf.mxu0
    %v6009 = vadd.f32 %v5995, %v6008
    %v6010 = vpop.f32.mrf.mxu0
    %v6011 = vadd.f32 %v5997, %v6010
    %6012 = vdwg.mxu0
    %6013 = vmatpush.bf16.msra.mxu0 %v4368
    %6014 = vmatpush.bf16.msra.mxu0 %v4360
    %6015 = vmatpush.bf16.msra.mxu0 %v4352
    %6016 = vmatpush.bf16.msra.mxu0 %v4344
    %6017 = vmatpush.bf16.msra.mxu0 %v4336
    %6018 = vmatpush.bf16.msra.mxu0 %v4328
    %6019 = vmatpush.bf16.msra.mxu0 %v4320
    %6020 = vmatpush.bf16.msra.mxu0 %v4312
    %6021 = vmatmul.bf16.gmra.mxu0 %v2618
    %v6022 = vpop.f32.mrf.mxu0
    %v6023 = vadd.f32 %v6009, %v6022
    %v6024 = vpop.f32.mrf.mxu0
    %v6025 = vadd.f32 %v6011, %v6024
    %6026 = vdwg.mxu0
    %6027 = vmatpush.bf16.msra.mxu0 %v4432
    %6028 = vmatpush.bf16.msra.mxu0 %v4424
    %6029 = vmatpush.bf16.msra.mxu0 %v4416
    %6030 = vmatpush.bf16.msra.mxu0 %v4408
    %6031 = vmatpush.bf16.msra.mxu0 %v4400
    %6032 = vmatpush.bf16.msra.mxu0 %v4392
    %6033 = vmatpush.bf16.msra.mxu0 %v4384
    %6034 = vmatpush.bf16.msra.mxu0 %v4376
    %6035 = vmatmul.bf16.gmra.mxu0 %v2619
    %v6036 = vpop.f32.mrf.mxu0
    %v6037 = vadd.f32 %v6023, %v6036
    %v6038 = vpop.f32.mrf.mxu0
    %v6039 = vadd.f32 %v6025, %v6038
    %6040 = vdwg.mxu0
    %6041 = vmatpush.bf16.msra.mxu0 %v4496
    %6042 = vmatpush.bf16.msra.mxu0 %v4488
    %6043 = vmatpush.bf16.msra.mxu0 %v4480
    %6044 = vmatpush.bf16.msra.mxu0 %v4472
    %6045 = vmatpush.bf16.msra.mxu0 %v4464
    %6046 = vmatpush.bf16.msra.mxu0 %v4456
    %6047 = vmatpush.bf16.msra.mxu0 %v4448
    %6048 = vmatpush.bf16.msra.mxu0 %v4440
    %6049 = vmatmul.bf16.gmra.mxu0 %v2620
    %v6050 = vpop.f32.mrf.mxu0
    %v6051 = vadd.f32 %v6037, %v6050
    %v6052 = vpop.f32.mrf.mxu0
    %v6053 = vadd.f32 %v6039, %v6052
    %6054 = vdwg.mxu0
    %6055 = vmatpush.bf16.msra.mxu0 %v4560
    %6056 = vmatpush.bf16.msra.mxu0 %v4552
    %6057 = vmatpush.bf16.msra.mxu0 %v4544
    %6058 = vmatpush.bf16.msra.mxu0 %v4536
    %6059 = vmatpush.bf16.msra.mxu0 %v4528
    %6060 = vmatpush.bf16.msra.mxu0 %v4520
    %6061 = vmatpush.bf16.msra.mxu0 %v4512
    %6062 = vmatpush.bf16.msra.mxu0 %v4504
    %6063 = vmatmul.bf16.gmra.mxu0 %v2621
    %v6064 = vpop.f32.mrf.mxu0
    %v6065 = vadd.f32 %v6051, %v6064
    %v6066 = vpop.f32.mrf.mxu0
    %v6067 = vadd.f32 %v6053, %v6066
    %6068 = vdwg.mxu0
    %6069 = vmatpush.bf16.msra.mxu0 %v4624
    %6070 = vmatpush.bf16.msra.mxu0 %v4616
    %6071 = vmatpush.bf16.msra.mxu0 %v4608
    %6072 = vmatpush.bf16.msra.mxu0 %v4600
    %6073 = vmatpush.bf16.msra.mxu0 %v4592
    %6074 = vmatpush.bf16.msra.mxu0 %v4584
    %6075 = vmatpush.bf16.msra.mxu0 %v4576
    %6076 = vmatpush.bf16.msra.mxu0 %v4568
    %6077 = vmatmul.bf16.gmra.mxu0 %v2622
    %v6078 = vpop.f32.mrf.mxu0
    %v6079 = vadd.f32 %v6065, %v6078
    %v6080 = vpop.f32.mrf.mxu0
    %v6081 = vadd.f32 %v6067, %v6080
    %6082 = vdwg.mxu0
    %6083 = vmatpush.bf16.msra.mxu0 %v4688
    %6084 = vmatpush.bf16.msra.mxu0 %v4680
    %6085 = vmatpush.bf16.msra.mxu0 %v4672
    %6086 = vmatpush.bf16.msra.mxu0 %v4664
    %6087 = vmatpush.bf16.msra.mxu0 %v4656
    %6088 = vmatpush.bf16.msra.mxu0 %v4648
    %6089 = vmatpush.bf16.msra.mxu0 %v4640
    %6090 = vmatpush.bf16.msra.mxu0 %v4632
    %6091 = vmatmul.bf16.gmra.mxu0 %v2623
    %v6092 = vpop.f32.mrf.mxu0
    %v6093 = vadd.f32 %v6079, %v6092
    %v6094 = vpop.f32.mrf.mxu0
    %v6095 = vadd.f32 %v6081, %v6094
    %6096 = vdwg.mxu0
    %vm6097 = vcmp.gt.f32.partialorder %v5309, 0.0
    %vm6098 = vcmp.gt.f32.partialorder %v5421, 0.0
    %vm6099 = vcmp.gt.f32.partialorder %v5533, 0.0
    %vm6100 = vcmp.gt.f32.partialorder %v5645, 0.0
    %vm6101 = vcmp.gt.f32.partialorder %v5757, 0.0
    %vm6102 = vcmp.gt.f32.partialorder %v5869, 0.0
    %vm6103 = vcmp.gt.f32.partialorder %v5981, 0.0
    %vm6104 = vcmp.gt.f32.partialorder %v6093, 0.0
    %vm6105 = vcmp.gt.f32.partialorder %v5311, 0.0
    %vm6106 = vcmp.gt.f32.partialorder %v5423, 0.0
    %vm6107 = vcmp.gt.f32.partialorder %v5535, 0.0
    %vm6108 = vcmp.gt.f32.partialorder %v5647, 0.0
    %vm6109 = vcmp.gt.f32.partialorder %v5759, 0.0
    %vm6110 = vcmp.gt.f32.partialorder %v5871, 0.0
    %vm6111 = vcmp.gt.f32.partialorder %v5983, 0.0
    %vm6112 = vcmp.gt.f32.partialorder %v6095, 0.0
    %v6113 = vmul.f32 %v5309, 0.01
    %v6114 = vmul.f32 %v5421, 0.01
    %v6115 = vmul.f32 %v5533, 0.01
    %v6116 = vmul.f32 %v5645, 0.01
    %v6117 = vmul.f32 %v5757, 0.01
    %v6118 = vmul.f32 %v5869, 0.01
    %v6119 = vmul.f32 %v5981, 0.01
    %v6120 = vmul.f32 %v6093, 0.01
    %v6121 = vmul.f32 %v5311, 0.01
    %v6122 = vmul.f32 %v5423, 0.01
    %v6123 = vmul.f32 %v5535, 0.01
    %v6124 = vmul.f32 %v5647, 0.01
    %v6125 = vmul.f32 %v5759, 0.01
    %v6126 = vmul.f32 %v5871, 0.01
    %v6127 = vmul.f32 %v5983, 0.01
    %v6128 = vmul.f32 %v6095, 0.01
    %v6129 = vsel %vm6097, %v5309, %v6113
    %v6130 = vsel %vm6098, %v5421, %v6114
    %v6131 = vsel %vm6099, %v5533, %v6115
    %v6132 = vsel %vm6100, %v5645, %v6116
    %v6133 = vsel %vm6101, %v5757, %v6117
    %v6134 = vsel %vm6102, %v5869, %v6118
    %v6135 = vsel %vm6103, %v5981, %v6119
    %v6136 = vsel %vm6104, %v6093, %v6120
    %v6137 = vsel %vm6105, %v5311, %v6121
    %v6138 = vsel %vm6106, %v5423, %v6122
    %v6139 = vsel %vm6107, %v5535, %v6123
    %v6140 = vsel %vm6108, %v5647, %v6124
    %v6141 = vsel %vm6109, %v5759, %v6125
    %v6142 = vsel %vm6110, %v5871, %v6126
    %v6143 = vsel %vm6111, %v5983, %v6127
    %v6144 = vsel %vm6112, %v6095, %v6128
    %v6145 = vpack.c.bf16 %v6137, %v6129
    %v6146 = vpack.c.bf16 %v6138, %v6130
    %v6147 = vpack.c.bf16 %v6139, %v6131
    %v6148 = vpack.c.bf16 %v6140, %v6132
    %v6149 = vpack.c.bf16 %v6141, %v6133
    %v6150 = vpack.c.bf16 %v6142, %v6134
    %v6151 = vpack.c.bf16 %v6143, %v6135
    %v6152 = vpack.c.bf16 %v6144, %v6136
    %v6154 = vperm.slane %v671, 0
    %v6284 = vunpack.c.l.b16 %v543
    %v6285 = vunpack.c.l.b16 %v544
    %v6286 = vunpack.c.l.b16 %v545
    %v6287 = vunpack.c.l.b16 %v546
    %v6288 = vunpack.c.l.b16 %v547
    %v6289 = vunpack.c.l.b16 %v548
    %v6290 = vunpack.c.l.b16 %v549
    %v6291 = vunpack.c.l.b16 %v550
    %v6292 = vunpack.c.l.b16 %v551
    %v6293 = vunpack.c.l.b16 %v552
    %v6294 = vunpack.c.l.b16 %v553
    %v6295 = vunpack.c.l.b16 %v554
    %v6296 = vunpack.c.l.b16 %v555
    %v6297 = vunpack.c.l.b16 %v556
    %v6298 = vunpack.c.l.b16 %v557
    %v6299 = vunpack.c.l.b16 %v558
    %v6300 = vunpack.c.l.b16 %v559
    %v6301 = vunpack.c.l.b16 %v560
    %v6302 = vunpack.c.l.b16 %v561
    %v6303 = vunpack.c.l.b16 %v562
    %v6304 = vunpack.c.l.b16 %v563
    %v6305 = vunpack.c.l.b16 %v564
    %v6306 = vunpack.c.l.b16 %v565
    %v6307 = vunpack.c.l.b16 %v566
    %v6308 = vunpack.c.l.b16 %v567
    %v6309 = vunpack.c.l.b16 %v568
    %v6310 = vunpack.c.l.b16 %v569
    %v6311 = vunpack.c.l.b16 %v570
    %v6312 = vunpack.c.l.b16 %v571
    %v6313 = vunpack.c.l.b16 %v572
    %v6314 = vunpack.c.l.b16 %v573
    %v6315 = vunpack.c.l.b16 %v574
    %v6316 = vunpack.c.l.b16 %v575
    %v6317 = vunpack.c.l.b16 %v576
    %v6318 = vunpack.c.l.b16 %v577
    %v6319 = vunpack.c.l.b16 %v578
    %v6320 = vunpack.c.l.b16 %v579
    %v6321 = vunpack.c.l.b16 %v580
    %v6322 = vunpack.c.l.b16 %v581
    %v6323 = vunpack.c.l.b16 %v582
    %v6324 = vunpack.c.l.b16 %v583
    %v6325 = vunpack.c.l.b16 %v584
    %v6326 = vunpack.c.l.b16 %v585
    %v6327 = vunpack.c.l.b16 %v586
    %v6328 = vunpack.c.l.b16 %v587
    %v6329 = vunpack.c.l.b16 %v588
    %v6330 = vunpack.c.l.b16 %v589
    %v6331 = vunpack.c.l.b16 %v590
    %v6332 = vunpack.c.l.b16 %v591
    %v6333 = vunpack.c.l.b16 %v592
    %v6334 = vunpack.c.l.b16 %v593
    %v6335 = vunpack.c.l.b16 %v594
    %v6336 = vunpack.c.l.b16 %v595
    %v6337 = vunpack.c.l.b16 %v596
    %v6338 = vunpack.c.l.b16 %v597
    %v6339 = vunpack.c.l.b16 %v598
    %v6340 = vunpack.c.l.b16 %v599
    %v6341 = vunpack.c.l.b16 %v600
    %v6342 = vunpack.c.l.b16 %v601
    %v6343 = vunpack.c.l.b16 %v602
    %v6344 = vunpack.c.l.b16 %v603
    %v6345 = vunpack.c.l.b16 %v604
    %v6346 = vunpack.c.l.b16 %v605
    %v6347 = vunpack.c.l.b16 %v606
    %v6348 = vunpack.c.l.b16 %v607
    %v6349 = vunpack.c.l.b16 %v608
    %v6350 = vunpack.c.l.b16 %v609
    %v6351 = vunpack.c.l.b16 %v610
    %v6352 = vunpack.c.l.b16 %v611
    %v6353 = vunpack.c.l.b16 %v612
    %v6354 = vunpack.c.l.b16 %v613
    %v6355 = vunpack.c.l.b16 %v614
    %v6356 = vunpack.c.l.b16 %v615
    %v6357 = vunpack.c.l.b16 %v616
    %v6358 = vunpack.c.l.b16 %v617
    %v6359 = vunpack.c.l.b16 %v618
    %v6360 = vunpack.c.l.b16 %v619
    %v6361 = vunpack.c.l.b16 %v620
    %v6362 = vunpack.c.l.b16 %v621
    %v6363 = vunpack.c.l.b16 %v622
    %v6364 = vunpack.c.l.b16 %v623
    %v6365 = vunpack.c.l.b16 %v624
    %v6366 = vunpack.c.l.b16 %v625
    %v6367 = vunpack.c.l.b16 %v626
    %v6368 = vunpack.c.l.b16 %v627
    %v6369 = vunpack.c.l.b16 %v628
    %v6370 = vunpack.c.l.b16 %v629
    %v6371 = vunpack.c.l.b16 %v630
    %v6372 = vunpack.c.l.b16 %v631
    %v6373 = vunpack.c.l.b16 %v632
    %v6374 = vunpack.c.l.b16 %v633
    %v6375 = vunpack.c.l.b16 %v634
    %v6376 = vunpack.c.l.b16 %v635
    %v6377 = vunpack.c.l.b16 %v636
    %v6378 = vunpack.c.l.b16 %v637
    %v6379 = vunpack.c.l.b16 %v638
    %v6380 = vunpack.c.l.b16 %v639
    %v6381 = vunpack.c.l.b16 %v640
    %v6382 = vunpack.c.l.b16 %v641
    %v6383 = vunpack.c.l.b16 %v642
    %v6384 = vunpack.c.l.b16 %v643
    %v6385 = vunpack.c.l.b16 %v644
    %v6386 = vunpack.c.l.b16 %v645
    %v6387 = vunpack.c.l.b16 %v646
    %v6388 = vunpack.c.l.b16 %v647
    %v6389 = vunpack.c.l.b16 %v648
    %v6390 = vunpack.c.l.b16 %v649
    %v6391 = vunpack.c.l.b16 %v650
    %v6392 = vunpack.c.l.b16 %v651
    %v6393 = vunpack.c.l.b16 %v652
    %v6394 = vunpack.c.l.b16 %v653
    %v6395 = vunpack.c.l.b16 %v654
    %v6396 = vunpack.c.l.b16 %v655
    %v6397 = vunpack.c.l.b16 %v656
    %v6398 = vunpack.c.l.b16 %v657
    %v6399 = vunpack.c.l.b16 %v658
    %v6400 = vunpack.c.l.b16 %v659
    %v6401 = vunpack.c.l.b16 %v660
    %v6402 = vunpack.c.l.b16 %v661
    %v6403 = vunpack.c.l.b16 %v662
    %v6404 = vunpack.c.l.b16 %v663
    %v6405 = vunpack.c.l.b16 %v664
    %v6406 = vunpack.c.l.b16 %v665
    %v6407 = vunpack.c.l.b16 %v666
    %v6408 = vunpack.c.l.b16 %v667
    %v6409 = vunpack.c.l.b16 %v668
    %v6410 = vunpack.c.l.b16 %v669
    %v6411 = vunpack.c.l.b16 %v670
    %v6412 = vpack.c.b16 %v6285, %v6284
    %v6413 = vpack.c.b16 %v6287, %v6286
    %v6414 = vpack.c.b16 %v6289, %v6288
    %v6415 = vpack.c.b16 %v6291, %v6290
    %v6416 = vpack.c.b16 %v6293, %v6292
    %v6417 = vpack.c.b16 %v6295, %v6294
    %v6418 = vpack.c.b16 %v6297, %v6296
    %v6419 = vpack.c.b16 %v6299, %v6298
    %v6420 = vpack.c.b16 %v6301, %v6300
    %v6421 = vpack.c.b16 %v6303, %v6302
    %v6422 = vpack.c.b16 %v6305, %v6304
    %v6423 = vpack.c.b16 %v6307, %v6306
    %v6424 = vpack.c.b16 %v6309, %v6308
    %v6425 = vpack.c.b16 %v6311, %v6310
    %v6426 = vpack.c.b16 %v6313, %v6312
    %v6427 = vpack.c.b16 %v6315, %v6314
    %v6428 = vpack.c.b16 %v6317, %v6316
    %v6429 = vpack.c.b16 %v6319, %v6318
    %v6430 = vpack.c.b16 %v6321, %v6320
    %v6431 = vpack.c.b16 %v6323, %v6322
    %v6432 = vpack.c.b16 %v6325, %v6324
    %v6433 = vpack.c.b16 %v6327, %v6326
    %v6434 = vpack.c.b16 %v6329, %v6328
    %v6435 = vpack.c.b16 %v6331, %v6330
    %v6436 = vpack.c.b16 %v6333, %v6332
    %v6437 = vpack.c.b16 %v6335, %v6334
    %v6438 = vpack.c.b16 %v6337, %v6336
    %v6439 = vpack.c.b16 %v6339, %v6338
    %v6440 = vpack.c.b16 %v6341, %v6340
    %v6441 = vpack.c.b16 %v6343, %v6342
    %v6442 = vpack.c.b16 %v6345, %v6344
    %v6443 = vpack.c.b16 %v6347, %v6346
    %v6444 = vpack.c.b16 %v6349, %v6348
    %v6445 = vpack.c.b16 %v6351, %v6350
    %v6446 = vpack.c.b16 %v6353, %v6352
    %v6447 = vpack.c.b16 %v6355, %v6354
    %v6448 = vpack.c.b16 %v6357, %v6356
    %v6449 = vpack.c.b16 %v6359, %v6358
    %v6450 = vpack.c.b16 %v6361, %v6360
    %v6451 = vpack.c.b16 %v6363, %v6362
    %v6452 = vpack.c.b16 %v6365, %v6364
    %v6453 = vpack.c.b16 %v6367, %v6366
    %v6454 = vpack.c.b16 %v6369, %v6368
    %v6455 = vpack.c.b16 %v6371, %v6370
    %v6456 = vpack.c.b16 %v6373, %v6372
    %v6457 = vpack.c.b16 %v6375, %v6374
    %v6458 = vpack.c.b16 %v6377, %v6376
    %v6459 = vpack.c.b16 %v6379, %v6378
    %v6460 = vpack.c.b16 %v6381, %v6380
    %v6461 = vpack.c.b16 %v6383, %v6382
    %v6462 = vpack.c.b16 %v6385, %v6384
    %v6463 = vpack.c.b16 %v6387, %v6386
    %v6464 = vpack.c.b16 %v6389, %v6388
    %v6465 = vpack.c.b16 %v6391, %v6390
    %v6466 = vpack.c.b16 %v6393, %v6392
    %v6467 = vpack.c.b16 %v6395, %v6394
    %v6468 = vpack.c.b16 %v6397, %v6396
    %v6469 = vpack.c.b16 %v6399, %v6398
    %v6470 = vpack.c.b16 %v6401, %v6400
    %v6471 = vpack.c.b16 %v6403, %v6402
    %v6472 = vpack.c.b16 %v6405, %v6404
    %v6473 = vpack.c.b16 %v6407, %v6406
    %v6474 = vpack.c.b16 %v6409, %v6408
    %v6475 = vpack.c.b16 %v6411, %v6410
    %6540 = vmatpush.bf16.msra.mxu0 %v6419
    %6541 = vmatpush.bf16.msra.mxu0 %v6418
    %6542 = vmatpush.bf16.msra.mxu0 %v6417
    %6543 = vmatpush.bf16.msra.mxu0 %v6416
    %6544 = vmatpush.bf16.msra.mxu0 %v6415
    %6545 = vmatpush.bf16.msra.mxu0 %v6414
    %6546 = vmatpush.bf16.msra.mxu0 %v6413
    %6547 = vmatpush.bf16.msra.mxu0 %v6412
    %6548 = vmatmul.bf16.gmra.mxu0 %v6145
    %v6549 = vpop.f32.mrf.mxu0
    %v6550 = vadd.f32 %v6154, %v6549
    %v6551 = vpop.f32.mrf.mxu0
    %v6552 = vadd.f32 %v6154, %v6551
    %6553 = vdwg.mxu0
    %6554 = vmatpush.bf16.msra.mxu0 %v6427
    %6555 = vmatpush.bf16.msra.mxu0 %v6426
    %6556 = vmatpush.bf16.msra.mxu0 %v6425
    %6557 = vmatpush.bf16.msra.mxu0 %v6424
    %6558 = vmatpush.bf16.msra.mxu0 %v6423
    %6559 = vmatpush.bf16.msra.mxu0 %v6422
    %6560 = vmatpush.bf16.msra.mxu0 %v6421
    %6561 = vmatpush.bf16.msra.mxu0 %v6420
    %6562 = vmatmul.bf16.gmra.mxu0 %v6146
    %v6563 = vpop.f32.mrf.mxu0
    %v6564 = vadd.f32 %v6550, %v6563
    %v6565 = vpop.f32.mrf.mxu0
    %v6566 = vadd.f32 %v6552, %v6565
    %6567 = vdwg.mxu0
    %6568 = vmatpush.bf16.msra.mxu0 %v6435
    %6569 = vmatpush.bf16.msra.mxu0 %v6434
    %6570 = vmatpush.bf16.msra.mxu0 %v6433
    %6571 = vmatpush.bf16.msra.mxu0 %v6432
    %6572 = vmatpush.bf16.msra.mxu0 %v6431
    %6573 = vmatpush.bf16.msra.mxu0 %v6430
    %6574 = vmatpush.bf16.msra.mxu0 %v6429
    %6575 = vmatpush.bf16.msra.mxu0 %v6428
    %6576 = vmatmul.bf16.gmra.mxu0 %v6147
    %v6577 = vpop.f32.mrf.mxu0
    %v6578 = vadd.f32 %v6564, %v6577
    %v6579 = vpop.f32.mrf.mxu0
    %v6580 = vadd.f32 %v6566, %v6579
    %6581 = vdwg.mxu0
    %6582 = vmatpush.bf16.msra.mxu0 %v6443
    %6583 = vmatpush.bf16.msra.mxu0 %v6442
    %6584 = vmatpush.bf16.msra.mxu0 %v6441
    %6585 = vmatpush.bf16.msra.mxu0 %v6440
    %6586 = vmatpush.bf16.msra.mxu0 %v6439
    %6587 = vmatpush.bf16.msra.mxu0 %v6438
    %6588 = vmatpush.bf16.msra.mxu0 %v6437
    %6589 = vmatpush.bf16.msra.mxu0 %v6436
    %6590 = vmatmul.bf16.gmra.mxu0 %v6148
    %v6591 = vpop.f32.mrf.mxu0
    %v6592 = vadd.f32 %v6578, %v6591
    %v6593 = vpop.f32.mrf.mxu0
    %v6594 = vadd.f32 %v6580, %v6593
    %6595 = vdwg.mxu0
    %6596 = vmatpush.bf16.msra.mxu0 %v6451
    %6597 = vmatpush.bf16.msra.mxu0 %v6450
    %6598 = vmatpush.bf16.msra.mxu0 %v6449
    %6599 = vmatpush.bf16.msra.mxu0 %v6448
    %6600 = vmatpush.bf16.msra.mxu0 %v6447
    %6601 = vmatpush.bf16.msra.mxu0 %v6446
    %6602 = vmatpush.bf16.msra.mxu0 %v6445
    %6603 = vmatpush.bf16.msra.mxu0 %v6444
    %6604 = vmatmul.bf16.gmra.mxu0 %v6149
    %v6605 = vpop.f32.mrf.mxu0
    %v6606 = vadd.f32 %v6592, %v6605
    %v6607 = vpop.f32.mrf.mxu0
    %v6608 = vadd.f32 %v6594, %v6607
    %6609 = vdwg.mxu0
    %6610 = vmatpush.bf16.msra.mxu0 %v6459
    %6611 = vmatpush.bf16.msra.mxu0 %v6458
    %6612 = vmatpush.bf16.msra.mxu0 %v6457
    %6613 = vmatpush.bf16.msra.mxu0 %v6456
    %6614 = vmatpush.bf16.msra.mxu0 %v6455
    %6615 = vmatpush.bf16.msra.mxu0 %v6454
    %6616 = vmatpush.bf16.msra.mxu0 %v6453
    %6617 = vmatpush.bf16.msra.mxu0 %v6452
    %6618 = vmatmul.bf16.gmra.mxu0 %v6150
    %v6619 = vpop.f32.mrf.mxu0
    %v6620 = vadd.f32 %v6606, %v6619
    %v6621 = vpop.f32.mrf.mxu0
    %v6622 = vadd.f32 %v6608, %v6621
    %6623 = vdwg.mxu0
    %6624 = vmatpush.bf16.msra.mxu0 %v6467
    %6625 = vmatpush.bf16.msra.mxu0 %v6466
    %6626 = vmatpush.bf16.msra.mxu0 %v6465
    %6627 = vmatpush.bf16.msra.mxu0 %v6464
    %6628 = vmatpush.bf16.msra.mxu0 %v6463
    %6629 = vmatpush.bf16.msra.mxu0 %v6462
    %6630 = vmatpush.bf16.msra.mxu0 %v6461
    %6631 = vmatpush.bf16.msra.mxu0 %v6460
    %6632 = vmatmul.bf16.gmra.mxu0 %v6151
    %v6633 = vpop.f32.mrf.mxu0
    %v6634 = vadd.f32 %v6620, %v6633
    %v6635 = vpop.f32.mrf.mxu0
    %v6636 = vadd.f32 %v6622, %v6635
    %6637 = vdwg.mxu0
    %6638 = vmatpush.bf16.msra.mxu0 %v6475
    %6639 = vmatpush.bf16.msra.mxu0 %v6474
    %6640 = vmatpush.bf16.msra.mxu0 %v6473
    %6641 = vmatpush.bf16.msra.mxu0 %v6472
    %6642 = vmatpush.bf16.msra.mxu0 %v6471
    %6643 = vmatpush.bf16.msra.mxu0 %v6470
    %6644 = vmatpush.bf16.msra.mxu0 %v6469
    %6645 = vmatpush.bf16.msra.mxu0 %v6468
    %6646 = vmatmul.bf16.gmra.mxu0 %v6152
    %v6647 = vpop.f32.mrf.mxu0
    %v6648 = vadd.f32 %v6634, %v6647
    %v6649 = vpop.f32.mrf.mxu0
    %v6650 = vadd.f32 %v6636, %v6649
    %6651 = vdwg.mxu0
    %v6652 = vlaneseq
    %v6653 = vand.u32 %v6652, 127
    %vm6654 = vcmp.lt.s32.totalorder %v6653, 32
    %v6655 = vtanh.pop %v6648
    %v6656 = vtanh.pop %v6650
    %v6657 = vsel %vm6654, %v6655, %v6648
    %v6658 = vsel %vm6654, %v6656, %v6650
    %v6659 = vpack.c.bf16 %v351, %v350
    %v6692 = vunpack.c.l.b16 %v688
    %v6693 = vunpack.c.h.b16 %v688
    %v6694 = vunpack.c.l.b16 %v689
    %v6695 = vunpack.c.h.b16 %v689
    %v6696 = vunpack.c.l.b16 %v690
    %v6697 = vunpack.c.h.b16 %v690
    %v6698 = vunpack.c.l.b16 %v691
    %v6699 = vunpack.c.h.b16 %v691
    %v6700 = vunpack.c.l.b16 %v692
    %v6701 = vunpack.c.h.b16 %v692
    %v6702 = vunpack.c.l.b16 %v693
    %v6703 = vunpack.c.h.b16 %v693
    %v6704 = vunpack.c.l.b16 %v694
    %v6705 = vunpack.c.h.b16 %v694
    %v6706 = vunpack.c.l.b16 %v695
    %v6707 = vunpack.c.h.b16 %v695
    %v6708 = vunpack.c.l.b16 %v696
    %v6709 = vunpack.c.h.b16 %v696
    %v6710 = vunpack.c.l.b16 %v697
    %v6711 = vunpack.c.h.b16 %v697
    %v6712 = vunpack.c.l.b16 %v698
    %v6713 = vunpack.c.h.b16 %v698
    %v6714 = vunpack.c.l.b16 %v699
    %v6715 = vunpack.c.h.b16 %v699
    %v6716 = vunpack.c.l.b16 %v700
    %v6717 = vunpack.c.h.b16 %v700
    %v6718 = vunpack.c.l.b16 %v701
    %v6719 = vunpack.c.h.b16 %v701
    %v6720 = vunpack.c.l.b16 %v702
    %v6721 = vunpack.c.h.b16 %v702
    %v6722 = vunpack.c.l.b16 %v703
    %v6723 = vunpack.c.h.b16 %v703
    %v6724 = vunpack.c.l.b16 %v704
    %v6725 = vunpack.c.h.b16 %v704
    %v6726 = vunpack.c.l.b16 %v705
    %v6727 = vunpack.c.h.b16 %v705
    %v6728 = vunpack.c.l.b16 %v706
    %v6729 = vunpack.c.h.b16 %v706
    %v6730 = vunpack.c.l.b16 %v707
    %v6731 = vunpack.c.h.b16 %v707
    %v6732 = vunpack.c.l.b16 %v708
    %v6733 = vunpack.c.h.b16 %v708
    %v6734 = vunpack.c.l.b16 %v709
    %v6735 = vunpack.c.h.b16 %v709
    %v6736 = vunpack.c.l.b16 %v710
    %v6737 = vunpack.c.h.b16 %v710
    %v6738 = vunpack.c.l.b16 %v711
    %v6739 = vunpack.c.h.b16 %v711
    %v6740 = vunpack.c.l.b16 %v712
    %v6741 = vunpack.c.h.b16 %v712
    %v6742 = vunpack.c.l.b16 %v713
    %v6743 = vunpack.c.h.b16 %v713
    %v6744 = vunpack.c.l.b16 %v714
    %v6745 = vunpack.c.h.b16 %v714
    %v6746 = vunpack.c.l.b16 %v715
    %v6747 = vunpack.c.h.b16 %v715
    %v6748 = vunpack.c.l.b16 %v716
    %v6749 = vunpack.c.h.b16 %v716
    %v6750 = vunpack.c.l.b16 %v717
    %v6751 = vunpack.c.h.b16 %v717
    %v6752 = vunpack.c.l.b16 %v718
    %v6753 = vunpack.c.h.b16 %v718
    %v6754 = vunpack.c.l.b16 %v719
    %v6755 = vunpack.c.h.b16 %v719
    %v6756 = vpack.c.b16 %v6700, %v6692
    %v6757 = vpack.c.b16 %v6701, %v6693
    %v6758 = vpack.c.b16 %v6702, %v6694
    %v6759 = vpack.c.b16 %v6703, %v6695
    %v6760 = vpack.c.b16 %v6704, %v6696
    %v6761 = vpack.c.b16 %v6705, %v6697
    %v6762 = vpack.c.b16 %v6706, %v6698
    %v6763 = vpack.c.b16 %v6707, %v6699
    %v6764 = vpack.c.b16 %v6716, %v6708
    %v6765 = vpack.c.b16 %v6717, %v6709
    %v6766 = vpack.c.b16 %v6718, %v6710
    %v6767 = vpack.c.b16 %v6719, %v6711
    %v6768 = vpack.c.b16 %v6720, %v6712
    %v6769 = vpack.c.b16 %v6721, %v6713
    %v6770 = vpack.c.b16 %v6722, %v6714
    %v6771 = vpack.c.b16 %v6723, %v6715
    %v6772 = vpack.c.b16 %v6732, %v6724
    %v6773 = vpack.c.b16 %v6733, %v6725
    %v6774 = vpack.c.b16 %v6734, %v6726
    %v6775 = vpack.c.b16 %v6735, %v6727
    %v6776 = vpack.c.b16 %v6736, %v6728
    %v6777 = vpack.c.b16 %v6737, %v6729
    %v6778 = vpack.c.b16 %v6738, %v6730
    %v6779 = vpack.c.b16 %v6739, %v6731
    %v6780 = vpack.c.b16 %v6748, %v6740
    %v6781 = vpack.c.b16 %v6749, %v6741
    %v6782 = vpack.c.b16 %v6750, %v6742
    %v6783 = vpack.c.b16 %v6751, %v6743
    %v6784 = vpack.c.b16 %v6752, %v6744
    %v6785 = vpack.c.b16 %v6753, %v6745
    %v6786 = vpack.c.b16 %v6754, %v6746
    %v6787 = vpack.c.b16 %v6755, %v6747
    %vm6820 = vcmask 523264
    %v6822 = vsel %vm6820, %v6659, 0
    %6824 = vmatpush.bf16.msra.mxu0 0
    %6825 = vmatpush.bf16.msra.mxu0 0
    %6826 = vmatpush.bf16.msra.mxu0 0
    %6827 = vmatpush.bf16.msra.mxu0 0
    %6828 = vmatpush.bf16.msra.mxu0 %v6780
    %6829 = vmatpush.bf16.msra.mxu0 %v6772
    %6830 = vmatpush.bf16.msra.mxu0 %v6764
    %6831 = vmatpush.bf16.msra.mxu0 %v6756
    %6832 = vmatmul.bf16.gmra.mxu0 %v6822
    %v6833 = vpop.f32.mrf.mxu0
    %v6834 = vadd.f32 0.0, %v6833
    %v6835 = vpop.f32.mrf.mxu0
    %v6836 = vadd.f32 0.0, %v6835
    %6837 = vdwg.mxu0
    %6838 = vmatpush.bf16.msra.mxu0 0
    %6839 = vmatpush.bf16.msra.mxu0 0
    %6840 = vmatpush.bf16.msra.mxu0 0
    %6841 = vmatpush.bf16.msra.mxu0 0
    %6842 = vmatpush.bf16.msra.mxu0 %v6781
    %6843 = vmatpush.bf16.msra.mxu0 %v6773
    %6844 = vmatpush.bf16.msra.mxu0 %v6765
    %6845 = vmatpush.bf16.msra.mxu0 %v6757
    %6846 = vmatmul.bf16.gmra.mxu0 %v6822
    %v6847 = vpop.f32.mrf.mxu0
    %v6848 = vadd.f32 0.0, %v6847
    %v6849 = vpop.f32.mrf.mxu0
    %v6850 = vadd.f32 0.0, %v6849
    %6851 = vdwg.mxu0
    %6852 = vmatpush.bf16.msra.mxu0 0
    %6853 = vmatpush.bf16.msra.mxu0 0
    %6854 = vmatpush.bf16.msra.mxu0 0
    %6855 = vmatpush.bf16.msra.mxu0 0
    %6856 = vmatpush.bf16.msra.mxu0 %v6782
    %6857 = vmatpush.bf16.msra.mxu0 %v6774
    %6858 = vmatpush.bf16.msra.mxu0 %v6766
    %6859 = vmatpush.bf16.msra.mxu0 %v6758
    %6860 = vmatmul.bf16.gmra.mxu0 %v6822
    %v6861 = vpop.f32.mrf.mxu0
    %v6862 = vadd.f32 0.0, %v6861
    %v6863 = vpop.f32.mrf.mxu0
    %v6864 = vadd.f32 0.0, %v6863
    %6865 = vdwg.mxu0
    %6866 = vmatpush.bf16.msra.mxu0 0
    %6867 = vmatpush.bf16.msra.mxu0 0
    %6868 = vmatpush.bf16.msra.mxu0 0
    %6869 = vmatpush.bf16.msra.mxu0 0
    %6870 = vmatpush.bf16.msra.mxu0 %v6783
    %6871 = vmatpush.bf16.msra.mxu0 %v6775
    %6872 = vmatpush.bf16.msra.mxu0 %v6767
    %6873 = vmatpush.bf16.msra.mxu0 %v6759
    %6874 = vmatmul.bf16.gmra.mxu0 %v6822
    %v6875 = vpop.f32.mrf.mxu0
    %v6876 = vadd.f32 0.0, %v6875
    %v6877 = vpop.f32.mrf.mxu0
    %v6878 = vadd.f32 0.0, %v6877
    %6879 = vdwg.mxu0
    %6880 = vmatpush.bf16.msra.mxu0 0
    %6881 = vmatpush.bf16.msra.mxu0 0
    %6882 = vmatpush.bf16.msra.mxu0 0
    %6883 = vmatpush.bf16.msra.mxu0 0
    %6884 = vmatpush.bf16.msra.mxu0 %v6784
    %6885 = vmatpush.bf16.msra.mxu0 %v6776
    %6886 = vmatpush.bf16.msra.mxu0 %v6768
    %6887 = vmatpush.bf16.msra.mxu0 %v6760
    %6888 = vmatmul.bf16.gmra.mxu0 %v6822
    %v6889 = vpop.f32.mrf.mxu0
    %v6890 = vadd.f32 0.0, %v6889
    %v6891 = vpop.f32.mrf.mxu0
    %v6892 = vadd.f32 0.0, %v6891
    %6893 = vdwg.mxu0
    %6894 = vmatpush.bf16.msra.mxu0 0
    %6895 = vmatpush.bf16.msra.mxu0 0
    %6896 = vmatpush.bf16.msra.mxu0 0
    %6897 = vmatpush.bf16.msra.mxu0 0
    %6898 = vmatpush.bf16.msra.mxu0 %v6785
    %6899 = vmatpush.bf16.msra.mxu0 %v6777
    %6900 = vmatpush.bf16.msra.mxu0 %v6769
    %6901 = vmatpush.bf16.msra.mxu0 %v6761
    %6902 = vmatmul.bf16.gmra.mxu0 %v6822
    %v6903 = vpop.f32.mrf.mxu0
    %v6904 = vadd.f32 0.0, %v6903
    %v6905 = vpop.f32.mrf.mxu0
    %v6906 = vadd.f32 0.0, %v6905
    %6907 = vdwg.mxu0
    %6908 = vmatpush.bf16.msra.mxu0 0
    %6909 = vmatpush.bf16.msra.mxu0 0
    %6910 = vmatpush.bf16.msra.mxu0 0
    %6911 = vmatpush.bf16.msra.mxu0 0
    %6912 = vmatpush.bf16.msra.mxu0 %v6786
    %6913 = vmatpush.bf16.msra.mxu0 %v6778
    %6914 = vmatpush.bf16.msra.mxu0 %v6770
    %6915 = vmatpush.bf16.msra.mxu0 %v6762
    %6916 = vmatmul.bf16.gmra.mxu0 %v6822
    %v6917 = vpop.f32.mrf.mxu0
    %v6918 = vadd.f32 0.0, %v6917
    %v6919 = vpop.f32.mrf.mxu0
    %v6920 = vadd.f32 0.0, %v6919
    %6921 = vdwg.mxu0
    %6922 = vmatpush.bf16.msra.mxu0 0
    %6923 = vmatpush.bf16.msra.mxu0 0
    %6924 = vmatpush.bf16.msra.mxu0 0
    %6925 = vmatpush.bf16.msra.mxu0 0
    %6926 = vmatpush.bf16.msra.mxu0 %v6787
    %6927 = vmatpush.bf16.msra.mxu0 %v6779
    %6928 = vmatpush.bf16.msra.mxu0 %v6771
    %6929 = vmatpush.bf16.msra.mxu0 %v6763
    %6930 = vmatmul.bf16.gmra.mxu0 %v6822
    %v6931 = vpop.f32.mrf.mxu0
    %v6932 = vadd.f32 0.0, %v6931
    %v6933 = vpop.f32.mrf.mxu0
    %v6934 = vadd.f32 0.0, %v6933
    %6935 = vdwg.mxu0
    %v6952 = vunpack.c.l.b16 %v672
    %v6953 = vunpack.c.h.b16 %v672
    %v6954 = vunpack.c.l.b16 %v673
    %v6955 = vunpack.c.h.b16 %v673
    %v6956 = vunpack.c.l.b16 %v674
    %v6957 = vunpack.c.h.b16 %v674
    %v6958 = vunpack.c.l.b16 %v675
    %v6959 = vunpack.c.h.b16 %v675
    %v6960 = vunpack.c.l.b16 %v676
    %v6961 = vunpack.c.h.b16 %v676
    %v6962 = vunpack.c.l.b16 %v677
    %v6963 = vunpack.c.h.b16 %v677
    %v6964 = vunpack.c.l.b16 %v678
    %v6965 = vunpack.c.h.b16 %v678
    %v6966 = vunpack.c.l.b16 %v679
    %v6967 = vunpack.c.h.b16 %v679
    %v6968 = vunpack.c.l.b16 %v680
    %v6969 = vunpack.c.h.b16 %v680
    %v6970 = vunpack.c.l.b16 %v681
    %v6971 = vunpack.c.h.b16 %v681
    %v6972 = vunpack.c.l.b16 %v682
    %v6973 = vunpack.c.h.b16 %v682
    %v6974 = vunpack.c.l.b16 %v683
    %v6975 = vunpack.c.h.b16 %v683
    %v6976 = vunpack.c.l.b16 %v684
    %v6977 = vunpack.c.h.b16 %v684
    %v6978 = vunpack.c.l.b16 %v685
    %v6979 = vunpack.c.h.b16 %v685
    %v6980 = vunpack.c.l.b16 %v686
    %v6981 = vunpack.c.h.b16 %v686
    %v6982 = vunpack.c.l.b16 %v687
    %v6983 = vunpack.c.h.b16 %v687
    %v6984 = vpack.c.b16 %v6960, %v6952
    %v6985 = vpack.c.b16 %v6961, %v6953
    %v6986 = vpack.c.b16 %v6962, %v6954
    %v6987 = vpack.c.b16 %v6963, %v6955
    %v6988 = vpack.c.b16 %v6964, %v6956
    %v6989 = vpack.c.b16 %v6965, %v6957
    %v6990 = vpack.c.b16 %v6966, %v6958
    %v6991 = vpack.c.b16 %v6967, %v6959
    %v6992 = vpack.c.b16 %v6976, %v6968
    %v6993 = vpack.c.b16 %v6977, %v6969
    %v6994 = vpack.c.b16 %v6978, %v6970
    %v6995 = vpack.c.b16 %v6979, %v6971
    %v6996 = vpack.c.b16 %v6980, %v6972
    %v6997 = vpack.c.b16 %v6981, %v6973
    %v6998 = vpack.c.b16 %v6982, %v6974
    %v6999 = vpack.c.b16 %v6983, %v6975
    %7016 = vmatpush.bf16.msra.mxu0 0
    %7017 = vmatpush.bf16.msra.mxu0 0
    %7018 = vmatpush.bf16.msra.mxu0 0
    %7019 = vmatpush.bf16.msra.mxu0 0
    %7020 = vmatpush.bf16.msra.mxu0 0
    %7021 = vmatpush.bf16.msra.mxu0 0
    %7022 = vmatpush.bf16.msra.mxu0 %v6992
    %7023 = vmatpush.bf16.msra.mxu0 %v6984
    %7024 = vmatmul.bf16.gmra.mxu0 %v1938
    %v7025 = vpop.f32.mrf.mxu0
    %v7026 = vadd.f32 %v6834, %v7025
    %v7027 = vpop.f32.mrf.mxu0
    %v7028 = vadd.f32 %v6836, %v7027
    %7029 = vdwg.mxu0
    %7030 = vmatpush.bf16.msra.mxu0 0
    %7031 = vmatpush.bf16.msra.mxu0 0
    %7032 = vmatpush.bf16.msra.mxu0 0
    %7033 = vmatpush.bf16.msra.mxu0 0
    %7034 = vmatpush.bf16.msra.mxu0 0
    %7035 = vmatpush.bf16.msra.mxu0 0
    %7036 = vmatpush.bf16.msra.mxu0 %v6993
    %7037 = vmatpush.bf16.msra.mxu0 %v6985
    %7038 = vmatmul.bf16.gmra.mxu0 %v1938
    %v7039 = vpop.f32.mrf.mxu0
    %v7040 = vadd.f32 %v6848, %v7039
    %v7041 = vpop.f32.mrf.mxu0
    %v7042 = vadd.f32 %v6850, %v7041
    %7043 = vdwg.mxu0
    %7044 = vmatpush.bf16.msra.mxu0 0
    %7045 = vmatpush.bf16.msra.mxu0 0
    %7046 = vmatpush.bf16.msra.mxu0 0
    %7047 = vmatpush.bf16.msra.mxu0 0
    %7048 = vmatpush.bf16.msra.mxu0 0
    %7049 = vmatpush.bf16.msra.mxu0 0
    %7050 = vmatpush.bf16.msra.mxu0 %v6994
    %7051 = vmatpush.bf16.msra.mxu0 %v6986
    %7052 = vmatmul.bf16.gmra.mxu0 %v1938
    %v7053 = vpop.f32.mrf.mxu0
    %v7054 = vadd.f32 %v6862, %v7053
    %v7055 = vpop.f32.mrf.mxu0
    %v7056 = vadd.f32 %v6864, %v7055
    %7057 = vdwg.mxu0
    %7058 = vmatpush.bf16.msra.mxu0 0
    %7059 = vmatpush.bf16.msra.mxu0 0
    %7060 = vmatpush.bf16.msra.mxu0 0
    %7061 = vmatpush.bf16.msra.mxu0 0
    %7062 = vmatpush.bf16.msra.mxu0 0
    %7063 = vmatpush.bf16.msra.mxu0 0
    %7064 = vmatpush.bf16.msra.mxu0 %v6995
    %7065 = vmatpush.bf16.msra.mxu0 %v6987
    %7066 = vmatmul.bf16.gmra.mxu0 %v1938
    %v7067 = vpop.f32.mrf.mxu0
    %v7068 = vadd.f32 %v6876, %v7067
    %v7069 = vpop.f32.mrf.mxu0
    %v7070 = vadd.f32 %v6878, %v7069
    %7071 = vdwg.mxu0
    %7072 = vmatpush.bf16.msra.mxu0 0
    %7073 = vmatpush.bf16.msra.mxu0 0
    %7074 = vmatpush.bf16.msra.mxu0 0
    %7075 = vmatpush.bf16.msra.mxu0 0
    %7076 = vmatpush.bf16.msra.mxu0 0
    %7077 = vmatpush.bf16.msra.mxu0 0
    %7078 = vmatpush.bf16.msra.mxu0 %v6996
    %7079 = vmatpush.bf16.msra.mxu0 %v6988
    %7080 = vmatmul.bf16.gmra.mxu0 %v1938
    %v7081 = vpop.f32.mrf.mxu0
    %v7082 = vadd.f32 %v6890, %v7081
    %v7083 = vpop.f32.mrf.mxu0
    %v7084 = vadd.f32 %v6892, %v7083
    %7085 = vdwg.mxu0
    %7086 = vmatpush.bf16.msra.mxu0 0
    %7087 = vmatpush.bf16.msra.mxu0 0
    %7088 = vmatpush.bf16.msra.mxu0 0
    %7089 = vmatpush.bf16.msra.mxu0 0
    %7090 = vmatpush.bf16.msra.mxu0 0
    %7091 = vmatpush.bf16.msra.mxu0 0
    %7092 = vmatpush.bf16.msra.mxu0 %v6997
    %7093 = vmatpush.bf16.msra.mxu0 %v6989
    %7094 = vmatmul.bf16.gmra.mxu0 %v1938
    %v7095 = vpop.f32.mrf.mxu0
    %v7096 = vadd.f32 %v6904, %v7095
    %v7097 = vpop.f32.mrf.mxu0
    %v7098 = vadd.f32 %v6906, %v7097
    %7099 = vdwg.mxu0
    %7100 = vmatpush.bf16.msra.mxu0 0
    %7101 = vmatpush.bf16.msra.mxu0 0
    %7102 = vmatpush.bf16.msra.mxu0 0
    %7103 = vmatpush.bf16.msra.mxu0 0
    %7104 = vmatpush.bf16.msra.mxu0 0
    %7105 = vmatpush.bf16.msra.mxu0 0
    %7106 = vmatpush.bf16.msra.mxu0 %v6998
    %7107 = vmatpush.bf16.msra.mxu0 %v6990
    %7108 = vmatmul.bf16.gmra.mxu0 %v1938
    %v7109 = vpop.f32.mrf.mxu0
    %v7110 = vadd.f32 %v6918, %v7109
    %v7111 = vpop.f32.mrf.mxu0
    %v7112 = vadd.f32 %v6920, %v7111
    %7113 = vdwg.mxu0
    %7114 = vmatpush.bf16.msra.mxu0 0
    %7115 = vmatpush.bf16.msra.mxu0 0
    %7116 = vmatpush.bf16.msra.mxu0 0
    %7117 = vmatpush.bf16.msra.mxu0 0
    %7118 = vmatpush.bf16.msra.mxu0 0
    %7119 = vmatpush.bf16.msra.mxu0 0
    %7120 = vmatpush.bf16.msra.mxu0 %v6999
    %7121 = vmatpush.bf16.msra.mxu0 %v6991
    %7122 = vmatmul.bf16.gmra.mxu0 %v1938
    %v7123 = vpop.f32.mrf.mxu0
    %v7124 = vadd.f32 %v6932, %v7123
    %v7125 = vpop.f32.mrf.mxu0
    %v7126 = vadd.f32 %v6934, %v7125
    %7127 = vdwg.mxu0
    %v7129 = vperm.slane %v720, 0
    %v7130 = vperm.slane %v720, 1
    %v7131 = vperm.slane %v720, 2
    %v7132 = vperm.slane %v720, 3
    %v7133 = vperm.slane %v720, 4
    %v7134 = vperm.slane %v720, 5
    %v7135 = vperm.slane %v720, 6
    %v7136 = vperm.slane %v720, 7
    %v7145 = vadd.f32 %v7026, %v7129
    %v7146 = vadd.f32 %v7040, %v7130
    %v7147 = vadd.f32 %v7054, %v7131
    %v7148 = vadd.f32 %v7068, %v7132
    %v7149 = vadd.f32 %v7082, %v7133
    %v7150 = vadd.f32 %v7096, %v7134
    %v7151 = vadd.f32 %v7110, %v7135
    %v7152 = vadd.f32 %v7124, %v7136
    %v7153 = vadd.f32 %v7028, %v7129
    %v7154 = vadd.f32 %v7042, %v7130
    %v7155 = vadd.f32 %v7056, %v7131
    %v7156 = vadd.f32 %v7070, %v7132
    %v7157 = vadd.f32 %v7084, %v7133
    %v7158 = vadd.f32 %v7098, %v7134
    %v7159 = vadd.f32 %v7112, %v7135
    %v7160 = vadd.f32 %v7126, %v7136
    %vm7161 = vcmp.gt.f32.partialorder %v7145, 0.0
    %vm7162 = vcmp.gt.f32.partialorder %v7146, 0.0
    %vm7163 = vcmp.gt.f32.partialorder %v7147, 0.0
    %vm7164 = vcmp.gt.f32.partialorder %v7148, 0.0
    %vm7165 = vcmp.gt.f32.partialorder %v7149, 0.0
    %vm7166 = vcmp.gt.f32.partialorder %v7150, 0.0
    %vm7167 = vcmp.gt.f32.partialorder %v7151, 0.0
    %vm7168 = vcmp.gt.f32.partialorder %v7152, 0.0
    %vm7169 = vcmp.gt.f32.partialorder %v7153, 0.0
    %vm7170 = vcmp.gt.f32.partialorder %v7154, 0.0
    %vm7171 = vcmp.gt.f32.partialorder %v7155, 0.0
    %vm7172 = vcmp.gt.f32.partialorder %v7156, 0.0
    %vm7173 = vcmp.gt.f32.partialorder %v7157, 0.0
    %vm7174 = vcmp.gt.f32.partialorder %v7158, 0.0
    %vm7175 = vcmp.gt.f32.partialorder %v7159, 0.0
    %vm7176 = vcmp.gt.f32.partialorder %v7160, 0.0
    %v7177 = vmul.f32 %v7145, 0.01
    %v7178 = vmul.f32 %v7146, 0.01
    %v7179 = vmul.f32 %v7147, 0.01
    %v7180 = vmul.f32 %v7148, 0.01
    %v7181 = vmul.f32 %v7149, 0.01
    %v7182 = vmul.f32 %v7150, 0.01
    %v7183 = vmul.f32 %v7151, 0.01
    %v7184 = vmul.f32 %v7152, 0.01
    %v7185 = vmul.f32 %v7153, 0.01
    %v7186 = vmul.f32 %v7154, 0.01
    %v7187 = vmul.f32 %v7155, 0.01
    %v7188 = vmul.f32 %v7156, 0.01
    %v7189 = vmul.f32 %v7157, 0.01
    %v7190 = vmul.f32 %v7158, 0.01
    %v7191 = vmul.f32 %v7159, 0.01
    %v7192 = vmul.f32 %v7160, 0.01
    %v7193 = vsel %vm7161, %v7145, %v7177
    %v7194 = vsel %vm7162, %v7146, %v7178
    %v7195 = vsel %vm7163, %v7147, %v7179
    %v7196 = vsel %vm7164, %v7148, %v7180
    %v7197 = vsel %vm7165, %v7149, %v7181
    %v7198 = vsel %vm7166, %v7150, %v7182
    %v7199 = vsel %vm7167, %v7151, %v7183
    %v7200 = vsel %vm7168, %v7152, %v7184
    %v7201 = vsel %vm7169, %v7153, %v7185
    %v7202 = vsel %vm7170, %v7154, %v7186
    %v7203 = vsel %vm7171, %v7155, %v7187
    %v7204 = vsel %vm7172, %v7156, %v7188
    %v7205 = vsel %vm7173, %v7157, %v7189
    %v7206 = vsel %vm7174, %v7158, %v7190
    %v7207 = vsel %vm7175, %v7159, %v7191
    %v7208 = vsel %vm7176, %v7160, %v7192
    %s7209 = sshll.u32 %s2101, 4
    %7210 = dma.done %s721, %s7209
    %v7211 = vld [vmem:[#allocation3] sm:$0xff]
    %v7212 = vld [vmem:[#allocation3 + $0x8] sm:$0xff]
    %v7213 = vld [vmem:[#allocation3 + $0x10] sm:$0xff]
    %v7214 = vld [vmem:[#allocation3 + $0x18] sm:$0xff]
    %v7215 = vld [vmem:[#allocation3 + $0x20] sm:$0xff]
    %v7216 = vld [vmem:[#allocation3 + $0x28] sm:$0xff]
    %v7217 = vld [vmem:[#allocation3 + $0x30] sm:$0xff]
    %v7218 = vld [vmem:[#allocation3 + $0x38] sm:$0xff]
    %v7219 = vld [vmem:[#allocation3 + $0x40] sm:$0xff]
    %v7220 = vld [vmem:[#allocation3 + $0x48] sm:$0xff]
    %v7221 = vld [vmem:[#allocation3 + $0x50] sm:$0xff]
    %v7222 = vld [vmem:[#allocation3 + $0x58] sm:$0xff]
    %v7223 = vld [vmem:[#allocation3 + $0x60] sm:$0xff]
    %v7224 = vld [vmem:[#allocation3 + $0x68] sm:$0xff]
    %v7225 = vld [vmem:[#allocation3 + $0x70] sm:$0xff]
    %v7226 = vld [vmem:[#allocation3 + $0x78] sm:$0xff]
    %v7227 = vld [vmem:[#allocation3 + $0x80] sm:$0xff]
    %v7228 = vld [vmem:[#allocation3 + $0x88] sm:$0xff]
    %v7229 = vld [vmem:[#allocation3 + $0x90] sm:$0xff]
    %v7230 = vld [vmem:[#allocation3 + $0x98] sm:$0xff]
    %v7231 = vld [vmem:[#allocation3 + $0xa0] sm:$0xff]
    %v7232 = vld [vmem:[#allocation3 + $0xa8] sm:$0xff]
    %v7233 = vld [vmem:[#allocation3 + $0xb0] sm:$0xff]
    %v7234 = vld [vmem:[#allocation3 + $0xb8] sm:$0xff]
    %v7235 = vld [vmem:[#allocation3 + $0xc0] sm:$0xff]
    %v7236 = vld [vmem:[#allocation3 + $0xc8] sm:$0xff]
    %v7237 = vld [vmem:[#allocation3 + $0xd0] sm:$0xff]
    %v7238 = vld [vmem:[#allocation3 + $0xd8] sm:$0xff]
    %v7239 = vld [vmem:[#allocation3 + $0xe0] sm:$0xff]
    %v7240 = vld [vmem:[#allocation3 + $0xe8] sm:$0xff]
    %v7241 = vld [vmem:[#allocation3 + $0xf0] sm:$0xff]
    %v7242 = vld [vmem:[#allocation3 + $0xf8] sm:$0xff]
    %v7243 = vld [vmem:[#allocation3 + $0x100] sm:$0xff]
    %v7244 = vld [vmem:[#allocation3 + $0x108] sm:$0xff]
    %v7245 = vld [vmem:[#allocation3 + $0x110] sm:$0xff]
    %v7246 = vld [vmem:[#allocation3 + $0x118] sm:$0xff]
    %v7247 = vld [vmem:[#allocation3 + $0x120] sm:$0xff]
    %v7248 = vld [vmem:[#allocation3 + $0x128] sm:$0xff]
    %v7249 = vld [vmem:[#allocation3 + $0x130] sm:$0xff]
    %v7250 = vld [vmem:[#allocation3 + $0x138] sm:$0xff]
    %v7251 = vld [vmem:[#allocation3 + $0x140] sm:$0xff]
    %v7252 = vld [vmem:[#allocation3 + $0x148] sm:$0xff]
    %v7253 = vld [vmem:[#allocation3 + $0x150] sm:$0xff]
    %v7254 = vld [vmem:[#allocation3 + $0x158] sm:$0xff]
    %v7255 = vld [vmem:[#allocation3 + $0x160] sm:$0xff]
    %v7256 = vld [vmem:[#allocation3 + $0x168] sm:$0xff]
    %v7257 = vld [vmem:[#allocation3 + $0x170] sm:$0xff]
    %v7258 = vld [vmem:[#allocation3 + $0x178] sm:$0xff]
    %v7259 = vld [vmem:[#allocation3 + $0x180] sm:$0xff]
    %v7260 = vld [vmem:[#allocation3 + $0x188] sm:$0xff]
    %v7261 = vld [vmem:[#allocation3 + $0x190] sm:$0xff]
    %v7262 = vld [vmem:[#allocation3 + $0x198] sm:$0xff]
    %v7263 = vld [vmem:[#allocation3 + $0x1a0] sm:$0xff]
    %v7264 = vld [vmem:[#allocation3 + $0x1a8] sm:$0xff]
    %v7265 = vld [vmem:[#allocation3 + $0x1b0] sm:$0xff]
    %v7266 = vld [vmem:[#allocation3 + $0x1b8] sm:$0xff]
    %v7267 = vld [vmem:[#allocation3 + $0x1c0] sm:$0xff]
    %v7268 = vld [vmem:[#allocation3 + $0x1c8] sm:$0xff]
    %v7269 = vld [vmem:[#allocation3 + $0x1d0] sm:$0xff]
    %v7270 = vld [vmem:[#allocation3 + $0x1d8] sm:$0xff]
    %v7271 = vld [vmem:[#allocation3 + $0x1e0] sm:$0xff]
    %v7272 = vld [vmem:[#allocation3 + $0x1e8] sm:$0xff]
    %v7273 = vld [vmem:[#allocation3 + $0x1f0] sm:$0xff]
    %v7274 = vld [vmem:[#allocation3 + $0x1f8] sm:$0xff]
    %v7275 = vld [vmem:[#allocation3 + $0x200] sm:$0xff]
    %v7276 = vld [vmem:[#allocation3 + $0x208] sm:$0xff]
    %v7277 = vld [vmem:[#allocation3 + $0x210] sm:$0xff]
    %v7278 = vld [vmem:[#allocation3 + $0x218] sm:$0xff]
    %v7279 = vld [vmem:[#allocation3 + $0x220] sm:$0xff]
    %v7280 = vld [vmem:[#allocation3 + $0x228] sm:$0xff]
    %v7281 = vld [vmem:[#allocation3 + $0x230] sm:$0xff]
    %v7282 = vld [vmem:[#allocation3 + $0x238] sm:$0xff]
    %v7283 = vld [vmem:[#allocation3 + $0x240] sm:$0xff]
    %v7284 = vld [vmem:[#allocation3 + $0x248] sm:$0xff]
    %v7285 = vld [vmem:[#allocation3 + $0x250] sm:$0xff]
    %v7286 = vld [vmem:[#allocation3 + $0x258] sm:$0xff]
    %v7287 = vld [vmem:[#allocation3 + $0x260] sm:$0xff]
    %v7288 = vld [vmem:[#allocation3 + $0x268] sm:$0xff]
    %v7289 = vld [vmem:[#allocation3 + $0x270] sm:$0xff]
    %v7290 = vld [vmem:[#allocation3 + $0x278] sm:$0xff]
    %v7291 = vld [vmem:[#allocation3 + $0x280] sm:$0xff]
    %v7292 = vld [vmem:[#allocation3 + $0x288] sm:$0xff]
    %v7293 = vld [vmem:[#allocation3 + $0x290] sm:$0xff]
    %v7294 = vld [vmem:[#allocation3 + $0x298] sm:$0xff]
    %v7295 = vld [vmem:[#allocation3 + $0x2a0] sm:$0xff]
    %v7296 = vld [vmem:[#allocation3 + $0x2a8] sm:$0xff]
    %v7297 = vld [vmem:[#allocation3 + $0x2b0] sm:$0xff]
    %v7298 = vld [vmem:[#allocation3 + $0x2b8] sm:$0xff]
    %v7299 = vld [vmem:[#allocation3 + $0x2c0] sm:$0xff]
    %v7300 = vld [vmem:[#allocation3 + $0x2c8] sm:$0xff]
    %v7301 = vld [vmem:[#allocation3 + $0x2d0] sm:$0xff]
    %v7302 = vld [vmem:[#allocation3 + $0x2d8] sm:$0xff]
    %v7303 = vld [vmem:[#allocation3 + $0x2e0] sm:$0xff]
    %v7304 = vld [vmem:[#allocation3 + $0x2e8] sm:$0xff]
    %v7305 = vld [vmem:[#allocation3 + $0x2f0] sm:$0xff]
    %v7306 = vld [vmem:[#allocation3 + $0x2f8] sm:$0xff]
    %v7307 = vld [vmem:[#allocation3 + $0x300] sm:$0xff]
    %v7308 = vld [vmem:[#allocation3 + $0x308] sm:$0xff]
    %v7309 = vld [vmem:[#allocation3 + $0x310] sm:$0xff]
    %v7310 = vld [vmem:[#allocation3 + $0x318] sm:$0xff]
    %v7311 = vld [vmem:[#allocation3 + $0x320] sm:$0xff]
    %v7312 = vld [vmem:[#allocation3 + $0x328] sm:$0xff]
    %v7313 = vld [vmem:[#allocation3 + $0x330] sm:$0xff]
    %v7314 = vld [vmem:[#allocation3 + $0x338] sm:$0xff]
    %v7315 = vld [vmem:[#allocation3 + $0x340] sm:$0xff]
    %v7316 = vld [vmem:[#allocation3 + $0x348] sm:$0xff]
    %v7317 = vld [vmem:[#allocation3 + $0x350] sm:$0xff]
    %v7318 = vld [vmem:[#allocation3 + $0x358] sm:$0xff]
    %v7319 = vld [vmem:[#allocation3 + $0x360] sm:$0xff]
    %v7320 = vld [vmem:[#allocation3 + $0x368] sm:$0xff]
    %v7321 = vld [vmem:[#allocation3 + $0x370] sm:$0xff]
    %v7322 = vld [vmem:[#allocation3 + $0x378] sm:$0xff]
    %v7323 = vld [vmem:[#allocation3 + $0x380] sm:$0xff]
    %v7324 = vld [vmem:[#allocation3 + $0x388] sm:$0xff]
    %v7325 = vld [vmem:[#allocation3 + $0x390] sm:$0xff]
    %v7326 = vld [vmem:[#allocation3 + $0x398] sm:$0xff]
    %v7327 = vld [vmem:[#allocation3 + $0x3a0] sm:$0xff]
    %v7328 = vld [vmem:[#allocation3 + $0x3a8] sm:$0xff]
    %v7329 = vld [vmem:[#allocation3 + $0x3b0] sm:$0xff]
    %v7330 = vld [vmem:[#allocation3 + $0x3b8] sm:$0xff]
    %v7331 = vld [vmem:[#allocation3 + $0x3c0] sm:$0xff]
    %v7332 = vld [vmem:[#allocation3 + $0x3c8] sm:$0xff]
    %v7333 = vld [vmem:[#allocation3 + $0x3d0] sm:$0xff]
    %v7334 = vld [vmem:[#allocation3 + $0x3d8] sm:$0xff]
    %v7335 = vld [vmem:[#allocation3 + $0x3e0] sm:$0xff]
    %v7336 = vld [vmem:[#allocation3 + $0x3e8] sm:$0xff]
    %v7337 = vld [vmem:[#allocation3 + $0x3f0] sm:$0xff]
    %v7338 = vld [vmem:[#allocation3 + $0x3f8] sm:$0xff]
    %v7339 = vld [vmem:[#allocation3 + $0x400] sm:$0xff]
    %v7340 = vld [vmem:[#allocation3 + $0x408] sm:$0xff]
    %v7341 = vld [vmem:[#allocation3 + $0x410] sm:$0xff]
    %v7342 = vld [vmem:[#allocation3 + $0x418] sm:$0xff]
    %v7343 = vld [vmem:[#allocation3 + $0x420] sm:$0xff]
    %v7344 = vld [vmem:[#allocation3 + $0x428] sm:$0xff]
    %v7345 = vld [vmem:[#allocation3 + $0x430] sm:$0xff]
    %v7346 = vld [vmem:[#allocation3 + $0x438] sm:$0xff]
    %v7347 = vld [vmem:[#allocation3 + $0x440] sm:$0xff]
    %v7348 = vld [vmem:[#allocation3 + $0x448] sm:$0xff]
    %v7349 = vld [vmem:[#allocation3 + $0x450] sm:$0xff]
    %v7350 = vld [vmem:[#allocation3 + $0x458] sm:$0xff]
    %v7351 = vld [vmem:[#allocation3 + $0x460] sm:$0xff]
    %v7352 = vld [vmem:[#allocation3 + $0x468] sm:$0xff]
    %v7353 = vld [vmem:[#allocation3 + $0x470] sm:$0xff]
    %v7354 = vld [vmem:[#allocation3 + $0x478] sm:$0xff]
    %v7355 = vld [vmem:[#allocation3 + $0x480] sm:$0xff]
    %v7356 = vld [vmem:[#allocation3 + $0x488] sm:$0xff]
    %v7357 = vld [vmem:[#allocation3 + $0x490] sm:$0xff]
    %v7358 = vld [vmem:[#allocation3 + $0x498] sm:$0xff]
    %v7359 = vld [vmem:[#allocation3 + $0x4a0] sm:$0xff]
    %v7360 = vld [vmem:[#allocation3 + $0x4a8] sm:$0xff]
    %v7361 = vld [vmem:[#allocation3 + $0x4b0] sm:$0xff]
    %v7362 = vld [vmem:[#allocation3 + $0x4b8] sm:$0xff]
    %v7363 = vld [vmem:[#allocation3 + $0x4c0] sm:$0xff]
    %v7364 = vld [vmem:[#allocation3 + $0x4c8] sm:$0xff]
    %v7365 = vld [vmem:[#allocation3 + $0x4d0] sm:$0xff]
    %v7366 = vld [vmem:[#allocation3 + $0x4d8] sm:$0xff]
    %v7367 = vld [vmem:[#allocation3 + $0x4e0] sm:$0xff]
    %v7368 = vld [vmem:[#allocation3 + $0x4e8] sm:$0xff]
    %v7369 = vld [vmem:[#allocation3 + $0x4f0] sm:$0xff]
    %v7370 = vld [vmem:[#allocation3 + $0x4f8] sm:$0xff]
    %v7371 = vld [vmem:[#allocation3 + $0x500] sm:$0xff]
    %v7372 = vld [vmem:[#allocation3 + $0x508] sm:$0xff]
    %v7373 = vld [vmem:[#allocation3 + $0x510] sm:$0xff]
    %v7374 = vld [vmem:[#allocation3 + $0x518] sm:$0xff]
    %v7375 = vld [vmem:[#allocation3 + $0x520] sm:$0xff]
    %v7376 = vld [vmem:[#allocation3 + $0x528] sm:$0xff]
    %v7377 = vld [vmem:[#allocation3 + $0x530] sm:$0xff]
    %v7378 = vld [vmem:[#allocation3 + $0x538] sm:$0xff]
    %v7379 = vld [vmem:[#allocation3 + $0x540] sm:$0xff]
    %v7380 = vld [vmem:[#allocation3 + $0x548] sm:$0xff]
    %v7381 = vld [vmem:[#allocation3 + $0x550] sm:$0xff]
    %v7382 = vld [vmem:[#allocation3 + $0x558] sm:$0xff]
    %v7383 = vld [vmem:[#allocation3 + $0x560] sm:$0xff]
    %v7384 = vld [vmem:[#allocation3 + $0x568] sm:$0xff]
    %v7385 = vld [vmem:[#allocation3 + $0x570] sm:$0xff]
    %v7386 = vld [vmem:[#allocation3 + $0x578] sm:$0xff]
    %v7387 = vld [vmem:[#allocation3 + $0x580] sm:$0xff]
    %v7388 = vld [vmem:[#allocation3 + $0x588] sm:$0xff]
    %v7389 = vld [vmem:[#allocation3 + $0x590] sm:$0xff]
    %v7390 = vld [vmem:[#allocation3 + $0x598] sm:$0xff]
    %v7391 = vld [vmem:[#allocation3 + $0x5a0] sm:$0xff]
    %v7392 = vld [vmem:[#allocation3 + $0x5a8] sm:$0xff]
    %v7393 = vld [vmem:[#allocation3 + $0x5b0] sm:$0xff]
    %v7394 = vld [vmem:[#allocation3 + $0x5b8] sm:$0xff]
    %v7395 = vld [vmem:[#allocation3 + $0x5c0] sm:$0xff]
    %v7396 = vld [vmem:[#allocation3 + $0x5c8] sm:$0xff]
    %v7397 = vld [vmem:[#allocation3 + $0x5d0] sm:$0xff]
    %v7398 = vld [vmem:[#allocation3 + $0x5d8] sm:$0xff]
    %v7399 = vld [vmem:[#allocation3 + $0x5e0] sm:$0xff]
    %v7400 = vld [vmem:[#allocation3 + $0x5e8] sm:$0xff]
    %v7401 = vld [vmem:[#allocation3 + $0x5f0] sm:$0xff]
    %v7402 = vld [vmem:[#allocation3 + $0x5f8] sm:$0xff]
    %v7403 = vld [vmem:[#allocation3 + $0x600] sm:$0xff]
    %v7404 = vld [vmem:[#allocation3 + $0x608] sm:$0xff]
    %v7405 = vld [vmem:[#allocation3 + $0x610] sm:$0xff]
    %v7406 = vld [vmem:[#allocation3 + $0x618] sm:$0xff]
    %v7407 = vld [vmem:[#allocation3 + $0x620] sm:$0xff]
    %v7408 = vld [vmem:[#allocation3 + $0x628] sm:$0xff]
    %v7409 = vld [vmem:[#allocation3 + $0x630] sm:$0xff]
    %v7410 = vld [vmem:[#allocation3 + $0x638] sm:$0xff]
    %v7411 = vld [vmem:[#allocation3 + $0x640] sm:$0xff]
    %v7412 = vld [vmem:[#allocation3 + $0x648] sm:$0xff]
    %v7413 = vld [vmem:[#allocation3 + $0x650] sm:$0xff]
    %v7414 = vld [vmem:[#allocation3 + $0x658] sm:$0xff]
    %v7415 = vld [vmem:[#allocation3 + $0x660] sm:$0xff]
    %v7416 = vld [vmem:[#allocation3 + $0x668] sm:$0xff]
    %v7417 = vld [vmem:[#allocation3 + $0x670] sm:$0xff]
    %v7418 = vld [vmem:[#allocation3 + $0x678] sm:$0xff]
    %v7419 = vld [vmem:[#allocation3 + $0x680] sm:$0xff]
    %v7420 = vld [vmem:[#allocation3 + $0x688] sm:$0xff]
    %v7421 = vld [vmem:[#allocation3 + $0x690] sm:$0xff]
    %v7422 = vld [vmem:[#allocation3 + $0x698] sm:$0xff]
    %v7423 = vld [vmem:[#allocation3 + $0x6a0] sm:$0xff]
    %v7424 = vld [vmem:[#allocation3 + $0x6a8] sm:$0xff]
    %v7425 = vld [vmem:[#allocation3 + $0x6b0] sm:$0xff]
    %v7426 = vld [vmem:[#allocation3 + $0x6b8] sm:$0xff]
    %v7427 = vld [vmem:[#allocation3 + $0x6c0] sm:$0xff]
    %v7428 = vld [vmem:[#allocation3 + $0x6c8] sm:$0xff]
    %v7429 = vld [vmem:[#allocation3 + $0x6d0] sm:$0xff]
    %v7430 = vld [vmem:[#allocation3 + $0x6d8] sm:$0xff]
    %v7431 = vld [vmem:[#allocation3 + $0x6e0] sm:$0xff]
    %v7432 = vld [vmem:[#allocation3 + $0x6e8] sm:$0xff]
    %v7433 = vld [vmem:[#allocation3 + $0x6f0] sm:$0xff]
    %v7434 = vld [vmem:[#allocation3 + $0x6f8] sm:$0xff]
    %v7435 = vld [vmem:[#allocation3 + $0x700] sm:$0xff]
    %v7436 = vld [vmem:[#allocation3 + $0x708] sm:$0xff]
    %v7437 = vld [vmem:[#allocation3 + $0x710] sm:$0xff]
    %v7438 = vld [vmem:[#allocation3 + $0x718] sm:$0xff]
    %v7439 = vld [vmem:[#allocation3 + $0x720] sm:$0xff]
    %v7440 = vld [vmem:[#allocation3 + $0x728] sm:$0xff]
    %v7441 = vld [vmem:[#allocation3 + $0x730] sm:$0xff]
    %v7442 = vld [vmem:[#allocation3 + $0x738] sm:$0xff]
    %v7443 = vld [vmem:[#allocation3 + $0x740] sm:$0xff]
    %v7444 = vld [vmem:[#allocation3 + $0x748] sm:$0xff]
    %v7445 = vld [vmem:[#allocation3 + $0x750] sm:$0xff]
    %v7446 = vld [vmem:[#allocation3 + $0x758] sm:$0xff]
    %v7447 = vld [vmem:[#allocation3 + $0x760] sm:$0xff]
    %v7448 = vld [vmem:[#allocation3 + $0x768] sm:$0xff]
    %v7449 = vld [vmem:[#allocation3 + $0x770] sm:$0xff]
    %v7450 = vld [vmem:[#allocation3 + $0x778] sm:$0xff]
    %v7451 = vld [vmem:[#allocation3 + $0x780] sm:$0xff]
    %v7452 = vld [vmem:[#allocation3 + $0x788] sm:$0xff]
    %v7453 = vld [vmem:[#allocation3 + $0x790] sm:$0xff]
    %v7454 = vld [vmem:[#allocation3 + $0x798] sm:$0xff]
    %v7455 = vld [vmem:[#allocation3 + $0x7a0] sm:$0xff]
    %v7456 = vld [vmem:[#allocation3 + $0x7a8] sm:$0xff]
    %v7457 = vld [vmem:[#allocation3 + $0x7b0] sm:$0xff]
    %v7458 = vld [vmem:[#allocation3 + $0x7b8] sm:$0xff]
    %v7459 = vld [vmem:[#allocation3 + $0x7c0] sm:$0xff]
    %v7460 = vld [vmem:[#allocation3 + $0x7c8] sm:$0xff]
    %v7461 = vld [vmem:[#allocation3 + $0x7d0] sm:$0xff]
    %v7462 = vld [vmem:[#allocation3 + $0x7d8] sm:$0xff]
    %v7463 = vld [vmem:[#allocation3 + $0x7e0] sm:$0xff]
    %v7464 = vld [vmem:[#allocation3 + $0x7e8] sm:$0xff]
    %v7465 = vld [vmem:[#allocation3 + $0x7f0] sm:$0xff]
    %v7466 = vld [vmem:[#allocation3 + $0x7f8] sm:$0xff]
    %v7467 = vld [vmem:[#allocation3 + $0x800] sm:$0xff]
    %v7468 = vld [vmem:[#allocation3 + $0x808] sm:$0xff]
    %v7469 = vld [vmem:[#allocation3 + $0x810] sm:$0xff]
    %v7470 = vld [vmem:[#allocation3 + $0x818] sm:$0xff]
    %v7471 = vld [vmem:[#allocation3 + $0x820] sm:$0xff]
    %v7472 = vld [vmem:[#allocation3 + $0x828] sm:$0xff]
    %v7473 = vld [vmem:[#allocation3 + $0x830] sm:$0xff]
    %v7474 = vld [vmem:[#allocation3 + $0x838] sm:$0xff]
    %v7475 = vld [vmem:[#allocation3 + $0x840] sm:$0xff]
    %v7476 = vld [vmem:[#allocation3 + $0x848] sm:$0xff]
    %v7477 = vld [vmem:[#allocation3 + $0x850] sm:$0xff]
    %v7478 = vld [vmem:[#allocation3 + $0x858] sm:$0xff]
    %v7479 = vld [vmem:[#allocation3 + $0x860] sm:$0xff]
    %v7480 = vld [vmem:[#allocation3 + $0x868] sm:$0xff]
    %v7481 = vld [vmem:[#allocation3 + $0x870] sm:$0xff]
    %v7482 = vld [vmem:[#allocation3 + $0x878] sm:$0xff]
    %v7483 = vld [vmem:[#allocation3 + $0x880] sm:$0xff]
    %v7484 = vld [vmem:[#allocation3 + $0x888] sm:$0xff]
    %v7485 = vld [vmem:[#allocation3 + $0x890] sm:$0xff]
    %v7486 = vld [vmem:[#allocation3 + $0x898] sm:$0xff]
    %v7487 = vld [vmem:[#allocation3 + $0x8a0] sm:$0xff]
    %v7488 = vld [vmem:[#allocation3 + $0x8a8] sm:$0xff]
    %v7489 = vld [vmem:[#allocation3 + $0x8b0] sm:$0xff]
    %v7490 = vld [vmem:[#allocation3 + $0x8b8] sm:$0xff]
    %v7491 = vld [vmem:[#allocation3 + $0x8c0] sm:$0xff]
    %v7492 = vld [vmem:[#allocation3 + $0x8c8] sm:$0xff]
    %v7493 = vld [vmem:[#allocation3 + $0x8d0] sm:$0xff]
    %v7494 = vld [vmem:[#allocation3 + $0x8d8] sm:$0xff]
    %v7495 = vld [vmem:[#allocation3 + $0x8e0] sm:$0xff]
    %v7496 = vld [vmem:[#allocation3 + $0x8e8] sm:$0xff]
    %v7497 = vld [vmem:[#allocation3 + $0x8f0] sm:$0xff]
    %v7498 = vld [vmem:[#allocation3 + $0x8f8] sm:$0xff]
    %v7499 = vld [vmem:[#allocation3 + $0x900] sm:$0xff]
    %v7500 = vld [vmem:[#allocation3 + $0x908] sm:$0xff]
    %v7501 = vld [vmem:[#allocation3 + $0x910] sm:$0xff]
    %v7502 = vld [vmem:[#allocation3 + $0x918] sm:$0xff]
    %v7503 = vld [vmem:[#allocation3 + $0x920] sm:$0xff]
    %v7504 = vld [vmem:[#allocation3 + $0x928] sm:$0xff]
    %v7505 = vld [vmem:[#allocation3 + $0x930] sm:$0xff]
    %v7506 = vld [vmem:[#allocation3 + $0x938] sm:$0xff]
    %v7507 = vld [vmem:[#allocation3 + $0x940] sm:$0xff]
    %v7508 = vld [vmem:[#allocation3 + $0x948] sm:$0xff]
    %v7509 = vld [vmem:[#allocation3 + $0x950] sm:$0xff]
    %v7510 = vld [vmem:[#allocation3 + $0x958] sm:$0xff]
    %v7511 = vld [vmem:[#allocation3 + $0x960] sm:$0xff]
    %v7512 = vld [vmem:[#allocation3 + $0x968] sm:$0xff]
    %v7513 = vld [vmem:[#allocation3 + $0x970] sm:$0xff]
    %v7514 = vld [vmem:[#allocation3 + $0x978] sm:$0xff]
    %v7515 = vld [vmem:[#allocation3 + $0x980] sm:$0xff]
    %v7516 = vld [vmem:[#allocation3 + $0x988] sm:$0xff]
    %v7517 = vld [vmem:[#allocation3 + $0x990] sm:$0xff]
    %v7518 = vld [vmem:[#allocation3 + $0x998] sm:$0xff]
    %v7519 = vld [vmem:[#allocation3 + $0x9a0] sm:$0xff]
    %v7520 = vld [vmem:[#allocation3 + $0x9a8] sm:$0xff]
    %v7521 = vld [vmem:[#allocation3 + $0x9b0] sm:$0xff]
    %v7522 = vld [vmem:[#allocation3 + $0x9b8] sm:$0xff]
    %v7523 = vld [vmem:[#allocation3 + $0x9c0] sm:$0xff]
    %v7524 = vld [vmem:[#allocation3 + $0x9c8] sm:$0xff]
    %v7525 = vld [vmem:[#allocation3 + $0x9d0] sm:$0xff]
    %v7526 = vld [vmem:[#allocation3 + $0x9d8] sm:$0xff]
    %v7527 = vld [vmem:[#allocation3 + $0x9e0] sm:$0xff]
    %v7528 = vld [vmem:[#allocation3 + $0x9e8] sm:$0xff]
    %v7529 = vld [vmem:[#allocation3 + $0x9f0] sm:$0xff]
    %v7530 = vld [vmem:[#allocation3 + $0x9f8] sm:$0xff]
    %v7531 = vld [vmem:[#allocation3 + $0xa00] sm:$0xff]
    %v7532 = vld [vmem:[#allocation3 + $0xa08] sm:$0xff]
    %v7533 = vld [vmem:[#allocation3 + $0xa10] sm:$0xff]
    %v7534 = vld [vmem:[#allocation3 + $0xa18] sm:$0xff]
    %v7535 = vld [vmem:[#allocation3 + $0xa20] sm:$0xff]
    %v7536 = vld [vmem:[#allocation3 + $0xa28] sm:$0xff]
    %v7537 = vld [vmem:[#allocation3 + $0xa30] sm:$0xff]
    %v7538 = vld [vmem:[#allocation3 + $0xa38] sm:$0xff]
    %v7539 = vld [vmem:[#allocation3 + $0xa40] sm:$0xff]
    %v7540 = vld [vmem:[#allocation3 + $0xa48] sm:$0xff]
    %v7541 = vld [vmem:[#allocation3 + $0xa50] sm:$0xff]
    %v7542 = vld [vmem:[#allocation3 + $0xa58] sm:$0xff]
    %v7543 = vld [vmem:[#allocation3 + $0xa60] sm:$0xff]
    %v7544 = vld [vmem:[#allocation3 + $0xa68] sm:$0xff]
    %v7545 = vld [vmem:[#allocation3 + $0xa70] sm:$0xff]
    %v7546 = vld [vmem:[#allocation3 + $0xa78] sm:$0xff]
    %v7547 = vld [vmem:[#allocation3 + $0xa80] sm:$0xff]
    %v7548 = vld [vmem:[#allocation3 + $0xa88] sm:$0xff]
    %v7549 = vld [vmem:[#allocation3 + $0xa90] sm:$0xff]
    %v7550 = vld [vmem:[#allocation3 + $0xa98] sm:$0xff]
    %v7551 = vld [vmem:[#allocation3 + $0xaa0] sm:$0xff]
    %v7552 = vld [vmem:[#allocation3 + $0xaa8] sm:$0xff]
    %v7553 = vld [vmem:[#allocation3 + $0xab0] sm:$0xff]
    %v7554 = vld [vmem:[#allocation3 + $0xab8] sm:$0xff]
    %v7555 = vld [vmem:[#allocation3 + $0xac0] sm:$0xff]
    %v7556 = vld [vmem:[#allocation3 + $0xac8] sm:$0xff]
    %v7557 = vld [vmem:[#allocation3 + $0xad0] sm:$0xff]
    %v7558 = vld [vmem:[#allocation3 + $0xad8] sm:$0xff]
    %v7559 = vld [vmem:[#allocation3 + $0xae0] sm:$0xff]
    %v7560 = vld [vmem:[#allocation3 + $0xae8] sm:$0xff]
    %v7561 = vld [vmem:[#allocation3 + $0xaf0] sm:$0xff]
    %v7562 = vld [vmem:[#allocation3 + $0xaf8] sm:$0xff]
    %v7563 = vld [vmem:[#allocation3 + $0xb00] sm:$0xff]
    %v7564 = vld [vmem:[#allocation3 + $0xb08] sm:$0xff]
    %v7565 = vld [vmem:[#allocation3 + $0xb10] sm:$0xff]
    %v7566 = vld [vmem:[#allocation3 + $0xb18] sm:$0xff]
    %v7567 = vld [vmem:[#allocation3 + $0xb20] sm:$0xff]
    %v7568 = vld [vmem:[#allocation3 + $0xb28] sm:$0xff]
    %v7569 = vld [vmem:[#allocation3 + $0xb30] sm:$0xff]
    %v7570 = vld [vmem:[#allocation3 + $0xb38] sm:$0xff]
    %v7571 = vld [vmem:[#allocation3 + $0xb40] sm:$0xff]
    %v7572 = vld [vmem:[#allocation3 + $0xb48] sm:$0xff]
    %v7573 = vld [vmem:[#allocation3 + $0xb50] sm:$0xff]
    %v7574 = vld [vmem:[#allocation3 + $0xb58] sm:$0xff]
    %v7575 = vld [vmem:[#allocation3 + $0xb60] sm:$0xff]
    %v7576 = vld [vmem:[#allocation3 + $0xb68] sm:$0xff]
    %v7577 = vld [vmem:[#allocation3 + $0xb70] sm:$0xff]
    %v7578 = vld [vmem:[#allocation3 + $0xb78] sm:$0xff]
    %v7579 = vld [vmem:[#allocation3 + $0xb80] sm:$0xff]
    %v7580 = vld [vmem:[#allocation3 + $0xb88] sm:$0xff]
    %v7581 = vld [vmem:[#allocation3 + $0xb90] sm:$0xff]
    %v7582 = vld [vmem:[#allocation3 + $0xb98] sm:$0xff]
    %v7583 = vld [vmem:[#allocation3 + $0xba0] sm:$0xff]
    %v7584 = vld [vmem:[#allocation3 + $0xba8] sm:$0xff]
    %v7585 = vld [vmem:[#allocation3 + $0xbb0] sm:$0xff]
    %v7586 = vld [vmem:[#allocation3 + $0xbb8] sm:$0xff]
    %v7587 = vld [vmem:[#allocation3 + $0xbc0] sm:$0xff]
    %v7588 = vld [vmem:[#allocation3 + $0xbc8] sm:$0xff]
    %v7589 = vld [vmem:[#allocation3 + $0xbd0] sm:$0xff]
    %v7590 = vld [vmem:[#allocation3 + $0xbd8] sm:$0xff]
    %v7591 = vld [vmem:[#allocation3 + $0xbe0] sm:$0xff]
    %v7592 = vld [vmem:[#allocation3 + $0xbe8] sm:$0xff]
    %v7593 = vld [vmem:[#allocation3 + $0xbf0] sm:$0xff]
    %v7594 = vld [vmem:[#allocation3 + $0xbf8] sm:$0xff]
    %v7595 = vld [vmem:[#allocation3 + $0xc00] sm:$0xff]
    %v7596 = vld [vmem:[#allocation3 + $0xc08] sm:$0xff]
    %v7597 = vld [vmem:[#allocation3 + $0xc10] sm:$0xff]
    %v7598 = vld [vmem:[#allocation3 + $0xc18] sm:$0xff]
    %v7599 = vld [vmem:[#allocation3 + $0xc20] sm:$0xff]
    %v7600 = vld [vmem:[#allocation3 + $0xc28] sm:$0xff]
    %v7601 = vld [vmem:[#allocation3 + $0xc30] sm:$0xff]
    %v7602 = vld [vmem:[#allocation3 + $0xc38] sm:$0xff]
    %v7603 = vld [vmem:[#allocation3 + $0xc40] sm:$0xff]
    %v7604 = vld [vmem:[#allocation3 + $0xc48] sm:$0xff]
    %v7605 = vld [vmem:[#allocation3 + $0xc50] sm:$0xff]
    %v7606 = vld [vmem:[#allocation3 + $0xc58] sm:$0xff]
    %v7607 = vld [vmem:[#allocation3 + $0xc60] sm:$0xff]
    %v7608 = vld [vmem:[#allocation3 + $0xc68] sm:$0xff]
    %v7609 = vld [vmem:[#allocation3 + $0xc70] sm:$0xff]
    %v7610 = vld [vmem:[#allocation3 + $0xc78] sm:$0xff]
    %v7611 = vld [vmem:[#allocation3 + $0xc80] sm:$0xff]
    %v7612 = vld [vmem:[#allocation3 + $0xc88] sm:$0xff]
    %v7613 = vld [vmem:[#allocation3 + $0xc90] sm:$0xff]
    %v7614 = vld [vmem:[#allocation3 + $0xc98] sm:$0xff]
    %v7615 = vld [vmem:[#allocation3 + $0xca0] sm:$0xff]
    %v7616 = vld [vmem:[#allocation3 + $0xca8] sm:$0xff]
    %v7617 = vld [vmem:[#allocation3 + $0xcb0] sm:$0xff]
    %v7618 = vld [vmem:[#allocation3 + $0xcb8] sm:$0xff]
    %v7619 = vld [vmem:[#allocation3 + $0xcc0] sm:$0xff]
    %v7620 = vld [vmem:[#allocation3 + $0xcc8] sm:$0xff]
    %v7621 = vld [vmem:[#allocation3 + $0xcd0] sm:$0xff]
    %v7622 = vld [vmem:[#allocation3 + $0xcd8] sm:$0xff]
    %v7623 = vld [vmem:[#allocation3 + $0xce0] sm:$0xff]
    %v7624 = vld [vmem:[#allocation3 + $0xce8] sm:$0xff]
    %v7625 = vld [vmem:[#allocation3 + $0xcf0] sm:$0xff]
    %v7626 = vld [vmem:[#allocation3 + $0xcf8] sm:$0xff]
    %v7627 = vld [vmem:[#allocation3 + $0xd00] sm:$0xff]
    %v7628 = vld [vmem:[#allocation3 + $0xd08] sm:$0xff]
    %v7629 = vld [vmem:[#allocation3 + $0xd10] sm:$0xff]
    %v7630 = vld [vmem:[#allocation3 + $0xd18] sm:$0xff]
    %v7631 = vld [vmem:[#allocation3 + $0xd20] sm:$0xff]
    %v7632 = vld [vmem:[#allocation3 + $0xd28] sm:$0xff]
    %v7633 = vld [vmem:[#allocation3 + $0xd30] sm:$0xff]
    %v7634 = vld [vmem:[#allocation3 + $0xd38] sm:$0xff]
    %v7635 = vld [vmem:[#allocation3 + $0xd40] sm:$0xff]
    %v7636 = vld [vmem:[#allocation3 + $0xd48] sm:$0xff]
    %v7637 = vld [vmem:[#allocation3 + $0xd50] sm:$0xff]
    %v7638 = vld [vmem:[#allocation3 + $0xd58] sm:$0xff]
    %v7639 = vld [vmem:[#allocation3 + $0xd60] sm:$0xff]
    %v7640 = vld [vmem:[#allocation3 + $0xd68] sm:$0xff]
    %v7641 = vld [vmem:[#allocation3 + $0xd70] sm:$0xff]
    %v7642 = vld [vmem:[#allocation3 + $0xd78] sm:$0xff]
    %v7643 = vld [vmem:[#allocation3 + $0xd80] sm:$0xff]
    %v7644 = vld [vmem:[#allocation3 + $0xd88] sm:$0xff]
    %v7645 = vld [vmem:[#allocation3 + $0xd90] sm:$0xff]
    %v7646 = vld [vmem:[#allocation3 + $0xd98] sm:$0xff]
    %v7647 = vld [vmem:[#allocation3 + $0xda0] sm:$0xff]
    %v7648 = vld [vmem:[#allocation3 + $0xda8] sm:$0xff]
    %v7649 = vld [vmem:[#allocation3 + $0xdb0] sm:$0xff]
    %v7650 = vld [vmem:[#allocation3 + $0xdb8] sm:$0xff]
    %v7651 = vld [vmem:[#allocation3 + $0xdc0] sm:$0xff]
    %v7652 = vld [vmem:[#allocation3 + $0xdc8] sm:$0xff]
    %v7653 = vld [vmem:[#allocation3 + $0xdd0] sm:$0xff]
    %v7654 = vld [vmem:[#allocation3 + $0xdd8] sm:$0xff]
    %v7655 = vld [vmem:[#allocation3 + $0xde0] sm:$0xff]
    %v7656 = vld [vmem:[#allocation3 + $0xde8] sm:$0xff]
    %v7657 = vld [vmem:[#allocation3 + $0xdf0] sm:$0xff]
    %v7658 = vld [vmem:[#allocation3 + $0xdf8] sm:$0xff]
    %v7659 = vld [vmem:[#allocation3 + $0xe00] sm:$0xff]
    %v7660 = vld [vmem:[#allocation3 + $0xe08] sm:$0xff]
    %v7661 = vld [vmem:[#allocation3 + $0xe10] sm:$0xff]
    %v7662 = vld [vmem:[#allocation3 + $0xe18] sm:$0xff]
    %v7663 = vld [vmem:[#allocation3 + $0xe20] sm:$0xff]
    %v7664 = vld [vmem:[#allocation3 + $0xe28] sm:$0xff]
    %v7665 = vld [vmem:[#allocation3 + $0xe30] sm:$0xff]
    %v7666 = vld [vmem:[#allocation3 + $0xe38] sm:$0xff]
    %v7667 = vld [vmem:[#allocation3 + $0xe40] sm:$0xff]
    %v7668 = vld [vmem:[#allocation3 + $0xe48] sm:$0xff]
    %v7669 = vld [vmem:[#allocation3 + $0xe50] sm:$0xff]
    %v7670 = vld [vmem:[#allocation3 + $0xe58] sm:$0xff]
    %v7671 = vld [vmem:[#allocation3 + $0xe60] sm:$0xff]
    %v7672 = vld [vmem:[#allocation3 + $0xe68] sm:$0xff]
    %v7673 = vld [vmem:[#allocation3 + $0xe70] sm:$0xff]
    %v7674 = vld [vmem:[#allocation3 + $0xe78] sm:$0xff]
    %v7675 = vld [vmem:[#allocation3 + $0xe80] sm:$0xff]
    %v7676 = vld [vmem:[#allocation3 + $0xe88] sm:$0xff]
    %v7677 = vld [vmem:[#allocation3 + $0xe90] sm:$0xff]
    %v7678 = vld [vmem:[#allocation3 + $0xe98] sm:$0xff]
    %v7679 = vld [vmem:[#allocation3 + $0xea0] sm:$0xff]
    %v7680 = vld [vmem:[#allocation3 + $0xea8] sm:$0xff]
    %v7681 = vld [vmem:[#allocation3 + $0xeb0] sm:$0xff]
    %v7682 = vld [vmem:[#allocation3 + $0xeb8] sm:$0xff]
    %v7683 = vld [vmem:[#allocation3 + $0xec0] sm:$0xff]
    %v7684 = vld [vmem:[#allocation3 + $0xec8] sm:$0xff]
    %v7685 = vld [vmem:[#allocation3 + $0xed0] sm:$0xff]
    %v7686 = vld [vmem:[#allocation3 + $0xed8] sm:$0xff]
    %v7687 = vld [vmem:[#allocation3 + $0xee0] sm:$0xff]
    %v7688 = vld [vmem:[#allocation3 + $0xee8] sm:$0xff]
    %v7689 = vld [vmem:[#allocation3 + $0xef0] sm:$0xff]
    %v7690 = vld [vmem:[#allocation3 + $0xef8] sm:$0xff]
    %v7691 = vld [vmem:[#allocation3 + $0xf00] sm:$0xff]
    %v7692 = vld [vmem:[#allocation3 + $0xf08] sm:$0xff]
    %v7693 = vld [vmem:[#allocation3 + $0xf10] sm:$0xff]
    %v7694 = vld [vmem:[#allocation3 + $0xf18] sm:$0xff]
    %v7695 = vld [vmem:[#allocation3 + $0xf20] sm:$0xff]
    %v7696 = vld [vmem:[#allocation3 + $0xf28] sm:$0xff]
    %v7697 = vld [vmem:[#allocation3 + $0xf30] sm:$0xff]
    %v7698 = vld [vmem:[#allocation3 + $0xf38] sm:$0xff]
    %v7699 = vld [vmem:[#allocation3 + $0xf40] sm:$0xff]
    %v7700 = vld [vmem:[#allocation3 + $0xf48] sm:$0xff]
    %v7701 = vld [vmem:[#allocation3 + $0xf50] sm:$0xff]
    %v7702 = vld [vmem:[#allocation3 + $0xf58] sm:$0xff]
    %v7703 = vld [vmem:[#allocation3 + $0xf60] sm:$0xff]
    %v7704 = vld [vmem:[#allocation3 + $0xf68] sm:$0xff]
    %v7705 = vld [vmem:[#allocation3 + $0xf70] sm:$0xff]
    %v7706 = vld [vmem:[#allocation3 + $0xf78] sm:$0xff]
    %v7707 = vld [vmem:[#allocation3 + $0xf80] sm:$0xff]
    %v7708 = vld [vmem:[#allocation3 + $0xf88] sm:$0xff]
    %v7709 = vld [vmem:[#allocation3 + $0xf90] sm:$0xff]
    %v7710 = vld [vmem:[#allocation3 + $0xf98] sm:$0xff]
    %v7711 = vld [vmem:[#allocation3 + $0xfa0] sm:$0xff]
    %v7712 = vld [vmem:[#allocation3 + $0xfa8] sm:$0xff]
    %v7713 = vld [vmem:[#allocation3 + $0xfb0] sm:$0xff]
    %v7714 = vld [vmem:[#allocation3 + $0xfb8] sm:$0xff]
    %v7715 = vld [vmem:[#allocation3 + $0xfc0] sm:$0xff]
    %v7716 = vld [vmem:[#allocation3 + $0xfc8] sm:$0xff]
    %v7717 = vld [vmem:[#allocation3 + $0xfd0] sm:$0xff]
    %v7718 = vld [vmem:[#allocation3 + $0xfd8] sm:$0xff]
    %v7719 = vld [vmem:[#allocation3 + $0xfe0] sm:$0xff]
    %v7720 = vld [vmem:[#allocation3 + $0xfe8] sm:$0xff]
    %v7721 = vld [vmem:[#allocation3 + $0xff0] sm:$0xff]
    %v7722 = vld [vmem:[#allocation3 + $0xff8] sm:$0xff]
    %v7723 = vpack.c.bf16 %v7201, %v7193
    %v7724 = vpack.c.bf16 %v7202, %v7194
    %v7725 = vpack.c.bf16 %v7203, %v7195
    %v7726 = vpack.c.bf16 %v7204, %v7196
    %v7727 = vpack.c.bf16 %v7205, %v7197
    %v7728 = vpack.c.bf16 %v7206, %v7198
    %v7729 = vpack.c.bf16 %v7207, %v7199
    %v7730 = vpack.c.bf16 %v7208, %v7200
    %v7732 = vperm.slane %v735, 0
    %v7733 = vperm.slane %v735, 1
    %v7734 = vperm.slane %v735, 2
    %v7735 = vperm.slane %v735, 3
    %v7736 = vperm.slane %v735, 4
    %v7737 = vperm.slane %v735, 5
    %v7738 = vperm.slane %v735, 6
    %v7739 = vperm.slane %v735, 7
    %v8260 = vunpack.c.l.b16 %v7211
    %v8261 = vunpack.c.h.b16 %v7211
    %v8262 = vunpack.c.l.b16 %v7212
    %v8263 = vunpack.c.h.b16 %v7212
    %v8264 = vunpack.c.l.b16 %v7213
    %v8265 = vunpack.c.h.b16 %v7213
    %v8266 = vunpack.c.l.b16 %v7214
    %v8267 = vunpack.c.h.b16 %v7214
    %v8268 = vunpack.c.l.b16 %v7215
    %v8269 = vunpack.c.h.b16 %v7215
    %v8270 = vunpack.c.l.b16 %v7216
    %v8271 = vunpack.c.h.b16 %v7216
    %v8272 = vunpack.c.l.b16 %v7217
    %v8273 = vunpack.c.h.b16 %v7217
    %v8274 = vunpack.c.l.b16 %v7218
    %v8275 = vunpack.c.h.b16 %v7218
    %v8276 = vunpack.c.l.b16 %v7219
    %v8277 = vunpack.c.h.b16 %v7219
    %v8278 = vunpack.c.l.b16 %v7220
    %v8279 = vunpack.c.h.b16 %v7220
    %v8280 = vunpack.c.l.b16 %v7221
    %v8281 = vunpack.c.h.b16 %v7221
    %v8282 = vunpack.c.l.b16 %v7222
    %v8283 = vunpack.c.h.b16 %v7222
    %v8284 = vunpack.c.l.b16 %v7223
    %v8285 = vunpack.c.h.b16 %v7223
    %v8286 = vunpack.c.l.b16 %v7224
    %v8287 = vunpack.c.h.b16 %v7224
    %v8288 = vunpack.c.l.b16 %v7225
    %v8289 = vunpack.c.h.b16 %v7225
    %v8290 = vunpack.c.l.b16 %v7226
    %v8291 = vunpack.c.h.b16 %v7226
    %v8292 = vunpack.c.l.b16 %v7227
    %v8293 = vunpack.c.h.b16 %v7227
    %v8294 = vunpack.c.l.b16 %v7228
    %v8295 = vunpack.c.h.b16 %v7228
    %v8296 = vunpack.c.l.b16 %v7229
    %v8297 = vunpack.c.h.b16 %v7229
    %v8298 = vunpack.c.l.b16 %v7230
    %v8299 = vunpack.c.h.b16 %v7230
    %v8300 = vunpack.c.l.b16 %v7231
    %v8301 = vunpack.c.h.b16 %v7231
    %v8302 = vunpack.c.l.b16 %v7232
    %v8303 = vunpack.c.h.b16 %v7232
    %v8304 = vunpack.c.l.b16 %v7233
    %v8305 = vunpack.c.h.b16 %v7233
    %v8306 = vunpack.c.l.b16 %v7234
    %v8307 = vunpack.c.h.b16 %v7234
    %v8308 = vunpack.c.l.b16 %v7235
    %v8309 = vunpack.c.h.b16 %v7235
    %v8310 = vunpack.c.l.b16 %v7236
    %v8311 = vunpack.c.h.b16 %v7236
    %v8312 = vunpack.c.l.b16 %v7237
    %v8313 = vunpack.c.h.b16 %v7237
    %v8314 = vunpack.c.l.b16 %v7238
    %v8315 = vunpack.c.h.b16 %v7238
    %v8316 = vunpack.c.l.b16 %v7239
    %v8317 = vunpack.c.h.b16 %v7239
    %v8318 = vunpack.c.l.b16 %v7240
    %v8319 = vunpack.c.h.b16 %v7240
    %v8320 = vunpack.c.l.b16 %v7241
    %v8321 = vunpack.c.h.b16 %v7241
    %v8322 = vunpack.c.l.b16 %v7242
    %v8323 = vunpack.c.h.b16 %v7242
    %v8324 = vunpack.c.l.b16 %v7243
    %v8325 = vunpack.c.h.b16 %v7243
    %v8326 = vunpack.c.l.b16 %v7244
    %v8327 = vunpack.c.h.b16 %v7244
    %v8328 = vunpack.c.l.b16 %v7245
    %v8329 = vunpack.c.h.b16 %v7245
    %v8330 = vunpack.c.l.b16 %v7246
    %v8331 = vunpack.c.h.b16 %v7246
    %v8332 = vunpack.c.l.b16 %v7247
    %v8333 = vunpack.c.h.b16 %v7247
    %v8334 = vunpack.c.l.b16 %v7248
    %v8335 = vunpack.c.h.b16 %v7248
    %v8336 = vunpack.c.l.b16 %v7249
    %v8337 = vunpack.c.h.b16 %v7249
    %v8338 = vunpack.c.l.b16 %v7250
    %v8339 = vunpack.c.h.b16 %v7250
    %v8340 = vunpack.c.l.b16 %v7251
    %v8341 = vunpack.c.h.b16 %v7251
    %v8342 = vunpack.c.l.b16 %v7252
    %v8343 = vunpack.c.h.b16 %v7252
    %v8344 = vunpack.c.l.b16 %v7253
    %v8345 = vunpack.c.h.b16 %v7253
    %v8346 = vunpack.c.l.b16 %v7254
    %v8347 = vunpack.c.h.b16 %v7254
    %v8348 = vunpack.c.l.b16 %v7255
    %v8349 = vunpack.c.h.b16 %v7255
    %v8350 = vunpack.c.l.b16 %v7256
    %v8351 = vunpack.c.h.b16 %v7256
    %v8352 = vunpack.c.l.b16 %v7257
    %v8353 = vunpack.c.h.b16 %v7257
    %v8354 = vunpack.c.l.b16 %v7258
    %v8355 = vunpack.c.h.b16 %v7258
    %v8356 = vunpack.c.l.b16 %v7259
    %v8357 = vunpack.c.h.b16 %v7259
    %v8358 = vunpack.c.l.b16 %v7260
    %v8359 = vunpack.c.h.b16 %v7260
    %v8360 = vunpack.c.l.b16 %v7261
    %v8361 = vunpack.c.h.b16 %v7261
    %v8362 = vunpack.c.l.b16 %v7262
    %v8363 = vunpack.c.h.b16 %v7262
    %v8364 = vunpack.c.l.b16 %v7263
    %v8365 = vunpack.c.h.b16 %v7263
    %v8366 = vunpack.c.l.b16 %v7264
    %v8367 = vunpack.c.h.b16 %v7264
    %v8368 = vunpack.c.l.b16 %v7265
    %v8369 = vunpack.c.h.b16 %v7265
    %v8370 = vunpack.c.l.b16 %v7266
    %v8371 = vunpack.c.h.b16 %v7266
    %v8372 = vunpack.c.l.b16 %v7267
    %v8373 = vunpack.c.h.b16 %v7267
    %v8374 = vunpack.c.l.b16 %v7268
    %v8375 = vunpack.c.h.b16 %v7268
    %v8376 = vunpack.c.l.b16 %v7269
    %v8377 = vunpack.c.h.b16 %v7269
    %v8378 = vunpack.c.l.b16 %v7270
    %v8379 = vunpack.c.h.b16 %v7270
    %v8380 = vunpack.c.l.b16 %v7271
    %v8381 = vunpack.c.h.b16 %v7271
    %v8382 = vunpack.c.l.b16 %v7272
    %v8383 = vunpack.c.h.b16 %v7272
    %v8384 = vunpack.c.l.b16 %v7273
    %v8385 = vunpack.c.h.b16 %v7273
    %v8386 = vunpack.c.l.b16 %v7274
    %v8387 = vunpack.c.h.b16 %v7274
    %v8388 = vunpack.c.l.b16 %v7275
    %v8389 = vunpack.c.h.b16 %v7275
    %v8390 = vunpack.c.l.b16 %v7276
    %v8391 = vunpack.c.h.b16 %v7276
    %v8392 = vunpack.c.l.b16 %v7277
    %v8393 = vunpack.c.h.b16 %v7277
    %v8394 = vunpack.c.l.b16 %v7278
    %v8395 = vunpack.c.h.b16 %v7278
    %v8396 = vunpack.c.l.b16 %v7279
    %v8397 = vunpack.c.h.b16 %v7279
    %v8398 = vunpack.c.l.b16 %v7280
    %v8399 = vunpack.c.h.b16 %v7280
    %v8400 = vunpack.c.l.b16 %v7281
    %v8401 = vunpack.c.h.b16 %v7281
    %v8402 = vunpack.c.l.b16 %v7282
    %v8403 = vunpack.c.h.b16 %v7282
    %v8404 = vunpack.c.l.b16 %v7283
    %v8405 = vunpack.c.h.b16 %v7283
    %v8406 = vunpack.c.l.b16 %v7284
    %v8407 = vunpack.c.h.b16 %v7284
    %v8408 = vunpack.c.l.b16 %v7285
    %v8409 = vunpack.c.h.b16 %v7285
    %v8410 = vunpack.c.l.b16 %v7286
    %v8411 = vunpack.c.h.b16 %v7286
    %v8412 = vunpack.c.l.b16 %v7287
    %v8413 = vunpack.c.h.b16 %v7287
    %v8414 = vunpack.c.l.b16 %v7288
    %v8415 = vunpack.c.h.b16 %v7288
    %v8416 = vunpack.c.l.b16 %v7289
    %v8417 = vunpack.c.h.b16 %v7289
    %v8418 = vunpack.c.l.b16 %v7290
    %v8419 = vunpack.c.h.b16 %v7290
    %v8420 = vunpack.c.l.b16 %v7291
    %v8421 = vunpack.c.h.b16 %v7291
    %v8422 = vunpack.c.l.b16 %v7292
    %v8423 = vunpack.c.h.b16 %v7292
    %v8424 = vunpack.c.l.b16 %v7293
    %v8425 = vunpack.c.h.b16 %v7293
    %v8426 = vunpack.c.l.b16 %v7294
    %v8427 = vunpack.c.h.b16 %v7294
    %v8428 = vunpack.c.l.b16 %v7295
    %v8429 = vunpack.c.h.b16 %v7295
    %v8430 = vunpack.c.l.b16 %v7296
    %v8431 = vunpack.c.h.b16 %v7296
    %v8432 = vunpack.c.l.b16 %v7297
    %v8433 = vunpack.c.h.b16 %v7297
    %v8434 = vunpack.c.l.b16 %v7298
    %v8435 = vunpack.c.h.b16 %v7298
    %v8436 = vunpack.c.l.b16 %v7299
    %v8437 = vunpack.c.h.b16 %v7299
    %v8438 = vunpack.c.l.b16 %v7300
    %v8439 = vunpack.c.h.b16 %v7300
    %v8440 = vunpack.c.l.b16 %v7301
    %v8441 = vunpack.c.h.b16 %v7301
    %v8442 = vunpack.c.l.b16 %v7302
    %v8443 = vunpack.c.h.b16 %v7302
    %v8444 = vunpack.c.l.b16 %v7303
    %v8445 = vunpack.c.h.b16 %v7303
    %v8446 = vunpack.c.l.b16 %v7304
    %v8447 = vunpack.c.h.b16 %v7304
    %v8448 = vunpack.c.l.b16 %v7305
    %v8449 = vunpack.c.h.b16 %v7305
    %v8450 = vunpack.c.l.b16 %v7306
    %v8451 = vunpack.c.h.b16 %v7306
    %v8452 = vunpack.c.l.b16 %v7307
    %v8453 = vunpack.c.h.b16 %v7307
    %v8454 = vunpack.c.l.b16 %v7308
    %v8455 = vunpack.c.h.b16 %v7308
    %v8456 = vunpack.c.l.b16 %v7309
    %v8457 = vunpack.c.h.b16 %v7309
    %v8458 = vunpack.c.l.b16 %v7310
    %v8459 = vunpack.c.h.b16 %v7310
    %v8460 = vunpack.c.l.b16 %v7311
    %v8461 = vunpack.c.h.b16 %v7311
    %v8462 = vunpack.c.l.b16 %v7312
    %v8463 = vunpack.c.h.b16 %v7312
    %v8464 = vunpack.c.l.b16 %v7313
    %v8465 = vunpack.c.h.b16 %v7313
    %v8466 = vunpack.c.l.b16 %v7314
    %v8467 = vunpack.c.h.b16 %v7314
    %v8468 = vunpack.c.l.b16 %v7315
    %v8469 = vunpack.c.h.b16 %v7315
    %v8470 = vunpack.c.l.b16 %v7316
    %v8471 = vunpack.c.h.b16 %v7316
    %v8472 = vunpack.c.l.b16 %v7317
    %v8473 = vunpack.c.h.b16 %v7317
    %v8474 = vunpack.c.l.b16 %v7318
    %v8475 = vunpack.c.h.b16 %v7318
    %v8476 = vunpack.c.l.b16 %v7319
    %v8477 = vunpack.c.h.b16 %v7319
    %v8478 = vunpack.c.l.b16 %v7320
    %v8479 = vunpack.c.h.b16 %v7320
    %v8480 = vunpack.c.l.b16 %v7321
    %v8481 = vunpack.c.h.b16 %v7321
    %v8482 = vunpack.c.l.b16 %v7322
    %v8483 = vunpack.c.h.b16 %v7322
    %v8484 = vunpack.c.l.b16 %v7323
    %v8485 = vunpack.c.h.b16 %v7323
    %v8486 = vunpack.c.l.b16 %v7324
    %v8487 = vunpack.c.h.b16 %v7324
    %v8488 = vunpack.c.l.b16 %v7325
    %v8489 = vunpack.c.h.b16 %v7325
    %v8490 = vunpack.c.l.b16 %v7326
    %v8491 = vunpack.c.h.b16 %v7326
    %v8492 = vunpack.c.l.b16 %v7327
    %v8493 = vunpack.c.h.b16 %v7327
    %v8494 = vunpack.c.l.b16 %v7328
    %v8495 = vunpack.c.h.b16 %v7328
    %v8496 = vunpack.c.l.b16 %v7329
    %v8497 = vunpack.c.h.b16 %v7329
    %v8498 = vunpack.c.l.b16 %v7330
    %v8499 = vunpack.c.h.b16 %v7330
    %v8500 = vunpack.c.l.b16 %v7331
    %v8501 = vunpack.c.h.b16 %v7331
    %v8502 = vunpack.c.l.b16 %v7332
    %v8503 = vunpack.c.h.b16 %v7332
    %v8504 = vunpack.c.l.b16 %v7333
    %v8505 = vunpack.c.h.b16 %v7333
    %v8506 = vunpack.c.l.b16 %v7334
    %v8507 = vunpack.c.h.b16 %v7334
    %v8508 = vunpack.c.l.b16 %v7335
    %v8509 = vunpack.c.h.b16 %v7335
    %v8510 = vunpack.c.l.b16 %v7336
    %v8511 = vunpack.c.h.b16 %v7336
    %v8512 = vunpack.c.l.b16 %v7337
    %v8513 = vunpack.c.h.b16 %v7337
    %v8514 = vunpack.c.l.b16 %v7338
    %v8515 = vunpack.c.h.b16 %v7338
    %v8516 = vunpack.c.l.b16 %v7339
    %v8517 = vunpack.c.h.b16 %v7339
    %v8518 = vunpack.c.l.b16 %v7340
    %v8519 = vunpack.c.h.b16 %v7340
    %v8520 = vunpack.c.l.b16 %v7341
    %v8521 = vunpack.c.h.b16 %v7341
    %v8522 = vunpack.c.l.b16 %v7342
    %v8523 = vunpack.c.h.b16 %v7342
    %v8524 = vunpack.c.l.b16 %v7343
    %v8525 = vunpack.c.h.b16 %v7343
    %v8526 = vunpack.c.l.b16 %v7344
    %v8527 = vunpack.c.h.b16 %v7344
    %v8528 = vunpack.c.l.b16 %v7345
    %v8529 = vunpack.c.h.b16 %v7345
    %v8530 = vunpack.c.l.b16 %v7346
    %v8531 = vunpack.c.h.b16 %v7346
    %v8532 = vunpack.c.l.b16 %v7347
    %v8533 = vunpack.c.h.b16 %v7347
    %v8534 = vunpack.c.l.b16 %v7348
    %v8535 = vunpack.c.h.b16 %v7348
    %v8536 = vunpack.c.l.b16 %v7349
    %v8537 = vunpack.c.h.b16 %v7349
    %v8538 = vunpack.c.l.b16 %v7350
    %v8539 = vunpack.c.h.b16 %v7350
    %v8540 = vunpack.c.l.b16 %v7351
    %v8541 = vunpack.c.h.b16 %v7351
    %v8542 = vunpack.c.l.b16 %v7352
    %v8543 = vunpack.c.h.b16 %v7352
    %v8544 = vunpack.c.l.b16 %v7353
    %v8545 = vunpack.c.h.b16 %v7353
    %v8546 = vunpack.c.l.b16 %v7354
    %v8547 = vunpack.c.h.b16 %v7354
    %v8548 = vunpack.c.l.b16 %v7355
    %v8549 = vunpack.c.h.b16 %v7355
    %v8550 = vunpack.c.l.b16 %v7356
    %v8551 = vunpack.c.h.b16 %v7356
    %v8552 = vunpack.c.l.b16 %v7357
    %v8553 = vunpack.c.h.b16 %v7357
    %v8554 = vunpack.c.l.b16 %v7358
    %v8555 = vunpack.c.h.b16 %v7358
    %v8556 = vunpack.c.l.b16 %v7359
    %v8557 = vunpack.c.h.b16 %v7359
    %v8558 = vunpack.c.l.b16 %v7360
    %v8559 = vunpack.c.h.b16 %v7360
    %v8560 = vunpack.c.l.b16 %v7361
    %v8561 = vunpack.c.h.b16 %v7361
    %v8562 = vunpack.c.l.b16 %v7362
    %v8563 = vunpack.c.h.b16 %v7362
    %v8564 = vunpack.c.l.b16 %v7363
    %v8565 = vunpack.c.h.b16 %v7363
    %v8566 = vunpack.c.l.b16 %v7364
    %v8567 = vunpack.c.h.b16 %v7364
    %v8568 = vunpack.c.l.b16 %v7365
    %v8569 = vunpack.c.h.b16 %v7365
    %v8570 = vunpack.c.l.b16 %v7366
    %v8571 = vunpack.c.h.b16 %v7366
    %v8572 = vunpack.c.l.b16 %v7367
    %v8573 = vunpack.c.h.b16 %v7367
    %v8574 = vunpack.c.l.b16 %v7368
    %v8575 = vunpack.c.h.b16 %v7368
    %v8576 = vunpack.c.l.b16 %v7369
    %v8577 = vunpack.c.h.b16 %v7369
    %v8578 = vunpack.c.l.b16 %v7370
    %v8579 = vunpack.c.h.b16 %v7370
    %v8580 = vunpack.c.l.b16 %v7371
    %v8581 = vunpack.c.h.b16 %v7371
    %v8582 = vunpack.c.l.b16 %v7372
    %v8583 = vunpack.c.h.b16 %v7372
    %v8584 = vunpack.c.l.b16 %v7373
    %v8585 = vunpack.c.h.b16 %v7373
    %v8586 = vunpack.c.l.b16 %v7374
    %v8587 = vunpack.c.h.b16 %v7374
    %v8588 = vunpack.c.l.b16 %v7375
    %v8589 = vunpack.c.h.b16 %v7375
    %v8590 = vunpack.c.l.b16 %v7376
    %v8591 = vunpack.c.h.b16 %v7376
    %v8592 = vunpack.c.l.b16 %v7377
    %v8593 = vunpack.c.h.b16 %v7377
    %v8594 = vunpack.c.l.b16 %v7378
    %v8595 = vunpack.c.h.b16 %v7378
    %v8596 = vunpack.c.l.b16 %v7379
    %v8597 = vunpack.c.h.b16 %v7379
    %v8598 = vunpack.c.l.b16 %v7380
    %v8599 = vunpack.c.h.b16 %v7380
    %v8600 = vunpack.c.l.b16 %v7381
    %v8601 = vunpack.c.h.b16 %v7381
    %v8602 = vunpack.c.l.b16 %v7382
    %v8603 = vunpack.c.h.b16 %v7382
    %v8604 = vunpack.c.l.b16 %v7383
    %v8605 = vunpack.c.h.b16 %v7383
    %v8606 = vunpack.c.l.b16 %v7384
    %v8607 = vunpack.c.h.b16 %v7384
    %v8608 = vunpack.c.l.b16 %v7385
    %v8609 = vunpack.c.h.b16 %v7385
    %v8610 = vunpack.c.l.b16 %v7386
    %v8611 = vunpack.c.h.b16 %v7386
    %v8612 = vunpack.c.l.b16 %v7387
    %v8613 = vunpack.c.h.b16 %v7387
    %v8614 = vunpack.c.l.b16 %v7388
    %v8615 = vunpack.c.h.b16 %v7388
    %v8616 = vunpack.c.l.b16 %v7389
    %v8617 = vunpack.c.h.b16 %v7389
    %v8618 = vunpack.c.l.b16 %v7390
    %v8619 = vunpack.c.h.b16 %v7390
    %v8620 = vunpack.c.l.b16 %v7391
    %v8621 = vunpack.c.h.b16 %v7391
    %v8622 = vunpack.c.l.b16 %v7392
    %v8623 = vunpack.c.h.b16 %v7392
    %v8624 = vunpack.c.l.b16 %v7393
    %v8625 = vunpack.c.h.b16 %v7393
    %v8626 = vunpack.c.l.b16 %v7394
    %v8627 = vunpack.c.h.b16 %v7394
    %v8628 = vunpack.c.l.b16 %v7395
    %v8629 = vunpack.c.h.b16 %v7395
    %v8630 = vunpack.c.l.b16 %v7396
    %v8631 = vunpack.c.h.b16 %v7396
    %v8632 = vunpack.c.l.b16 %v7397
    %v8633 = vunpack.c.h.b16 %v7397
    %v8634 = vunpack.c.l.b16 %v7398
    %v8635 = vunpack.c.h.b16 %v7398
    %v8636 = vunpack.c.l.b16 %v7399
    %v8637 = vunpack.c.h.b16 %v7399
    %v8638 = vunpack.c.l.b16 %v7400
    %v8639 = vunpack.c.h.b16 %v7400
    %v8640 = vunpack.c.l.b16 %v7401
    %v8641 = vunpack.c.h.b16 %v7401
    %v8642 = vunpack.c.l.b16 %v7402
    %v8643 = vunpack.c.h.b16 %v7402
    %v8644 = vunpack.c.l.b16 %v7403
    %v8645 = vunpack.c.h.b16 %v7403
    %v8646 = vunpack.c.l.b16 %v7404
    %v8647 = vunpack.c.h.b16 %v7404
    %v8648 = vunpack.c.l.b16 %v7405
    %v8649 = vunpack.c.h.b16 %v7405
    %v8650 = vunpack.c.l.b16 %v7406
    %v8651 = vunpack.c.h.b16 %v7406
    %v8652 = vunpack.c.l.b16 %v7407
    %v8653 = vunpack.c.h.b16 %v7407
    %v8654 = vunpack.c.l.b16 %v7408
    %v8655 = vunpack.c.h.b16 %v7408
    %v8656 = vunpack.c.l.b16 %v7409
    %v8657 = vunpack.c.h.b16 %v7409
    %v8658 = vunpack.c.l.b16 %v7410
    %v8659 = vunpack.c.h.b16 %v7410
    %v8660 = vunpack.c.l.b16 %v7411
    %v8661 = vunpack.c.h.b16 %v7411
    %v8662 = vunpack.c.l.b16 %v7412
    %v8663 = vunpack.c.h.b16 %v7412
    %v8664 = vunpack.c.l.b16 %v7413
    %v8665 = vunpack.c.h.b16 %v7413
    %v8666 = vunpack.c.l.b16 %v7414
    %v8667 = vunpack.c.h.b16 %v7414
    %v8668 = vunpack.c.l.b16 %v7415
    %v8669 = vunpack.c.h.b16 %v7415
    %v8670 = vunpack.c.l.b16 %v7416
    %v8671 = vunpack.c.h.b16 %v7416
    %v8672 = vunpack.c.l.b16 %v7417
    %v8673 = vunpack.c.h.b16 %v7417
    %v8674 = vunpack.c.l.b16 %v7418
    %v8675 = vunpack.c.h.b16 %v7418
    %v8676 = vunpack.c.l.b16 %v7419
    %v8677 = vunpack.c.h.b16 %v7419
    %v8678 = vunpack.c.l.b16 %v7420
    %v8679 = vunpack.c.h.b16 %v7420
    %v8680 = vunpack.c.l.b16 %v7421
    %v8681 = vunpack.c.h.b16 %v7421
    %v8682 = vunpack.c.l.b16 %v7422
    %v8683 = vunpack.c.h.b16 %v7422
    %v8684 = vunpack.c.l.b16 %v7423
    %v8685 = vunpack.c.h.b16 %v7423
    %v8686 = vunpack.c.l.b16 %v7424
    %v8687 = vunpack.c.h.b16 %v7424
    %v8688 = vunpack.c.l.b16 %v7425
    %v8689 = vunpack.c.h.b16 %v7425
    %v8690 = vunpack.c.l.b16 %v7426
    %v8691 = vunpack.c.h.b16 %v7426
    %v8692 = vunpack.c.l.b16 %v7427
    %v8693 = vunpack.c.h.b16 %v7427
    %v8694 = vunpack.c.l.b16 %v7428
    %v8695 = vunpack.c.h.b16 %v7428
    %v8696 = vunpack.c.l.b16 %v7429
    %v8697 = vunpack.c.h.b16 %v7429
    %v8698 = vunpack.c.l.b16 %v7430
    %v8699 = vunpack.c.h.b16 %v7430
    %v8700 = vunpack.c.l.b16 %v7431
    %v8701 = vunpack.c.h.b16 %v7431
    %v8702 = vunpack.c.l.b16 %v7432
    %v8703 = vunpack.c.h.b16 %v7432
    %v8704 = vunpack.c.l.b16 %v7433
    %v8705 = vunpack.c.h.b16 %v7433
    %v8706 = vunpack.c.l.b16 %v7434
    %v8707 = vunpack.c.h.b16 %v7434
    %v8708 = vunpack.c.l.b16 %v7435
    %v8709 = vunpack.c.h.b16 %v7435
    %v8710 = vunpack.c.l.b16 %v7436
    %v8711 = vunpack.c.h.b16 %v7436
    %v8712 = vunpack.c.l.b16 %v7437
    %v8713 = vunpack.c.h.b16 %v7437
    %v8714 = vunpack.c.l.b16 %v7438
    %v8715 = vunpack.c.h.b16 %v7438
    %v8716 = vunpack.c.l.b16 %v7439
    %v8717 = vunpack.c.h.b16 %v7439
    %v8718 = vunpack.c.l.b16 %v7440
    %v8719 = vunpack.c.h.b16 %v7440
    %v8720 = vunpack.c.l.b16 %v7441
    %v8721 = vunpack.c.h.b16 %v7441
    %v8722 = vunpack.c.l.b16 %v7442
    %v8723 = vunpack.c.h.b16 %v7442
    %v8724 = vunpack.c.l.b16 %v7443
    %v8725 = vunpack.c.h.b16 %v7443
    %v8726 = vunpack.c.l.b16 %v7444
    %v8727 = vunpack.c.h.b16 %v7444
    %v8728 = vunpack.c.l.b16 %v7445
    %v8729 = vunpack.c.h.b16 %v7445
    %v8730 = vunpack.c.l.b16 %v7446
    %v8731 = vunpack.c.h.b16 %v7446
    %v8732 = vunpack.c.l.b16 %v7447
    %v8733 = vunpack.c.h.b16 %v7447
    %v8734 = vunpack.c.l.b16 %v7448
    %v8735 = vunpack.c.h.b16 %v7448
    %v8736 = vunpack.c.l.b16 %v7449
    %v8737 = vunpack.c.h.b16 %v7449
    %v8738 = vunpack.c.l.b16 %v7450
    %v8739 = vunpack.c.h.b16 %v7450
    %v8740 = vunpack.c.l.b16 %v7451
    %v8741 = vunpack.c.h.b16 %v7451
    %v8742 = vunpack.c.l.b16 %v7452
    %v8743 = vunpack.c.h.b16 %v7452
    %v8744 = vunpack.c.l.b16 %v7453
    %v8745 = vunpack.c.h.b16 %v7453
    %v8746 = vunpack.c.l.b16 %v7454
    %v8747 = vunpack.c.h.b16 %v7454
    %v8748 = vunpack.c.l.b16 %v7455
    %v8749 = vunpack.c.h.b16 %v7455
    %v8750 = vunpack.c.l.b16 %v7456
    %v8751 = vunpack.c.h.b16 %v7456
    %v8752 = vunpack.c.l.b16 %v7457
    %v8753 = vunpack.c.h.b16 %v7457
    %v8754 = vunpack.c.l.b16 %v7458
    %v8755 = vunpack.c.h.b16 %v7458
    %v8756 = vunpack.c.l.b16 %v7459
    %v8757 = vunpack.c.h.b16 %v7459
    %v8758 = vunpack.c.l.b16 %v7460
    %v8759 = vunpack.c.h.b16 %v7460
    %v8760 = vunpack.c.l.b16 %v7461
    %v8761 = vunpack.c.h.b16 %v7461
    %v8762 = vunpack.c.l.b16 %v7462
    %v8763 = vunpack.c.h.b16 %v7462
    %v8764 = vunpack.c.l.b16 %v7463
    %v8765 = vunpack.c.h.b16 %v7463
    %v8766 = vunpack.c.l.b16 %v7464
    %v8767 = vunpack.c.h.b16 %v7464
    %v8768 = vunpack.c.l.b16 %v7465
    %v8769 = vunpack.c.h.b16 %v7465
    %v8770 = vunpack.c.l.b16 %v7466
    %v8771 = vunpack.c.h.b16 %v7466
    %v8772 = vunpack.c.l.b16 %v7467
    %v8773 = vunpack.c.h.b16 %v7467
    %v8774 = vunpack.c.l.b16 %v7468
    %v8775 = vunpack.c.h.b16 %v7468
    %v8776 = vunpack.c.l.b16 %v7469
    %v8777 = vunpack.c.h.b16 %v7469
    %v8778 = vunpack.c.l.b16 %v7470
    %v8779 = vunpack.c.h.b16 %v7470
    %v8780 = vunpack.c.l.b16 %v7471
    %v8781 = vunpack.c.h.b16 %v7471
    %v8782 = vunpack.c.l.b16 %v7472
    %v8783 = vunpack.c.h.b16 %v7472
    %v8784 = vunpack.c.l.b16 %v7473
    %v8785 = vunpack.c.h.b16 %v7473
    %v8786 = vunpack.c.l.b16 %v7474
    %v8787 = vunpack.c.h.b16 %v7474
    %v8788 = vunpack.c.l.b16 %v7475
    %v8789 = vunpack.c.h.b16 %v7475
    %v8790 = vunpack.c.l.b16 %v7476
    %v8791 = vunpack.c.h.b16 %v7476
    %v8792 = vunpack.c.l.b16 %v7477
    %v8793 = vunpack.c.h.b16 %v7477
    %v8794 = vunpack.c.l.b16 %v7478
    %v8795 = vunpack.c.h.b16 %v7478
    %v8796 = vunpack.c.l.b16 %v7479
    %v8797 = vunpack.c.h.b16 %v7479
    %v8798 = vunpack.c.l.b16 %v7480
    %v8799 = vunpack.c.h.b16 %v7480
    %v8800 = vunpack.c.l.b16 %v7481
    %v8801 = vunpack.c.h.b16 %v7481
    %v8802 = vunpack.c.l.b16 %v7482
    %v8803 = vunpack.c.h.b16 %v7482
    %v8804 = vunpack.c.l.b16 %v7483
    %v8805 = vunpack.c.h.b16 %v7483
    %v8806 = vunpack.c.l.b16 %v7484
    %v8807 = vunpack.c.h.b16 %v7484
    %v8808 = vunpack.c.l.b16 %v7485
    %v8809 = vunpack.c.h.b16 %v7485
    %v8810 = vunpack.c.l.b16 %v7486
    %v8811 = vunpack.c.h.b16 %v7486
    %v8812 = vunpack.c.l.b16 %v7487
    %v8813 = vunpack.c.h.b16 %v7487
    %v8814 = vunpack.c.l.b16 %v7488
    %v8815 = vunpack.c.h.b16 %v7488
    %v8816 = vunpack.c.l.b16 %v7489
    %v8817 = vunpack.c.h.b16 %v7489
    %v8818 = vunpack.c.l.b16 %v7490
    %v8819 = vunpack.c.h.b16 %v7490
    %v8820 = vunpack.c.l.b16 %v7491
    %v8821 = vunpack.c.h.b16 %v7491
    %v8822 = vunpack.c.l.b16 %v7492
    %v8823 = vunpack.c.h.b16 %v7492
    %v8824 = vunpack.c.l.b16 %v7493
    %v8825 = vunpack.c.h.b16 %v7493
    %v8826 = vunpack.c.l.b16 %v7494
    %v8827 = vunpack.c.h.b16 %v7494
    %v8828 = vunpack.c.l.b16 %v7495
    %v8829 = vunpack.c.h.b16 %v7495
    %v8830 = vunpack.c.l.b16 %v7496
    %v8831 = vunpack.c.h.b16 %v7496
    %v8832 = vunpack.c.l.b16 %v7497
    %v8833 = vunpack.c.h.b16 %v7497
    %v8834 = vunpack.c.l.b16 %v7498
    %v8835 = vunpack.c.h.b16 %v7498
    %v8836 = vunpack.c.l.b16 %v7499
    %v8837 = vunpack.c.h.b16 %v7499
    %v8838 = vunpack.c.l.b16 %v7500
    %v8839 = vunpack.c.h.b16 %v7500
    %v8840 = vunpack.c.l.b16 %v7501
    %v8841 = vunpack.c.h.b16 %v7501
    %v8842 = vunpack.c.l.b16 %v7502
    %v8843 = vunpack.c.h.b16 %v7502
    %v8844 = vunpack.c.l.b16 %v7503
    %v8845 = vunpack.c.h.b16 %v7503
    %v8846 = vunpack.c.l.b16 %v7504
    %v8847 = vunpack.c.h.b16 %v7504
    %v8848 = vunpack.c.l.b16 %v7505
    %v8849 = vunpack.c.h.b16 %v7505
    %v8850 = vunpack.c.l.b16 %v7506
    %v8851 = vunpack.c.h.b16 %v7506
    %v8852 = vunpack.c.l.b16 %v7507
    %v8853 = vunpack.c.h.b16 %v7507
    %v8854 = vunpack.c.l.b16 %v7508
    %v8855 = vunpack.c.h.b16 %v7508
    %v8856 = vunpack.c.l.b16 %v7509
    %v8857 = vunpack.c.h.b16 %v7509
    %v8858 = vunpack.c.l.b16 %v7510
    %v8859 = vunpack.c.h.b16 %v7510
    %v8860 = vunpack.c.l.b16 %v7511
    %v8861 = vunpack.c.h.b16 %v7511
    %v8862 = vunpack.c.l.b16 %v7512
    %v8863 = vunpack.c.h.b16 %v7512
    %v8864 = vunpack.c.l.b16 %v7513
    %v8865 = vunpack.c.h.b16 %v7513
    %v8866 = vunpack.c.l.b16 %v7514
    %v8867 = vunpack.c.h.b16 %v7514
    %v8868 = vunpack.c.l.b16 %v7515
    %v8869 = vunpack.c.h.b16 %v7515
    %v8870 = vunpack.c.l.b16 %v7516
    %v8871 = vunpack.c.h.b16 %v7516
    %v8872 = vunpack.c.l.b16 %v7517
    %v8873 = vunpack.c.h.b16 %v7517
    %v8874 = vunpack.c.l.b16 %v7518
    %v8875 = vunpack.c.h.b16 %v7518
    %v8876 = vunpack.c.l.b16 %v7519
    %v8877 = vunpack.c.h.b16 %v7519
    %v8878 = vunpack.c.l.b16 %v7520
    %v8879 = vunpack.c.h.b16 %v7520
    %v8880 = vunpack.c.l.b16 %v7521
    %v8881 = vunpack.c.h.b16 %v7521
    %v8882 = vunpack.c.l.b16 %v7522
    %v8883 = vunpack.c.h.b16 %v7522
    %v8884 = vunpack.c.l.b16 %v7523
    %v8885 = vunpack.c.h.b16 %v7523
    %v8886 = vunpack.c.l.b16 %v7524
    %v8887 = vunpack.c.h.b16 %v7524
    %v8888 = vunpack.c.l.b16 %v7525
    %v8889 = vunpack.c.h.b16 %v7525
    %v8890 = vunpack.c.l.b16 %v7526
    %v8891 = vunpack.c.h.b16 %v7526
    %v8892 = vunpack.c.l.b16 %v7527
    %v8893 = vunpack.c.h.b16 %v7527
    %v8894 = vunpack.c.l.b16 %v7528
    %v8895 = vunpack.c.h.b16 %v7528
    %v8896 = vunpack.c.l.b16 %v7529
    %v8897 = vunpack.c.h.b16 %v7529
    %v8898 = vunpack.c.l.b16 %v7530
    %v8899 = vunpack.c.h.b16 %v7530
    %v8900 = vunpack.c.l.b16 %v7531
    %v8901 = vunpack.c.h.b16 %v7531
    %v8902 = vunpack.c.l.b16 %v7532
    %v8903 = vunpack.c.h.b16 %v7532
    %v8904 = vunpack.c.l.b16 %v7533
    %v8905 = vunpack.c.h.b16 %v7533
    %v8906 = vunpack.c.l.b16 %v7534
    %v8907 = vunpack.c.h.b16 %v7534
    %v8908 = vunpack.c.l.b16 %v7535
    %v8909 = vunpack.c.h.b16 %v7535
    %v8910 = vunpack.c.l.b16 %v7536
    %v8911 = vunpack.c.h.b16 %v7536
    %v8912 = vunpack.c.l.b16 %v7537
    %v8913 = vunpack.c.h.b16 %v7537
    %v8914 = vunpack.c.l.b16 %v7538
    %v8915 = vunpack.c.h.b16 %v7538
    %v8916 = vunpack.c.l.b16 %v7539
    %v8917 = vunpack.c.h.b16 %v7539
    %v8918 = vunpack.c.l.b16 %v7540
    %v8919 = vunpack.c.h.b16 %v7540
    %v8920 = vunpack.c.l.b16 %v7541
    %v8921 = vunpack.c.h.b16 %v7541
    %v8922 = vunpack.c.l.b16 %v7542
    %v8923 = vunpack.c.h.b16 %v7542
    %v8924 = vunpack.c.l.b16 %v7543
    %v8925 = vunpack.c.h.b16 %v7543
    %v8926 = vunpack.c.l.b16 %v7544
    %v8927 = vunpack.c.h.b16 %v7544
    %v8928 = vunpack.c.l.b16 %v7545
    %v8929 = vunpack.c.h.b16 %v7545
    %v8930 = vunpack.c.l.b16 %v7546
    %v8931 = vunpack.c.h.b16 %v7546
    %v8932 = vunpack.c.l.b16 %v7547
    %v8933 = vunpack.c.h.b16 %v7547
    %v8934 = vunpack.c.l.b16 %v7548
    %v8935 = vunpack.c.h.b16 %v7548
    %v8936 = vunpack.c.l.b16 %v7549
    %v8937 = vunpack.c.h.b16 %v7549
    %v8938 = vunpack.c.l.b16 %v7550
    %v8939 = vunpack.c.h.b16 %v7550
    %v8940 = vunpack.c.l.b16 %v7551
    %v8941 = vunpack.c.h.b16 %v7551
    %v8942 = vunpack.c.l.b16 %v7552
    %v8943 = vunpack.c.h.b16 %v7552
    %v8944 = vunpack.c.l.b16 %v7553
    %v8945 = vunpack.c.h.b16 %v7553
    %v8946 = vunpack.c.l.b16 %v7554
    %v8947 = vunpack.c.h.b16 %v7554
    %v8948 = vunpack.c.l.b16 %v7555
    %v8949 = vunpack.c.h.b16 %v7555
    %v8950 = vunpack.c.l.b16 %v7556
    %v8951 = vunpack.c.h.b16 %v7556
    %v8952 = vunpack.c.l.b16 %v7557
    %v8953 = vunpack.c.h.b16 %v7557
    %v8954 = vunpack.c.l.b16 %v7558
    %v8955 = vunpack.c.h.b16 %v7558
    %v8956 = vunpack.c.l.b16 %v7559
    %v8957 = vunpack.c.h.b16 %v7559
    %v8958 = vunpack.c.l.b16 %v7560
    %v8959 = vunpack.c.h.b16 %v7560
    %v8960 = vunpack.c.l.b16 %v7561
    %v8961 = vunpack.c.h.b16 %v7561
    %v8962 = vunpack.c.l.b16 %v7562
    %v8963 = vunpack.c.h.b16 %v7562
    %v8964 = vunpack.c.l.b16 %v7563
    %v8965 = vunpack.c.h.b16 %v7563
    %v8966 = vunpack.c.l.b16 %v7564
    %v8967 = vunpack.c.h.b16 %v7564
    %v8968 = vunpack.c.l.b16 %v7565
    %v8969 = vunpack.c.h.b16 %v7565
    %v8970 = vunpack.c.l.b16 %v7566
    %v8971 = vunpack.c.h.b16 %v7566
    %v8972 = vunpack.c.l.b16 %v7567
    %v8973 = vunpack.c.h.b16 %v7567
    %v8974 = vunpack.c.l.b16 %v7568
    %v8975 = vunpack.c.h.b16 %v7568
    %v8976 = vunpack.c.l.b16 %v7569
    %v8977 = vunpack.c.h.b16 %v7569
    %v8978 = vunpack.c.l.b16 %v7570
    %v8979 = vunpack.c.h.b16 %v7570
    %v8980 = vunpack.c.l.b16 %v7571
    %v8981 = vunpack.c.h.b16 %v7571
    %v8982 = vunpack.c.l.b16 %v7572
    %v8983 = vunpack.c.h.b16 %v7572
    %v8984 = vunpack.c.l.b16 %v7573
    %v8985 = vunpack.c.h.b16 %v7573
    %v8986 = vunpack.c.l.b16 %v7574
    %v8987 = vunpack.c.h.b16 %v7574
    %v8988 = vunpack.c.l.b16 %v7575
    %v8989 = vunpack.c.h.b16 %v7575
    %v8990 = vunpack.c.l.b16 %v7576
    %v8991 = vunpack.c.h.b16 %v7576
    %v8992 = vunpack.c.l.b16 %v7577
    %v8993 = vunpack.c.h.b16 %v7577
    %v8994 = vunpack.c.l.b16 %v7578
    %v8995 = vunpack.c.h.b16 %v7578
    %v8996 = vunpack.c.l.b16 %v7579
    %v8997 = vunpack.c.h.b16 %v7579
    %v8998 = vunpack.c.l.b16 %v7580
    %v8999 = vunpack.c.h.b16 %v7580
    %v9000 = vunpack.c.l.b16 %v7581
    %v9001 = vunpack.c.h.b16 %v7581
    %v9002 = vunpack.c.l.b16 %v7582
    %v9003 = vunpack.c.h.b16 %v7582
    %v9004 = vunpack.c.l.b16 %v7583
    %v9005 = vunpack.c.h.b16 %v7583
    %v9006 = vunpack.c.l.b16 %v7584
    %v9007 = vunpack.c.h.b16 %v7584
    %v9008 = vunpack.c.l.b16 %v7585
    %v9009 = vunpack.c.h.b16 %v7585
    %v9010 = vunpack.c.l.b16 %v7586
    %v9011 = vunpack.c.h.b16 %v7586
    %v9012 = vunpack.c.l.b16 %v7587
    %v9013 = vunpack.c.h.b16 %v7587
    %v9014 = vunpack.c.l.b16 %v7588
    %v9015 = vunpack.c.h.b16 %v7588
    %v9016 = vunpack.c.l.b16 %v7589
    %v9017 = vunpack.c.h.b16 %v7589
    %v9018 = vunpack.c.l.b16 %v7590
    %v9019 = vunpack.c.h.b16 %v7590
    %v9020 = vunpack.c.l.b16 %v7591
    %v9021 = vunpack.c.h.b16 %v7591
    %v9022 = vunpack.c.l.b16 %v7592
    %v9023 = vunpack.c.h.b16 %v7592
    %v9024 = vunpack.c.l.b16 %v7593
    %v9025 = vunpack.c.h.b16 %v7593
    %v9026 = vunpack.c.l.b16 %v7594
    %v9027 = vunpack.c.h.b16 %v7594
    %v9028 = vunpack.c.l.b16 %v7595
    %v9029 = vunpack.c.h.b16 %v7595
    %v9030 = vunpack.c.l.b16 %v7596
    %v9031 = vunpack.c.h.b16 %v7596
    %v9032 = vunpack.c.l.b16 %v7597
    %v9033 = vunpack.c.h.b16 %v7597
    %v9034 = vunpack.c.l.b16 %v7598
    %v9035 = vunpack.c.h.b16 %v7598
    %v9036 = vunpack.c.l.b16 %v7599
    %v9037 = vunpack.c.h.b16 %v7599
    %v9038 = vunpack.c.l.b16 %v7600
    %v9039 = vunpack.c.h.b16 %v7600
    %v9040 = vunpack.c.l.b16 %v7601
    %v9041 = vunpack.c.h.b16 %v7601
    %v9042 = vunpack.c.l.b16 %v7602
    %v9043 = vunpack.c.h.b16 %v7602
    %v9044 = vunpack.c.l.b16 %v7603
    %v9045 = vunpack.c.h.b16 %v7603
    %v9046 = vunpack.c.l.b16 %v7604
    %v9047 = vunpack.c.h.b16 %v7604
    %v9048 = vunpack.c.l.b16 %v7605
    %v9049 = vunpack.c.h.b16 %v7605
    %v9050 = vunpack.c.l.b16 %v7606
    %v9051 = vunpack.c.h.b16 %v7606
    %v9052 = vunpack.c.l.b16 %v7607
    %v9053 = vunpack.c.h.b16 %v7607
    %v9054 = vunpack.c.l.b16 %v7608
    %v9055 = vunpack.c.h.b16 %v7608
    %v9056 = vunpack.c.l.b16 %v7609
    %v9057 = vunpack.c.h.b16 %v7609
    %v9058 = vunpack.c.l.b16 %v7610
    %v9059 = vunpack.c.h.b16 %v7610
    %v9060 = vunpack.c.l.b16 %v7611
    %v9061 = vunpack.c.h.b16 %v7611
    %v9062 = vunpack.c.l.b16 %v7612
    %v9063 = vunpack.c.h.b16 %v7612
    %v9064 = vunpack.c.l.b16 %v7613
    %v9065 = vunpack.c.h.b16 %v7613
    %v9066 = vunpack.c.l.b16 %v7614
    %v9067 = vunpack.c.h.b16 %v7614
    %v9068 = vunpack.c.l.b16 %v7615
    %v9069 = vunpack.c.h.b16 %v7615
    %v9070 = vunpack.c.l.b16 %v7616
    %v9071 = vunpack.c.h.b16 %v7616
    %v9072 = vunpack.c.l.b16 %v7617
    %v9073 = vunpack.c.h.b16 %v7617
    %v9074 = vunpack.c.l.b16 %v7618
    %v9075 = vunpack.c.h.b16 %v7618
    %v9076 = vunpack.c.l.b16 %v7619
    %v9077 = vunpack.c.h.b16 %v7619
    %v9078 = vunpack.c.l.b16 %v7620
    %v9079 = vunpack.c.h.b16 %v7620
    %v9080 = vunpack.c.l.b16 %v7621
    %v9081 = vunpack.c.h.b16 %v7621
    %v9082 = vunpack.c.l.b16 %v7622
    %v9083 = vunpack.c.h.b16 %v7622
    %v9084 = vunpack.c.l.b16 %v7623
    %v9085 = vunpack.c.h.b16 %v7623
    %v9086 = vunpack.c.l.b16 %v7624
    %v9087 = vunpack.c.h.b16 %v7624
    %v9088 = vunpack.c.l.b16 %v7625
    %v9089 = vunpack.c.h.b16 %v7625
    %v9090 = vunpack.c.l.b16 %v7626
    %v9091 = vunpack.c.h.b16 %v7626
    %v9092 = vunpack.c.l.b16 %v7627
    %v9093 = vunpack.c.h.b16 %v7627
    %v9094 = vunpack.c.l.b16 %v7628
    %v9095 = vunpack.c.h.b16 %v7628
    %v9096 = vunpack.c.l.b16 %v7629
    %v9097 = vunpack.c.h.b16 %v7629
    %v9098 = vunpack.c.l.b16 %v7630
    %v9099 = vunpack.c.h.b16 %v7630
    %v9100 = vunpack.c.l.b16 %v7631
    %v9101 = vunpack.c.h.b16 %v7631
    %v9102 = vunpack.c.l.b16 %v7632
    %v9103 = vunpack.c.h.b16 %v7632
    %v9104 = vunpack.c.l.b16 %v7633
    %v9105 = vunpack.c.h.b16 %v7633
    %v9106 = vunpack.c.l.b16 %v7634
    %v9107 = vunpack.c.h.b16 %v7634
    %v9108 = vunpack.c.l.b16 %v7635
    %v9109 = vunpack.c.h.b16 %v7635
    %v9110 = vunpack.c.l.b16 %v7636
    %v9111 = vunpack.c.h.b16 %v7636
    %v9112 = vunpack.c.l.b16 %v7637
    %v9113 = vunpack.c.h.b16 %v7637
    %v9114 = vunpack.c.l.b16 %v7638
    %v9115 = vunpack.c.h.b16 %v7638
    %v9116 = vunpack.c.l.b16 %v7639
    %v9117 = vunpack.c.h.b16 %v7639
    %v9118 = vunpack.c.l.b16 %v7640
    %v9119 = vunpack.c.h.b16 %v7640
    %v9120 = vunpack.c.l.b16 %v7641
    %v9121 = vunpack.c.h.b16 %v7641
    %v9122 = vunpack.c.l.b16 %v7642
    %v9123 = vunpack.c.h.b16 %v7642
    %v9124 = vunpack.c.l.b16 %v7643
    %v9125 = vunpack.c.h.b16 %v7643
    %v9126 = vunpack.c.l.b16 %v7644
    %v9127 = vunpack.c.h.b16 %v7644
    %v9128 = vunpack.c.l.b16 %v7645
    %v9129 = vunpack.c.h.b16 %v7645
    %v9130 = vunpack.c.l.b16 %v7646
    %v9131 = vunpack.c.h.b16 %v7646
    %v9132 = vunpack.c.l.b16 %v7647
    %v9133 = vunpack.c.h.b16 %v7647
    %v9134 = vunpack.c.l.b16 %v7648
    %v9135 = vunpack.c.h.b16 %v7648
    %v9136 = vunpack.c.l.b16 %v7649
    %v9137 = vunpack.c.h.b16 %v7649
    %v9138 = vunpack.c.l.b16 %v7650
    %v9139 = vunpack.c.h.b16 %v7650
    %v9140 = vunpack.c.l.b16 %v7651
    %v9141 = vunpack.c.h.b16 %v7651
    %v9142 = vunpack.c.l.b16 %v7652
    %v9143 = vunpack.c.h.b16 %v7652
    %v9144 = vunpack.c.l.b16 %v7653
    %v9145 = vunpack.c.h.b16 %v7653
    %v9146 = vunpack.c.l.b16 %v7654
    %v9147 = vunpack.c.h.b16 %v7654
    %v9148 = vunpack.c.l.b16 %v7655
    %v9149 = vunpack.c.h.b16 %v7655
    %v9150 = vunpack.c.l.b16 %v7656
    %v9151 = vunpack.c.h.b16 %v7656
    %v9152 = vunpack.c.l.b16 %v7657
    %v9153 = vunpack.c.h.b16 %v7657
    %v9154 = vunpack.c.l.b16 %v7658
    %v9155 = vunpack.c.h.b16 %v7658
    %v9156 = vunpack.c.l.b16 %v7659
    %v9157 = vunpack.c.h.b16 %v7659
    %v9158 = vunpack.c.l.b16 %v7660
    %v9159 = vunpack.c.h.b16 %v7660
    %v9160 = vunpack.c.l.b16 %v7661
    %v9161 = vunpack.c.h.b16 %v7661
    %v9162 = vunpack.c.l.b16 %v7662
    %v9163 = vunpack.c.h.b16 %v7662
    %v9164 = vunpack.c.l.b16 %v7663
    %v9165 = vunpack.c.h.b16 %v7663
    %v9166 = vunpack.c.l.b16 %v7664
    %v9167 = vunpack.c.h.b16 %v7664
    %v9168 = vunpack.c.l.b16 %v7665
    %v9169 = vunpack.c.h.b16 %v7665
    %v9170 = vunpack.c.l.b16 %v7666
    %v9171 = vunpack.c.h.b16 %v7666
    %v9172 = vunpack.c.l.b16 %v7667
    %v9173 = vunpack.c.h.b16 %v7667
    %v9174 = vunpack.c.l.b16 %v7668
    %v9175 = vunpack.c.h.b16 %v7668
    %v9176 = vunpack.c.l.b16 %v7669
    %v9177 = vunpack.c.h.b16 %v7669
    %v9178 = vunpack.c.l.b16 %v7670
    %v9179 = vunpack.c.h.b16 %v7670
    %v9180 = vunpack.c.l.b16 %v7671
    %v9181 = vunpack.c.h.b16 %v7671
    %v9182 = vunpack.c.l.b16 %v7672
    %v9183 = vunpack.c.h.b16 %v7672
    %v9184 = vunpack.c.l.b16 %v7673
    %v9185 = vunpack.c.h.b16 %v7673
    %v9186 = vunpack.c.l.b16 %v7674
    %v9187 = vunpack.c.h.b16 %v7674
    %v9188 = vunpack.c.l.b16 %v7675
    %v9189 = vunpack.c.h.b16 %v7675
    %v9190 = vunpack.c.l.b16 %v7676
    %v9191 = vunpack.c.h.b16 %v7676
    %v9192 = vunpack.c.l.b16 %v7677
    %v9193 = vunpack.c.h.b16 %v7677
    %v9194 = vunpack.c.l.b16 %v7678
    %v9195 = vunpack.c.h.b16 %v7678
    %v9196 = vunpack.c.l.b16 %v7679
    %v9197 = vunpack.c.h.b16 %v7679
    %v9198 = vunpack.c.l.b16 %v7680
    %v9199 = vunpack.c.h.b16 %v7680
    %v9200 = vunpack.c.l.b16 %v7681
    %v9201 = vunpack.c.h.b16 %v7681
    %v9202 = vunpack.c.l.b16 %v7682
    %v9203 = vunpack.c.h.b16 %v7682
    %v9204 = vunpack.c.l.b16 %v7683
    %v9205 = vunpack.c.h.b16 %v7683
    %v9206 = vunpack.c.l.b16 %v7684
    %v9207 = vunpack.c.h.b16 %v7684
    %v9208 = vunpack.c.l.b16 %v7685
    %v9209 = vunpack.c.h.b16 %v7685
    %v9210 = vunpack.c.l.b16 %v7686
    %v9211 = vunpack.c.h.b16 %v7686
    %v9212 = vunpack.c.l.b16 %v7687
    %v9213 = vunpack.c.h.b16 %v7687
    %v9214 = vunpack.c.l.b16 %v7688
    %v9215 = vunpack.c.h.b16 %v7688
    %v9216 = vunpack.c.l.b16 %v7689
    %v9217 = vunpack.c.h.b16 %v7689
    %v9218 = vunpack.c.l.b16 %v7690
    %v9219 = vunpack.c.h.b16 %v7690
    %v9220 = vunpack.c.l.b16 %v7691
    %v9221 = vunpack.c.h.b16 %v7691
    %v9222 = vunpack.c.l.b16 %v7692
    %v9223 = vunpack.c.h.b16 %v7692
    %v9224 = vunpack.c.l.b16 %v7693
    %v9225 = vunpack.c.h.b16 %v7693
    %v9226 = vunpack.c.l.b16 %v7694
    %v9227 = vunpack.c.h.b16 %v7694
    %v9228 = vunpack.c.l.b16 %v7695
    %v9229 = vunpack.c.h.b16 %v7695
    %v9230 = vunpack.c.l.b16 %v7696
    %v9231 = vunpack.c.h.b16 %v7696
    %v9232 = vunpack.c.l.b16 %v7697
    %v9233 = vunpack.c.h.b16 %v7697
    %v9234 = vunpack.c.l.b16 %v7698
    %v9235 = vunpack.c.h.b16 %v7698
    %v9236 = vunpack.c.l.b16 %v7699
    %v9237 = vunpack.c.h.b16 %v7699
    %v9238 = vunpack.c.l.b16 %v7700
    %v9239 = vunpack.c.h.b16 %v7700
    %v9240 = vunpack.c.l.b16 %v7701
    %v9241 = vunpack.c.h.b16 %v7701
    %v9242 = vunpack.c.l.b16 %v7702
    %v9243 = vunpack.c.h.b16 %v7702
    %v9244 = vunpack.c.l.b16 %v7703
    %v9245 = vunpack.c.h.b16 %v7703
    %v9246 = vunpack.c.l.b16 %v7704
    %v9247 = vunpack.c.h.b16 %v7704
    %v9248 = vunpack.c.l.b16 %v7705
    %v9249 = vunpack.c.h.b16 %v7705
    %v9250 = vunpack.c.l.b16 %v7706
    %v9251 = vunpack.c.h.b16 %v7706
    %v9252 = vunpack.c.l.b16 %v7707
    %v9253 = vunpack.c.h.b16 %v7707
    %v9254 = vunpack.c.l.b16 %v7708
    %v9255 = vunpack.c.h.b16 %v7708
    %v9256 = vunpack.c.l.b16 %v7709
    %v9257 = vunpack.c.h.b16 %v7709
    %v9258 = vunpack.c.l.b16 %v7710
    %v9259 = vunpack.c.h.b16 %v7710
    %v9260 = vunpack.c.l.b16 %v7711
    %v9261 = vunpack.c.h.b16 %v7711
    %v9262 = vunpack.c.l.b16 %v7712
    %v9263 = vunpack.c.h.b16 %v7712
    %v9264 = vunpack.c.l.b16 %v7713
    %v9265 = vunpack.c.h.b16 %v7713
    %v9266 = vunpack.c.l.b16 %v7714
    %v9267 = vunpack.c.h.b16 %v7714
    %v9268 = vunpack.c.l.b16 %v7715
    %v9269 = vunpack.c.h.b16 %v7715
    %v9270 = vunpack.c.l.b16 %v7716
    %v9271 = vunpack.c.h.b16 %v7716
    %v9272 = vunpack.c.l.b16 %v7717
    %v9273 = vunpack.c.h.b16 %v7717
    %v9274 = vunpack.c.l.b16 %v7718
    %v9275 = vunpack.c.h.b16 %v7718
    %v9276 = vunpack.c.l.b16 %v7719
    %v9277 = vunpack.c.h.b16 %v7719
    %v9278 = vunpack.c.l.b16 %v7720
    %v9279 = vunpack.c.h.b16 %v7720
    %v9280 = vunpack.c.l.b16 %v7721
    %v9281 = vunpack.c.h.b16 %v7721
    %v9282 = vunpack.c.l.b16 %v7722
    %v9283 = vunpack.c.h.b16 %v7722
    %v9284 = vpack.c.b16 %v8268, %v8260
    %v9285 = vpack.c.b16 %v8269, %v8261
    %v9286 = vpack.c.b16 %v8270, %v8262
    %v9287 = vpack.c.b16 %v8271, %v8263
    %v9288 = vpack.c.b16 %v8272, %v8264
    %v9289 = vpack.c.b16 %v8273, %v8265
    %v9290 = vpack.c.b16 %v8274, %v8266
    %v9291 = vpack.c.b16 %v8275, %v8267
    %v9292 = vpack.c.b16 %v8284, %v8276
    %v9293 = vpack.c.b16 %v8285, %v8277
    %v9294 = vpack.c.b16 %v8286, %v8278
    %v9295 = vpack.c.b16 %v8287, %v8279
    %v9296 = vpack.c.b16 %v8288, %v8280
    %v9297 = vpack.c.b16 %v8289, %v8281
    %v9298 = vpack.c.b16 %v8290, %v8282
    %v9299 = vpack.c.b16 %v8291, %v8283
    %v9300 = vpack.c.b16 %v8300, %v8292
    %v9301 = vpack.c.b16 %v8301, %v8293
    %v9302 = vpack.c.b16 %v8302, %v8294
    %v9303 = vpack.c.b16 %v8303, %v8295
    %v9304 = vpack.c.b16 %v8304, %v8296
    %v9305 = vpack.c.b16 %v8305, %v8297
    %v9306 = vpack.c.b16 %v8306, %v8298
    %v9307 = vpack.c.b16 %v8307, %v8299
    %v9308 = vpack.c.b16 %v8316, %v8308
    %v9309 = vpack.c.b16 %v8317, %v8309
    %v9310 = vpack.c.b16 %v8318, %v8310
    %v9311 = vpack.c.b16 %v8319, %v8311
    %v9312 = vpack.c.b16 %v8320, %v8312
    %v9313 = vpack.c.b16 %v8321, %v8313
    %v9314 = vpack.c.b16 %v8322, %v8314
    %v9315 = vpack.c.b16 %v8323, %v8315
    %v9316 = vpack.c.b16 %v8332, %v8324
    %v9317 = vpack.c.b16 %v8333, %v8325
    %v9318 = vpack.c.b16 %v8334, %v8326
    %v9319 = vpack.c.b16 %v8335, %v8327
    %v9320 = vpack.c.b16 %v8336, %v8328
    %v9321 = vpack.c.b16 %v8337, %v8329
    %v9322 = vpack.c.b16 %v8338, %v8330
    %v9323 = vpack.c.b16 %v8339, %v8331
    %v9324 = vpack.c.b16 %v8348, %v8340
    %v9325 = vpack.c.b16 %v8349, %v8341
    %v9326 = vpack.c.b16 %v8350, %v8342
    %v9327 = vpack.c.b16 %v8351, %v8343
    %v9328 = vpack.c.b16 %v8352, %v8344
    %v9329 = vpack.c.b16 %v8353, %v8345
    %v9330 = vpack.c.b16 %v8354, %v8346
    %v9331 = vpack.c.b16 %v8355, %v8347
    %v9332 = vpack.c.b16 %v8364, %v8356
    %v9333 = vpack.c.b16 %v8365, %v8357
    %v9334 = vpack.c.b16 %v8366, %v8358
    %v9335 = vpack.c.b16 %v8367, %v8359
    %v9336 = vpack.c.b16 %v8368, %v8360
    %v9337 = vpack.c.b16 %v8369, %v8361
    %v9338 = vpack.c.b16 %v8370, %v8362
    %v9339 = vpack.c.b16 %v8371, %v8363
    %v9340 = vpack.c.b16 %v8380, %v8372
    %v9341 = vpack.c.b16 %v8381, %v8373
    %v9342 = vpack.c.b16 %v8382, %v8374
    %v9343 = vpack.c.b16 %v8383, %v8375
    %v9344 = vpack.c.b16 %v8384, %v8376
    %v9345 = vpack.c.b16 %v8385, %v8377
    %v9346 = vpack.c.b16 %v8386, %v8378
    %v9347 = vpack.c.b16 %v8387, %v8379
    %v9348 = vpack.c.b16 %v8396, %v8388
    %v9349 = vpack.c.b16 %v8397, %v8389
    %v9350 = vpack.c.b16 %v8398, %v8390
    %v9351 = vpack.c.b16 %v8399, %v8391
    %v9352 = vpack.c.b16 %v8400, %v8392
    %v9353 = vpack.c.b16 %v8401, %v8393
    %v9354 = vpack.c.b16 %v8402, %v8394
    %v9355 = vpack.c.b16 %v8403, %v8395
    %v9356 = vpack.c.b16 %v8412, %v8404
    %v9357 = vpack.c.b16 %v8413, %v8405
    %v9358 = vpack.c.b16 %v8414, %v8406
    %v9359 = vpack.c.b16 %v8415, %v8407
    %v9360 = vpack.c.b16 %v8416, %v8408
    %v9361 = vpack.c.b16 %v8417, %v8409
    %v9362 = vpack.c.b16 %v8418, %v8410
    %v9363 = vpack.c.b16 %v8419, %v8411
    %v9364 = vpack.c.b16 %v8428, %v8420
    %v9365 = vpack.c.b16 %v8429, %v8421
    %v9366 = vpack.c.b16 %v8430, %v8422
    %v9367 = vpack.c.b16 %v8431, %v8423
    %v9368 = vpack.c.b16 %v8432, %v8424
    %v9369 = vpack.c.b16 %v8433, %v8425
    %v9370 = vpack.c.b16 %v8434, %v8426
    %v9371 = vpack.c.b16 %v8435, %v8427
    %v9372 = vpack.c.b16 %v8444, %v8436
    %v9373 = vpack.c.b16 %v8445, %v8437
    %v9374 = vpack.c.b16 %v8446, %v8438
    %v9375 = vpack.c.b16 %v8447, %v8439
    %v9376 = vpack.c.b16 %v8448, %v8440
    %v9377 = vpack.c.b16 %v8449, %v8441
    %v9378 = vpack.c.b16 %v8450, %v8442
    %v9379 = vpack.c.b16 %v8451, %v8443
    %v9380 = vpack.c.b16 %v8460, %v8452
    %v9381 = vpack.c.b16 %v8461, %v8453
    %v9382 = vpack.c.b16 %v8462, %v8454
    %v9383 = vpack.c.b16 %v8463, %v8455
    %v9384 = vpack.c.b16 %v8464, %v8456
    %v9385 = vpack.c.b16 %v8465, %v8457
    %v9386 = vpack.c.b16 %v8466, %v8458
    %v9387 = vpack.c.b16 %v8467, %v8459
    %v9388 = vpack.c.b16 %v8476, %v8468
    %v9389 = vpack.c.b16 %v8477, %v8469
    %v9390 = vpack.c.b16 %v8478, %v8470
    %v9391 = vpack.c.b16 %v8479, %v8471
    %v9392 = vpack.c.b16 %v8480, %v8472
    %v9393 = vpack.c.b16 %v8481, %v8473
    %v9394 = vpack.c.b16 %v8482, %v8474
    %v9395 = vpack.c.b16 %v8483, %v8475
    %v9396 = vpack.c.b16 %v8492, %v8484
    %v9397 = vpack.c.b16 %v8493, %v8485
    %v9398 = vpack.c.b16 %v8494, %v8486
    %v9399 = vpack.c.b16 %v8495, %v8487
    %v9400 = vpack.c.b16 %v8496, %v8488
    %v9401 = vpack.c.b16 %v8497, %v8489
    %v9402 = vpack.c.b16 %v8498, %v8490
    %v9403 = vpack.c.b16 %v8499, %v8491
    %v9404 = vpack.c.b16 %v8508, %v8500
    %v9405 = vpack.c.b16 %v8509, %v8501
    %v9406 = vpack.c.b16 %v8510, %v8502
    %v9407 = vpack.c.b16 %v8511, %v8503
    %v9408 = vpack.c.b16 %v8512, %v8504
    %v9409 = vpack.c.b16 %v8513, %v8505
    %v9410 = vpack.c.b16 %v8514, %v8506
    %v9411 = vpack.c.b16 %v8515, %v8507
    %v9412 = vpack.c.b16 %v8524, %v8516
    %v9413 = vpack.c.b16 %v8525, %v8517
    %v9414 = vpack.c.b16 %v8526, %v8518
    %v9415 = vpack.c.b16 %v8527, %v8519
    %v9416 = vpack.c.b16 %v8528, %v8520
    %v9417 = vpack.c.b16 %v8529, %v8521
    %v9418 = vpack.c.b16 %v8530, %v8522
    %v9419 = vpack.c.b16 %v8531, %v8523
    %v9420 = vpack.c.b16 %v8540, %v8532
    %v9421 = vpack.c.b16 %v8541, %v8533
    %v9422 = vpack.c.b16 %v8542, %v8534
    %v9423 = vpack.c.b16 %v8543, %v8535
    %v9424 = vpack.c.b16 %v8544, %v8536
    %v9425 = vpack.c.b16 %v8545, %v8537
    %v9426 = vpack.c.b16 %v8546, %v8538
    %v9427 = vpack.c.b16 %v8547, %v8539
    %v9428 = vpack.c.b16 %v8556, %v8548
    %v9429 = vpack.c.b16 %v8557, %v8549
    %v9430 = vpack.c.b16 %v8558, %v8550
    %v9431 = vpack.c.b16 %v8559, %v8551
    %v9432 = vpack.c.b16 %v8560, %v8552
    %v9433 = vpack.c.b16 %v8561, %v8553
    %v9434 = vpack.c.b16 %v8562, %v8554
    %v9435 = vpack.c.b16 %v8563, %v8555
    %v9436 = vpack.c.b16 %v8572, %v8564
    %v9437 = vpack.c.b16 %v8573, %v8565
    %v9438 = vpack.c.b16 %v8574, %v8566
    %v9439 = vpack.c.b16 %v8575, %v8567
    %v9440 = vpack.c.b16 %v8576, %v8568
    %v9441 = vpack.c.b16 %v8577, %v8569
    %v9442 = vpack.c.b16 %v8578, %v8570
    %v9443 = vpack.c.b16 %v8579, %v8571
    %v9444 = vpack.c.b16 %v8588, %v8580
    %v9445 = vpack.c.b16 %v8589, %v8581
    %v9446 = vpack.c.b16 %v8590, %v8582
    %v9447 = vpack.c.b16 %v8591, %v8583
    %v9448 = vpack.c.b16 %v8592, %v8584
    %v9449 = vpack.c.b16 %v8593, %v8585
    %v9450 = vpack.c.b16 %v8594, %v8586
    %v9451 = vpack.c.b16 %v8595, %v8587
    %v9452 = vpack.c.b16 %v8604, %v8596
    %v9453 = vpack.c.b16 %v8605, %v8597
    %v9454 = vpack.c.b16 %v8606, %v8598
    %v9455 = vpack.c.b16 %v8607, %v8599
    %v9456 = vpack.c.b16 %v8608, %v8600
    %v9457 = vpack.c.b16 %v8609, %v8601
    %v9458 = vpack.c.b16 %v8610, %v8602
    %v9459 = vpack.c.b16 %v8611, %v8603
    %v9460 = vpack.c.b16 %v8620, %v8612
    %v9461 = vpack.c.b16 %v8621, %v8613
    %v9462 = vpack.c.b16 %v8622, %v8614
    %v9463 = vpack.c.b16 %v8623, %v8615
    %v9464 = vpack.c.b16 %v8624, %v8616
    %v9465 = vpack.c.b16 %v8625, %v8617
    %v9466 = vpack.c.b16 %v8626, %v8618
    %v9467 = vpack.c.b16 %v8627, %v8619
    %v9468 = vpack.c.b16 %v8636, %v8628
    %v9469 = vpack.c.b16 %v8637, %v8629
    %v9470 = vpack.c.b16 %v8638, %v8630
    %v9471 = vpack.c.b16 %v8639, %v8631
    %v9472 = vpack.c.b16 %v8640, %v8632
    %v9473 = vpack.c.b16 %v8641, %v8633
    %v9474 = vpack.c.b16 %v8642, %v8634
    %v9475 = vpack.c.b16 %v8643, %v8635
    %v9476 = vpack.c.b16 %v8652, %v8644
    %v9477 = vpack.c.b16 %v8653, %v8645
    %v9478 = vpack.c.b16 %v8654, %v8646
    %v9479 = vpack.c.b16 %v8655, %v8647
    %v9480 = vpack.c.b16 %v8656, %v8648
    %v9481 = vpack.c.b16 %v8657, %v8649
    %v9482 = vpack.c.b16 %v8658, %v8650
    %v9483 = vpack.c.b16 %v8659, %v8651
    %v9484 = vpack.c.b16 %v8668, %v8660
    %v9485 = vpack.c.b16 %v8669, %v8661
    %v9486 = vpack.c.b16 %v8670, %v8662
    %v9487 = vpack.c.b16 %v8671, %v8663
    %v9488 = vpack.c.b16 %v8672, %v8664
    %v9489 = vpack.c.b16 %v8673, %v8665
    %v9490 = vpack.c.b16 %v8674, %v8666
    %v9491 = vpack.c.b16 %v8675, %v8667
    %v9492 = vpack.c.b16 %v8684, %v8676
    %v9493 = vpack.c.b16 %v8685, %v8677
    %v9494 = vpack.c.b16 %v8686, %v8678
    %v9495 = vpack.c.b16 %v8687, %v8679
    %v9496 = vpack.c.b16 %v8688, %v8680
    %v9497 = vpack.c.b16 %v8689, %v8681
    %v9498 = vpack.c.b16 %v8690, %v8682
    %v9499 = vpack.c.b16 %v8691, %v8683
    %v9500 = vpack.c.b16 %v8700, %v8692
    %v9501 = vpack.c.b16 %v8701, %v8693
    %v9502 = vpack.c.b16 %v8702, %v8694
    %v9503 = vpack.c.b16 %v8703, %v8695
    %v9504 = vpack.c.b16 %v8704, %v8696
    %v9505 = vpack.c.b16 %v8705, %v8697
    %v9506 = vpack.c.b16 %v8706, %v8698
    %v9507 = vpack.c.b16 %v8707, %v8699
    %v9508 = vpack.c.b16 %v8716, %v8708
    %v9509 = vpack.c.b16 %v8717, %v8709
    %v9510 = vpack.c.b16 %v8718, %v8710
    %v9511 = vpack.c.b16 %v8719, %v8711
    %v9512 = vpack.c.b16 %v8720, %v8712
    %v9513 = vpack.c.b16 %v8721, %v8713
    %v9514 = vpack.c.b16 %v8722, %v8714
    %v9515 = vpack.c.b16 %v8723, %v8715
    %v9516 = vpack.c.b16 %v8732, %v8724
    %v9517 = vpack.c.b16 %v8733, %v8725
    %v9518 = vpack.c.b16 %v8734, %v8726
    %v9519 = vpack.c.b16 %v8735, %v8727
    %v9520 = vpack.c.b16 %v8736, %v8728
    %v9521 = vpack.c.b16 %v8737, %v8729
    %v9522 = vpack.c.b16 %v8738, %v8730
    %v9523 = vpack.c.b16 %v8739, %v8731
    %v9524 = vpack.c.b16 %v8748, %v8740
    %v9525 = vpack.c.b16 %v8749, %v8741
    %v9526 = vpack.c.b16 %v8750, %v8742
    %v9527 = vpack.c.b16 %v8751, %v8743
    %v9528 = vpack.c.b16 %v8752, %v8744
    %v9529 = vpack.c.b16 %v8753, %v8745
    %v9530 = vpack.c.b16 %v8754, %v8746
    %v9531 = vpack.c.b16 %v8755, %v8747
    %v9532 = vpack.c.b16 %v8764, %v8756
    %v9533 = vpack.c.b16 %v8765, %v8757
    %v9534 = vpack.c.b16 %v8766, %v8758
    %v9535 = vpack.c.b16 %v8767, %v8759
    %v9536 = vpack.c.b16 %v8768, %v8760
    %v9537 = vpack.c.b16 %v8769, %v8761
    %v9538 = vpack.c.b16 %v8770, %v8762
    %v9539 = vpack.c.b16 %v8771, %v8763
    %v9540 = vpack.c.b16 %v8780, %v8772
    %v9541 = vpack.c.b16 %v8781, %v8773
    %v9542 = vpack.c.b16 %v8782, %v8774
    %v9543 = vpack.c.b16 %v8783, %v8775
    %v9544 = vpack.c.b16 %v8784, %v8776
    %v9545 = vpack.c.b16 %v8785, %v8777
    %v9546 = vpack.c.b16 %v8786, %v8778
    %v9547 = vpack.c.b16 %v8787, %v8779
    %v9548 = vpack.c.b16 %v8796, %v8788
    %v9549 = vpack.c.b16 %v8797, %v8789
    %v9550 = vpack.c.b16 %v8798, %v8790
    %v9551 = vpack.c.b16 %v8799, %v8791
    %v9552 = vpack.c.b16 %v8800, %v8792
    %v9553 = vpack.c.b16 %v8801, %v8793
    %v9554 = vpack.c.b16 %v8802, %v8794
    %v9555 = vpack.c.b16 %v8803, %v8795
    %v9556 = vpack.c.b16 %v8812, %v8804
    %v9557 = vpack.c.b16 %v8813, %v8805
    %v9558 = vpack.c.b16 %v8814, %v8806
    %v9559 = vpack.c.b16 %v8815, %v8807
    %v9560 = vpack.c.b16 %v8816, %v8808
    %v9561 = vpack.c.b16 %v8817, %v8809
    %v9562 = vpack.c.b16 %v8818, %v8810
    %v9563 = vpack.c.b16 %v8819, %v8811
    %v9564 = vpack.c.b16 %v8828, %v8820
    %v9565 = vpack.c.b16 %v8829, %v8821
    %v9566 = vpack.c.b16 %v8830, %v8822
    %v9567 = vpack.c.b16 %v8831, %v8823
    %v9568 = vpack.c.b16 %v8832, %v8824
    %v9569 = vpack.c.b16 %v8833, %v8825
    %v9570 = vpack.c.b16 %v8834, %v8826
    %v9571 = vpack.c.b16 %v8835, %v8827
    %v9572 = vpack.c.b16 %v8844, %v8836
    %v9573 = vpack.c.b16 %v8845, %v8837
    %v9574 = vpack.c.b16 %v8846, %v8838
    %v9575 = vpack.c.b16 %v8847, %v8839
    %v9576 = vpack.c.b16 %v8848, %v8840
    %v9577 = vpack.c.b16 %v8849, %v8841
    %v9578 = vpack.c.b16 %v8850, %v8842
    %v9579 = vpack.c.b16 %v8851, %v8843
    %v9580 = vpack.c.b16 %v8860, %v8852
    %v9581 = vpack.c.b16 %v8861, %v8853
    %v9582 = vpack.c.b16 %v8862, %v8854
    %v9583 = vpack.c.b16 %v8863, %v8855
    %v9584 = vpack.c.b16 %v8864, %v8856
    %v9585 = vpack.c.b16 %v8865, %v8857
    %v9586 = vpack.c.b16 %v8866, %v8858
    %v9587 = vpack.c.b16 %v8867, %v8859
    %v9588 = vpack.c.b16 %v8876, %v8868
    %v9589 = vpack.c.b16 %v8877, %v8869
    %v9590 = vpack.c.b16 %v8878, %v8870
    %v9591 = vpack.c.b16 %v8879, %v8871
    %v9592 = vpack.c.b16 %v8880, %v8872
    %v9593 = vpack.c.b16 %v8881, %v8873
    %v9594 = vpack.c.b16 %v8882, %v8874
    %v9595 = vpack.c.b16 %v8883, %v8875
    %v9596 = vpack.c.b16 %v8892, %v8884
    %v9597 = vpack.c.b16 %v8893, %v8885
    %v9598 = vpack.c.b16 %v8894, %v8886
    %v9599 = vpack.c.b16 %v8895, %v8887
    %v9600 = vpack.c.b16 %v8896, %v8888
    %v9601 = vpack.c.b16 %v8897, %v8889
    %v9602 = vpack.c.b16 %v8898, %v8890
    %v9603 = vpack.c.b16 %v8899, %v8891
    %v9604 = vpack.c.b16 %v8908, %v8900
    %v9605 = vpack.c.b16 %v8909, %v8901
    %v9606 = vpack.c.b16 %v8910, %v8902
    %v9607 = vpack.c.b16 %v8911, %v8903
    %v9608 = vpack.c.b16 %v8912, %v8904
    %v9609 = vpack.c.b16 %v8913, %v8905
    %v9610 = vpack.c.b16 %v8914, %v8906
    %v9611 = vpack.c.b16 %v8915, %v8907
    %v9612 = vpack.c.b16 %v8924, %v8916
    %v9613 = vpack.c.b16 %v8925, %v8917
    %v9614 = vpack.c.b16 %v8926, %v8918
    %v9615 = vpack.c.b16 %v8927, %v8919
    %v9616 = vpack.c.b16 %v8928, %v8920
    %v9617 = vpack.c.b16 %v8929, %v8921
    %v9618 = vpack.c.b16 %v8930, %v8922
    %v9619 = vpack.c.b16 %v8931, %v8923
    %v9620 = vpack.c.b16 %v8940, %v8932
    %v9621 = vpack.c.b16 %v8941, %v8933
    %v9622 = vpack.c.b16 %v8942, %v8934
    %v9623 = vpack.c.b16 %v8943, %v8935
    %v9624 = vpack.c.b16 %v8944, %v8936
    %v9625 = vpack.c.b16 %v8945, %v8937
    %v9626 = vpack.c.b16 %v8946, %v8938
    %v9627 = vpack.c.b16 %v8947, %v8939
    %v9628 = vpack.c.b16 %v8956, %v8948
    %v9629 = vpack.c.b16 %v8957, %v8949
    %v9630 = vpack.c.b16 %v8958, %v8950
    %v9631 = vpack.c.b16 %v8959, %v8951
    %v9632 = vpack.c.b16 %v8960, %v8952
    %v9633 = vpack.c.b16 %v8961, %v8953
    %v9634 = vpack.c.b16 %v8962, %v8954
    %v9635 = vpack.c.b16 %v8963, %v8955
    %v9636 = vpack.c.b16 %v8972, %v8964
    %v9637 = vpack.c.b16 %v8973, %v8965
    %v9638 = vpack.c.b16 %v8974, %v8966
    %v9639 = vpack.c.b16 %v8975, %v8967
    %v9640 = vpack.c.b16 %v8976, %v8968
    %v9641 = vpack.c.b16 %v8977, %v8969
    %v9642 = vpack.c.b16 %v8978, %v8970
    %v9643 = vpack.c.b16 %v8979, %v8971
    %v9644 = vpack.c.b16 %v8988, %v8980
    %v9645 = vpack.c.b16 %v8989, %v8981
    %v9646 = vpack.c.b16 %v8990, %v8982
    %v9647 = vpack.c.b16 %v8991, %v8983
    %v9648 = vpack.c.b16 %v8992, %v8984
    %v9649 = vpack.c.b16 %v8993, %v8985
    %v9650 = vpack.c.b16 %v8994, %v8986
    %v9651 = vpack.c.b16 %v8995, %v8987
    %v9652 = vpack.c.b16 %v9004, %v8996
    %v9653 = vpack.c.b16 %v9005, %v8997
    %v9654 = vpack.c.b16 %v9006, %v8998
    %v9655 = vpack.c.b16 %v9007, %v8999
    %v9656 = vpack.c.b16 %v9008, %v9000
    %v9657 = vpack.c.b16 %v9009, %v9001
    %v9658 = vpack.c.b16 %v9010, %v9002
    %v9659 = vpack.c.b16 %v9011, %v9003
    %v9660 = vpack.c.b16 %v9020, %v9012
    %v9661 = vpack.c.b16 %v9021, %v9013
    %v9662 = vpack.c.b16 %v9022, %v9014
    %v9663 = vpack.c.b16 %v9023, %v9015
    %v9664 = vpack.c.b16 %v9024, %v9016
    %v9665 = vpack.c.b16 %v9025, %v9017
    %v9666 = vpack.c.b16 %v9026, %v9018
    %v9667 = vpack.c.b16 %v9027, %v9019
    %v9668 = vpack.c.b16 %v9036, %v9028
    %v9669 = vpack.c.b16 %v9037, %v9029
    %v9670 = vpack.c.b16 %v9038, %v9030
    %v9671 = vpack.c.b16 %v9039, %v9031
    %v9672 = vpack.c.b16 %v9040, %v9032
    %v9673 = vpack.c.b16 %v9041, %v9033
    %v9674 = vpack.c.b16 %v9042, %v9034
    %v9675 = vpack.c.b16 %v9043, %v9035
    %v9676 = vpack.c.b16 %v9052, %v9044
    %v9677 = vpack.c.b16 %v9053, %v9045
    %v9678 = vpack.c.b16 %v9054, %v9046
    %v9679 = vpack.c.b16 %v9055, %v9047
    %v9680 = vpack.c.b16 %v9056, %v9048
    %v9681 = vpack.c.b16 %v9057, %v9049
    %v9682 = vpack.c.b16 %v9058, %v9050
    %v9683 = vpack.c.b16 %v9059, %v9051
    %v9684 = vpack.c.b16 %v9068, %v9060
    %v9685 = vpack.c.b16 %v9069, %v9061
    %v9686 = vpack.c.b16 %v9070, %v9062
    %v9687 = vpack.c.b16 %v9071, %v9063
    %v9688 = vpack.c.b16 %v9072, %v9064
    %v9689 = vpack.c.b16 %v9073, %v9065
    %v9690 = vpack.c.b16 %v9074, %v9066
    %v9691 = vpack.c.b16 %v9075, %v9067
    %v9692 = vpack.c.b16 %v9084, %v9076
    %v9693 = vpack.c.b16 %v9085, %v9077
    %v9694 = vpack.c.b16 %v9086, %v9078
    %v9695 = vpack.c.b16 %v9087, %v9079
    %v9696 = vpack.c.b16 %v9088, %v9080
    %v9697 = vpack.c.b16 %v9089, %v9081
    %v9698 = vpack.c.b16 %v9090, %v9082
    %v9699 = vpack.c.b16 %v9091, %v9083
    %v9700 = vpack.c.b16 %v9100, %v9092
    %v9701 = vpack.c.b16 %v9101, %v9093
    %v9702 = vpack.c.b16 %v9102, %v9094
    %v9703 = vpack.c.b16 %v9103, %v9095
    %v9704 = vpack.c.b16 %v9104, %v9096
    %v9705 = vpack.c.b16 %v9105, %v9097
    %v9706 = vpack.c.b16 %v9106, %v9098
    %v9707 = vpack.c.b16 %v9107, %v9099
    %v9708 = vpack.c.b16 %v9116, %v9108
    %v9709 = vpack.c.b16 %v9117, %v9109
    %v9710 = vpack.c.b16 %v9118, %v9110
    %v9711 = vpack.c.b16 %v9119, %v9111
    %v9712 = vpack.c.b16 %v9120, %v9112
    %v9713 = vpack.c.b16 %v9121, %v9113
    %v9714 = vpack.c.b16 %v9122, %v9114
    %v9715 = vpack.c.b16 %v9123, %v9115
    %v9716 = vpack.c.b16 %v9132, %v9124
    %v9717 = vpack.c.b16 %v9133, %v9125
    %v9718 = vpack.c.b16 %v9134, %v9126
    %v9719 = vpack.c.b16 %v9135, %v9127
    %v9720 = vpack.c.b16 %v9136, %v9128
    %v9721 = vpack.c.b16 %v9137, %v9129
    %v9722 = vpack.c.b16 %v9138, %v9130
    %v9723 = vpack.c.b16 %v9139, %v9131
    %v9724 = vpack.c.b16 %v9148, %v9140
    %v9725 = vpack.c.b16 %v9149, %v9141
    %v9726 = vpack.c.b16 %v9150, %v9142
    %v9727 = vpack.c.b16 %v9151, %v9143
    %v9728 = vpack.c.b16 %v9152, %v9144
    %v9729 = vpack.c.b16 %v9153, %v9145
    %v9730 = vpack.c.b16 %v9154, %v9146
    %v9731 = vpack.c.b16 %v9155, %v9147
    %v9732 = vpack.c.b16 %v9164, %v9156
    %v9733 = vpack.c.b16 %v9165, %v9157
    %v9734 = vpack.c.b16 %v9166, %v9158
    %v9735 = vpack.c.b16 %v9167, %v9159
    %v9736 = vpack.c.b16 %v9168, %v9160
    %v9737 = vpack.c.b16 %v9169, %v9161
    %v9738 = vpack.c.b16 %v9170, %v9162
    %v9739 = vpack.c.b16 %v9171, %v9163
    %v9740 = vpack.c.b16 %v9180, %v9172
    %v9741 = vpack.c.b16 %v9181, %v9173
    %v9742 = vpack.c.b16 %v9182, %v9174
    %v9743 = vpack.c.b16 %v9183, %v9175
    %v9744 = vpack.c.b16 %v9184, %v9176
    %v9745 = vpack.c.b16 %v9185, %v9177
    %v9746 = vpack.c.b16 %v9186, %v9178
    %v9747 = vpack.c.b16 %v9187, %v9179
    %v9748 = vpack.c.b16 %v9196, %v9188
    %v9749 = vpack.c.b16 %v9197, %v9189
    %v9750 = vpack.c.b16 %v9198, %v9190
    %v9751 = vpack.c.b16 %v9199, %v9191
    %v9752 = vpack.c.b16 %v9200, %v9192
    %v9753 = vpack.c.b16 %v9201, %v9193
    %v9754 = vpack.c.b16 %v9202, %v9194
    %v9755 = vpack.c.b16 %v9203, %v9195
    %v9756 = vpack.c.b16 %v9212, %v9204
    %v9757 = vpack.c.b16 %v9213, %v9205
    %v9758 = vpack.c.b16 %v9214, %v9206
    %v9759 = vpack.c.b16 %v9215, %v9207
    %v9760 = vpack.c.b16 %v9216, %v9208
    %v9761 = vpack.c.b16 %v9217, %v9209
    %v9762 = vpack.c.b16 %v9218, %v9210
    %v9763 = vpack.c.b16 %v9219, %v9211
    %v9764 = vpack.c.b16 %v9228, %v9220
    %v9765 = vpack.c.b16 %v9229, %v9221
    %v9766 = vpack.c.b16 %v9230, %v9222
    %v9767 = vpack.c.b16 %v9231, %v9223
    %v9768 = vpack.c.b16 %v9232, %v9224
    %v9769 = vpack.c.b16 %v9233, %v9225
    %v9770 = vpack.c.b16 %v9234, %v9226
    %v9771 = vpack.c.b16 %v9235, %v9227
    %v9772 = vpack.c.b16 %v9244, %v9236
    %v9773 = vpack.c.b16 %v9245, %v9237
    %v9774 = vpack.c.b16 %v9246, %v9238
    %v9775 = vpack.c.b16 %v9247, %v9239
    %v9776 = vpack.c.b16 %v9248, %v9240
    %v9777 = vpack.c.b16 %v9249, %v9241
    %v9778 = vpack.c.b16 %v9250, %v9242
    %v9779 = vpack.c.b16 %v9251, %v9243
    %v9780 = vpack.c.b16 %v9260, %v9252
    %v9781 = vpack.c.b16 %v9261, %v9253
    %v9782 = vpack.c.b16 %v9262, %v9254
    %v9783 = vpack.c.b16 %v9263, %v9255
    %v9784 = vpack.c.b16 %v9264, %v9256
    %v9785 = vpack.c.b16 %v9265, %v9257
    %v9786 = vpack.c.b16 %v9266, %v9258
    %v9787 = vpack.c.b16 %v9267, %v9259
    %v9788 = vpack.c.b16 %v9276, %v9268
    %v9789 = vpack.c.b16 %v9277, %v9269
    %v9790 = vpack.c.b16 %v9278, %v9270
    %v9791 = vpack.c.b16 %v9279, %v9271
    %v9792 = vpack.c.b16 %v9280, %v9272
    %v9793 = vpack.c.b16 %v9281, %v9273
    %v9794 = vpack.c.b16 %v9282, %v9274
    %v9795 = vpack.c.b16 %v9283, %v9275
    %10308 = vmatpush.bf16.msra.mxu0 %v9340
    %10309 = vmatpush.bf16.msra.mxu0 %v9332
    %10310 = vmatpush.bf16.msra.mxu0 %v9324
    %10311 = vmatpush.bf16.msra.mxu0 %v9316
    %10312 = vmatpush.bf16.msra.mxu0 %v9308
    %10313 = vmatpush.bf16.msra.mxu0 %v9300
    %10314 = vmatpush.bf16.msra.mxu0 %v9292
    %10315 = vmatpush.bf16.msra.mxu0 %v9284
    %10316 = vmatmul.bf16.gmra.mxu0 %v7723
    %v10317 = vpop.f32.mrf.mxu0
    %v10318 = vadd.f32 %v7732, %v10317
    %v10319 = vpop.f32.mrf.mxu0
    %v10320 = vadd.f32 %v7732, %v10319
    %10321 = vdwg.mxu0
    %10322 = vmatpush.bf16.msra.mxu0 %v9404
    %10323 = vmatpush.bf16.msra.mxu0 %v9396
    %10324 = vmatpush.bf16.msra.mxu0 %v9388
    %10325 = vmatpush.bf16.msra.mxu0 %v9380
    %10326 = vmatpush.bf16.msra.mxu0 %v9372
    %10327 = vmatpush.bf16.msra.mxu0 %v9364
    %10328 = vmatpush.bf16.msra.mxu0 %v9356
    %10329 = vmatpush.bf16.msra.mxu0 %v9348
    %10330 = vmatmul.bf16.gmra.mxu0 %v7724
    %v10331 = vpop.f32.mrf.mxu0
    %v10332 = vadd.f32 %v10318, %v10331
    %v10333 = vpop.f32.mrf.mxu0
    %v10334 = vadd.f32 %v10320, %v10333
    %10335 = vdwg.mxu0
    %10336 = vmatpush.bf16.msra.mxu0 %v9468
    %10337 = vmatpush.bf16.msra.mxu0 %v9460
    %10338 = vmatpush.bf16.msra.mxu0 %v9452
    %10339 = vmatpush.bf16.msra.mxu0 %v9444
    %10340 = vmatpush.bf16.msra.mxu0 %v9436
    %10341 = vmatpush.bf16.msra.mxu0 %v9428
    %10342 = vmatpush.bf16.msra.mxu0 %v9420
    %10343 = vmatpush.bf16.msra.mxu0 %v9412
    %10344 = vmatmul.bf16.gmra.mxu0 %v7725
    %v10345 = vpop.f32.mrf.mxu0
    %v10346 = vadd.f32 %v10332, %v10345
    %v10347 = vpop.f32.mrf.mxu0
    %v10348 = vadd.f32 %v10334, %v10347
    %10349 = vdwg.mxu0
    %10350 = vmatpush.bf16.msra.mxu0 %v9532
    %10351 = vmatpush.bf16.msra.mxu0 %v9524
    %10352 = vmatpush.bf16.msra.mxu0 %v9516
    %10353 = vmatpush.bf16.msra.mxu0 %v9508
    %10354 = vmatpush.bf16.msra.mxu0 %v9500
    %10355 = vmatpush.bf16.msra.mxu0 %v9492
    %10356 = vmatpush.bf16.msra.mxu0 %v9484
    %10357 = vmatpush.bf16.msra.mxu0 %v9476
    %10358 = vmatmul.bf16.gmra.mxu0 %v7726
    %v10359 = vpop.f32.mrf.mxu0
    %v10360 = vadd.f32 %v10346, %v10359
    %v10361 = vpop.f32.mrf.mxu0
    %v10362 = vadd.f32 %v10348, %v10361
    %10363 = vdwg.mxu0
    %10364 = vmatpush.bf16.msra.mxu0 %v9596
    %10365 = vmatpush.bf16.msra.mxu0 %v9588
    %10366 = vmatpush.bf16.msra.mxu0 %v9580
    %10367 = vmatpush.bf16.msra.mxu0 %v9572
    %10368 = vmatpush.bf16.msra.mxu0 %v9564
    %10369 = vmatpush.bf16.msra.mxu0 %v9556
    %10370 = vmatpush.bf16.msra.mxu0 %v9548
    %10371 = vmatpush.bf16.msra.mxu0 %v9540
    %10372 = vmatmul.bf16.gmra.mxu0 %v7727
    %v10373 = vpop.f32.mrf.mxu0
    %v10374 = vadd.f32 %v10360, %v10373
    %v10375 = vpop.f32.mrf.mxu0
    %v10376 = vadd.f32 %v10362, %v10375
    %10377 = vdwg.mxu0
    %10378 = vmatpush.bf16.msra.mxu0 %v9660
    %10379 = vmatpush.bf16.msra.mxu0 %v9652
    %10380 = vmatpush.bf16.msra.mxu0 %v9644
    %10381 = vmatpush.bf16.msra.mxu0 %v9636
    %10382 = vmatpush.bf16.msra.mxu0 %v9628
    %10383 = vmatpush.bf16.msra.mxu0 %v9620
    %10384 = vmatpush.bf16.msra.mxu0 %v9612
    %10385 = vmatpush.bf16.msra.mxu0 %v9604
    %10386 = vmatmul.bf16.gmra.mxu0 %v7728
    %v10387 = vpop.f32.mrf.mxu0
    %v10388 = vadd.f32 %v10374, %v10387
    %v10389 = vpop.f32.mrf.mxu0
    %v10390 = vadd.f32 %v10376, %v10389
    %10391 = vdwg.mxu0
    %10392 = vmatpush.bf16.msra.mxu0 %v9724
    %10393 = vmatpush.bf16.msra.mxu0 %v9716
    %10394 = vmatpush.bf16.msra.mxu0 %v9708
    %10395 = vmatpush.bf16.msra.mxu0 %v9700
    %10396 = vmatpush.bf16.msra.mxu0 %v9692
    %10397 = vmatpush.bf16.msra.mxu0 %v9684
    %10398 = vmatpush.bf16.msra.mxu0 %v9676
    %10399 = vmatpush.bf16.msra.mxu0 %v9668
    %10400 = vmatmul.bf16.gmra.mxu0 %v7729
    %v10401 = vpop.f32.mrf.mxu0
    %v10402 = vadd.f32 %v10388, %v10401
    %v10403 = vpop.f32.mrf.mxu0
    %v10404 = vadd.f32 %v10390, %v10403
    %10405 = vdwg.mxu0
    %10406 = vmatpush.bf16.msra.mxu0 %v9788
    %10407 = vmatpush.bf16.msra.mxu0 %v9780
    %10408 = vmatpush.bf16.msra.mxu0 %v9772
    %10409 = vmatpush.bf16.msra.mxu0 %v9764
    %10410 = vmatpush.bf16.msra.mxu0 %v9756
    %10411 = vmatpush.bf16.msra.mxu0 %v9748
    %10412 = vmatpush.bf16.msra.mxu0 %v9740
    %10413 = vmatpush.bf16.msra.mxu0 %v9732
    %10414 = vmatmul.bf16.gmra.mxu0 %v7730
    %v10415 = vpop.f32.mrf.mxu0
    %v10416 = vadd.f32 %v10402, %v10415
    %v10417 = vpop.f32.mrf.mxu0
    %v10418 = vadd.f32 %v10404, %v10417
    %10419 = vdwg.mxu0
    %10420 = vmatpush.bf16.msra.mxu0 %v9341
    %10421 = vmatpush.bf16.msra.mxu0 %v9333
    %10422 = vmatpush.bf16.msra.mxu0 %v9325
    %10423 = vmatpush.bf16.msra.mxu0 %v9317
    %10424 = vmatpush.bf16.msra.mxu0 %v9309
    %10425 = vmatpush.bf16.msra.mxu0 %v9301
    %10426 = vmatpush.bf16.msra.mxu0 %v9293
    %10427 = vmatpush.bf16.msra.mxu0 %v9285
    %10428 = vmatmul.bf16.gmra.mxu0 %v7723
    %v10429 = vpop.f32.mrf.mxu0
    %v10430 = vadd.f32 %v7733, %v10429
    %v10431 = vpop.f32.mrf.mxu0
    %v10432 = vadd.f32 %v7733, %v10431
    %10433 = vdwg.mxu0
    %10434 = vmatpush.bf16.msra.mxu0 %v9405
    %10435 = vmatpush.bf16.msra.mxu0 %v9397
    %10436 = vmatpush.bf16.msra.mxu0 %v9389
    %10437 = vmatpush.bf16.msra.mxu0 %v9381
    %10438 = vmatpush.bf16.msra.mxu0 %v9373
    %10439 = vmatpush.bf16.msra.mxu0 %v9365
    %10440 = vmatpush.bf16.msra.mxu0 %v9357
    %10441 = vmatpush.bf16.msra.mxu0 %v9349
    %10442 = vmatmul.bf16.gmra.mxu0 %v7724
    %v10443 = vpop.f32.mrf.mxu0
    %v10444 = vadd.f32 %v10430, %v10443
    %v10445 = vpop.f32.mrf.mxu0
    %v10446 = vadd.f32 %v10432, %v10445
    %10447 = vdwg.mxu0
    %10448 = vmatpush.bf16.msra.mxu0 %v9469
    %10449 = vmatpush.bf16.msra.mxu0 %v9461
    %10450 = vmatpush.bf16.msra.mxu0 %v9453
    %10451 = vmatpush.bf16.msra.mxu0 %v9445
    %10452 = vmatpush.bf16.msra.mxu0 %v9437
    %10453 = vmatpush.bf16.msra.mxu0 %v9429
    %10454 = vmatpush.bf16.msra.mxu0 %v9421
    %10455 = vmatpush.bf16.msra.mxu0 %v9413
    %10456 = vmatmul.bf16.gmra.mxu0 %v7725
    %v10457 = vpop.f32.mrf.mxu0
    %v10458 = vadd.f32 %v10444, %v10457
    %v10459 = vpop.f32.mrf.mxu0
    %v10460 = vadd.f32 %v10446, %v10459
    %10461 = vdwg.mxu0
    %10462 = vmatpush.bf16.msra.mxu0 %v9533
    %10463 = vmatpush.bf16.msra.mxu0 %v9525
    %10464 = vmatpush.bf16.msra.mxu0 %v9517
    %10465 = vmatpush.bf16.msra.mxu0 %v9509
    %10466 = vmatpush.bf16.msra.mxu0 %v9501
    %10467 = vmatpush.bf16.msra.mxu0 %v9493
    %10468 = vmatpush.bf16.msra.mxu0 %v9485
    %10469 = vmatpush.bf16.msra.mxu0 %v9477
    %10470 = vmatmul.bf16.gmra.mxu0 %v7726
    %v10471 = vpop.f32.mrf.mxu0
    %v10472 = vadd.f32 %v10458, %v10471
    %v10473 = vpop.f32.mrf.mxu0
    %v10474 = vadd.f32 %v10460, %v10473
    %10475 = vdwg.mxu0
    %10476 = vmatpush.bf16.msra.mxu0 %v9597
    %10477 = vmatpush.bf16.msra.mxu0 %v9589
    %10478 = vmatpush.bf16.msra.mxu0 %v9581
    %10479 = vmatpush.bf16.msra.mxu0 %v9573
    %10480 = vmatpush.bf16.msra.mxu0 %v9565
    %10481 = vmatpush.bf16.msra.mxu0 %v9557
    %10482 = vmatpush.bf16.msra.mxu0 %v9549
    %10483 = vmatpush.bf16.msra.mxu0 %v9541
    %10484 = vmatmul.bf16.gmra.mxu0 %v7727
    %v10485 = vpop.f32.mrf.mxu0
    %v10486 = vadd.f32 %v10472, %v10485
    %v10487 = vpop.f32.mrf.mxu0
    %v10488 = vadd.f32 %v10474, %v10487
    %10489 = vdwg.mxu0
    %10490 = vmatpush.bf16.msra.mxu0 %v9661
    %10491 = vmatpush.bf16.msra.mxu0 %v9653
    %10492 = vmatpush.bf16.msra.mxu0 %v9645
    %10493 = vmatpush.bf16.msra.mxu0 %v9637
    %10494 = vmatpush.bf16.msra.mxu0 %v9629
    %10495 = vmatpush.bf16.msra.mxu0 %v9621
    %10496 = vmatpush.bf16.msra.mxu0 %v9613
    %10497 = vmatpush.bf16.msra.mxu0 %v9605
    %10498 = vmatmul.bf16.gmra.mxu0 %v7728
    %v10499 = vpop.f32.mrf.mxu0
    %v10500 = vadd.f32 %v10486, %v10499
    %v10501 = vpop.f32.mrf.mxu0
    %v10502 = vadd.f32 %v10488, %v10501
    %10503 = vdwg.mxu0
    %10504 = vmatpush.bf16.msra.mxu0 %v9725
    %10505 = vmatpush.bf16.msra.mxu0 %v9717
    %10506 = vmatpush.bf16.msra.mxu0 %v9709
    %10507 = vmatpush.bf16.msra.mxu0 %v9701
    %10508 = vmatpush.bf16.msra.mxu0 %v9693
    %10509 = vmatpush.bf16.msra.mxu0 %v9685
    %10510 = vmatpush.bf16.msra.mxu0 %v9677
    %10511 = vmatpush.bf16.msra.mxu0 %v9669
    %10512 = vmatmul.bf16.gmra.mxu0 %v7729
    %v10513 = vpop.f32.mrf.mxu0
    %v10514 = vadd.f32 %v10500, %v10513
    %v10515 = vpop.f32.mrf.mxu0
    %v10516 = vadd.f32 %v10502, %v10515
    %10517 = vdwg.mxu0
    %10518 = vmatpush.bf16.msra.mxu0 %v9789
    %10519 = vmatpush.bf16.msra.mxu0 %v9781
    %10520 = vmatpush.bf16.msra.mxu0 %v9773
    %10521 = vmatpush.bf16.msra.mxu0 %v9765
    %10522 = vmatpush.bf16.msra.mxu0 %v9757
    %10523 = vmatpush.bf16.msra.mxu0 %v9749
    %10524 = vmatpush.bf16.msra.mxu0 %v9741
    %10525 = vmatpush.bf16.msra.mxu0 %v9733
    %10526 = vmatmul.bf16.gmra.mxu0 %v7730
    %v10527 = vpop.f32.mrf.mxu0
    %v10528 = vadd.f32 %v10514, %v10527
    %v10529 = vpop.f32.mrf.mxu0
    %v10530 = vadd.f32 %v10516, %v10529
    %10531 = vdwg.mxu0
    %10532 = vmatpush.bf16.msra.mxu0 %v9342
    %10533 = vmatpush.bf16.msra.mxu0 %v9334
    %10534 = vmatpush.bf16.msra.mxu0 %v9326
    %10535 = vmatpush.bf16.msra.mxu0 %v9318
    %10536 = vmatpush.bf16.msra.mxu0 %v9310
    %10537 = vmatpush.bf16.msra.mxu0 %v9302
    %10538 = vmatpush.bf16.msra.mxu0 %v9294
    %10539 = vmatpush.bf16.msra.mxu0 %v9286
    %10540 = vmatmul.bf16.gmra.mxu0 %v7723
    %v10541 = vpop.f32.mrf.mxu0
    %v10542 = vadd.f32 %v7734, %v10541
    %v10543 = vpop.f32.mrf.mxu0
    %v10544 = vadd.f32 %v7734, %v10543
    %10545 = vdwg.mxu0
    %10546 = vmatpush.bf16.msra.mxu0 %v9406
    %10547 = vmatpush.bf16.msra.mxu0 %v9398
    %10548 = vmatpush.bf16.msra.mxu0 %v9390
    %10549 = vmatpush.bf16.msra.mxu0 %v9382
    %10550 = vmatpush.bf16.msra.mxu0 %v9374
    %10551 = vmatpush.bf16.msra.mxu0 %v9366
    %10552 = vmatpush.bf16.msra.mxu0 %v9358
    %10553 = vmatpush.bf16.msra.mxu0 %v9350
    %10554 = vmatmul.bf16.gmra.mxu0 %v7724
    %v10555 = vpop.f32.mrf.mxu0
    %v10556 = vadd.f32 %v10542, %v10555
    %v10557 = vpop.f32.mrf.mxu0
    %v10558 = vadd.f32 %v10544, %v10557
    %10559 = vdwg.mxu0
    %10560 = vmatpush.bf16.msra.mxu0 %v9470
    %10561 = vmatpush.bf16.msra.mxu0 %v9462
    %10562 = vmatpush.bf16.msra.mxu0 %v9454
    %10563 = vmatpush.bf16.msra.mxu0 %v9446
    %10564 = vmatpush.bf16.msra.mxu0 %v9438
    %10565 = vmatpush.bf16.msra.mxu0 %v9430
    %10566 = vmatpush.bf16.msra.mxu0 %v9422
    %10567 = vmatpush.bf16.msra.mxu0 %v9414
    %10568 = vmatmul.bf16.gmra.mxu0 %v7725
    %v10569 = vpop.f32.mrf.mxu0
    %v10570 = vadd.f32 %v10556, %v10569
    %v10571 = vpop.f32.mrf.mxu0
    %v10572 = vadd.f32 %v10558, %v10571
    %10573 = vdwg.mxu0
    %10574 = vmatpush.bf16.msra.mxu0 %v9534
    %10575 = vmatpush.bf16.msra.mxu0 %v9526
    %10576 = vmatpush.bf16.msra.mxu0 %v9518
    %10577 = vmatpush.bf16.msra.mxu0 %v9510
    %10578 = vmatpush.bf16.msra.mxu0 %v9502
    %10579 = vmatpush.bf16.msra.mxu0 %v9494
    %10580 = vmatpush.bf16.msra.mxu0 %v9486
    %10581 = vmatpush.bf16.msra.mxu0 %v9478
    %10582 = vmatmul.bf16.gmra.mxu0 %v7726
    %v10583 = vpop.f32.mrf.mxu0
    %v10584 = vadd.f32 %v10570, %v10583
    %v10585 = vpop.f32.mrf.mxu0
    %v10586 = vadd.f32 %v10572, %v10585
    %10587 = vdwg.mxu0
    %10588 = vmatpush.bf16.msra.mxu0 %v9598
    %10589 = vmatpush.bf16.msra.mxu0 %v9590
    %10590 = vmatpush.bf16.msra.mxu0 %v9582
    %10591 = vmatpush.bf16.msra.mxu0 %v9574
    %10592 = vmatpush.bf16.msra.mxu0 %v9566
    %10593 = vmatpush.bf16.msra.mxu0 %v9558
    %10594 = vmatpush.bf16.msra.mxu0 %v9550
    %10595 = vmatpush.bf16.msra.mxu0 %v9542
    %10596 = vmatmul.bf16.gmra.mxu0 %v7727
    %v10597 = vpop.f32.mrf.mxu0
    %v10598 = vadd.f32 %v10584, %v10597
    %v10599 = vpop.f32.mrf.mxu0
    %v10600 = vadd.f32 %v10586, %v10599
    %10601 = vdwg.mxu0
    %10602 = vmatpush.bf16.msra.mxu0 %v9662
    %10603 = vmatpush.bf16.msra.mxu0 %v9654
    %10604 = vmatpush.bf16.msra.mxu0 %v9646
    %10605 = vmatpush.bf16.msra.mxu0 %v9638
    %10606 = vmatpush.bf16.msra.mxu0 %v9630
    %10607 = vmatpush.bf16.msra.mxu0 %v9622
    %10608 = vmatpush.bf16.msra.mxu0 %v9614
    %10609 = vmatpush.bf16.msra.mxu0 %v9606
    %10610 = vmatmul.bf16.gmra.mxu0 %v7728
    %v10611 = vpop.f32.mrf.mxu0
    %v10612 = vadd.f32 %v10598, %v10611
    %v10613 = vpop.f32.mrf.mxu0
    %v10614 = vadd.f32 %v10600, %v10613
    %10615 = vdwg.mxu0
    %10616 = vmatpush.bf16.msra.mxu0 %v9726
    %10617 = vmatpush.bf16.msra.mxu0 %v9718
    %10618 = vmatpush.bf16.msra.mxu0 %v9710
    %10619 = vmatpush.bf16.msra.mxu0 %v9702
    %10620 = vmatpush.bf16.msra.mxu0 %v9694
    %10621 = vmatpush.bf16.msra.mxu0 %v9686
    %10622 = vmatpush.bf16.msra.mxu0 %v9678
    %10623 = vmatpush.bf16.msra.mxu0 %v9670
    %10624 = vmatmul.bf16.gmra.mxu0 %v7729
    %v10625 = vpop.f32.mrf.mxu0
    %v10626 = vadd.f32 %v10612, %v10625
    %v10627 = vpop.f32.mrf.mxu0
    %v10628 = vadd.f32 %v10614, %v10627
    %10629 = vdwg.mxu0
    %10630 = vmatpush.bf16.msra.mxu0 %v9790
    %10631 = vmatpush.bf16.msra.mxu0 %v9782
    %10632 = vmatpush.bf16.msra.mxu0 %v9774
    %10633 = vmatpush.bf16.msra.mxu0 %v9766
    %10634 = vmatpush.bf16.msra.mxu0 %v9758
    %10635 = vmatpush.bf16.msra.mxu0 %v9750
    %10636 = vmatpush.bf16.msra.mxu0 %v9742
    %10637 = vmatpush.bf16.msra.mxu0 %v9734
    %10638 = vmatmul.bf16.gmra.mxu0 %v7730
    %v10639 = vpop.f32.mrf.mxu0
    %v10640 = vadd.f32 %v10626, %v10639
    %v10641 = vpop.f32.mrf.mxu0
    %v10642 = vadd.f32 %v10628, %v10641
    %10643 = vdwg.mxu0
    %10644 = vmatpush.bf16.msra.mxu0 %v9343
    %10645 = vmatpush.bf16.msra.mxu0 %v9335
    %10646 = vmatpush.bf16.msra.mxu0 %v9327
    %10647 = vmatpush.bf16.msra.mxu0 %v9319
    %10648 = vmatpush.bf16.msra.mxu0 %v9311
    %10649 = vmatpush.bf16.msra.mxu0 %v9303
    %10650 = vmatpush.bf16.msra.mxu0 %v9295
    %10651 = vmatpush.bf16.msra.mxu0 %v9287
    %10652 = vmatmul.bf16.gmra.mxu0 %v7723
    %v10653 = vpop.f32.mrf.mxu0
    %v10654 = vadd.f32 %v7735, %v10653
    %v10655 = vpop.f32.mrf.mxu0
    %v10656 = vadd.f32 %v7735, %v10655
    %10657 = vdwg.mxu0
    %10658 = vmatpush.bf16.msra.mxu0 %v9407
    %10659 = vmatpush.bf16.msra.mxu0 %v9399
    %10660 = vmatpush.bf16.msra.mxu0 %v9391
    %10661 = vmatpush.bf16.msra.mxu0 %v9383
    %10662 = vmatpush.bf16.msra.mxu0 %v9375
    %10663 = vmatpush.bf16.msra.mxu0 %v9367
    %10664 = vmatpush.bf16.msra.mxu0 %v9359
    %10665 = vmatpush.bf16.msra.mxu0 %v9351
    %10666 = vmatmul.bf16.gmra.mxu0 %v7724
    %v10667 = vpop.f32.mrf.mxu0
    %v10668 = vadd.f32 %v10654, %v10667
    %v10669 = vpop.f32.mrf.mxu0
    %v10670 = vadd.f32 %v10656, %v10669
    %10671 = vdwg.mxu0
    %10672 = vmatpush.bf16.msra.mxu0 %v9471
    %10673 = vmatpush.bf16.msra.mxu0 %v9463
    %10674 = vmatpush.bf16.msra.mxu0 %v9455
    %10675 = vmatpush.bf16.msra.mxu0 %v9447
    %10676 = vmatpush.bf16.msra.mxu0 %v9439
    %10677 = vmatpush.bf16.msra.mxu0 %v9431
    %10678 = vmatpush.bf16.msra.mxu0 %v9423
    %10679 = vmatpush.bf16.msra.mxu0 %v9415
    %10680 = vmatmul.bf16.gmra.mxu0 %v7725
    %v10681 = vpop.f32.mrf.mxu0
    %v10682 = vadd.f32 %v10668, %v10681
    %v10683 = vpop.f32.mrf.mxu0
    %v10684 = vadd.f32 %v10670, %v10683
    %10685 = vdwg.mxu0
    %10686 = vmatpush.bf16.msra.mxu0 %v9535
    %10687 = vmatpush.bf16.msra.mxu0 %v9527
    %10688 = vmatpush.bf16.msra.mxu0 %v9519
    %10689 = vmatpush.bf16.msra.mxu0 %v9511
    %10690 = vmatpush.bf16.msra.mxu0 %v9503
    %10691 = vmatpush.bf16.msra.mxu0 %v9495
    %10692 = vmatpush.bf16.msra.mxu0 %v9487
    %10693 = vmatpush.bf16.msra.mxu0 %v9479
    %10694 = vmatmul.bf16.gmra.mxu0 %v7726
    %v10695 = vpop.f32.mrf.mxu0
    %v10696 = vadd.f32 %v10682, %v10695
    %v10697 = vpop.f32.mrf.mxu0
    %v10698 = vadd.f32 %v10684, %v10697
    %10699 = vdwg.mxu0
    %10700 = vmatpush.bf16.msra.mxu0 %v9599
    %10701 = vmatpush.bf16.msra.mxu0 %v9591
    %10702 = vmatpush.bf16.msra.mxu0 %v9583
    %10703 = vmatpush.bf16.msra.mxu0 %v9575
    %10704 = vmatpush.bf16.msra.mxu0 %v9567
    %10705 = vmatpush.bf16.msra.mxu0 %v9559
    %10706 = vmatpush.bf16.msra.mxu0 %v9551
    %10707 = vmatpush.bf16.msra.mxu0 %v9543
    %10708 = vmatmul.bf16.gmra.mxu0 %v7727
    %v10709 = vpop.f32.mrf.mxu0
    %v10710 = vadd.f32 %v10696, %v10709
    %v10711 = vpop.f32.mrf.mxu0
    %v10712 = vadd.f32 %v10698, %v10711
    %10713 = vdwg.mxu0
    %10714 = vmatpush.bf16.msra.mxu0 %v9663
    %10715 = vmatpush.bf16.msra.mxu0 %v9655
    %10716 = vmatpush.bf16.msra.mxu0 %v9647
    %10717 = vmatpush.bf16.msra.mxu0 %v9639
    %10718 = vmatpush.bf16.msra.mxu0 %v9631
    %10719 = vmatpush.bf16.msra.mxu0 %v9623
    %10720 = vmatpush.bf16.msra.mxu0 %v9615
    %10721 = vmatpush.bf16.msra.mxu0 %v9607
    %10722 = vmatmul.bf16.gmra.mxu0 %v7728
    %v10723 = vpop.f32.mrf.mxu0
    %v10724 = vadd.f32 %v10710, %v10723
    %v10725 = vpop.f32.mrf.mxu0
    %v10726 = vadd.f32 %v10712, %v10725
    %10727 = vdwg.mxu0
    %10728 = vmatpush.bf16.msra.mxu0 %v9727
    %10729 = vmatpush.bf16.msra.mxu0 %v9719
    %10730 = vmatpush.bf16.msra.mxu0 %v9711
    %10731 = vmatpush.bf16.msra.mxu0 %v9703
    %10732 = vmatpush.bf16.msra.mxu0 %v9695
    %10733 = vmatpush.bf16.msra.mxu0 %v9687
    %10734 = vmatpush.bf16.msra.mxu0 %v9679
    %10735 = vmatpush.bf16.msra.mxu0 %v9671
    %10736 = vmatmul.bf16.gmra.mxu0 %v7729
    %v10737 = vpop.f32.mrf.mxu0
    %v10738 = vadd.f32 %v10724, %v10737
    %v10739 = vpop.f32.mrf.mxu0
    %v10740 = vadd.f32 %v10726, %v10739
    %10741 = vdwg.mxu0
    %10742 = vmatpush.bf16.msra.mxu0 %v9791
    %10743 = vmatpush.bf16.msra.mxu0 %v9783
    %10744 = vmatpush.bf16.msra.mxu0 %v9775
    %10745 = vmatpush.bf16.msra.mxu0 %v9767
    %10746 = vmatpush.bf16.msra.mxu0 %v9759
    %10747 = vmatpush.bf16.msra.mxu0 %v9751
    %10748 = vmatpush.bf16.msra.mxu0 %v9743
    %10749 = vmatpush.bf16.msra.mxu0 %v9735
    %10750 = vmatmul.bf16.gmra.mxu0 %v7730
    %v10751 = vpop.f32.mrf.mxu0
    %v10752 = vadd.f32 %v10738, %v10751
    %v10753 = vpop.f32.mrf.mxu0
    %v10754 = vadd.f32 %v10740, %v10753
    %10755 = vdwg.mxu0
    %10756 = vmatpush.bf16.msra.mxu0 %v9344
    %10757 = vmatpush.bf16.msra.mxu0 %v9336
    %10758 = vmatpush.bf16.msra.mxu0 %v9328
    %10759 = vmatpush.bf16.msra.mxu0 %v9320
    %10760 = vmatpush.bf16.msra.mxu0 %v9312
    %10761 = vmatpush.bf16.msra.mxu0 %v9304
    %10762 = vmatpush.bf16.msra.mxu0 %v9296
    %10763 = vmatpush.bf16.msra.mxu0 %v9288
    %10764 = vmatmul.bf16.gmra.mxu0 %v7723
    %v10765 = vpop.f32.mrf.mxu0
    %v10766 = vadd.f32 %v7736, %v10765
    %v10767 = vpop.f32.mrf.mxu0
    %v10768 = vadd.f32 %v7736, %v10767
    %10769 = vdwg.mxu0
    %10770 = vmatpush.bf16.msra.mxu0 %v9408
    %10771 = vmatpush.bf16.msra.mxu0 %v9400
    %10772 = vmatpush.bf16.msra.mxu0 %v9392
    %10773 = vmatpush.bf16.msra.mxu0 %v9384
    %10774 = vmatpush.bf16.msra.mxu0 %v9376
    %10775 = vmatpush.bf16.msra.mxu0 %v9368
    %10776 = vmatpush.bf16.msra.mxu0 %v9360
    %10777 = vmatpush.bf16.msra.mxu0 %v9352
    %10778 = vmatmul.bf16.gmra.mxu0 %v7724
    %v10779 = vpop.f32.mrf.mxu0
    %v10780 = vadd.f32 %v10766, %v10779
    %v10781 = vpop.f32.mrf.mxu0
    %v10782 = vadd.f32 %v10768, %v10781
    %10783 = vdwg.mxu0
    %10784 = vmatpush.bf16.msra.mxu0 %v9472
    %10785 = vmatpush.bf16.msra.mxu0 %v9464
    %10786 = vmatpush.bf16.msra.mxu0 %v9456
    %10787 = vmatpush.bf16.msra.mxu0 %v9448
    %10788 = vmatpush.bf16.msra.mxu0 %v9440
    %10789 = vmatpush.bf16.msra.mxu0 %v9432
    %10790 = vmatpush.bf16.msra.mxu0 %v9424
    %10791 = vmatpush.bf16.msra.mxu0 %v9416
    %10792 = vmatmul.bf16.gmra.mxu0 %v7725
    %v10793 = vpop.f32.mrf.mxu0
    %v10794 = vadd.f32 %v10780, %v10793
    %v10795 = vpop.f32.mrf.mxu0
    %v10796 = vadd.f32 %v10782, %v10795
    %10797 = vdwg.mxu0
    %10798 = vmatpush.bf16.msra.mxu0 %v9536
    %10799 = vmatpush.bf16.msra.mxu0 %v9528
    %10800 = vmatpush.bf16.msra.mxu0 %v9520
    %10801 = vmatpush.bf16.msra.mxu0 %v9512
    %10802 = vmatpush.bf16.msra.mxu0 %v9504
    %10803 = vmatpush.bf16.msra.mxu0 %v9496
    %10804 = vmatpush.bf16.msra.mxu0 %v9488
    %10805 = vmatpush.bf16.msra.mxu0 %v9480
    %10806 = vmatmul.bf16.gmra.mxu0 %v7726
    %v10807 = vpop.f32.mrf.mxu0
    %v10808 = vadd.f32 %v10794, %v10807
    %v10809 = vpop.f32.mrf.mxu0
    %v10810 = vadd.f32 %v10796, %v10809
    %10811 = vdwg.mxu0
    %10812 = vmatpush.bf16.msra.mxu0 %v9600
    %10813 = vmatpush.bf16.msra.mxu0 %v9592
    %10814 = vmatpush.bf16.msra.mxu0 %v9584
    %10815 = vmatpush.bf16.msra.mxu0 %v9576
    %10816 = vmatpush.bf16.msra.mxu0 %v9568
    %10817 = vmatpush.bf16.msra.mxu0 %v9560
    %10818 = vmatpush.bf16.msra.mxu0 %v9552
    %10819 = vmatpush.bf16.msra.mxu0 %v9544
    %10820 = vmatmul.bf16.gmra.mxu0 %v7727
    %v10821 = vpop.f32.mrf.mxu0
    %v10822 = vadd.f32 %v10808, %v10821
    %v10823 = vpop.f32.mrf.mxu0
    %v10824 = vadd.f32 %v10810, %v10823
    %10825 = vdwg.mxu0
    %10826 = vmatpush.bf16.msra.mxu0 %v9664
    %10827 = vmatpush.bf16.msra.mxu0 %v9656
    %10828 = vmatpush.bf16.msra.mxu0 %v9648
    %10829 = vmatpush.bf16.msra.mxu0 %v9640
    %10830 = vmatpush.bf16.msra.mxu0 %v9632
    %10831 = vmatpush.bf16.msra.mxu0 %v9624
    %10832 = vmatpush.bf16.msra.mxu0 %v9616
    %10833 = vmatpush.bf16.msra.mxu0 %v9608
    %10834 = vmatmul.bf16.gmra.mxu0 %v7728
    %v10835 = vpop.f32.mrf.mxu0
    %v10836 = vadd.f32 %v10822, %v10835
    %v10837 = vpop.f32.mrf.mxu0
    %v10838 = vadd.f32 %v10824, %v10837
    %10839 = vdwg.mxu0
    %10840 = vmatpush.bf16.msra.mxu0 %v9728
    %10841 = vmatpush.bf16.msra.mxu0 %v9720
    %10842 = vmatpush.bf16.msra.mxu0 %v9712
    %10843 = vmatpush.bf16.msra.mxu0 %v9704
    %10844 = vmatpush.bf16.msra.mxu0 %v9696
    %10845 = vmatpush.bf16.msra.mxu0 %v9688
    %10846 = vmatpush.bf16.msra.mxu0 %v9680
    %10847 = vmatpush.bf16.msra.mxu0 %v9672
    %10848 = vmatmul.bf16.gmra.mxu0 %v7729
    %v10849 = vpop.f32.mrf.mxu0
    %v10850 = vadd.f32 %v10836, %v10849
    %v10851 = vpop.f32.mrf.mxu0
    %v10852 = vadd.f32 %v10838, %v10851
    %10853 = vdwg.mxu0
    %10854 = vmatpush.bf16.msra.mxu0 %v9792
    %10855 = vmatpush.bf16.msra.mxu0 %v9784
    %10856 = vmatpush.bf16.msra.mxu0 %v9776
    %10857 = vmatpush.bf16.msra.mxu0 %v9768
    %10858 = vmatpush.bf16.msra.mxu0 %v9760
    %10859 = vmatpush.bf16.msra.mxu0 %v9752
    %10860 = vmatpush.bf16.msra.mxu0 %v9744
    %10861 = vmatpush.bf16.msra.mxu0 %v9736
    %10862 = vmatmul.bf16.gmra.mxu0 %v7730
    %v10863 = vpop.f32.mrf.mxu0
    %v10864 = vadd.f32 %v10850, %v10863
    %v10865 = vpop.f32.mrf.mxu0
    %v10866 = vadd.f32 %v10852, %v10865
    %10867 = vdwg.mxu0
    %10868 = vmatpush.bf16.msra.mxu0 %v9345
    %10869 = vmatpush.bf16.msra.mxu0 %v9337
    %10870 = vmatpush.bf16.msra.mxu0 %v9329
    %10871 = vmatpush.bf16.msra.mxu0 %v9321
    %10872 = vmatpush.bf16.msra.mxu0 %v9313
    %10873 = vmatpush.bf16.msra.mxu0 %v9305
    %10874 = vmatpush.bf16.msra.mxu0 %v9297
    %10875 = vmatpush.bf16.msra.mxu0 %v9289
    %10876 = vmatmul.bf16.gmra.mxu0 %v7723
    %v10877 = vpop.f32.mrf.mxu0
    %v10878 = vadd.f32 %v7737, %v10877
    %v10879 = vpop.f32.mrf.mxu0
    %v10880 = vadd.f32 %v7737, %v10879
    %10881 = vdwg.mxu0
    %10882 = vmatpush.bf16.msra.mxu0 %v9409
    %10883 = vmatpush.bf16.msra.mxu0 %v9401
    %10884 = vmatpush.bf16.msra.mxu0 %v9393
    %10885 = vmatpush.bf16.msra.mxu0 %v9385
    %10886 = vmatpush.bf16.msra.mxu0 %v9377
    %10887 = vmatpush.bf16.msra.mxu0 %v9369
    %10888 = vmatpush.bf16.msra.mxu0 %v9361
    %10889 = vmatpush.bf16.msra.mxu0 %v9353
    %10890 = vmatmul.bf16.gmra.mxu0 %v7724
    %v10891 = vpop.f32.mrf.mxu0
    %v10892 = vadd.f32 %v10878, %v10891
    %v10893 = vpop.f32.mrf.mxu0
    %v10894 = vadd.f32 %v10880, %v10893
    %10895 = vdwg.mxu0
    %10896 = vmatpush.bf16.msra.mxu0 %v9473
    %10897 = vmatpush.bf16.msra.mxu0 %v9465
    %10898 = vmatpush.bf16.msra.mxu0 %v9457
    %10899 = vmatpush.bf16.msra.mxu0 %v9449
    %10900 = vmatpush.bf16.msra.mxu0 %v9441
    %10901 = vmatpush.bf16.msra.mxu0 %v9433
    %10902 = vmatpush.bf16.msra.mxu0 %v9425
    %10903 = vmatpush.bf16.msra.mxu0 %v9417
    %10904 = vmatmul.bf16.gmra.mxu0 %v7725
    %v10905 = vpop.f32.mrf.mxu0
    %v10906 = vadd.f32 %v10892, %v10905
    %v10907 = vpop.f32.mrf.mxu0
    %v10908 = vadd.f32 %v10894, %v10907
    %10909 = vdwg.mxu0
    %10910 = vmatpush.bf16.msra.mxu0 %v9537
    %10911 = vmatpush.bf16.msra.mxu0 %v9529
    %10912 = vmatpush.bf16.msra.mxu0 %v9521
    %10913 = vmatpush.bf16.msra.mxu0 %v9513
    %10914 = vmatpush.bf16.msra.mxu0 %v9505
    %10915 = vmatpush.bf16.msra.mxu0 %v9497
    %10916 = vmatpush.bf16.msra.mxu0 %v9489
    %10917 = vmatpush.bf16.msra.mxu0 %v9481
    %10918 = vmatmul.bf16.gmra.mxu0 %v7726
    %v10919 = vpop.f32.mrf.mxu0
    %v10920 = vadd.f32 %v10906, %v10919
    %v10921 = vpop.f32.mrf.mxu0
    %v10922 = vadd.f32 %v10908, %v10921
    %10923 = vdwg.mxu0
    %10924 = vmatpush.bf16.msra.mxu0 %v9601
    %10925 = vmatpush.bf16.msra.mxu0 %v9593
    %10926 = vmatpush.bf16.msra.mxu0 %v9585
    %10927 = vmatpush.bf16.msra.mxu0 %v9577
    %10928 = vmatpush.bf16.msra.mxu0 %v9569
    %10929 = vmatpush.bf16.msra.mxu0 %v9561
    %10930 = vmatpush.bf16.msra.mxu0 %v9553
    %10931 = vmatpush.bf16.msra.mxu0 %v9545
    %10932 = vmatmul.bf16.gmra.mxu0 %v7727
    %v10933 = vpop.f32.mrf.mxu0
    %v10934 = vadd.f32 %v10920, %v10933
    %v10935 = vpop.f32.mrf.mxu0
    %v10936 = vadd.f32 %v10922, %v10935
    %10937 = vdwg.mxu0
    %10938 = vmatpush.bf16.msra.mxu0 %v9665
    %10939 = vmatpush.bf16.msra.mxu0 %v9657
    %10940 = vmatpush.bf16.msra.mxu0 %v9649
    %10941 = vmatpush.bf16.msra.mxu0 %v9641
    %10942 = vmatpush.bf16.msra.mxu0 %v9633
    %10943 = vmatpush.bf16.msra.mxu0 %v9625
    %10944 = vmatpush.bf16.msra.mxu0 %v9617
    %10945 = vmatpush.bf16.msra.mxu0 %v9609
    %10946 = vmatmul.bf16.gmra.mxu0 %v7728
    %v10947 = vpop.f32.mrf.mxu0
    %v10948 = vadd.f32 %v10934, %v10947
    %v10949 = vpop.f32.mrf.mxu0
    %v10950 = vadd.f32 %v10936, %v10949
    %10951 = vdwg.mxu0
    %10952 = vmatpush.bf16.msra.mxu0 %v9729
    %10953 = vmatpush.bf16.msra.mxu0 %v9721
    %10954 = vmatpush.bf16.msra.mxu0 %v9713
    %10955 = vmatpush.bf16.msra.mxu0 %v9705
    %10956 = vmatpush.bf16.msra.mxu0 %v9697
    %10957 = vmatpush.bf16.msra.mxu0 %v9689
    %10958 = vmatpush.bf16.msra.mxu0 %v9681
    %10959 = vmatpush.bf16.msra.mxu0 %v9673
    %10960 = vmatmul.bf16.gmra.mxu0 %v7729
    %v10961 = vpop.f32.mrf.mxu0
    %v10962 = vadd.f32 %v10948, %v10961
    %v10963 = vpop.f32.mrf.mxu0
    %v10964 = vadd.f32 %v10950, %v10963
    %10965 = vdwg.mxu0
    %10966 = vmatpush.bf16.msra.mxu0 %v9793
    %10967 = vmatpush.bf16.msra.mxu0 %v9785
    %10968 = vmatpush.bf16.msra.mxu0 %v9777
    %10969 = vmatpush.bf16.msra.mxu0 %v9769
    %10970 = vmatpush.bf16.msra.mxu0 %v9761
    %10971 = vmatpush.bf16.msra.mxu0 %v9753
    %10972 = vmatpush.bf16.msra.mxu0 %v9745
    %10973 = vmatpush.bf16.msra.mxu0 %v9737
    %10974 = vmatmul.bf16.gmra.mxu0 %v7730
    %v10975 = vpop.f32.mrf.mxu0
    %v10976 = vadd.f32 %v10962, %v10975
    %v10977 = vpop.f32.mrf.mxu0
    %v10978 = vadd.f32 %v10964, %v10977
    %10979 = vdwg.mxu0
    %10980 = vmatpush.bf16.msra.mxu0 %v9346
    %10981 = vmatpush.bf16.msra.mxu0 %v9338
    %10982 = vmatpush.bf16.msra.mxu0 %v9330
    %10983 = vmatpush.bf16.msra.mxu0 %v9322
    %10984 = vmatpush.bf16.msra.mxu0 %v9314
    %10985 = vmatpush.bf16.msra.mxu0 %v9306
    %10986 = vmatpush.bf16.msra.mxu0 %v9298
    %10987 = vmatpush.bf16.msra.mxu0 %v9290
    %10988 = vmatmul.bf16.gmra.mxu0 %v7723
    %v10989 = vpop.f32.mrf.mxu0
    %v10990 = vadd.f32 %v7738, %v10989
    %v10991 = vpop.f32.mrf.mxu0
    %v10992 = vadd.f32 %v7738, %v10991
    %10993 = vdwg.mxu0
    %10994 = vmatpush.bf16.msra.mxu0 %v9410
    %10995 = vmatpush.bf16.msra.mxu0 %v9402
    %10996 = vmatpush.bf16.msra.mxu0 %v9394
    %10997 = vmatpush.bf16.msra.mxu0 %v9386
    %10998 = vmatpush.bf16.msra.mxu0 %v9378
    %10999 = vmatpush.bf16.msra.mxu0 %v9370
    %11000 = vmatpush.bf16.msra.mxu0 %v9362
    %11001 = vmatpush.bf16.msra.mxu0 %v9354
    %11002 = vmatmul.bf16.gmra.mxu0 %v7724
    %v11003 = vpop.f32.mrf.mxu0
    %v11004 = vadd.f32 %v10990, %v11003
    %v11005 = vpop.f32.mrf.mxu0
    %v11006 = vadd.f32 %v10992, %v11005
    %11007 = vdwg.mxu0
    %11008 = vmatpush.bf16.msra.mxu0 %v9474
    %11009 = vmatpush.bf16.msra.mxu0 %v9466
    %11010 = vmatpush.bf16.msra.mxu0 %v9458
    %11011 = vmatpush.bf16.msra.mxu0 %v9450
    %11012 = vmatpush.bf16.msra.mxu0 %v9442
    %11013 = vmatpush.bf16.msra.mxu0 %v9434
    %11014 = vmatpush.bf16.msra.mxu0 %v9426
    %11015 = vmatpush.bf16.msra.mxu0 %v9418
    %11016 = vmatmul.bf16.gmra.mxu0 %v7725
    %v11017 = vpop.f32.mrf.mxu0
    %v11018 = vadd.f32 %v11004, %v11017
    %v11019 = vpop.f32.mrf.mxu0
    %v11020 = vadd.f32 %v11006, %v11019
    %11021 = vdwg.mxu0
    %11022 = vmatpush.bf16.msra.mxu0 %v9538
    %11023 = vmatpush.bf16.msra.mxu0 %v9530
    %11024 = vmatpush.bf16.msra.mxu0 %v9522
    %11025 = vmatpush.bf16.msra.mxu0 %v9514
    %11026 = vmatpush.bf16.msra.mxu0 %v9506
    %11027 = vmatpush.bf16.msra.mxu0 %v9498
    %11028 = vmatpush.bf16.msra.mxu0 %v9490
    %11029 = vmatpush.bf16.msra.mxu0 %v9482
    %11030 = vmatmul.bf16.gmra.mxu0 %v7726
    %v11031 = vpop.f32.mrf.mxu0
    %v11032 = vadd.f32 %v11018, %v11031
    %v11033 = vpop.f32.mrf.mxu0
    %v11034 = vadd.f32 %v11020, %v11033
    %11035 = vdwg.mxu0
    %11036 = vmatpush.bf16.msra.mxu0 %v9602
    %11037 = vmatpush.bf16.msra.mxu0 %v9594
    %11038 = vmatpush.bf16.msra.mxu0 %v9586
    %11039 = vmatpush.bf16.msra.mxu0 %v9578
    %11040 = vmatpush.bf16.msra.mxu0 %v9570
    %11041 = vmatpush.bf16.msra.mxu0 %v9562
    %11042 = vmatpush.bf16.msra.mxu0 %v9554
    %11043 = vmatpush.bf16.msra.mxu0 %v9546
    %11044 = vmatmul.bf16.gmra.mxu0 %v7727
    %v11045 = vpop.f32.mrf.mxu0
    %v11046 = vadd.f32 %v11032, %v11045
    %v11047 = vpop.f32.mrf.mxu0
    %v11048 = vadd.f32 %v11034, %v11047
    %11049 = vdwg.mxu0
    %11050 = vmatpush.bf16.msra.mxu0 %v9666
    %11051 = vmatpush.bf16.msra.mxu0 %v9658
    %11052 = vmatpush.bf16.msra.mxu0 %v9650
    %11053 = vmatpush.bf16.msra.mxu0 %v9642
    %11054 = vmatpush.bf16.msra.mxu0 %v9634
    %11055 = vmatpush.bf16.msra.mxu0 %v9626
    %11056 = vmatpush.bf16.msra.mxu0 %v9618
    %11057 = vmatpush.bf16.msra.mxu0 %v9610
    %11058 = vmatmul.bf16.gmra.mxu0 %v7728
    %v11059 = vpop.f32.mrf.mxu0
    %v11060 = vadd.f32 %v11046, %v11059
    %v11061 = vpop.f32.mrf.mxu0
    %v11062 = vadd.f32 %v11048, %v11061
    %11063 = vdwg.mxu0
    %11064 = vmatpush.bf16.msra.mxu0 %v9730
    %11065 = vmatpush.bf16.msra.mxu0 %v9722
    %11066 = vmatpush.bf16.msra.mxu0 %v9714
    %11067 = vmatpush.bf16.msra.mxu0 %v9706
    %11068 = vmatpush.bf16.msra.mxu0 %v9698
    %11069 = vmatpush.bf16.msra.mxu0 %v9690
    %11070 = vmatpush.bf16.msra.mxu0 %v9682
    %11071 = vmatpush.bf16.msra.mxu0 %v9674
    %11072 = vmatmul.bf16.gmra.mxu0 %v7729
    %v11073 = vpop.f32.mrf.mxu0
    %v11074 = vadd.f32 %v11060, %v11073
    %v11075 = vpop.f32.mrf.mxu0
    %v11076 = vadd.f32 %v11062, %v11075
    %11077 = vdwg.mxu0
    %11078 = vmatpush.bf16.msra.mxu0 %v9794
    %11079 = vmatpush.bf16.msra.mxu0 %v9786
    %11080 = vmatpush.bf16.msra.mxu0 %v9778
    %11081 = vmatpush.bf16.msra.mxu0 %v9770
    %11082 = vmatpush.bf16.msra.mxu0 %v9762
    %11083 = vmatpush.bf16.msra.mxu0 %v9754
    %11084 = vmatpush.bf16.msra.mxu0 %v9746
    %11085 = vmatpush.bf16.msra.mxu0 %v9738
    %11086 = vmatmul.bf16.gmra.mxu0 %v7730
    %v11087 = vpop.f32.mrf.mxu0
    %v11088 = vadd.f32 %v11074, %v11087
    %v11089 = vpop.f32.mrf.mxu0
    %v11090 = vadd.f32 %v11076, %v11089
    %11091 = vdwg.mxu0
    %11092 = vmatpush.bf16.msra.mxu0 %v9347
    %11093 = vmatpush.bf16.msra.mxu0 %v9339
    %11094 = vmatpush.bf16.msra.mxu0 %v9331
    %11095 = vmatpush.bf16.msra.mxu0 %v9323
    %11096 = vmatpush.bf16.msra.mxu0 %v9315
    %11097 = vmatpush.bf16.msra.mxu0 %v9307
    %11098 = vmatpush.bf16.msra.mxu0 %v9299
    %11099 = vmatpush.bf16.msra.mxu0 %v9291
    %11100 = vmatmul.bf16.gmra.mxu0 %v7723
    %v11101 = vpop.f32.mrf.mxu0
    %v11102 = vadd.f32 %v7739, %v11101
    %v11103 = vpop.f32.mrf.mxu0
    %v11104 = vadd.f32 %v7739, %v11103
    %11105 = vdwg.mxu0
    %11106 = vmatpush.bf16.msra.mxu0 %v9411
    %11107 = vmatpush.bf16.msra.mxu0 %v9403
    %11108 = vmatpush.bf16.msra.mxu0 %v9395
    %11109 = vmatpush.bf16.msra.mxu0 %v9387
    %11110 = vmatpush.bf16.msra.mxu0 %v9379
    %11111 = vmatpush.bf16.msra.mxu0 %v9371
    %11112 = vmatpush.bf16.msra.mxu0 %v9363
    %11113 = vmatpush.bf16.msra.mxu0 %v9355
    %11114 = vmatmul.bf16.gmra.mxu0 %v7724
    %v11115 = vpop.f32.mrf.mxu0
    %v11116 = vadd.f32 %v11102, %v11115
    %v11117 = vpop.f32.mrf.mxu0
    %v11118 = vadd.f32 %v11104, %v11117
    %11119 = vdwg.mxu0
    %11120 = vmatpush.bf16.msra.mxu0 %v9475
    %11121 = vmatpush.bf16.msra.mxu0 %v9467
    %11122 = vmatpush.bf16.msra.mxu0 %v9459
    %11123 = vmatpush.bf16.msra.mxu0 %v9451
    %11124 = vmatpush.bf16.msra.mxu0 %v9443
    %11125 = vmatpush.bf16.msra.mxu0 %v9435
    %11126 = vmatpush.bf16.msra.mxu0 %v9427
    %11127 = vmatpush.bf16.msra.mxu0 %v9419
    %11128 = vmatmul.bf16.gmra.mxu0 %v7725
    %v11129 = vpop.f32.mrf.mxu0
    %v11130 = vadd.f32 %v11116, %v11129
    %v11131 = vpop.f32.mrf.mxu0
    %v11132 = vadd.f32 %v11118, %v11131
    %11133 = vdwg.mxu0
    %11134 = vmatpush.bf16.msra.mxu0 %v9539
    %11135 = vmatpush.bf16.msra.mxu0 %v9531
    %11136 = vmatpush.bf16.msra.mxu0 %v9523
    %11137 = vmatpush.bf16.msra.mxu0 %v9515
    %11138 = vmatpush.bf16.msra.mxu0 %v9507
    %11139 = vmatpush.bf16.msra.mxu0 %v9499
    %11140 = vmatpush.bf16.msra.mxu0 %v9491
    %11141 = vmatpush.bf16.msra.mxu0 %v9483
    %11142 = vmatmul.bf16.gmra.mxu0 %v7726
    %v11143 = vpop.f32.mrf.mxu0
    %v11144 = vadd.f32 %v11130, %v11143
    %v11145 = vpop.f32.mrf.mxu0
    %v11146 = vadd.f32 %v11132, %v11145
    %11147 = vdwg.mxu0
    %11148 = vmatpush.bf16.msra.mxu0 %v9603
    %11149 = vmatpush.bf16.msra.mxu0 %v9595
    %11150 = vmatpush.bf16.msra.mxu0 %v9587
    %11151 = vmatpush.bf16.msra.mxu0 %v9579
    %11152 = vmatpush.bf16.msra.mxu0 %v9571
    %11153 = vmatpush.bf16.msra.mxu0 %v9563
    %11154 = vmatpush.bf16.msra.mxu0 %v9555
    %11155 = vmatpush.bf16.msra.mxu0 %v9547
    %11156 = vmatmul.bf16.gmra.mxu0 %v7727
    %v11157 = vpop.f32.mrf.mxu0
    %v11158 = vadd.f32 %v11144, %v11157
    %v11159 = vpop.f32.mrf.mxu0
    %v11160 = vadd.f32 %v11146, %v11159
    %11161 = vdwg.mxu0
    %11162 = vmatpush.bf16.msra.mxu0 %v9667
    %11163 = vmatpush.bf16.msra.mxu0 %v9659
    %11164 = vmatpush.bf16.msra.mxu0 %v9651
    %11165 = vmatpush.bf16.msra.mxu0 %v9643
    %11166 = vmatpush.bf16.msra.mxu0 %v9635
    %11167 = vmatpush.bf16.msra.mxu0 %v9627
    %11168 = vmatpush.bf16.msra.mxu0 %v9619
    %11169 = vmatpush.bf16.msra.mxu0 %v9611
    %11170 = vmatmul.bf16.gmra.mxu0 %v7728
    %v11171 = vpop.f32.mrf.mxu0
    %v11172 = vadd.f32 %v11158, %v11171
    %v11173 = vpop.f32.mrf.mxu0
    %v11174 = vadd.f32 %v11160, %v11173
    %11175 = vdwg.mxu0
    %11176 = vmatpush.bf16.msra.mxu0 %v9731
    %11177 = vmatpush.bf16.msra.mxu0 %v9723
    %11178 = vmatpush.bf16.msra.mxu0 %v9715
    %11179 = vmatpush.bf16.msra.mxu0 %v9707
    %11180 = vmatpush.bf16.msra.mxu0 %v9699
    %11181 = vmatpush.bf16.msra.mxu0 %v9691
    %11182 = vmatpush.bf16.msra.mxu0 %v9683
    %11183 = vmatpush.bf16.msra.mxu0 %v9675
    %11184 = vmatmul.bf16.gmra.mxu0 %v7729
    %v11185 = vpop.f32.mrf.mxu0
    %v11186 = vadd.f32 %v11172, %v11185
    %v11187 = vpop.f32.mrf.mxu0
    %v11188 = vadd.f32 %v11174, %v11187
    %11189 = vdwg.mxu0
    %11190 = vmatpush.bf16.msra.mxu0 %v9795
    %11191 = vmatpush.bf16.msra.mxu0 %v9787
    %11192 = vmatpush.bf16.msra.mxu0 %v9779
    %11193 = vmatpush.bf16.msra.mxu0 %v9771
    %11194 = vmatpush.bf16.msra.mxu0 %v9763
    %11195 = vmatpush.bf16.msra.mxu0 %v9755
    %11196 = vmatpush.bf16.msra.mxu0 %v9747
    %11197 = vmatpush.bf16.msra.mxu0 %v9739
    %11198 = vmatmul.bf16.gmra.mxu0 %v7730
    %v11199 = vpop.f32.mrf.mxu0
    %v11200 = vadd.f32 %v11186, %v11199
    %v11201 = vpop.f32.mrf.mxu0
    %v11202 = vadd.f32 %v11188, %v11201
    %11203 = vdwg.mxu0
    %vm11204 = vcmp.gt.f32.partialorder %v10416, 0.0
    %vm11205 = vcmp.gt.f32.partialorder %v10528, 0.0
    %vm11206 = vcmp.gt.f32.partialorder %v10640, 0.0
    %vm11207 = vcmp.gt.f32.partialorder %v10752, 0.0
    %vm11208 = vcmp.gt.f32.partialorder %v10864, 0.0
    %vm11209 = vcmp.gt.f32.partialorder %v10976, 0.0
    %vm11210 = vcmp.gt.f32.partialorder %v11088, 0.0
    %vm11211 = vcmp.gt.f32.partialorder %v11200, 0.0
    %vm11212 = vcmp.gt.f32.partialorder %v10418, 0.0
    %vm11213 = vcmp.gt.f32.partialorder %v10530, 0.0
    %vm11214 = vcmp.gt.f32.partialorder %v10642, 0.0
    %vm11215 = vcmp.gt.f32.partialorder %v10754, 0.0
    %vm11216 = vcmp.gt.f32.partialorder %v10866, 0.0
    %vm11217 = vcmp.gt.f32.partialorder %v10978, 0.0
    %vm11218 = vcmp.gt.f32.partialorder %v11090, 0.0
    %vm11219 = vcmp.gt.f32.partialorder %v11202, 0.0
    %v11220 = vmul.f32 %v10416, 0.01
    %v11221 = vmul.f32 %v10528, 0.01
    %v11222 = vmul.f32 %v10640, 0.01
    %v11223 = vmul.f32 %v10752, 0.01
    %v11224 = vmul.f32 %v10864, 0.01
    %v11225 = vmul.f32 %v10976, 0.01
    %v11226 = vmul.f32 %v11088, 0.01
    %v11227 = vmul.f32 %v11200, 0.01
    %v11228 = vmul.f32 %v10418, 0.01
    %v11229 = vmul.f32 %v10530, 0.01
    %v11230 = vmul.f32 %v10642, 0.01
    %v11231 = vmul.f32 %v10754, 0.01
    %v11232 = vmul.f32 %v10866, 0.01
    %v11233 = vmul.f32 %v10978, 0.01
    %v11234 = vmul.f32 %v11090, 0.01
    %v11235 = vmul.f32 %v11202, 0.01
    %v11236 = vsel %vm11204, %v10416, %v11220
    %v11237 = vsel %vm11205, %v10528, %v11221
    %v11238 = vsel %vm11206, %v10640, %v11222
    %v11239 = vsel %vm11207, %v10752, %v11223
    %v11240 = vsel %vm11208, %v10864, %v11224
    %v11241 = vsel %vm11209, %v10976, %v11225
    %v11242 = vsel %vm11210, %v11088, %v11226
    %v11243 = vsel %vm11211, %v11200, %v11227
    %v11244 = vsel %vm11212, %v10418, %v11228
    %v11245 = vsel %vm11213, %v10530, %v11229
    %v11246 = vsel %vm11214, %v10642, %v11230
    %v11247 = vsel %vm11215, %v10754, %v11231
    %v11248 = vsel %vm11216, %v10866, %v11232
    %v11249 = vsel %vm11217, %v10978, %v11233
    %v11250 = vsel %vm11218, %v11090, %v11234
    %v11251 = vsel %vm11219, %v11202, %v11235
    %v11252 = vpack.c.bf16 %v11244, %v11236
    %v11253 = vpack.c.bf16 %v11245, %v11237
    %v11254 = vpack.c.bf16 %v11246, %v11238
    %v11255 = vpack.c.bf16 %v11247, %v11239
    %v11256 = vpack.c.bf16 %v11248, %v11240
    %v11257 = vpack.c.bf16 %v11249, %v11241
    %v11258 = vpack.c.bf16 %v11250, %v11242
    %v11259 = vpack.c.bf16 %v11251, %v11243
    %v11261 = vperm.slane %v864, 0
    %v11391 = vunpack.c.l.b16 %v736
    %v11392 = vunpack.c.l.b16 %v737
    %v11393 = vunpack.c.l.b16 %v738
    %v11394 = vunpack.c.l.b16 %v739
    %v11395 = vunpack.c.l.b16 %v740
    %v11396 = vunpack.c.l.b16 %v741
    %v11397 = vunpack.c.l.b16 %v742
    %v11398 = vunpack.c.l.b16 %v743
    %v11399 = vunpack.c.l.b16 %v744
    %v11400 = vunpack.c.l.b16 %v745
    %v11401 = vunpack.c.l.b16 %v746
    %v11402 = vunpack.c.l.b16 %v747
    %v11403 = vunpack.c.l.b16 %v748
    %v11404 = vunpack.c.l.b16 %v749
    %v11405 = vunpack.c.l.b16 %v750
    %v11406 = vunpack.c.l.b16 %v751
    %v11407 = vunpack.c.l.b16 %v752
    %v11408 = vunpack.c.l.b16 %v753
    %v11409 = vunpack.c.l.b16 %v754
    %v11410 = vunpack.c.l.b16 %v755
    %v11411 = vunpack.c.l.b16 %v756
    %v11412 = vunpack.c.l.b16 %v757
    %v11413 = vunpack.c.l.b16 %v758
    %v11414 = vunpack.c.l.b16 %v759
    %v11415 = vunpack.c.l.b16 %v760
    %v11416 = vunpack.c.l.b16 %v761
    %v11417 = vunpack.c.l.b16 %v762
    %v11418 = vunpack.c.l.b16 %v763
    %v11419 = vunpack.c.l.b16 %v764
    %v11420 = vunpack.c.l.b16 %v765
    %v11421 = vunpack.c.l.b16 %v766
    %v11422 = vunpack.c.l.b16 %v767
    %v11423 = vunpack.c.l.b16 %v768
    %v11424 = vunpack.c.l.b16 %v769
    %v11425 = vunpack.c.l.b16 %v770
    %v11426 = vunpack.c.l.b16 %v771
    %v11427 = vunpack.c.l.b16 %v772
    %v11428 = vunpack.c.l.b16 %v773
    %v11429 = vunpack.c.l.b16 %v774
    %v11430 = vunpack.c.l.b16 %v775
    %v11431 = vunpack.c.l.b16 %v776
    %v11432 = vunpack.c.l.b16 %v777
    %v11433 = vunpack.c.l.b16 %v778
    %v11434 = vunpack.c.l.b16 %v779
    %v11435 = vunpack.c.l.b16 %v780
    %v11436 = vunpack.c.l.b16 %v781
    %v11437 = vunpack.c.l.b16 %v782
    %v11438 = vunpack.c.l.b16 %v783
    %v11439 = vunpack.c.l.b16 %v784
    %v11440 = vunpack.c.l.b16 %v785
    %v11441 = vunpack.c.l.b16 %v786
    %v11442 = vunpack.c.l.b16 %v787
    %v11443 = vunpack.c.l.b16 %v788
    %v11444 = vunpack.c.l.b16 %v789
    %v11445 = vunpack.c.l.b16 %v790
    %v11446 = vunpack.c.l.b16 %v791
    %v11447 = vunpack.c.l.b16 %v792
    %v11448 = vunpack.c.l.b16 %v793
    %v11449 = vunpack.c.l.b16 %v794
    %v11450 = vunpack.c.l.b16 %v795
    %v11451 = vunpack.c.l.b16 %v796
    %v11452 = vunpack.c.l.b16 %v797
    %v11453 = vunpack.c.l.b16 %v798
    %v11454 = vunpack.c.l.b16 %v799
    %v11455 = vunpack.c.l.b16 %v800
    %v11456 = vunpack.c.l.b16 %v801
    %v11457 = vunpack.c.l.b16 %v802
    %v11458 = vunpack.c.l.b16 %v803
    %v11459 = vunpack.c.l.b16 %v804
    %v11460 = vunpack.c.l.b16 %v805
    %v11461 = vunpack.c.l.b16 %v806
    %v11462 = vunpack.c.l.b16 %v807
    %v11463 = vunpack.c.l.b16 %v808
    %v11464 = vunpack.c.l.b16 %v809
    %v11465 = vunpack.c.l.b16 %v810
    %v11466 = vunpack.c.l.b16 %v811
    %v11467 = vunpack.c.l.b16 %v812
    %v11468 = vunpack.c.l.b16 %v813
    %v11469 = vunpack.c.l.b16 %v814
    %v11470 = vunpack.c.l.b16 %v815
    %v11471 = vunpack.c.l.b16 %v816
    %v11472 = vunpack.c.l.b16 %v817
    %v11473 = vunpack.c.l.b16 %v818
    %v11474 = vunpack.c.l.b16 %v819
    %v11475 = vunpack.c.l.b16 %v820
    %v11476 = vunpack.c.l.b16 %v821
    %v11477 = vunpack.c.l.b16 %v822
    %v11478 = vunpack.c.l.b16 %v823
    %v11479 = vunpack.c.l.b16 %v824
    %v11480 = vunpack.c.l.b16 %v825
    %v11481 = vunpack.c.l.b16 %v826
    %v11482 = vunpack.c.l.b16 %v827
    %v11483 = vunpack.c.l.b16 %v828
    %v11484 = vunpack.c.l.b16 %v829
    %v11485 = vunpack.c.l.b16 %v830
    %v11486 = vunpack.c.l.b16 %v831
    %v11487 = vunpack.c.l.b16 %v832
    %v11488 = vunpack.c.l.b16 %v833
    %v11489 = vunpack.c.l.b16 %v834
    %v11490 = vunpack.c.l.b16 %v835
    %v11491 = vunpack.c.l.b16 %v836
    %v11492 = vunpack.c.l.b16 %v837
    %v11493 = vunpack.c.l.b16 %v838
    %v11494 = vunpack.c.l.b16 %v839
    %v11495 = vunpack.c.l.b16 %v840
    %v11496 = vunpack.c.l.b16 %v841
    %v11497 = vunpack.c.l.b16 %v842
    %v11498 = vunpack.c.l.b16 %v843
    %v11499 = vunpack.c.l.b16 %v844
    %v11500 = vunpack.c.l.b16 %v845
    %v11501 = vunpack.c.l.b16 %v846
    %v11502 = vunpack.c.l.b16 %v847
    %v11503 = vunpack.c.l.b16 %v848
    %v11504 = vunpack.c.l.b16 %v849
    %v11505 = vunpack.c.l.b16 %v850
    %v11506 = vunpack.c.l.b16 %v851
    %v11507 = vunpack.c.l.b16 %v852
    %v11508 = vunpack.c.l.b16 %v853
    %v11509 = vunpack.c.l.b16 %v854
    %v11510 = vunpack.c.l.b16 %v855
    %v11511 = vunpack.c.l.b16 %v856
    %v11512 = vunpack.c.l.b16 %v857
    %v11513 = vunpack.c.l.b16 %v858
    %v11514 = vunpack.c.l.b16 %v859
    %v11515 = vunpack.c.l.b16 %v860
    %v11516 = vunpack.c.l.b16 %v861
    %v11517 = vunpack.c.l.b16 %v862
    %v11518 = vunpack.c.l.b16 %v863
    %v11519 = vpack.c.b16 %v11392, %v11391
    %v11520 = vpack.c.b16 %v11394, %v11393
    %v11521 = vpack.c.b16 %v11396, %v11395
    %v11522 = vpack.c.b16 %v11398, %v11397
    %v11523 = vpack.c.b16 %v11400, %v11399
    %v11524 = vpack.c.b16 %v11402, %v11401
    %v11525 = vpack.c.b16 %v11404, %v11403
    %v11526 = vpack.c.b16 %v11406, %v11405
    %v11527 = vpack.c.b16 %v11408, %v11407
    %v11528 = vpack.c.b16 %v11410, %v11409
    %v11529 = vpack.c.b16 %v11412, %v11411
    %v11530 = vpack.c.b16 %v11414, %v11413
    %v11531 = vpack.c.b16 %v11416, %v11415
    %v11532 = vpack.c.b16 %v11418, %v11417
    %v11533 = vpack.c.b16 %v11420, %v11419
    %v11534 = vpack.c.b16 %v11422, %v11421
    %v11535 = vpack.c.b16 %v11424, %v11423
    %v11536 = vpack.c.b16 %v11426, %v11425
    %v11537 = vpack.c.b16 %v11428, %v11427
    %v11538 = vpack.c.b16 %v11430, %v11429
    %v11539 = vpack.c.b16 %v11432, %v11431
    %v11540 = vpack.c.b16 %v11434, %v11433
    %v11541 = vpack.c.b16 %v11436, %v11435
    %v11542 = vpack.c.b16 %v11438, %v11437
    %v11543 = vpack.c.b16 %v11440, %v11439
    %v11544 = vpack.c.b16 %v11442, %v11441
    %v11545 = vpack.c.b16 %v11444, %v11443
    %v11546 = vpack.c.b16 %v11446, %v11445
    %v11547 = vpack.c.b16 %v11448, %v11447
    %v11548 = vpack.c.b16 %v11450, %v11449
    %v11549 = vpack.c.b16 %v11452, %v11451
    %v11550 = vpack.c.b16 %v11454, %v11453
    %v11551 = vpack.c.b16 %v11456, %v11455
    %v11552 = vpack.c.b16 %v11458, %v11457
    %v11553 = vpack.c.b16 %v11460, %v11459
    %v11554 = vpack.c.b16 %v11462, %v11461
    %v11555 = vpack.c.b16 %v11464, %v11463
    %v11556 = vpack.c.b16 %v11466, %v11465
    %v11557 = vpack.c.b16 %v11468, %v11467
    %v11558 = vpack.c.b16 %v11470, %v11469
    %v11559 = vpack.c.b16 %v11472, %v11471
    %v11560 = vpack.c.b16 %v11474, %v11473
    %v11561 = vpack.c.b16 %v11476, %v11475
    %v11562 = vpack.c.b16 %v11478, %v11477
    %v11563 = vpack.c.b16 %v11480, %v11479
    %v11564 = vpack.c.b16 %v11482, %v11481
    %v11565 = vpack.c.b16 %v11484, %v11483
    %v11566 = vpack.c.b16 %v11486, %v11485
    %v11567 = vpack.c.b16 %v11488, %v11487
    %v11568 = vpack.c.b16 %v11490, %v11489
    %v11569 = vpack.c.b16 %v11492, %v11491
    %v11570 = vpack.c.b16 %v11494, %v11493
    %v11571 = vpack.c.b16 %v11496, %v11495
    %v11572 = vpack.c.b16 %v11498, %v11497
    %v11573 = vpack.c.b16 %v11500, %v11499
    %v11574 = vpack.c.b16 %v11502, %v11501
    %v11575 = vpack.c.b16 %v11504, %v11503
    %v11576 = vpack.c.b16 %v11506, %v11505
    %v11577 = vpack.c.b16 %v11508, %v11507
    %v11578 = vpack.c.b16 %v11510, %v11509
    %v11579 = vpack.c.b16 %v11512, %v11511
    %v11580 = vpack.c.b16 %v11514, %v11513
    %v11581 = vpack.c.b16 %v11516, %v11515
    %v11582 = vpack.c.b16 %v11518, %v11517
    %11647 = vmatpush.bf16.msra.mxu0 %v11526
    %11648 = vmatpush.bf16.msra.mxu0 %v11525
    %11649 = vmatpush.bf16.msra.mxu0 %v11524
    %11650 = vmatpush.bf16.msra.mxu0 %v11523
    %11651 = vmatpush.bf16.msra.mxu0 %v11522
    %11652 = vmatpush.bf16.msra.mxu0 %v11521
    %11653 = vmatpush.bf16.msra.mxu0 %v11520
    %11654 = vmatpush.bf16.msra.mxu0 %v11519
    %11655 = vmatmul.bf16.gmra.mxu0 %v11252
    %v11656 = vpop.f32.mrf.mxu0
    %v11657 = vadd.f32 %v11261, %v11656
    %v11658 = vpop.f32.mrf.mxu0
    %v11659 = vadd.f32 %v11261, %v11658
    %11660 = vdwg.mxu0
    %11661 = vmatpush.bf16.msra.mxu0 %v11534
    %11662 = vmatpush.bf16.msra.mxu0 %v11533
    %11663 = vmatpush.bf16.msra.mxu0 %v11532
    %11664 = vmatpush.bf16.msra.mxu0 %v11531
    %11665 = vmatpush.bf16.msra.mxu0 %v11530
    %11666 = vmatpush.bf16.msra.mxu0 %v11529
    %11667 = vmatpush.bf16.msra.mxu0 %v11528
    %11668 = vmatpush.bf16.msra.mxu0 %v11527
    %11669 = vmatmul.bf16.gmra.mxu0 %v11253
    %v11670 = vpop.f32.mrf.mxu0
    %v11671 = vadd.f32 %v11657, %v11670
    %v11672 = vpop.f32.mrf.mxu0
    %v11673 = vadd.f32 %v11659, %v11672
    %11674 = vdwg.mxu0
    %11675 = vmatpush.bf16.msra.mxu0 %v11542
    %11676 = vmatpush.bf16.msra.mxu0 %v11541
    %11677 = vmatpush.bf16.msra.mxu0 %v11540
    %11678 = vmatpush.bf16.msra.mxu0 %v11539
    %11679 = vmatpush.bf16.msra.mxu0 %v11538
    %11680 = vmatpush.bf16.msra.mxu0 %v11537
    %11681 = vmatpush.bf16.msra.mxu0 %v11536
    %11682 = vmatpush.bf16.msra.mxu0 %v11535
    %11683 = vmatmul.bf16.gmra.mxu0 %v11254
    %v11684 = vpop.f32.mrf.mxu0
    %v11685 = vadd.f32 %v11671, %v11684
    %v11686 = vpop.f32.mrf.mxu0
    %v11687 = vadd.f32 %v11673, %v11686
    %11688 = vdwg.mxu0
    %11689 = vmatpush.bf16.msra.mxu0 %v11550
    %11690 = vmatpush.bf16.msra.mxu0 %v11549
    %11691 = vmatpush.bf16.msra.mxu0 %v11548
    %11692 = vmatpush.bf16.msra.mxu0 %v11547
    %11693 = vmatpush.bf16.msra.mxu0 %v11546
    %11694 = vmatpush.bf16.msra.mxu0 %v11545
    %11695 = vmatpush.bf16.msra.mxu0 %v11544
    %11696 = vmatpush.bf16.msra.mxu0 %v11543
    %11697 = vmatmul.bf16.gmra.mxu0 %v11255
    %v11698 = vpop.f32.mrf.mxu0
    %v11699 = vadd.f32 %v11685, %v11698
    %v11700 = vpop.f32.mrf.mxu0
    %v11701 = vadd.f32 %v11687, %v11700
    %11702 = vdwg.mxu0
    %11703 = vmatpush.bf16.msra.mxu0 %v11558
    %11704 = vmatpush.bf16.msra.mxu0 %v11557
    %11705 = vmatpush.bf16.msra.mxu0 %v11556
    %11706 = vmatpush.bf16.msra.mxu0 %v11555
    %11707 = vmatpush.bf16.msra.mxu0 %v11554
    %11708 = vmatpush.bf16.msra.mxu0 %v11553
    %11709 = vmatpush.bf16.msra.mxu0 %v11552
    %11710 = vmatpush.bf16.msra.mxu0 %v11551
    %11711 = vmatmul.bf16.gmra.mxu0 %v11256
    %v11712 = vpop.f32.mrf.mxu0
    %v11713 = vadd.f32 %v11699, %v11712
    %v11714 = vpop.f32.mrf.mxu0
    %v11715 = vadd.f32 %v11701, %v11714
    %11716 = vdwg.mxu0
    %11717 = vmatpush.bf16.msra.mxu0 %v11566
    %11718 = vmatpush.bf16.msra.mxu0 %v11565
    %11719 = vmatpush.bf16.msra.mxu0 %v11564
    %11720 = vmatpush.bf16.msra.mxu0 %v11563
    %11721 = vmatpush.bf16.msra.mxu0 %v11562
    %11722 = vmatpush.bf16.msra.mxu0 %v11561
    %11723 = vmatpush.bf16.msra.mxu0 %v11560
    %11724 = vmatpush.bf16.msra.mxu0 %v11559
    %11725 = vmatmul.bf16.gmra.mxu0 %v11257
    %v11726 = vpop.f32.mrf.mxu0
    %v11727 = vadd.f32 %v11713, %v11726
    %v11728 = vpop.f32.mrf.mxu0
    %v11729 = vadd.f32 %v11715, %v11728
    %11730 = vdwg.mxu0
    %11731 = vmatpush.bf16.msra.mxu0 %v11574
    %11732 = vmatpush.bf16.msra.mxu0 %v11573
    %11733 = vmatpush.bf16.msra.mxu0 %v11572
    %11734 = vmatpush.bf16.msra.mxu0 %v11571
    %11735 = vmatpush.bf16.msra.mxu0 %v11570
    %11736 = vmatpush.bf16.msra.mxu0 %v11569
    %11737 = vmatpush.bf16.msra.mxu0 %v11568
    %11738 = vmatpush.bf16.msra.mxu0 %v11567
    %11739 = vmatmul.bf16.gmra.mxu0 %v11258
    %v11740 = vpop.f32.mrf.mxu0
    %v11741 = vadd.f32 %v11727, %v11740
    %v11742 = vpop.f32.mrf.mxu0
    %v11743 = vadd.f32 %v11729, %v11742
    %11744 = vdwg.mxu0
    %11745 = vmatpush.bf16.msra.mxu0 %v11582
    %11746 = vmatpush.bf16.msra.mxu0 %v11581
    %11747 = vmatpush.bf16.msra.mxu0 %v11580
    %11748 = vmatpush.bf16.msra.mxu0 %v11579
    %11749 = vmatpush.bf16.msra.mxu0 %v11578
    %11750 = vmatpush.bf16.msra.mxu0 %v11577
    %11751 = vmatpush.bf16.msra.mxu0 %v11576
    %11752 = vmatpush.bf16.msra.mxu0 %v11575
    %11753 = vmatmul.bf16.gmra.mxu0 %v11259
    %v11754 = vpop.f32.mrf.mxu0
    %v11755 = vadd.f32 %v11741, %v11754
    %v11756 = vpop.f32.mrf.mxu0
    %v11757 = vadd.f32 %v11743, %v11756
    %11758 = vdwg.mxu0
    %v11759 = vtanh.pop %v11755
    %v11760 = vtanh.pop %v11757
    %v11761 = vsel %vm6654, %v11759, %v11755
    %v11762 = vsel %vm6654, %v11760, %v11757
    %11765 = vrot.lane.b32.xlu0 %v11761, 64
    %v11766 = vpop.permute.xlu0 %11765
    %11767 = vrot.lane.b32.xlu0 %v11762, 64
    %v11768 = vpop.permute.xlu0 %11767
    %v11771 = vsel %vm6820, %v6657, %v11766
    %v11772 = vsel %vm6820, %v6658, %v11768
    %11773 = vst [vmem:[#allocation35] sm:$0xff] %v11771
    %11774 = vst [vmem:[#allocation35 + $0x8] sm:$0xff] %v11772
    // Predicated region
    $region174: #{tpu_custom_call.1} parent=1 // pred_check
      _
    $region175: #{tpu_custom_call.1} parent=1 // pred_check_branch
      %11776 = sbr.rel (0) target = $region177
    $region176: #{tpu_custom_call.1} parent=1 // pred_region
      %11778 = vsyncadd [#allocation7], 0
      %s11779 = sshll.u32 [#allocation35], 4
      %s11780 = int_to_ptr.vmem [resolvable:$true] %s11779
      %s11781 = sshll.u32 %s24, 4
      %s11782 = int_to_ptr.hbm [resolvable:$true] %s11781
      %11787 = dma.vmem_to_hbm [thread:$0]  %s11780, 256, %s11782, [#allocation7], 128, 128, 8
    $region177: #{tpu_custom_call.1} parent=1 // pred_fallthru
      _
    // Predicated region
    $region178: #{tpu_custom_call.1} parent=1 // pred_check
      _
    $region179: #{tpu_custom_call.1} parent=1 // pred_check_branch
      %11789 = sbr.rel (0) target = $region181
    $region180: #{tpu_custom_call.1} parent=1 // pred_region
      %11791 = dma.done [#allocation7], 256
    $region181: #{tpu_custom_call.1} parent=1 // pred_fallthru
      _
    %11792 = vsyncpa [#allocation6], 1
    %11793 = vsyncpa [#allocation9], 1
    %11794 = vsyncpa [#allocation12], 1
    %11795 = vsyncpa [#allocation15], 1
    %11796 = vsyncpa [#allocation18], 1
    %11797 = vsyncpa [#allocation21], 1
    %11798 = vsyncpa [#allocation24], 1
    %11799 = vsyncpa [#allocation27], 1
    %11800 = vsyncpa [#allocation30], 1
    %11801 = vsyncpa [#allocation33], 1
    %11802 = vsyncpa [#allocation7], 1
  %11803 = vsyncmov [#allocation4]
  %s11804 = vpop.sfrf %11803
  %p11805 = scmp.eq.s32.totalorder %s11804, 0
  %p11806 = pneg %p11805
  %11808 = shalt.err (%p11806)
  %s11809 = scalar_lea.sflag [#allocation4], 1
  %11810 = vsyncmov %s11809
  %s11811 = vpop.sfrf %11810
  %p11812 = scmp.eq.s32.totalorder %s11811, 0
  %p11813 = pneg %p11812
  %11815 = shalt.err (%p11813)

</llo_original>
